<compile_context>
chip_gen: v7x
topology: tpu7x:2x2x1
jax: 0.10.0
libtpu: 0.0.40
codegen_flags: <defaults>
</compile_context>

<pallas_src>
import functools
import math

import jax
import jax.numpy as jnp
from jax.experimental import pallas as pl
from jax.experimental.pallas import tpu as pltpu


# --------------------------------------------------------------------------
# Pallas kernel: one invocation == one full GT layer (all heads fused).
# --------------------------------------------------------------------------
def gt_layer_kernel(x_ref, wqkv_ref, wqet_ref, wep_ref, ef_ref, bias_ref,
                    wres_ref, o_ref, *, num_heads, head_dim, scale):
    H, Dh = num_heads, head_dim
    HD = H * Dh

    x = x_ref[...]                          # [N, Din]   bf16
    ef = ef_ref[...]                        # [N, N, P]  bf16
    bias = bias_ref[...]                    # [N, N]     f32 additive mask
    N = x.shape[0]
    P = ef.shape[-1]

    # Fused QKV projection for all heads: one lane-dense MXU matmul.
    qkv = jnp.dot(x, wqkv_ref[...],
                  preferred_element_type=jnp.float32).astype(jnp.bfloat16)
    q = qkv[:, 0 * HD:1 * HD]               # [N, H*Dh]  head-concat layout
    k = qkv[:, 1 * HD:2 * HD]
    v = qkv[:, 2 * HD:3 * HD]

    # Fold We out of the N^2 edge path: qwe_h = q_h @ We_h^T for all heads at
    # once via a block-diagonal weight (single 2-D MXU matmul).
    qwe = jnp.dot(q, wqet_ref[...],
                  preferred_element_type=jnp.float32).astype(jnp.bfloat16)
    qwe3 = qwe.reshape(N, H, P)             # [N, H, P]

    # Edge score term for all heads on the MXU (batched over query rows i):
    #   s_edge[i, h, j] = sum_p ef[i, j, p] * qwe3[i, h, p]
    s_edge = jnp.einsum("ihp,ijp->ihj", qwe3, ef,
                        preferred_element_type=jnp.float32)    # [N, H, N]

    alphas = []
    head_outs = []
    for h in range(H):                      # static unroll; H is small
        qh = q[:, h * Dh:(h + 1) * Dh]
        kh = k[:, h * Dh:(h + 1) * Dh]
        vh = v[:, h * Dh:(h + 1) * Dh]
        s_nn = jax.lax.dot_general(qh, kh, (((1,), (1,)), ((), ())),
                                   preferred_element_type=jnp.float32)  # [N,N]
        scores = (s_nn + s_edge[:, h, :]) * scale + bias
        m = jnp.max(scores, axis=-1, keepdims=True)
        p = jnp.exp(scores - m)
        denom = jnp.sum(p, axis=-1, keepdims=True)
        alpha = p * pl.reciprocal(denom, approx=True)    # EUP, not VALU divide
        head_outs.append(
            jnp.dot(alpha.astype(jnp.bfloat16), vh,
                    preferred_element_type=jnp.float32))               # [N,Dh]
        alphas.append(alpha)

    out_v = jnp.concatenate(head_outs, axis=-1)                    # [N, H*Dh]

    # Edge aggregation for all heads on the MXU (batched over rows i):
    #   ae[i, h, p] = sum_j alpha_h[i, j] * ef[i, j, p]
    alpha_all = jnp.concatenate([a[:, None, :] for a in alphas],
                                axis=1).astype(jnp.bfloat16)       # [N, H, N]
    ae = jnp.einsum("ihj,ijp->ihp", alpha_all, ef,
                    preferred_element_type=jnp.float32)            # [N, H, P]
    out_e = jnp.dot(ae.reshape(N, H * P).astype(jnp.bfloat16), wep_ref[...],
                    preferred_element_type=jnp.float32)            # [N, H*Dh]

    # Residual (projection, or identity matrix when dims match) + ELU, fused.
    res = jnp.dot(x, wres_ref[...], preferred_element_type=jnp.float32)
    out = out_v + out_e + res
    out = jnp.where(out > 0, out, jnp.exp(jnp.minimum(out, 0.0)) - 1.0)  # ELU
    o_ref[...] = out.astype(o_ref.dtype)


# --------------------------------------------------------------------------
# One GT layer wrapper: single pallas_call, lane-dense [N, H*Dh] output.
# --------------------------------------------------------------------------
def gt_layer(x, bias, edge_feats, params):
    w_qkv = params["w_qkv"].astype(jnp.bfloat16)
    w_qet = params["w_qet"].astype(jnp.bfloat16)
    w_ep = params["w_ep"].astype(jnp.bfloat16)
    w_res = params["w_res"].astype(jnp.bfloat16)

    N, din = x.shape
    HD = w_qkv.shape[1] // 3
    P = edge_feats.shape[-1]
    H = w_qet.shape[1] // P
    Dh = HD // H
    scale = 1.0 / math.sqrt(Dh)

    kernel = functools.partial(gt_layer_kernel, num_heads=H, head_dim=Dh,
                               scale=scale)

    # TODO(synk): for large N on v7x, tile the neighbor axis (online softmax)
    #             instead of holding the full [N, N, P] block in VMEM.
    return pl.pallas_call(
        kernel,
        out_shape=jax.ShapeDtypeStruct((N, HD), jnp.float32),
        grid=(1,),
        in_specs=[
            pl.BlockSpec((N, din), lambda i: (0, 0)),          # x
            pl.BlockSpec((din, 3 * HD), lambda i: (0, 0)),     # W_qkv (stacked)
            pl.BlockSpec((HD, H * P), lambda i: (0, 0)),       # blkdiag We^T
            pl.BlockSpec((H * P, HD), lambda i: (0, 0)),       # blkdiag We
            pl.BlockSpec((N, N, P), lambda i: (0, 0, 0)),      # edge feats
            pl.BlockSpec((N, N), lambda i: (0, 0)),            # additive mask
            pl.BlockSpec((din, HD), lambda i: (0, 0)),         # W_res
        ],
        out_specs=pl.BlockSpec((N, HD), lambda i: (0, 0)),
        compiler_params=pltpu.CompilerParams(
            dimension_semantics=("arbitrary",)),
    )(x.astype(jnp.bfloat16), w_qkv, w_qet, w_ep, edge_feats, bias, w_res)


# --------------------------------------------------------------------------
# Full model: GTRANRel_feat forward.
# --------------------------------------------------------------------------
def gtran_rel_feat_forward(inputs, edge_types, adj_mask, rel_emb, layer_params):
    # edge_feats = self.rel_emb(edge_types)  (embedding lookup, XLA glue).
    edge_feats = jnp.take(rel_emb, edge_types, axis=0).astype(jnp.bfloat16)
    # Additive attention mask: 0 on edges, -1e30 elsewhere (layer/head invariant).
    bias = (adj_mask - 1.0) * 1e30
    h = inputs
    for params in layer_params:
        h = gt_layer(h, bias, edge_feats, params)
    return h


# --------------------------------------------------------------------------
# Parameter init: per-head weights are generated, then fused into the
# stacked / block-diagonal forms consumed by the kernel.
# --------------------------------------------------------------------------
def _heads_concat(w):
    # [H, Din, Dh] -> [Din, H*Dh] with head h in column block h.
    H, din, dh = w.shape
    return jnp.transpose(w, (1, 0, 2)).reshape(din, H * dh)


def _block_diag(blocks):
    rows = sum(b.shape[0] for b in blocks)
    cols = sum(b.shape[1] for b in blocks)
    out = jnp.zeros((rows, cols), blocks[0].dtype)
    r = c = 0
    for b in blocks:
        out = out.at[r:r + b.shape[0], c:c + b.shape[1]].set(b)
        r += b.shape[0]
        c += b.shape[1]
    return out


def init_params(key, num_layers, heads, in_dim, num_hidden, pred_dim, rel_num):
    keys = jax.random.split(key, num_layers * 5 + 1)
    rel_emb = jax.random.normal(keys[-1], (rel_num, pred_dim),
                                jnp.float32) * 0.1
    layer_params = []
    din = in_dim
    for l in range(num_layers):
        H = heads[l]
        k0, k1, k2, k3, k4 = keys[5 * l:5 * l + 5]
        s_in = 1.0 / math.sqrt(din)
        s_p = 1.0 / math.sqrt(pred_dim)
        dout = H * num_hidden

        wq = jax.random.normal(k0, (H, din, num_hidden), jnp.float32) * s_in
        wk = jax.random.normal(k1, (H, din, num_hidden), jnp.float32) * s_in
        wv = jax.random.normal(k2, (H, din, num_hidden), jnp.float32) * s_in
        we = jax.random.normal(k3, (H, pred_dim, num_hidden), jnp.float32) * s_p
        if din != dout:
            w_res = jax.random.normal(k4, (din, dout), jnp.float32) * s_in
        else:
            w_res = jnp.eye(din, dtype=jnp.float32)   # identity residual

        w_qkv = jnp.concatenate(
            [_heads_concat(wq), _heads_concat(wk), _heads_concat(wv)], axis=1)
        w_qet = _block_diag([we[h].T for h in range(H)])   # [H*Dh, H*P]
        w_ep = _block_diag([we[h] for h in range(H)])      # [H*P, H*Dh]

        layer_params.append(dict(w_qkv=w_qkv, w_qet=w_qet, w_ep=w_ep,
                                 w_res=w_res))
        din = dout
    return rel_emb, layer_params


if __name__ == "__main__":
    # Small, module-consistent shapes.
    N = 16            # number of graph nodes
    in_dim = 32
    num_hidden = 16
    heads = [4, 4]
    num_layers = 2
    pred_dim = 8
    rel_num = 5

    key = jax.random.PRNGKey(0)
    k_x, k_adj, k_et, k_par = jax.random.split(key, 4)

    inputs = jax.random.normal(k_x, (N, in_dim), jnp.float32)
    # Dense adjacency mask with guaranteed self-loops (the DGL graph `g`).
    adj = (jax.random.uniform(k_adj, (N, N)) < 0.4).astype(jnp.float32)
    adj = jnp.maximum(adj, jnp.eye(N, dtype=jnp.float32))
    # Edge (relation) types, one per (i, j) pair.
    edge_types = jax.random.randint(k_et, (N, N), 0, rel_num, jnp.int32)

    rel_emb, layer_params = init_params(
        k_par, num_layers, heads, in_dim, num_hidden, pred_dim, rel_num)

    fwd = jax.jit(gtran_rel_feat_forward)
    out = fwd(inputs, edge_types, adj, rel_emb, layer_params)
    out = jax.block_until_ready(out)

    assert out.shape == (N, heads[-1] * num_hidden)
    assert bool(jnp.all(jnp.isfinite(out)))
    print("KERNEL_OK")
</pallas_src>

<mosaic_0001>
module attributes {stable_mosaic.version = 11 : i64} {
  func.func @gt_layer_kernel(%arg0: i32, %arg1: memref<16x32xbf16, #tpu.memory_space<vmem>>, %arg2: memref<32x192xbf16, #tpu.memory_space<vmem>>, %arg3: memref<64x32xbf16, #tpu.memory_space<vmem>>, %arg4: memref<32x64xbf16, #tpu.memory_space<vmem>>, %arg5: memref<16x16x8xbf16, #tpu.memory_space<vmem>>, %arg6: memref<16x16xf32, #tpu.memory_space<vmem>>, %arg7: memref<32x64xbf16, #tpu.memory_space<vmem>>, %arg8: memref<16x64xf32, #tpu.memory_space<vmem>>) attributes {dimension_semantics = [#tpu.dimension_semantics<arbitrary>], iteration_bounds = array<i64: 1>, scalar_prefetch = 0 : i64, scratch_operands = 0 : i64, tpu.core_type = #tpu.core_type<tc>, window_params = [{pipeline_mode = #tpu.pipeline_mode<synchronous>, transform_indices = @transform_0, window_bounds = array<i64: 16, 32>}, {pipeline_mode = #tpu.pipeline_mode<synchronous>, transform_indices = @transform_1, window_bounds = array<i64: 32, 192>}, {pipeline_mode = #tpu.pipeline_mode<synchronous>, transform_indices = @transform_2, window_bounds = array<i64: 64, 32>}, {pipeline_mode = #tpu.pipeline_mode<synchronous>, transform_indices = @transform_3, window_bounds = array<i64: 32, 64>}, {pipeline_mode = #tpu.pipeline_mode<synchronous>, transform_indices = @transform_4, window_bounds = array<i64: 16, 16, 8>}, {pipeline_mode = #tpu.pipeline_mode<synchronous>, transform_indices = @transform_5, window_bounds = array<i64: 16, 16>}, {pipeline_mode = #tpu.pipeline_mode<synchronous>, transform_indices = @transform_6, window_bounds = array<i64: 32, 64>}, {pipeline_mode = #tpu.pipeline_mode<synchronous>, transform_indices = @transform_7, window_bounds = array<i64: 16, 64>}]} {
    %c0 = arith.constant 0 : index
    %c0_0 = arith.constant 0 : index
    %0 = vector.load %arg1[%c0, %c0_0] : memref<16x32xbf16, #tpu.memory_space<vmem>>, vector<16x32xbf16>
    %c0_1 = arith.constant 0 : index
    %c0_2 = arith.constant 0 : index
    %c0_3 = arith.constant 0 : index
    %1 = vector.load %arg5[%c0_1, %c0_2, %c0_3] : memref<16x16x8xbf16, #tpu.memory_space<vmem>>, vector<16x16x8xbf16>
    %c0_4 = arith.constant 0 : index
    %c0_5 = arith.constant 0 : index
    %2 = vector.load %arg6[%c0_4, %c0_5] : memref<16x16xf32, #tpu.memory_space<vmem>>, vector<16x16xf32>
    %c0_6 = arith.constant 0 : index
    %c0_7 = arith.constant 0 : index
    %3 = vector.load %arg2[%c0_6, %c0_7] : memref<32x192xbf16, #tpu.memory_space<vmem>>, vector<32x192xbf16>
    %cst = arith.constant dense<0.000000e+00> : vector<16x192xf32>
    %4 = tpu.matmul %0, %3, %cst {dimension_numbers = #tpu.dot_dimension_numbers<[1], [0], [0], [1], [0, 0, 1, 1], [], []>} : vector<16x32xbf16>, vector<32x192xbf16>, vector<16x192xf32> -> vector<16x192xf32>
    %5 = arith.truncf %4 : vector<16x192xf32> to vector<16x192xbf16>
    %6 = vector.extract_strided_slice %5 {offsets = [0, 0], sizes = [16, 64], strides = [1, 1]} : vector<16x192xbf16> to vector<16x64xbf16>
    %7 = vector.extract_strided_slice %5 {offsets = [0, 64], sizes = [16, 64], strides = [1, 1]} : vector<16x192xbf16> to vector<16x64xbf16>
    %8 = vector.extract_strided_slice %5 {offsets = [0, 128], sizes = [16, 64], strides = [1, 1]} : vector<16x192xbf16> to vector<16x64xbf16>
    %c0_8 = arith.constant 0 : index
    %c0_9 = arith.constant 0 : index
    %9 = vector.load %arg3[%c0_8, %c0_9] : memref<64x32xbf16, #tpu.memory_space<vmem>>, vector<64x32xbf16>
    %cst_10 = arith.constant dense<0.000000e+00> : vector<16x32xf32>
    %10 = tpu.matmul %6, %9, %cst_10 {dimension_numbers = #tpu.dot_dimension_numbers<[1], [0], [0], [1], [0, 0, 1, 1], [], []>} : vector<16x64xbf16>, vector<64x32xbf16>, vector<16x32xf32> -> vector<16x32xf32>
    %11 = arith.truncf %10 : vector<16x32xf32> to vector<16x32xbf16>
    %12 = vector.shape_cast %11 : vector<16x32xbf16> to vector<16x4x8xbf16>
    "tpu.trace_start"() <{level = 10 : i32, message = "ihp,ijp->ihj"}> : () -> ()
    %cst_11 = arith.constant dense<0.000000e+00> : vector<16x4x16xf32>
    %13 = tpu.matmul %12, %1, %cst_11 {dimension_numbers = #tpu.dot_dimension_numbers<[2], [2], [1], [1], [0, 0, 0, 1, 1, 1], [0], [0]>} : vector<16x4x8xbf16>, vector<16x16x8xbf16>, vector<16x4x16xf32> -> vector<16x4x16xf32>
    "tpu.trace_stop"() : () -> ()
    %14 = vector.extract_strided_slice %6 {offsets = [0, 0], sizes = [16, 16], strides = [1, 1]} : vector<16x64xbf16> to vector<16x16xbf16>
    %15 = vector.extract_strided_slice %7 {offsets = [0, 0], sizes = [16, 16], strides = [1, 1]} : vector<16x64xbf16> to vector<16x16xbf16>
    %16 = vector.extract_strided_slice %8 {offsets = [0, 0], sizes = [16, 16], strides = [1, 1]} : vector<16x64xbf16> to vector<16x16xbf16>
    %cst_12 = arith.constant dense<0.000000e+00> : vector<16x16xf32>
    %17 = tpu.matmul %14, %15, %cst_12 {dimension_numbers = #tpu.dot_dimension_numbers<[1], [1], [0], [0], [0, 0, 1, 0], [], []>} : vector<16x16xbf16>, vector<16x16xbf16>, vector<16x16xf32> -> vector<16x16xf32>
    %18 = vector.extract_strided_slice %13 {offsets = [0, 0, 0], sizes = [16, 1, 16], strides = [1, 1, 1]} : vector<16x4x16xf32> to vector<16x1x16xf32>
    %19 = vector.shape_cast %18 : vector<16x1x16xf32> to vector<16x16xf32>
    %20 = arith.addf %17, %19 : vector<16x16xf32>
    %cst_13 = arith.constant 2.500000e-01 : f32
    %21 = vector.broadcast %cst_13 : f32 to vector<16x16xf32>
    %22 = arith.mulf %20, %21 : vector<16x16xf32>
    %23 = arith.addf %22, %2 : vector<16x16xf32>
    %cst_14 = arith.constant dense<0xFF800000> : vector<16xf32>
    %24 = vector.multi_reduction <maximumf>, %23, %cst_14 [1] : vector<16x16xf32> to vector<16xf32>
    %25 = vector.shape_cast %24 : vector<16xf32> to vector<16x1xf32>
    %26 = vector.broadcast %25 : vector<16x1xf32> to vector<16x16xf32>
    %27 = arith.subf %23, %26 : vector<16x16xf32>
    %28 = math.exp %27 : vector<16x16xf32>
    %cst_15 = arith.constant dense<0.000000e+00> : vector<16xf32>
    %29 = vector.multi_reduction <add>, %28, %cst_15 [1] : vector<16x16xf32> to vector<16xf32>
    %30 = vector.shape_cast %29 : vector<16xf32> to vector<16x1xf32>
    %31 = tpu.reciprocal %30 {approx = true} : vector<16x1xf32> -> vector<16x1xf32>
    %32 = vector.broadcast %31 : vector<16x1xf32> to vector<16x16xf32>
    %33 = arith.mulf %28, %32 : vector<16x16xf32>
    %34 = arith.truncf %33 : vector<16x16xf32> to vector<16x16xbf16>
    %cst_16 = arith.constant dense<0.000000e+00> : vector<16x16xf32>
    %35 = tpu.matmul %34, %16, %cst_16 {dimension_numbers = #tpu.dot_dimension_numbers<[1], [0], [0], [1], [0, 0, 1, 1], [], []>} : vector<16x16xbf16>, vector<16x16xbf16>, vector<16x16xf32> -> vector<16x16xf32>
    %36 = vector.extract_strided_slice %6 {offsets = [0, 16], sizes = [16, 16], strides = [1, 1]} : vector<16x64xbf16> to vector<16x16xbf16>
    %37 = vector.extract_strided_slice %7 {offsets = [0, 16], sizes = [16, 16], strides = [1, 1]} : vector<16x64xbf16> to vector<16x16xbf16>
    %38 = vector.extract_strided_slice %8 {offsets = [0, 16], sizes = [16, 16], strides = [1, 1]} : vector<16x64xbf16> to vector<16x16xbf16>
    %cst_17 = arith.constant dense<0.000000e+00> : vector<16x16xf32>
    %39 = tpu.matmul %36, %37, %cst_17 {dimension_numbers = #tpu.dot_dimension_numbers<[1], [1], [0], [0], [0, 0, 1, 0], [], []>} : vector<16x16xbf16>, vector<16x16xbf16>, vector<16x16xf32> -> vector<16x16xf32>
    %40 = vector.extract_strided_slice %13 {offsets = [0, 1, 0], sizes = [16, 1, 16], strides = [1, 1, 1]} : vector<16x4x16xf32> to vector<16x1x16xf32>
    %41 = vector.shape_cast %40 : vector<16x1x16xf32> to vector<16x16xf32>
    %42 = arith.addf %39, %41 : vector<16x16xf32>
    %cst_18 = arith.constant 2.500000e-01 : f32
    %43 = vector.broadcast %cst_18 : f32 to vector<16x16xf32>
    %44 = arith.mulf %42, %43 : vector<16x16xf32>
    %45 = arith.addf %44, %2 : vector<16x16xf32>
    %cst_19 = arith.constant dense<0xFF800000> : vector<16xf32>
    %46 = vector.multi_reduction <maximumf>, %45, %cst_19 [1] : vector<16x16xf32> to vector<16xf32>
    %47 = vector.shape_cast %46 : vector<16xf32> to vector<16x1xf32>
    %48 = vector.broadcast %47 : vector<16x1xf32> to vector<16x16xf32>
    %49 = arith.subf %45, %48 : vector<16x16xf32>
    %50 = math.exp %49 : vector<16x16xf32>
    %cst_20 = arith.constant dense<0.000000e+00> : vector<16xf32>
    %51 = vector.multi_reduction <add>, %50, %cst_20 [1] : vector<16x16xf32> to vector<16xf32>
    %52 = vector.shape_cast %51 : vector<16xf32> to vector<16x1xf32>
    %53 = tpu.reciprocal %52 {approx = true} : vector<16x1xf32> -> vector<16x1xf32>
    %54 = vector.broadcast %53 : vector<16x1xf32> to vector<16x16xf32>
    %55 = arith.mulf %50, %54 : vector<16x16xf32>
    %56 = arith.truncf %55 : vector<16x16xf32> to vector<16x16xbf16>
    %cst_21 = arith.constant dense<0.000000e+00> : vector<16x16xf32>
    %57 = tpu.matmul %56, %38, %cst_21 {dimension_numbers = #tpu.dot_dimension_numbers<[1], [0], [0], [1], [0, 0, 1, 1], [], []>} : vector<16x16xbf16>, vector<16x16xbf16>, vector<16x16xf32> -> vector<16x16xf32>
    %58 = vector.extract_strided_slice %6 {offsets = [0, 32], sizes = [16, 16], strides = [1, 1]} : vector<16x64xbf16> to vector<16x16xbf16>
    %59 = vector.extract_strided_slice %7 {offsets = [0, 32], sizes = [16, 16], strides = [1, 1]} : vector<16x64xbf16> to vector<16x16xbf16>
    %60 = vector.extract_strided_slice %8 {offsets = [0, 32], sizes = [16, 16], strides = [1, 1]} : vector<16x64xbf16> to vector<16x16xbf16>
    %cst_22 = arith.constant dense<0.000000e+00> : vector<16x16xf32>
    %61 = tpu.matmul %58, %59, %cst_22 {dimension_numbers = #tpu.dot_dimension_numbers<[1], [1], [0], [0], [0, 0, 1, 0], [], []>} : vector<16x16xbf16>, vector<16x16xbf16>, vector<16x16xf32> -> vector<16x16xf32>
    %62 = vector.extract_strided_slice %13 {offsets = [0, 2, 0], sizes = [16, 1, 16], strides = [1, 1, 1]} : vector<16x4x16xf32> to vector<16x1x16xf32>
    %63 = vector.shape_cast %62 : vector<16x1x16xf32> to vector<16x16xf32>
    %64 = arith.addf %61, %63 : vector<16x16xf32>
    %cst_23 = arith.constant 2.500000e-01 : f32
    %65 = vector.broadcast %cst_23 : f32 to vector<16x16xf32>
    %66 = arith.mulf %64, %65 : vector<16x16xf32>
    %67 = arith.addf %66, %2 : vector<16x16xf32>
    %cst_24 = arith.constant dense<0xFF800000> : vector<16xf32>
    %68 = vector.multi_reduction <maximumf>, %67, %cst_24 [1] : vector<16x16xf32> to vector<16xf32>
    %69 = vector.shape_cast %68 : vector<16xf32> to vector<16x1xf32>
    %70 = vector.broadcast %69 : vector<16x1xf32> to vector<16x16xf32>
    %71 = arith.subf %67, %70 : vector<16x16xf32>
    %72 = math.exp %71 : vector<16x16xf32>
    %cst_25 = arith.constant dense<0.000000e+00> : vector<16xf32>
    %73 = vector.multi_reduction <add>, %72, %cst_25 [1] : vector<16x16xf32> to vector<16xf32>
    %74 = vector.shape_cast %73 : vector<16xf32> to vector<16x1xf32>
    %75 = tpu.reciprocal %74 {approx = true} : vector<16x1xf32> -> vector<16x1xf32>
    %76 = vector.broadcast %75 : vector<16x1xf32> to vector<16x16xf32>
    %77 = arith.mulf %72, %76 : vector<16x16xf32>
    %78 = arith.truncf %77 : vector<16x16xf32> to vector<16x16xbf16>
    %cst_26 = arith.constant dense<0.000000e+00> : vector<16x16xf32>
    %79 = tpu.matmul %78, %60, %cst_26 {dimension_numbers = #tpu.dot_dimension_numbers<[1], [0], [0], [1], [0, 0, 1, 1], [], []>} : vector<16x16xbf16>, vector<16x16xbf16>, vector<16x16xf32> -> vector<16x16xf32>
    %80 = vector.extract_strided_slice %6 {offsets = [0, 48], sizes = [16, 16], strides = [1, 1]} : vector<16x64xbf16> to vector<16x16xbf16>
    %81 = vector.extract_strided_slice %7 {offsets = [0, 48], sizes = [16, 16], strides = [1, 1]} : vector<16x64xbf16> to vector<16x16xbf16>
    %82 = vector.extract_strided_slice %8 {offsets = [0, 48], sizes = [16, 16], strides = [1, 1]} : vector<16x64xbf16> to vector<16x16xbf16>
    %cst_27 = arith.constant dense<0.000000e+00> : vector<16x16xf32>
    %83 = tpu.matmul %80, %81, %cst_27 {dimension_numbers = #tpu.dot_dimension_numbers<[1], [1], [0], [0], [0, 0, 1, 0], [], []>} : vector<16x16xbf16>, vector<16x16xbf16>, vector<16x16xf32> -> vector<16x16xf32>
    %84 = vector.extract_strided_slice %13 {offsets = [0, 3, 0], sizes = [16, 1, 16], strides = [1, 1, 1]} : vector<16x4x16xf32> to vector<16x1x16xf32>
    %85 = vector.shape_cast %84 : vector<16x1x16xf32> to vector<16x16xf32>
    %86 = arith.addf %83, %85 : vector<16x16xf32>
    %cst_28 = arith.constant 2.500000e-01 : f32
    %87 = vector.broadcast %cst_28 : f32 to vector<16x16xf32>
    %88 = arith.mulf %86, %87 : vector<16x16xf32>
    %89 = arith.addf %88, %2 : vector<16x16xf32>
    %cst_29 = arith.constant dense<0xFF800000> : vector<16xf32>
    %90 = vector.multi_reduction <maximumf>, %89, %cst_29 [1] : vector<16x16xf32> to vector<16xf32>
    %91 = vector.shape_cast %90 : vector<16xf32> to vector<16x1xf32>
    %92 = vector.broadcast %91 : vector<16x1xf32> to vector<16x16xf32>
    %93 = arith.subf %89, %92 : vector<16x16xf32>
    %94 = math.exp %93 : vector<16x16xf32>
    %cst_30 = arith.constant dense<0.000000e+00> : vector<16xf32>
    %95 = vector.multi_reduction <add>, %94, %cst_30 [1] : vector<16x16xf32> to vector<16xf32>
    %96 = vector.shape_cast %95 : vector<16xf32> to vector<16x1xf32>
    %97 = tpu.reciprocal %96 {approx = true} : vector<16x1xf32> -> vector<16x1xf32>
    %98 = vector.broadcast %97 : vector<16x1xf32> to vector<16x16xf32>
    %99 = arith.mulf %94, %98 : vector<16x16xf32>
    %100 = arith.truncf %99 : vector<16x16xf32> to vector<16x16xbf16>
    %cst_31 = arith.constant dense<0.000000e+00> : vector<16x16xf32>
    %101 = tpu.matmul %100, %82, %cst_31 {dimension_numbers = #tpu.dot_dimension_numbers<[1], [0], [0], [1], [0, 0, 1, 1], [], []>} : vector<16x16xbf16>, vector<16x16xbf16>, vector<16x16xf32> -> vector<16x16xf32>
    %102 = tpu.concatenate %35, %57, %79, %101 in 1 : vector<16x16xf32>, vector<16x16xf32>, vector<16x16xf32>, vector<16x16xf32> -> vector<16x64xf32>
    %103 = vector.shape_cast %33 : vector<16x16xf32> to vector<16x1x16xf32>
    %104 = vector.shape_cast %55 : vector<16x16xf32> to vector<16x1x16xf32>
    %105 = vector.shape_cast %77 : vector<16x16xf32> to vector<16x1x16xf32>
    %106 = vector.shape_cast %99 : vector<16x16xf32> to vector<16x1x16xf32>
    %107 = tpu.concatenate %103, %104, %105, %106 in 1 : vector<16x1x16xf32>, vector<16x1x16xf32>, vector<16x1x16xf32>, vector<16x1x16xf32> -> vector<16x4x16xf32>
    %108 = arith.truncf %107 : vector<16x4x16xf32> to vector<16x4x16xbf16>
    "tpu.trace_start"() <{level = 10 : i32, message = "ihj,ijp->ihp"}> : () -> ()
    %cst_32 = arith.constant dense<0.000000e+00> : vector<16x4x8xf32>
    %109 = tpu.matmul %108, %1, %cst_32 {dimension_numbers = #tpu.dot_dimension_numbers<[2], [1], [1], [2], [0, 0, 0, 1, 1, 2], [0], [0]>} : vector<16x4x16xbf16>, vector<16x16x8xbf16>, vector<16x4x8xf32> -> vector<16x4x8xf32>
    "tpu.trace_stop"() : () -> ()
    %110 = vector.shape_cast %109 : vector<16x4x8xf32> to vector<16x32xf32>
    %111 = arith.truncf %110 : vector<16x32xf32> to vector<16x32xbf16>
    %c0_33 = arith.constant 0 : index
    %c0_34 = arith.constant 0 : index
    %112 = vector.load %arg4[%c0_33, %c0_34] : memref<32x64xbf16, #tpu.memory_space<vmem>>, vector<32x64xbf16>
    %cst_35 = arith.constant dense<0.000000e+00> : vector<16x64xf32>
    %113 = tpu.matmul %111, %112, %cst_35 {dimension_numbers = #tpu.dot_dimension_numbers<[1], [0], [0], [1], [0, 0, 1, 1], [], []>} : vector<16x32xbf16>, vector<32x64xbf16>, vector<16x64xf32> -> vector<16x64xf32>
    %c0_36 = arith.constant 0 : index
    %c0_37 = arith.constant 0 : index
    %114 = vector.load %arg7[%c0_36, %c0_37] : memref<32x64xbf16, #tpu.memory_space<vmem>>, vector<32x64xbf16>
    %cst_38 = arith.constant dense<0.000000e+00> : vector<16x64xf32>
    %115 = tpu.matmul %0, %114, %cst_38 {dimension_numbers = #tpu.dot_dimension_numbers<[1], [0], [0], [1], [0, 0, 1, 1], [], []>} : vector<16x32xbf16>, vector<32x64xbf16>, vector<16x64xf32> -> vector<16x64xf32>
    %116 = arith.addf %102, %113 : vector<16x64xf32>
    %117 = arith.addf %116, %115 : vector<16x64xf32>
    %cst_39 = arith.constant 0.000000e+00 : f32
    %118 = vector.broadcast %cst_39 : f32 to vector<16x64xf32>
    %119 = arith.cmpf ogt, %117, %118 : vector<16x64xf32>
    %cst_40 = arith.constant 0.000000e+00 : f32
    %120 = vector.broadcast %cst_40 : f32 to vector<16x64xf32>
    %121 = arith.minimumf %117, %120 : vector<16x64xf32>
    %122 = math.exp %121 : vector<16x64xf32>
    %cst_41 = arith.constant 1.000000e+00 : f32
    %123 = vector.broadcast %cst_41 : f32 to vector<16x64xf32>
    %124 = arith.subf %122, %123 : vector<16x64xf32>
    %125 = arith.select %119, %117, %124 : vector<16x64xi1>, vector<16x64xf32>
    %c0_42 = arith.constant 0 : index
    %c0_43 = arith.constant 0 : index
    %126 = vector.load %arg8[%c0_42, %c0_43] : memref<16x64xf32, #tpu.memory_space<vmem>>, vector<16x64xf32>
    tpu.vector_store %arg8[%c0_42, %c0_43], %125 {strides = array<i32>} : memref<16x64xf32, #tpu.memory_space<vmem>>, vector<16x64xf32>,
    return
  }
  func.func @transform_0(%arg0: i32) -> (i32, i32) {
    %c0_i32 = arith.constant 0 : i32
    %c0_i32_0 = arith.constant 0 : i32
    %c0_i32_1 = arith.constant 0 : i32
    return %c0_i32, %c0_i32_0 : i32, i32
  }
  func.func @transform_1(%arg0: i32) -> (i32, i32) {
    %c0_i32 = arith.constant 0 : i32
    %c0_i32_0 = arith.constant 0 : i32
    %c0_i32_1 = arith.constant 0 : i32
    return %c0_i32, %c0_i32_0 : i32, i32
  }
  func.func @transform_2(%arg0: i32) -> (i32, i32) {
    %c0_i32 = arith.constant 0 : i32
    %c0_i32_0 = arith.constant 0 : i32
    %c0_i32_1 = arith.constant 0 : i32
    return %c0_i32, %c0_i32_0 : i32, i32
  }
  func.func @transform_3(%arg0: i32) -> (i32, i32) {
    %c0_i32 = arith.constant 0 : i32
    %c0_i32_0 = arith.constant 0 : i32
    %c0_i32_1 = arith.constant 0 : i32
    return %c0_i32, %c0_i32_0 : i32, i32
  }
  func.func @transform_4(%arg0: i32) -> (i32, i32, i32) {
    %c0_i32 = arith.constant 0 : i32
    %c0_i32_0 = arith.constant 0 : i32
    %c0_i32_1 = arith.constant 0 : i32
    %c0_i32_2 = arith.constant 0 : i32
    return %c0_i32, %c0_i32_0, %c0_i32_1 : i32, i32, i32
  }
  func.func @transform_5(%arg0: i32) -> (i32, i32) {
    %c0_i32 = arith.constant 0 : i32
    %c0_i32_0 = arith.constant 0 : i32
    %c0_i32_1 = arith.constant 0 : i32
    return %c0_i32, %c0_i32_0 : i32, i32
  }
  func.func @transform_6(%arg0: i32) -> (i32, i32) {
    %c0_i32 = arith.constant 0 : i32
    %c0_i32_0 = arith.constant 0 : i32
    %c0_i32_1 = arith.constant 0 : i32
    return %c0_i32, %c0_i32_0 : i32, i32
  }
  func.func @transform_7(%arg0: i32) -> (i32, i32) {
    %c0_i32 = arith.constant 0 : i32
    %c0_i32_0 = arith.constant 0 : i32
    %c0_i32_1 = arith.constant 0 : i32
    return %c0_i32, %c0_i32_0 : i32, i32
  }
}

module attributes {stable_mosaic.version = 11 : i64} {
  func.func @gt_layer_kernel(%arg0: i32, %arg1: memref<16x64xbf16, #tpu.memory_space<vmem>>, %arg2: memref<64x192xbf16, #tpu.memory_space<vmem>>, %arg3: memref<64x32xbf16, #tpu.memory_space<vmem>>, %arg4: memref<32x64xbf16, #tpu.memory_space<vmem>>, %arg5: memref<16x16x8xbf16, #tpu.memory_space<vmem>>, %arg6: memref<16x16xf32, #tpu.memory_space<vmem>>, %arg7: memref<64x64xbf16, #tpu.memory_space<vmem>>, %arg8: memref<16x64xf32, #tpu.memory_space<vmem>>) attributes {dimension_semantics = [#tpu.dimension_semantics<arbitrary>], iteration_bounds = array<i64: 1>, scalar_prefetch = 0 : i64, scratch_operands = 0 : i64, tpu.core_type = #tpu.core_type<tc>, window_params = [{pipeline_mode = #tpu.pipeline_mode<synchronous>, transform_indices = @transform_0, window_bounds = array<i64: 16, 64>}, {pipeline_mode = #tpu.pipeline_mode<synchronous>, transform_indices = @transform_1, window_bounds = array<i64: 64, 192>}, {pipeline_mode = #tpu.pipeline_mode<synchronous>, transform_indices = @transform_2, window_bounds = array<i64: 64, 32>}, {pipeline_mode = #tpu.pipeline_mode<synchronous>, transform_indices = @transform_3, window_bounds = array<i64: 32, 64>}, {pipeline_mode = #tpu.pipeline_mode<synchronous>, transform_indices = @transform_4, window_bounds = array<i64: 16, 16, 8>}, {pipeline_mode = #tpu.pipeline_mode<synchronous>, transform_indices = @transform_5, window_bounds = array<i64: 16, 16>}, {pipeline_mode = #tpu.pipeline_mode<synchronous>, transform_indices = @transform_6, window_bounds = array<i64: 64, 64>}, {pipeline_mode = #tpu.pipeline_mode<synchronous>, transform_indices = @transform_7, window_bounds = array<i64: 16, 64>}]} {
    %c0 = arith.constant 0 : index
    %c0_0 = arith.constant 0 : index
    %0 = vector.load %arg1[%c0, %c0_0] : memref<16x64xbf16, #tpu.memory_space<vmem>>, vector<16x64xbf16>
    %c0_1 = arith.constant 0 : index
    %c0_2 = arith.constant 0 : index
    %c0_3 = arith.constant 0 : index
    %1 = vector.load %arg5[%c0_1, %c0_2, %c0_3] : memref<16x16x8xbf16, #tpu.memory_space<vmem>>, vector<16x16x8xbf16>
    %c0_4 = arith.constant 0 : index
    %c0_5 = arith.constant 0 : index
    %2 = vector.load %arg6[%c0_4, %c0_5] : memref<16x16xf32, #tpu.memory_space<vmem>>, vector<16x16xf32>
    %c0_6 = arith.constant 0 : index
    %c0_7 = arith.constant 0 : index
    %3 = vector.load %arg2[%c0_6, %c0_7] : memref<64x192xbf16, #tpu.memory_space<vmem>>, vector<64x192xbf16>
    %cst = arith.constant dense<0.000000e+00> : vector<16x192xf32>
    %4 = tpu.matmul %0, %3, %cst {dimension_numbers = #tpu.dot_dimension_numbers<[1], [0], [0], [1], [0, 0, 1, 1], [], []>} : vector<16x64xbf16>, vector<64x192xbf16>, vector<16x192xf32> -> vector<16x192xf32>
    %5 = arith.truncf %4 : vector<16x192xf32> to vector<16x192xbf16>
    %6 = vector.extract_strided_slice %5 {offsets = [0, 0], sizes = [16, 64], strides = [1, 1]} : vector<16x192xbf16> to vector<16x64xbf16>
    %7 = vector.extract_strided_slice %5 {offsets = [0, 64], sizes = [16, 64], strides = [1, 1]} : vector<16x192xbf16> to vector<16x64xbf16>
    %8 = vector.extract_strided_slice %5 {offsets = [0, 128], sizes = [16, 64], strides = [1, 1]} : vector<16x192xbf16> to vector<16x64xbf16>
    %c0_8 = arith.constant 0 : index
    %c0_9 = arith.constant 0 : index
    %9 = vector.load %arg3[%c0_8, %c0_9] : memref<64x32xbf16, #tpu.memory_space<vmem>>, vector<64x32xbf16>
    %cst_10 = arith.constant dense<0.000000e+00> : vector<16x32xf32>
    %10 = tpu.matmul %6, %9, %cst_10 {dimension_numbers = #tpu.dot_dimension_numbers<[1], [0], [0], [1], [0, 0, 1, 1], [], []>} : vector<16x64xbf16>, vector<64x32xbf16>, vector<16x32xf32> -> vector<16x32xf32>
    %11 = arith.truncf %10 : vector<16x32xf32> to vector<16x32xbf16>
    %12 = vector.shape_cast %11 : vector<16x32xbf16> to vector<16x4x8xbf16>
    "tpu.trace_start"() <{level = 10 : i32, message = "ihp,ijp->ihj"}> : () -> ()
    %cst_11 = arith.constant dense<0.000000e+00> : vector<16x4x16xf32>
    %13 = tpu.matmul %12, %1, %cst_11 {dimension_numbers = #tpu.dot_dimension_numbers<[2], [2], [1], [1], [0, 0, 0, 1, 1, 1], [0], [0]>} : vector<16x4x8xbf16>, vector<16x16x8xbf16>, vector<16x4x16xf32> -> vector<16x4x16xf32>
    "tpu.trace_stop"() : () -> ()
    %14 = vector.extract_strided_slice %6 {offsets = [0, 0], sizes = [16, 16], strides = [1, 1]} : vector<16x64xbf16> to vector<16x16xbf16>
    %15 = vector.extract_strided_slice %7 {offsets = [0, 0], sizes = [16, 16], strides = [1, 1]} : vector<16x64xbf16> to vector<16x16xbf16>
    %16 = vector.extract_strided_slice %8 {offsets = [0, 0], sizes = [16, 16], strides = [1, 1]} : vector<16x64xbf16> to vector<16x16xbf16>
    %cst_12 = arith.constant dense<0.000000e+00> : vector<16x16xf32>
    %17 = tpu.matmul %14, %15, %cst_12 {dimension_numbers = #tpu.dot_dimension_numbers<[1], [1], [0], [0], [0, 0, 1, 0], [], []>} : vector<16x16xbf16>, vector<16x16xbf16>, vector<16x16xf32> -> vector<16x16xf32>
    %18 = vector.extract_strided_slice %13 {offsets = [0, 0, 0], sizes = [16, 1, 16], strides = [1, 1, 1]} : vector<16x4x16xf32> to vector<16x1x16xf32>
    %19 = vector.shape_cast %18 : vector<16x1x16xf32> to vector<16x16xf32>
    %20 = arith.addf %17, %19 : vector<16x16xf32>
    %cst_13 = arith.constant 2.500000e-01 : f32
    %21 = vector.broadcast %cst_13 : f32 to vector<16x16xf32>
    %22 = arith.mulf %20, %21 : vector<16x16xf32>
    %23 = arith.addf %22, %2 : vector<16x16xf32>
    %cst_14 = arith.constant dense<0xFF800000> : vector<16xf32>
    %24 = vector.multi_reduction <maximumf>, %23, %cst_14 [1] : vector<16x16xf32> to vector<16xf32>
    %25 = vector.shape_cast %24 : vector<16xf32> to vector<16x1xf32>
    %26 = vector.broadcast %25 : vector<16x1xf32> to vector<16x16xf32>
    %27 = arith.subf %23, %26 : vector<16x16xf32>
    %28 = math.exp %27 : vector<16x16xf32>
    %cst_15 = arith.constant dense<0.000000e+00> : vector<16xf32>
    %29 = vector.multi_reduction <add>, %28, %cst_15 [1] : vector<16x16xf32> to vector<16xf32>
    %30 = vector.shape_cast %29 : vector<16xf32> to vector<16x1xf32>
    %31 = tpu.reciprocal %30 {approx = true} : vector<16x1xf32> -> vector<16x1xf32>
    %32 = vector.broadcast %31 : vector<16x1xf32> to vector<16x16xf32>
    %33 = arith.mulf %28, %32 : vector<16x16xf32>
    %34 = arith.truncf %33 : vector<16x16xf32> to vector<16x16xbf16>
    %cst_16 = arith.constant dense<0.000000e+00> : vector<16x16xf32>
    %35 = tpu.matmul %34, %16, %cst_16 {dimension_numbers = #tpu.dot_dimension_numbers<[1], [0], [0], [1], [0, 0, 1, 1], [], []>} : vector<16x16xbf16>, vector<16x16xbf16>, vector<16x16xf32> -> vector<16x16xf32>
    %36 = vector.extract_strided_slice %6 {offsets = [0, 16], sizes = [16, 16], strides = [1, 1]} : vector<16x64xbf16> to vector<16x16xbf16>
    %37 = vector.extract_strided_slice %7 {offsets = [0, 16], sizes = [16, 16], strides = [1, 1]} : vector<16x64xbf16> to vector<16x16xbf16>
    %38 = vector.extract_strided_slice %8 {offsets = [0, 16], sizes = [16, 16], strides = [1, 1]} : vector<16x64xbf16> to vector<16x16xbf16>
    %cst_17 = arith.constant dense<0.000000e+00> : vector<16x16xf32>
    %39 = tpu.matmul %36, %37, %cst_17 {dimension_numbers = #tpu.dot_dimension_numbers<[1], [1], [0], [0], [0, 0, 1, 0], [], []>} : vector<16x16xbf16>, vector<16x16xbf16>, vector<16x16xf32> -> vector<16x16xf32>
    %40 = vector.extract_strided_slice %13 {offsets = [0, 1, 0], sizes = [16, 1, 16], strides = [1, 1, 1]} : vector<16x4x16xf32> to vector<16x1x16xf32>
    %41 = vector.shape_cast %40 : vector<16x1x16xf32> to vector<16x16xf32>
    %42 = arith.addf %39, %41 : vector<16x16xf32>
    %cst_18 = arith.constant 2.500000e-01 : f32
    %43 = vector.broadcast %cst_18 : f32 to vector<16x16xf32>
    %44 = arith.mulf %42, %43 : vector<16x16xf32>
    %45 = arith.addf %44, %2 : vector<16x16xf32>
    %cst_19 = arith.constant dense<0xFF800000> : vector<16xf32>
    %46 = vector.multi_reduction <maximumf>, %45, %cst_19 [1] : vector<16x16xf32> to vector<16xf32>
    %47 = vector.shape_cast %46 : vector<16xf32> to vector<16x1xf32>
    %48 = vector.broadcast %47 : vector<16x1xf32> to vector<16x16xf32>
    %49 = arith.subf %45, %48 : vector<16x16xf32>
    %50 = math.exp %49 : vector<16x16xf32>
    %cst_20 = arith.constant dense<0.000000e+00> : vector<16xf32>
    %51 = vector.multi_reduction <add>, %50, %cst_20 [1] : vector<16x16xf32> to vector<16xf32>
    %52 = vector.shape_cast %51 : vector<16xf32> to vector<16x1xf32>
    %53 = tpu.reciprocal %52 {approx = true} : vector<16x1xf32> -> vector<16x1xf32>
    %54 = vector.broadcast %53 : vector<16x1xf32> to vector<16x16xf32>
    %55 = arith.mulf %50, %54 : vector<16x16xf32>
    %56 = arith.truncf %55 : vector<16x16xf32> to vector<16x16xbf16>
    %cst_21 = arith.constant dense<0.000000e+00> : vector<16x16xf32>
    %57 = tpu.matmul %56, %38, %cst_21 {dimension_numbers = #tpu.dot_dimension_numbers<[1], [0], [0], [1], [0, 0, 1, 1], [], []>} : vector<16x16xbf16>, vector<16x16xbf16>, vector<16x16xf32> -> vector<16x16xf32>
    %58 = vector.extract_strided_slice %6 {offsets = [0, 32], sizes = [16, 16], strides = [1, 1]} : vector<16x64xbf16> to vector<16x16xbf16>
    %59 = vector.extract_strided_slice %7 {offsets = [0, 32], sizes = [16, 16], strides = [1, 1]} : vector<16x64xbf16> to vector<16x16xbf16>
    %60 = vector.extract_strided_slice %8 {offsets = [0, 32], sizes = [16, 16], strides = [1, 1]} : vector<16x64xbf16> to vector<16x16xbf16>
    %cst_22 = arith.constant dense<0.000000e+00> : vector<16x16xf32>
    %61 = tpu.matmul %58, %59, %cst_22 {dimension_numbers = #tpu.dot_dimension_numbers<[1], [1], [0], [0], [0, 0, 1, 0], [], []>} : vector<16x16xbf16>, vector<16x16xbf16>, vector<16x16xf32> -> vector<16x16xf32>
    %62 = vector.extract_strided_slice %13 {offsets = [0, 2, 0], sizes = [16, 1, 16], strides = [1, 1, 1]} : vector<16x4x16xf32> to vector<16x1x16xf32>
    %63 = vector.shape_cast %62 : vector<16x1x16xf32> to vector<16x16xf32>
    %64 = arith.addf %61, %63 : vector<16x16xf32>
    %cst_23 = arith.constant 2.500000e-01 : f32
    %65 = vector.broadcast %cst_23 : f32 to vector<16x16xf32>
    %66 = arith.mulf %64, %65 : vector<16x16xf32>
    %67 = arith.addf %66, %2 : vector<16x16xf32>
    %cst_24 = arith.constant dense<0xFF800000> : vector<16xf32>
    %68 = vector.multi_reduction <maximumf>, %67, %cst_24 [1] : vector<16x16xf32> to vector<16xf32>
    %69 = vector.shape_cast %68 : vector<16xf32> to vector<16x1xf32>
    %70 = vector.broadcast %69 : vector<16x1xf32> to vector<16x16xf32>
    %71 = arith.subf %67, %70 : vector<16x16xf32>
    %72 = math.exp %71 : vector<16x16xf32>
    %cst_25 = arith.constant dense<0.000000e+00> : vector<16xf32>
    %73 = vector.multi_reduction <add>, %72, %cst_25 [1] : vector<16x16xf32> to vector<16xf32>
    %74 = vector.shape_cast %73 : vector<16xf32> to vector<16x1xf32>
    %75 = tpu.reciprocal %74 {approx = true} : vector<16x1xf32> -> vector<16x1xf32>
    %76 = vector.broadcast %75 : vector<16x1xf32> to vector<16x16xf32>
    %77 = arith.mulf %72, %76 : vector<16x16xf32>
    %78 = arith.truncf %77 : vector<16x16xf32> to vector<16x16xbf16>
    %cst_26 = arith.constant dense<0.000000e+00> : vector<16x16xf32>
    %79 = tpu.matmul %78, %60, %cst_26 {dimension_numbers = #tpu.dot_dimension_numbers<[1], [0], [0], [1], [0, 0, 1, 1], [], []>} : vector<16x16xbf16>, vector<16x16xbf16>, vector<16x16xf32> -> vector<16x16xf32>
    %80 = vector.extract_strided_slice %6 {offsets = [0, 48], sizes = [16, 16], strides = [1, 1]} : vector<16x64xbf16> to vector<16x16xbf16>
    %81 = vector.extract_strided_slice %7 {offsets = [0, 48], sizes = [16, 16], strides = [1, 1]} : vector<16x64xbf16> to vector<16x16xbf16>
    %82 = vector.extract_strided_slice %8 {offsets = [0, 48], sizes = [16, 16], strides = [1, 1]} : vector<16x64xbf16> to vector<16x16xbf16>
    %cst_27 = arith.constant dense<0.000000e+00> : vector<16x16xf32>
    %83 = tpu.matmul %80, %81, %cst_27 {dimension_numbers = #tpu.dot_dimension_numbers<[1], [1], [0], [0], [0, 0, 1, 0], [], []>} : vector<16x16xbf16>, vector<16x16xbf16>, vector<16x16xf32> -> vector<16x16xf32>
    %84 = vector.extract_strided_slice %13 {offsets = [0, 3, 0], sizes = [16, 1, 16], strides = [1, 1, 1]} : vector<16x4x16xf32> to vector<16x1x16xf32>
    %85 = vector.shape_cast %84 : vector<16x1x16xf32> to vector<16x16xf32>
    %86 = arith.addf %83, %85 : vector<16x16xf32>
    %cst_28 = arith.constant 2.500000e-01 : f32
    %87 = vector.broadcast %cst_28 : f32 to vector<16x16xf32>
    %88 = arith.mulf %86, %87 : vector<16x16xf32>
    %89 = arith.addf %88, %2 : vector<16x16xf32>
    %cst_29 = arith.constant dense<0xFF800000> : vector<16xf32>
    %90 = vector.multi_reduction <maximumf>, %89, %cst_29 [1] : vector<16x16xf32> to vector<16xf32>
    %91 = vector.shape_cast %90 : vector<16xf32> to vector<16x1xf32>
    %92 = vector.broadcast %91 : vector<16x1xf32> to vector<16x16xf32>
    %93 = arith.subf %89, %92 : vector<16x16xf32>
    %94 = math.exp %93 : vector<16x16xf32>
    %cst_30 = arith.constant dense<0.000000e+00> : vector<16xf32>
    %95 = vector.multi_reduction <add>, %94, %cst_30 [1] : vector<16x16xf32> to vector<16xf32>
    %96 = vector.shape_cast %95 : vector<16xf32> to vector<16x1xf32>
    %97 = tpu.reciprocal %96 {approx = true} : vector<16x1xf32> -> vector<16x1xf32>
    %98 = vector.broadcast %97 : vector<16x1xf32> to vector<16x16xf32>
    %99 = arith.mulf %94, %98 : vector<16x16xf32>
    %100 = arith.truncf %99 : vector<16x16xf32> to vector<16x16xbf16>
    %cst_31 = arith.constant dense<0.000000e+00> : vector<16x16xf32>
    %101 = tpu.matmul %100, %82, %cst_31 {dimension_numbers = #tpu.dot_dimension_numbers<[1], [0], [0], [1], [0, 0, 1, 1], [], []>} : vector<16x16xbf16>, vector<16x16xbf16>, vector<16x16xf32> -> vector<16x16xf32>
    %102 = tpu.concatenate %35, %57, %79, %101 in 1 : vector<16x16xf32>, vector<16x16xf32>, vector<16x16xf32>, vector<16x16xf32> -> vector<16x64xf32>
    %103 = vector.shape_cast %33 : vector<16x16xf32> to vector<16x1x16xf32>
    %104 = vector.shape_cast %55 : vector<16x16xf32> to vector<16x1x16xf32>
    %105 = vector.shape_cast %77 : vector<16x16xf32> to vector<16x1x16xf32>
    %106 = vector.shape_cast %99 : vector<16x16xf32> to vector<16x1x16xf32>
    %107 = tpu.concatenate %103, %104, %105, %106 in 1 : vector<16x1x16xf32>, vector<16x1x16xf32>, vector<16x1x16xf32>, vector<16x1x16xf32> -> vector<16x4x16xf32>
    %108 = arith.truncf %107 : vector<16x4x16xf32> to vector<16x4x16xbf16>
    "tpu.trace_start"() <{level = 10 : i32, message = "ihj,ijp->ihp"}> : () -> ()
    %cst_32 = arith.constant dense<0.000000e+00> : vector<16x4x8xf32>
    %109 = tpu.matmul %108, %1, %cst_32 {dimension_numbers = #tpu.dot_dimension_numbers<[2], [1], [1], [2], [0, 0, 0, 1, 1, 2], [0], [0]>} : vector<16x4x16xbf16>, vector<16x16x8xbf16>, vector<16x4x8xf32> -> vector<16x4x8xf32>
    "tpu.trace_stop"() : () -> ()
    %110 = vector.shape_cast %109 : vector<16x4x8xf32> to vector<16x32xf32>
    %111 = arith.truncf %110 : vector<16x32xf32> to vector<16x32xbf16>
    %c0_33 = arith.constant 0 : index
    %c0_34 = arith.constant 0 : index
    %112 = vector.load %arg4[%c0_33, %c0_34] : memref<32x64xbf16, #tpu.memory_space<vmem>>, vector<32x64xbf16>
    %cst_35 = arith.constant dense<0.000000e+00> : vector<16x64xf32>
    %113 = tpu.matmul %111, %112, %cst_35 {dimension_numbers = #tpu.dot_dimension_numbers<[1], [0], [0], [1], [0, 0, 1, 1], [], []>} : vector<16x32xbf16>, vector<32x64xbf16>, vector<16x64xf32> -> vector<16x64xf32>
    %c0_36 = arith.constant 0 : index
    %c0_37 = arith.constant 0 : index
    %114 = vector.load %arg7[%c0_36, %c0_37] : memref<64x64xbf16, #tpu.memory_space<vmem>>, vector<64x64xbf16>
    %cst_38 = arith.constant dense<0.000000e+00> : vector<16x64xf32>
    %115 = tpu.matmul %0, %114, %cst_38 {dimension_numbers = #tpu.dot_dimension_numbers<[1], [0], [0], [1], [0, 0, 1, 1], [], []>} : vector<16x64xbf16>, vector<64x64xbf16>, vector<16x64xf32> -> vector<16x64xf32>
    %116 = arith.addf %102, %113 : vector<16x64xf32>
    %117 = arith.addf %116, %115 : vector<16x64xf32>
    %cst_39 = arith.constant 0.000000e+00 : f32
    %118 = vector.broadcast %cst_39 : f32 to vector<16x64xf32>
    %119 = arith.cmpf ogt, %117, %118 : vector<16x64xf32>
    %cst_40 = arith.constant 0.000000e+00 : f32
    %120 = vector.broadcast %cst_40 : f32 to vector<16x64xf32>
    %121 = arith.minimumf %117, %120 : vector<16x64xf32>
    %122 = math.exp %121 : vector<16x64xf32>
    %cst_41 = arith.constant 1.000000e+00 : f32
    %123 = vector.broadcast %cst_41 : f32 to vector<16x64xf32>
    %124 = arith.subf %122, %123 : vector<16x64xf32>
    %125 = arith.select %119, %117, %124 : vector<16x64xi1>, vector<16x64xf32>
    %c0_42 = arith.constant 0 : index
    %c0_43 = arith.constant 0 : index
    %126 = vector.load %arg8[%c0_42, %c0_43] : memref<16x64xf32, #tpu.memory_space<vmem>>, vector<16x64xf32>
    tpu.vector_store %arg8[%c0_42, %c0_43], %125 {strides = array<i32>} : memref<16x64xf32, #tpu.memory_space<vmem>>, vector<16x64xf32>,
    return
  }
  func.func @transform_0(%arg0: i32) -> (i32, i32) {
    %c0_i32 = arith.constant 0 : i32
    %c0_i32_0 = arith.constant 0 : i32
    %c0_i32_1 = arith.constant 0 : i32
    return %c0_i32, %c0_i32_0 : i32, i32
  }
  func.func @transform_1(%arg0: i32) -> (i32, i32) {
    %c0_i32 = arith.constant 0 : i32
    %c0_i32_0 = arith.constant 0 : i32
    %c0_i32_1 = arith.constant 0 : i32
    return %c0_i32, %c0_i32_0 : i32, i32
  }
  func.func @transform_2(%arg0: i32) -> (i32, i32) {
    %c0_i32 = arith.constant 0 : i32
    %c0_i32_0 = arith.constant 0 : i32
    %c0_i32_1 = arith.constant 0 : i32
    return %c0_i32, %c0_i32_0 : i32, i32
  }
  func.func @transform_3(%arg0: i32) -> (i32, i32) {
    %c0_i32 = arith.constant 0 : i32
    %c0_i32_0 = arith.constant 0 : i32
    %c0_i32_1 = arith.constant 0 : i32
    return %c0_i32, %c0_i32_0 : i32, i32
  }
  func.func @transform_4(%arg0: i32) -> (i32, i32, i32) {
    %c0_i32 = arith.constant 0 : i32
    %c0_i32_0 = arith.constant 0 : i32
    %c0_i32_1 = arith.constant 0 : i32
    %c0_i32_2 = arith.constant 0 : i32
    return %c0_i32, %c0_i32_0, %c0_i32_1 : i32, i32, i32
  }
  func.func @transform_5(%arg0: i32) -> (i32, i32) {
    %c0_i32 = arith.constant 0 : i32
    %c0_i32_0 = arith.constant 0 : i32
    %c0_i32_1 = arith.constant 0 : i32
    return %c0_i32, %c0_i32_0 : i32, i32
  }
  func.func @transform_6(%arg0: i32) -> (i32, i32) {
    %c0_i32 = arith.constant 0 : i32
    %c0_i32_0 = arith.constant 0 : i32
    %c0_i32_1 = arith.constant 0 : i32
    return %c0_i32, %c0_i32_0 : i32, i32
  }
  func.func @transform_7(%arg0: i32) -> (i32, i32) {
    %c0_i32 = arith.constant 0 : i32
    %c0_i32_0 = arith.constant 0 : i32
    %c0_i32_1 = arith.constant 0 : i32
    return %c0_i32, %c0_i32_0 : i32, i32
  }
}

</mosaic_0001>

<llo_original>
// kernel: gtran_rel_feat_forward.3
$region0: #{gtran_rel_feat_forward.3}
  #allocation0 [shape = 'u32[]', space=smem, size = 0x4, offset = 0x4, fixed_abs, tag = 'smem constant byte address 0x4 - core index']
  #allocation1 [shape = 'u32[144,128]{1,0:T(1,128)}', space=vmem, size = 0x12000, scoped, tag = 'internal scratch']
  %s0 = inlined_call_operand.vmem [shape: bf16[16,64], index: 0, kind: input, shape index: {}]
  %s1 = inlined_call_operand.vmem [shape: bf16[64,192], index: 1, kind: input, shape index: {}]
  %s2 = inlined_call_operand.vmem [shape: bf16[64,32], index: 2, kind: input, shape index: {}]
  %s3 = inlined_call_operand.vmem [shape: bf16[32,64], index: 3, kind: input, shape index: {}]
  %s4 = inlined_call_operand.vmem [shape: bf16[16,16,8], index: 4, kind: input, shape index: {}]
  %s5 = inlined_call_operand.vmem [shape: f32[16,16], index: 5, kind: input, shape index: {}]
  %s6 = inlined_call_operand.vmem [shape: bf16[64,64], index: 6, kind: input, shape index: {}]
  %s7 = inlined_call_operand.hbm [shape: f32[16,64], index: 7, kind: output, shape index: {}]
  %s8 = sld [smem:[#allocation0]]
  $region38: #{gtran_rel_feat_forward.3} parent=0
    _
  %s10 = ssub.s32 1, %s8
  %s11 = scalar_select 0, %s10, %s8
  $region1: #{gtran_rel_feat_forward.3} parent=0
    #allocation2 [shape = 'u8[8192]{0}', space=vmem, size = 0x2000, scoped, tag = 'output window, operand 0, single buffered']
    #allocation3 [shape = 's32[1]{0}', space=sflag, size = 0x4, scoped, tag = 'scoped memory for gtran_rel_feat_forward.3']
    %12 = vsyncpa [#allocation3], 0
    // Predicated region
    $region2: #{gtran_rel_feat_forward.3} parent=1 // pred_check
      _
    $region3: #{gtran_rel_feat_forward.3} parent=1 // pred_check_branch
      %14 = sbr.rel (0) target = $region5
    $region4: #{gtran_rel_feat_forward.3} parent=1 // pred_region
      _
    $region5: #{gtran_rel_feat_forward.3} parent=1 // pred_fallthru
      _
    // Predicated region
    $region6: #{gtran_rel_feat_forward.3} parent=1 // pred_check
      _
    $region7: #{gtran_rel_feat_forward.3} parent=1 // pred_check_branch
      %16 = sbr.rel (0) target = $region9
    $region8: #{gtran_rel_feat_forward.3} parent=1 // pred_region
      _
    $region9: #{gtran_rel_feat_forward.3} parent=1 // pred_fallthru
      _
    // Predicated region
    $region10: #{gtran_rel_feat_forward.3} parent=1 // pred_check
      _
    $region11: #{gtran_rel_feat_forward.3} parent=1 // pred_check_branch
      %18 = sbr.rel (0) target = $region13
    $region12: #{gtran_rel_feat_forward.3} parent=1 // pred_region
      _
    $region13: #{gtran_rel_feat_forward.3} parent=1 // pred_fallthru
      _
    // Predicated region
    $region14: #{gtran_rel_feat_forward.3} parent=1 // pred_check
      _
    $region15: #{gtran_rel_feat_forward.3} parent=1 // pred_check_branch
      %20 = sbr.rel (0) target = $region17
    $region16: #{gtran_rel_feat_forward.3} parent=1 // pred_region
      _
    $region17: #{gtran_rel_feat_forward.3} parent=1 // pred_fallthru
      _
    // Predicated region
    $region18: #{gtran_rel_feat_forward.3} parent=1 // pred_check
      _
    $region19: #{gtran_rel_feat_forward.3} parent=1 // pred_check_branch
      %22 = sbr.rel (0) target = $region21
    $region20: #{gtran_rel_feat_forward.3} parent=1 // pred_region
      _
    $region21: #{gtran_rel_feat_forward.3} parent=1 // pred_fallthru
      _
    // Predicated region
    $region22: #{gtran_rel_feat_forward.3} parent=1 // pred_check
      _
    $region23: #{gtran_rel_feat_forward.3} parent=1 // pred_check_branch
      %24 = sbr.rel (0) target = $region25
    $region24: #{gtran_rel_feat_forward.3} parent=1 // pred_region
      _
    $region25: #{gtran_rel_feat_forward.3} parent=1 // pred_fallthru
      _
    // Predicated region
    $region26: #{gtran_rel_feat_forward.3} parent=1 // pred_check
      _
    $region27: #{gtran_rel_feat_forward.3} parent=1 // pred_check_branch
      %26 = sbr.rel (0) target = $region29
    $region28: #{gtran_rel_feat_forward.3} parent=1 // pred_region
      _
    $region29: #{gtran_rel_feat_forward.3} parent=1 // pred_fallthru
      _
    %v28 = vld [vmem:[%s0] sm:$0xf]
    %v29 = vld [vmem:[%s0 + $0x4] sm:$0xf]
    %v30 = vld [vmem:[%s4] sm:$0xf]
    %v31 = vld [vmem:[%s4 + $0x4] sm:$0xf]
    %v32 = vld [vmem:[%s4 + $0x8] sm:$0xf]
    %v33 = vld [vmem:[%s4 + $0xc] sm:$0xf]
    %v34 = vld [vmem:[%s4 + $0x10] sm:$0xf]
    %v35 = vld [vmem:[%s4 + $0x14] sm:$0xf]
    %v36 = vld [vmem:[%s4 + $0x18] sm:$0xf]
    %v37 = vld [vmem:[%s4 + $0x1c] sm:$0xf]
    %v38 = vld [vmem:[%s4 + $0x20] sm:$0xf]
    %v39 = vld [vmem:[%s4 + $0x24] sm:$0xf]
    %v40 = vld [vmem:[%s4 + $0x28] sm:$0xf]
    %v41 = vld [vmem:[%s4 + $0x2c] sm:$0xf]
    %v42 = vld [vmem:[%s4 + $0x30] sm:$0xf]
    %v43 = vld [vmem:[%s4 + $0x34] sm:$0xf]
    %v44 = vld [vmem:[%s4 + $0x38] sm:$0xf]
    %v45 = vld [vmem:[%s4 + $0x3c] sm:$0xf]
    %v46 = vld [vmem:[%s4 + $0x40] sm:$0xf]
    %v47 = vld [vmem:[%s4 + $0x44] sm:$0xf]
    %v48 = vld [vmem:[%s4 + $0x48] sm:$0xf]
    %v49 = vld [vmem:[%s4 + $0x4c] sm:$0xf]
    %v50 = vld [vmem:[%s4 + $0x50] sm:$0xf]
    %v51 = vld [vmem:[%s4 + $0x54] sm:$0xf]
    %v52 = vld [vmem:[%s4 + $0x58] sm:$0xf]
    %v53 = vld [vmem:[%s4 + $0x5c] sm:$0xf]
    %v54 = vld [vmem:[%s4 + $0x60] sm:$0xf]
    %v55 = vld [vmem:[%s4 + $0x64] sm:$0xf]
    %v56 = vld [vmem:[%s4 + $0x68] sm:$0xf]
    %v57 = vld [vmem:[%s4 + $0x6c] sm:$0xf]
    %v58 = vld [vmem:[%s4 + $0x70] sm:$0xf]
    %v59 = vld [vmem:[%s4 + $0x74] sm:$0xf]
    %v60 = vld [vmem:[%s4 + $0x78] sm:$0xf]
    %v61 = vld [vmem:[%s4 + $0x7c] sm:$0xf]
    %v62 = vld [vmem:[%s5] sm:$0xff]
    %v63 = vld [vmem:[%s5 + $0x8] sm:$0xff]
    %v64 = vld [vmem:[%s1] sm:$0xff]
    %v65 = vld [vmem:[%s1 + $0x8] sm:$0xff]
    %v66 = vld [vmem:[%s1 + $0x10] sm:$0xff]
    %v67 = vld [vmem:[%s1 + $0x18] sm:$0xff]
    %v68 = vld [vmem:[%s1 + $0x20] sm:$0xff]
    %v69 = vld [vmem:[%s1 + $0x28] sm:$0xff]
    %v70 = vld [vmem:[%s1 + $0x30] sm:$0xff]
    %v71 = vld [vmem:[%s1 + $0x38] sm:$0xff]
    %v74 = vunpack.c.l.b16 %v28
    %v75 = vunpack.c.l.b16 %v29
    %v76 = vpack.c.b16 %v75, %v74
    %v85 = vunpack.c.l.b16 %v64
    %v86 = vunpack.c.h.b16 %v64
    %v87 = vunpack.c.l.b16 %v65
    %v88 = vunpack.c.h.b16 %v65
    %v89 = vunpack.c.l.b16 %v66
    %v90 = vunpack.c.h.b16 %v66
    %v91 = vunpack.c.l.b16 %v67
    %v92 = vunpack.c.h.b16 %v67
    %v93 = vunpack.c.l.b16 %v68
    %v94 = vunpack.c.h.b16 %v68
    %v95 = vunpack.c.l.b16 %v69
    %v96 = vunpack.c.h.b16 %v69
    %v97 = vunpack.c.l.b16 %v70
    %v98 = vunpack.c.h.b16 %v70
    %v99 = vunpack.c.l.b16 %v71
    %v100 = vunpack.c.h.b16 %v71
    %v101 = vpack.c.b16 %v87, %v85
    %v102 = vpack.c.b16 %v88, %v86
    %v103 = vpack.c.b16 %v91, %v89
    %v104 = vpack.c.b16 %v92, %v90
    %v105 = vpack.c.b16 %v95, %v93
    %v106 = vpack.c.b16 %v96, %v94
    %v107 = vpack.c.b16 %v99, %v97
    %v108 = vpack.c.b16 %v100, %v98
    %vm117 = vcmask 523264
    %v119 = vsel %vm117, %v76, 0
    %121 = vmatprep.subr.bf16.mxu0 %v102
    %122 = vmatpush1.bf16.msra.mxu0 %v101
    %123 = vmatprep.subr.bf16.mxu0 %v104
    %124 = vmatpush1.bf16.msra.mxu0 %v103
    %125 = vmatprep.subr.bf16.mxu0 %v106
    %126 = vmatpush1.bf16.msra.mxu0 %v105
    %127 = vmatprep.subr.bf16.mxu0 %v108
    %128 = vmatpush1.bf16.msra.mxu0 %v107
    %129 = vmatprep.subr.bf16.mxu0 0
    %130 = vmatpush1.bf16.msra.mxu0 0
    %131 = vmatprep.subr.bf16.mxu0 0
    %132 = vmatpush1.bf16.msra.mxu0 0
    %133 = vmatprep.subr.bf16.mxu0 0
    %134 = vmatpush1.bf16.msra.mxu0 0
    %135 = vmatprep.subr.bf16.mxu0 0
    %136 = vmatpush1.bf16.msra.mxu0 0
    %137 = vmatprep.subr.bf16.mxu0 0
    %138 = vmatpush1.bf16.msra.mxu0 0
    %139 = vmatprep.subr.bf16.mxu0 0
    %140 = vmatpush1.bf16.msra.mxu0 0
    %141 = vmatprep.subr.bf16.mxu0 0
    %142 = vmatpush1.bf16.msra.mxu0 0
    %143 = vmatprep.subr.bf16.mxu0 0
    %144 = vmatpush1.bf16.msra.mxu0 0
    %145 = vmatprep.subr.bf16.mxu0 0
    %146 = vmatpush1.bf16.msra.mxu0 0
    %147 = vmatprep.subr.bf16.mxu0 0
    %148 = vmatpush1.bf16.msra.mxu0 0
    %149 = vmatprep.subr.bf16.mxu0 0
    %150 = vmatpush1.bf16.msra.mxu0 0
    %151 = vmatprep.subr.bf16.mxu0 0
    %152 = vmatpush1.bf16.msra.mxu0 0
    %153 = vmatprep.mubr.bf16.mxu0 0
    %154 = vmatmul.mubr.bf16.gmra.mrb[0].mxu0 %v119
    %v155 = vpop.f32.mrb[0].mxu0
    %v156 = vadd.f32 0.0, %v155
    %v157 = vpop.f32.mrb[0].mxu0
    %v158 = vadd.f32 0.0, %v157
    %v159 = vpop.f32.mrb[0].mxu0
    %v160 = vadd.f32 0.0, %v159
    %v161 = vpop.f32.mrb[0].mxu0
    %v162 = vadd.f32 0.0, %v161
    %163 = vdwg.mxu0
    %v164 = vpack.c.bf16 %v160, %v156
    %v165 = vpack.c.bf16 %v162, %v158
    %v166 = vld [vmem:[%s2] sm:$0xf]
    %v167 = vld [vmem:[%s2 + $0x4] sm:$0xf]
    %v168 = vld [vmem:[%s2 + $0x8] sm:$0xf]
    %v169 = vld [vmem:[%s2 + $0xc] sm:$0xf]
    %v170 = vld [vmem:[%s2 + $0x10] sm:$0xf]
    %v171 = vld [vmem:[%s2 + $0x14] sm:$0xf]
    %v172 = vld [vmem:[%s2 + $0x18] sm:$0xf]
    %v173 = vld [vmem:[%s2 + $0x1c] sm:$0xf]
    %v182 = vunpack.c.l.b16 %v166
    %v183 = vunpack.c.l.b16 %v167
    %v184 = vunpack.c.l.b16 %v168
    %v185 = vunpack.c.l.b16 %v169
    %v186 = vunpack.c.l.b16 %v170
    %v187 = vunpack.c.l.b16 %v171
    %v188 = vunpack.c.l.b16 %v172
    %v189 = vunpack.c.l.b16 %v173
    %v190 = vpack.c.b16 %v183, %v182
    %v191 = vpack.c.b16 %v185, %v184
    %v192 = vpack.c.b16 %v187, %v186
    %v193 = vpack.c.b16 %v189, %v188
    %v199 = vsel %vm117, %v164, 0
    %201 = vmatprep.subr.bf16.mxu0 0
    %202 = vmatpush1.bf16.msra.mxu0 %v190
    %203 = vmatprep.subr.bf16.mxu0 0
    %204 = vmatpush1.bf16.msra.mxu0 %v191
    %205 = vmatprep.subr.bf16.mxu0 0
    %206 = vmatpush1.bf16.msra.mxu0 %v192
    %207 = vmatprep.subr.bf16.mxu0 0
    %208 = vmatpush1.bf16.msra.mxu0 %v193
    %209 = vmatprep.subr.bf16.mxu0 0
    %210 = vmatpush1.bf16.msra.mxu0 0
    %211 = vmatprep.subr.bf16.mxu0 0
    %212 = vmatpush1.bf16.msra.mxu0 0
    %213 = vmatprep.subr.bf16.mxu0 0
    %214 = vmatpush1.bf16.msra.mxu0 0
    %215 = vmatprep.subr.bf16.mxu0 0
    %216 = vmatpush1.bf16.msra.mxu0 0
    %217 = vmatprep.subr.bf16.mxu0 0
    %218 = vmatpush1.bf16.msra.mxu0 0
    %219 = vmatprep.subr.bf16.mxu0 0
    %220 = vmatpush1.bf16.msra.mxu0 0
    %221 = vmatprep.subr.bf16.mxu0 0
    %222 = vmatpush1.bf16.msra.mxu0 0
    %223 = vmatprep.subr.bf16.mxu0 0
    %224 = vmatpush1.bf16.msra.mxu0 0
    %225 = vmatprep.subr.bf16.mxu0 0
    %226 = vmatpush1.bf16.msra.mxu0 0
    %227 = vmatprep.subr.bf16.mxu0 0
    %228 = vmatpush1.bf16.msra.mxu0 0
    %229 = vmatprep.subr.bf16.mxu0 0
    %230 = vmatpush1.bf16.msra.mxu0 0
    %231 = vmatprep.subr.bf16.mxu0 0
    %232 = vmatpush1.bf16.msra.mxu0 0
    %233 = vmatprep.mubr.bf16.mxu0 0
    %234 = vmatmul.mubr.bf16.gmra.mrb[0].mxu0 %v199
    %v235 = vpop.f32.mrb[0].mxu0
    %v236 = vadd.f32 0.0, %v235
    %v237 = vpop.f32.mrb[0].mxu0
    %v238 = vpop.f32.mrb[0].mxu0
    %v239 = vadd.f32 0.0, %v238
    %v240 = vpop.f32.mrb[0].mxu0
    %241 = vdwg.mxu0
    %v242 = vpack.c.bf16 %v239, %v236
    %244 = vrot.lane.b32.xlu0 %v242, 120
    %v245 = vpop.permute.xlu0 %244
    %246 = vrot.lane.b32.xlu0 %v242, 112
    %v247 = vpop.permute.xlu0 %246
    %248 = vrot.lane.b32.xlu0 %v242, 104
    %v249 = vpop.permute.xlu0 %248
    %v252 = vpack.i.b16 %v245, %v242
    %v254 = vshrl.u32 %v242, 16
    %v255 = vshrl.u32 %v245, 16
    %v256 = vpack.i.b16 %v255, %v254
    %v260 = vpack.i.b16 %v249, %v247
    %v262 = vshrl.u32 %v247, 16
    %v263 = vshrl.u32 %v249, 16
    %v264 = vpack.i.b16 %v263, %v262
    %v267 = vpack.i.b16 0, 0
    %v269 = vshrl.u32 0, 16
    %v270 = vpack.i.b16 %v269, %v269
    %v272 = vcombine.high %v252, %v267
    %v274 = vunpack.c.l.s4 1983009808
    %v275 = vunpack.c.0.s8 %v274
    %v276 = vlaneseq
    %v277 = vshrl.u32 %v276, 7
    %v278 = vsub.s32 %v275, %v277
    %v279 = vrot.slane %v252, %v278
    %v281 = vunpack.c.l.s4 1983009808
    %v282 = vunpack.c.0.s8 %v281
    %v283 = vlaneseq
    %v284 = vshrl.u32 %v283, 7
    %v285 = vsub.s32 %v282, %v284
    %v286 = vrot.slane %v272, %v285
    %v287 = vcombine.high %v260, %v267
    %v289 = vunpack.c.l.s4 1983009808
    %v290 = vunpack.c.0.s8 %v289
    %v291 = vlaneseq
    %v292 = vshrl.u32 %v291, 7
    %v293 = vsub.s32 %v290, %v292
    %v294 = vrot.slane %v260, %v293
    %v296 = vunpack.c.l.s4 1983009808
    %v297 = vunpack.c.0.s8 %v296
    %v298 = vlaneseq
    %v299 = vshrl.u32 %v298, 7
    %v300 = vsub.s32 %v297, %v299
    %v301 = vrot.slane %v287, %v300
    %v302 = vcombine.low %v279, %v294
    %v303 = vcombine.high %v279, %v294
    %v305 = vunpack.c.l.s4 1934713408
    %v306 = vunpack.c.0.s8 %v305
    %v307 = vlaneseq
    %v308 = vshrl.u32 %v307, 7
    %v309 = vsub.s32 %v306, %v308
    %v310 = vrot.slane %v302, %v309
    %v312 = vunpack.c.l.s4 1934713408
    %v313 = vunpack.c.0.s8 %v312
    %v314 = vlaneseq
    %v315 = vshrl.u32 %v314, 7
    %v316 = vsub.s32 %v313, %v315
    %v317 = vrot.slane %v303, %v316
    %v318 = vcombine.low %v286, %v301
    %v319 = vcombine.high %v286, %v301
    %v321 = vunpack.c.l.s4 1934713408
    %v322 = vunpack.c.0.s8 %v321
    %v323 = vlaneseq
    %v324 = vshrl.u32 %v323, 7
    %v325 = vsub.s32 %v322, %v324
    %v326 = vrot.slane %v318, %v325
    %v328 = vunpack.c.l.s4 1934713408
    %v329 = vunpack.c.0.s8 %v328
    %v330 = vlaneseq
    %v331 = vshrl.u32 %v330, 7
    %v332 = vsub.s32 %v329, %v331
    %v333 = vrot.slane %v319, %v332
    %v334 = vcombine.high %v310, 0
    %v335 = vcombine.high %v317, 0
    %v336 = vcombine.high %v326, 0
    %v337 = vcombine.high %v333, 0
    %v338 = vcombine.high %v256, %v270
    %v340 = vunpack.c.l.s4 1983009808
    %v341 = vunpack.c.0.s8 %v340
    %v342 = vlaneseq
    %v343 = vshrl.u32 %v342, 7
    %v344 = vsub.s32 %v341, %v343
    %v345 = vrot.slane %v256, %v344
    %v347 = vunpack.c.l.s4 1983009808
    %v348 = vunpack.c.0.s8 %v347
    %v349 = vlaneseq
    %v350 = vshrl.u32 %v349, 7
    %v351 = vsub.s32 %v348, %v350
    %v352 = vrot.slane %v338, %v351
    %v353 = vcombine.high %v264, %v270
    %v355 = vunpack.c.l.s4 1983009808
    %v356 = vunpack.c.0.s8 %v355
    %v357 = vlaneseq
    %v358 = vshrl.u32 %v357, 7
    %v359 = vsub.s32 %v356, %v358
    %v360 = vrot.slane %v264, %v359
    %v362 = vunpack.c.l.s4 1983009808
    %v363 = vunpack.c.0.s8 %v362
    %v364 = vlaneseq
    %v365 = vshrl.u32 %v364, 7
    %v366 = vsub.s32 %v363, %v365
    %v367 = vrot.slane %v353, %v366
    %v368 = vcombine.low %v345, %v360
    %v369 = vcombine.high %v345, %v360
    %v371 = vunpack.c.l.s4 1934713408
    %v372 = vunpack.c.0.s8 %v371
    %v373 = vlaneseq
    %v374 = vshrl.u32 %v373, 7
    %v375 = vsub.s32 %v372, %v374
    %v376 = vrot.slane %v368, %v375
    %v378 = vunpack.c.l.s4 1934713408
    %v379 = vunpack.c.0.s8 %v378
    %v380 = vlaneseq
    %v381 = vshrl.u32 %v380, 7
    %v382 = vsub.s32 %v379, %v381
    %v383 = vrot.slane %v369, %v382
    %v384 = vcombine.low %v352, %v367
    %v385 = vcombine.high %v352, %v367
    %v387 = vunpack.c.l.s4 1934713408
    %v388 = vunpack.c.0.s8 %v387
    %v389 = vlaneseq
    %v390 = vshrl.u32 %v389, 7
    %v391 = vsub.s32 %v388, %v390
    %v392 = vrot.slane %v384, %v391
    %v394 = vunpack.c.l.s4 1934713408
    %v395 = vunpack.c.0.s8 %v394
    %v396 = vlaneseq
    %v397 = vshrl.u32 %v396, 7
    %v398 = vsub.s32 %v395, %v397
    %v399 = vrot.slane %v385, %v398
    %v400 = vcombine.high %v376, 0
    %v401 = vcombine.high %v383, 0
    %v402 = vcombine.high %v392, 0
    %v403 = vcombine.high %v399, 0
    %v406 = vunpack.c.l.b16 %v30
    %v407 = vunpack.c.l.b16 %v31
    %v408 = vpack.c.b16 %v407, %v406
    %vm409 = vcmask 64512
    %v411 = vsel %vm409, %v310, 0
    %v414 = vsel %vm409, %v408, 0
    %416 = vmatprep.subr.bf16.mxu0 0
    %417 = vmatpush1.bf16.xpose.msra.mxu0 %v414
    %418 = vmatprep.subr.bf16.mxu0 0
    %419 = vmatpush1.bf16.xpose.msra.mxu0 0
    %420 = vmatprep.subr.bf16.mxu0 0
    %421 = vmatpush1.bf16.xpose.msra.mxu0 0
    %422 = vmatprep.subr.bf16.mxu0 0
    %423 = vmatpush1.bf16.xpose.msra.mxu0 0
    %424 = vmatprep.subr.bf16.mxu0 0
    %425 = vmatpush1.bf16.xpose.msra.mxu0 0
    %426 = vmatprep.subr.bf16.mxu0 0
    %427 = vmatpush1.bf16.xpose.msra.mxu0 0
    %428 = vmatprep.subr.bf16.mxu0 0
    %429 = vmatpush1.bf16.xpose.msra.mxu0 0
    %430 = vmatprep.subr.bf16.mxu0 0
    %431 = vmatpush1.bf16.xpose.msra.mxu0 0
    %432 = vmatprep.subr.bf16.mxu0 0
    %433 = vmatpush1.bf16.xpose.msra.mxu0 0
    %434 = vmatprep.subr.bf16.mxu0 0
    %435 = vmatpush1.bf16.xpose.msra.mxu0 0
    %436 = vmatprep.subr.bf16.mxu0 0
    %437 = vmatpush1.bf16.xpose.msra.mxu0 0
    %438 = vmatprep.subr.bf16.mxu0 0
    %439 = vmatpush1.bf16.xpose.msra.mxu0 0
    %440 = vmatprep.subr.bf16.mxu0 0
    %441 = vmatpush1.bf16.xpose.msra.mxu0 0
    %442 = vmatprep.subr.bf16.mxu0 0
    %443 = vmatpush1.bf16.xpose.msra.mxu0 0
    %444 = vmatprep.subr.bf16.mxu0 0
    %445 = vmatpush1.bf16.xpose.msra.mxu0 0
    %446 = vmatprep.subr.bf16.mxu0 0
    %447 = vmatpush1.bf16.xpose.msra.mxu0 0
    %448 = vmatprep.mubr.bf16.mxu0 0
    %449 = vmatmul.mubr.bf16.gmra.mrb[0].mxu0 %v411
    %v450 = vpop.f32.mrb[0].mxu0
    %v451 = vadd.f32 0.0, %v450
    %v452 = vpop.f32.mrb[0].mxu0
    %v453 = vpop.f32.mrb[0].mxu0
    %v454 = vpop.f32.mrb[0].mxu0
    %455 = vdwg.mxu0
    %v458 = vunpack.c.l.b16 %v32
    %v459 = vunpack.c.l.b16 %v33
    %v460 = vpack.c.b16 %v459, %v458
    %v462 = vsel %vm409, %v376, 0
    %v465 = vsel %vm409, %v460, 0
    %467 = vmatprep.subr.bf16.mxu0 0
    %468 = vmatpush1.bf16.xpose.msra.mxu0 %v465
    %469 = vmatprep.subr.bf16.mxu0 0
    %470 = vmatpush1.bf16.xpose.msra.mxu0 0
    %471 = vmatprep.subr.bf16.mxu0 0
    %472 = vmatpush1.bf16.xpose.msra.mxu0 0
    %473 = vmatprep.subr.bf16.mxu0 0
    %474 = vmatpush1.bf16.xpose.msra.mxu0 0
    %475 = vmatprep.subr.bf16.mxu0 0
    %476 = vmatpush1.bf16.xpose.msra.mxu0 0
    %477 = vmatprep.subr.bf16.mxu0 0
    %478 = vmatpush1.bf16.xpose.msra.mxu0 0
    %479 = vmatprep.subr.bf16.mxu0 0
    %480 = vmatpush1.bf16.xpose.msra.mxu0 0
    %481 = vmatprep.subr.bf16.mxu0 0
    %482 = vmatpush1.bf16.xpose.msra.mxu0 0
    %483 = vmatprep.subr.bf16.mxu0 0
    %484 = vmatpush1.bf16.xpose.msra.mxu0 0
    %485 = vmatprep.subr.bf16.mxu0 0
    %486 = vmatpush1.bf16.xpose.msra.mxu0 0
    %487 = vmatprep.subr.bf16.mxu0 0
    %488 = vmatpush1.bf16.xpose.msra.mxu0 0
    %489 = vmatprep.subr.bf16.mxu0 0
    %490 = vmatpush1.bf16.xpose.msra.mxu0 0
    %491 = vmatprep.subr.bf16.mxu0 0
    %492 = vmatpush1.bf16.xpose.msra.mxu0 0
    %493 = vmatprep.subr.bf16.mxu0 0
    %494 = vmatpush1.bf16.xpose.msra.mxu0 0
    %495 = vmatprep.subr.bf16.mxu0 0
    %496 = vmatpush1.bf16.xpose.msra.mxu0 0
    %497 = vmatprep.subr.bf16.mxu0 0
    %498 = vmatpush1.bf16.xpose.msra.mxu0 0
    %499 = vmatprep.mubr.bf16.mxu0 0
    %500 = vmatmul.mubr.bf16.gmra.mrb[0].mxu0 %v462
    %v501 = vpop.f32.mrb[0].mxu0
    %v502 = vadd.f32 0.0, %v501
    %v503 = vpop.f32.mrb[0].mxu0
    %v504 = vpop.f32.mrb[0].mxu0
    %v505 = vpop.f32.mrb[0].mxu0
    %506 = vdwg.mxu0
    %v509 = vunpack.c.l.b16 %v34
    %v510 = vunpack.c.l.b16 %v35
    %v511 = vpack.c.b16 %v510, %v509
    %v513 = vsel %vm409, %v334, 0
    %v516 = vsel %vm409, %v511, 0
    %518 = vmatprep.subr.bf16.mxu0 0
    %519 = vmatpush1.bf16.xpose.msra.mxu0 %v516
    %520 = vmatprep.subr.bf16.mxu0 0
    %521 = vmatpush1.bf16.xpose.msra.mxu0 0
    %522 = vmatprep.subr.bf16.mxu0 0
    %523 = vmatpush1.bf16.xpose.msra.mxu0 0
    %524 = vmatprep.subr.bf16.mxu0 0
    %525 = vmatpush1.bf16.xpose.msra.mxu0 0
    %526 = vmatprep.subr.bf16.mxu0 0
    %527 = vmatpush1.bf16.xpose.msra.mxu0 0
    %528 = vmatprep.subr.bf16.mxu0 0
    %529 = vmatpush1.bf16.xpose.msra.mxu0 0
    %530 = vmatprep.subr.bf16.mxu0 0
    %531 = vmatpush1.bf16.xpose.msra.mxu0 0
    %532 = vmatprep.subr.bf16.mxu0 0
    %533 = vmatpush1.bf16.xpose.msra.mxu0 0
    %534 = vmatprep.subr.bf16.mxu0 0
    %535 = vmatpush1.bf16.xpose.msra.mxu0 0
    %536 = vmatprep.subr.bf16.mxu0 0
    %537 = vmatpush1.bf16.xpose.msra.mxu0 0
    %538 = vmatprep.subr.bf16.mxu0 0
    %539 = vmatpush1.bf16.xpose.msra.mxu0 0
    %540 = vmatprep.subr.bf16.mxu0 0
    %541 = vmatpush1.bf16.xpose.msra.mxu0 0
    %542 = vmatprep.subr.bf16.mxu0 0
    %543 = vmatpush1.bf16.xpose.msra.mxu0 0
    %544 = vmatprep.subr.bf16.mxu0 0
    %545 = vmatpush1.bf16.xpose.msra.mxu0 0
    %546 = vmatprep.subr.bf16.mxu0 0
    %547 = vmatpush1.bf16.xpose.msra.mxu0 0
    %548 = vmatprep.subr.bf16.mxu0 0
    %549 = vmatpush1.bf16.xpose.msra.mxu0 0
    %550 = vmatprep.mubr.bf16.mxu0 0
    %551 = vmatmul.mubr.bf16.gmra.mrb[0].mxu0 %v513
    %v552 = vpop.f32.mrb[0].mxu0
    %v553 = vadd.f32 0.0, %v552
    %v554 = vpop.f32.mrb[0].mxu0
    %v555 = vpop.f32.mrb[0].mxu0
    %v556 = vpop.f32.mrb[0].mxu0
    %557 = vdwg.mxu0
    %v560 = vunpack.c.l.b16 %v36
    %v561 = vunpack.c.l.b16 %v37
    %v562 = vpack.c.b16 %v561, %v560
    %v564 = vsel %vm409, %v400, 0
    %v567 = vsel %vm409, %v562, 0
    %569 = vmatprep.subr.bf16.mxu0 0
    %570 = vmatpush1.bf16.xpose.msra.mxu0 %v567
    %571 = vmatprep.subr.bf16.mxu0 0
    %572 = vmatpush1.bf16.xpose.msra.mxu0 0
    %573 = vmatprep.subr.bf16.mxu0 0
    %574 = vmatpush1.bf16.xpose.msra.mxu0 0
    %575 = vmatprep.subr.bf16.mxu0 0
    %576 = vmatpush1.bf16.xpose.msra.mxu0 0
    %577 = vmatprep.subr.bf16.mxu0 0
    %578 = vmatpush1.bf16.xpose.msra.mxu0 0
    %579 = vmatprep.subr.bf16.mxu0 0
    %580 = vmatpush1.bf16.xpose.msra.mxu0 0
    %581 = vmatprep.subr.bf16.mxu0 0
    %582 = vmatpush1.bf16.xpose.msra.mxu0 0
    %583 = vmatprep.subr.bf16.mxu0 0
    %584 = vmatpush1.bf16.xpose.msra.mxu0 0
    %585 = vmatprep.subr.bf16.mxu0 0
    %586 = vmatpush1.bf16.xpose.msra.mxu0 0
    %587 = vmatprep.subr.bf16.mxu0 0
    %588 = vmatpush1.bf16.xpose.msra.mxu0 0
    %589 = vmatprep.subr.bf16.mxu0 0
    %590 = vmatpush1.bf16.xpose.msra.mxu0 0
    %591 = vmatprep.subr.bf16.mxu0 0
    %592 = vmatpush1.bf16.xpose.msra.mxu0 0
    %593 = vmatprep.subr.bf16.mxu0 0
    %594 = vmatpush1.bf16.xpose.msra.mxu0 0
    %595 = vmatprep.subr.bf16.mxu0 0
    %596 = vmatpush1.bf16.xpose.msra.mxu0 0
    %597 = vmatprep.subr.bf16.mxu0 0
    %598 = vmatpush1.bf16.xpose.msra.mxu0 0
    %599 = vmatprep.subr.bf16.mxu0 0
    %600 = vmatpush1.bf16.xpose.msra.mxu0 0
    %601 = vmatprep.mubr.bf16.mxu0 0
    %602 = vmatmul.mubr.bf16.gmra.mrb[0].mxu0 %v564
    %v603 = vpop.f32.mrb[0].mxu0
    %v604 = vadd.f32 0.0, %v603
    %v605 = vpop.f32.mrb[0].mxu0
    %v606 = vpop.f32.mrb[0].mxu0
    %v607 = vpop.f32.mrb[0].mxu0
    %608 = vdwg.mxu0
    %v611 = vunpack.c.l.b16 %v38
    %v612 = vunpack.c.l.b16 %v39
    %v613 = vpack.c.b16 %v612, %v611
    %v615 = vsel %vm409, %v317, 0
    %v618 = vsel %vm409, %v613, 0
    %620 = vmatprep.subr.bf16.mxu0 0
    %621 = vmatpush1.bf16.xpose.msra.mxu0 %v618
    %622 = vmatprep.subr.bf16.mxu0 0
    %623 = vmatpush1.bf16.xpose.msra.mxu0 0
    %624 = vmatprep.subr.bf16.mxu0 0
    %625 = vmatpush1.bf16.xpose.msra.mxu0 0
    %626 = vmatprep.subr.bf16.mxu0 0
    %627 = vmatpush1.bf16.xpose.msra.mxu0 0
    %628 = vmatprep.subr.bf16.mxu0 0
    %629 = vmatpush1.bf16.xpose.msra.mxu0 0
    %630 = vmatprep.subr.bf16.mxu0 0
    %631 = vmatpush1.bf16.xpose.msra.mxu0 0
    %632 = vmatprep.subr.bf16.mxu0 0
    %633 = vmatpush1.bf16.xpose.msra.mxu0 0
    %634 = vmatprep.subr.bf16.mxu0 0
    %635 = vmatpush1.bf16.xpose.msra.mxu0 0
    %636 = vmatprep.subr.bf16.mxu0 0
    %637 = vmatpush1.bf16.xpose.msra.mxu0 0
    %638 = vmatprep.subr.bf16.mxu0 0
    %639 = vmatpush1.bf16.xpose.msra.mxu0 0
    %640 = vmatprep.subr.bf16.mxu0 0
    %641 = vmatpush1.bf16.xpose.msra.mxu0 0
    %642 = vmatprep.subr.bf16.mxu0 0
    %643 = vmatpush1.bf16.xpose.msra.mxu0 0
    %644 = vmatprep.subr.bf16.mxu0 0
    %645 = vmatpush1.bf16.xpose.msra.mxu0 0
    %646 = vmatprep.subr.bf16.mxu0 0
    %647 = vmatpush1.bf16.xpose.msra.mxu0 0
    %648 = vmatprep.subr.bf16.mxu0 0
    %649 = vmatpush1.bf16.xpose.msra.mxu0 0
    %650 = vmatprep.subr.bf16.mxu0 0
    %651 = vmatpush1.bf16.xpose.msra.mxu0 0
    %652 = vmatprep.mubr.bf16.mxu0 0
    %653 = vmatmul.mubr.bf16.gmra.mrb[0].mxu0 %v615
    %v654 = vpop.f32.mrb[0].mxu0
    %v655 = vadd.f32 0.0, %v654
    %v656 = vpop.f32.mrb[0].mxu0
    %v657 = vpop.f32.mrb[0].mxu0
    %v658 = vpop.f32.mrb[0].mxu0
    %659 = vdwg.mxu0
    %v662 = vunpack.c.l.b16 %v40
    %v663 = vunpack.c.l.b16 %v41
    %v664 = vpack.c.b16 %v663, %v662
    %v666 = vsel %vm409, %v383, 0
    %v669 = vsel %vm409, %v664, 0
    %671 = vmatprep.subr.bf16.mxu0 0
    %672 = vmatpush1.bf16.xpose.msra.mxu0 %v669
    %673 = vmatprep.subr.bf16.mxu0 0
    %674 = vmatpush1.bf16.xpose.msra.mxu0 0
    %675 = vmatprep.subr.bf16.mxu0 0
    %676 = vmatpush1.bf16.xpose.msra.mxu0 0
    %677 = vmatprep.subr.bf16.mxu0 0
    %678 = vmatpush1.bf16.xpose.msra.mxu0 0
    %679 = vmatprep.subr.bf16.mxu0 0
    %680 = vmatpush1.bf16.xpose.msra.mxu0 0
    %681 = vmatprep.subr.bf16.mxu0 0
    %682 = vmatpush1.bf16.xpose.msra.mxu0 0
    %683 = vmatprep.subr.bf16.mxu0 0
    %684 = vmatpush1.bf16.xpose.msra.mxu0 0
    %685 = vmatprep.subr.bf16.mxu0 0
    %686 = vmatpush1.bf16.xpose.msra.mxu0 0
    %687 = vmatprep.subr.bf16.mxu0 0
    %688 = vmatpush1.bf16.xpose.msra.mxu0 0
    %689 = vmatprep.subr.bf16.mxu0 0
    %690 = vmatpush1.bf16.xpose.msra.mxu0 0
    %691 = vmatprep.subr.bf16.mxu0 0
    %692 = vmatpush1.bf16.xpose.msra.mxu0 0
    %693 = vmatprep.subr.bf16.mxu0 0
    %694 = vmatpush1.bf16.xpose.msra.mxu0 0
    %695 = vmatprep.subr.bf16.mxu0 0
    %696 = vmatpush1.bf16.xpose.msra.mxu0 0
    %697 = vmatprep.subr.bf16.mxu0 0
    %698 = vmatpush1.bf16.xpose.msra.mxu0 0
    %699 = vmatprep.subr.bf16.mxu0 0
    %700 = vmatpush1.bf16.xpose.msra.mxu0 0
    %701 = vmatprep.subr.bf16.mxu0 0
    %702 = vmatpush1.bf16.xpose.msra.mxu0 0
    %703 = vmatprep.mubr.bf16.mxu0 0
    %704 = vmatmul.mubr.bf16.gmra.mrb[0].mxu0 %v666
    %v705 = vpop.f32.mrb[0].mxu0
    %v706 = vadd.f32 0.0, %v705
    %v707 = vpop.f32.mrb[0].mxu0
    %v708 = vpop.f32.mrb[0].mxu0
    %v709 = vpop.f32.mrb[0].mxu0
    %710 = vdwg.mxu0
    %v713 = vunpack.c.l.b16 %v42
    %v714 = vunpack.c.l.b16 %v43
    %v715 = vpack.c.b16 %v714, %v713
    %v717 = vsel %vm409, %v335, 0
    %v720 = vsel %vm409, %v715, 0
    %722 = vmatprep.subr.bf16.mxu0 0
    %723 = vmatpush1.bf16.xpose.msra.mxu0 %v720
    %724 = vmatprep.subr.bf16.mxu0 0
    %725 = vmatpush1.bf16.xpose.msra.mxu0 0
    %726 = vmatprep.subr.bf16.mxu0 0
    %727 = vmatpush1.bf16.xpose.msra.mxu0 0
    %728 = vmatprep.subr.bf16.mxu0 0
    %729 = vmatpush1.bf16.xpose.msra.mxu0 0
    %730 = vmatprep.subr.bf16.mxu0 0
    %731 = vmatpush1.bf16.xpose.msra.mxu0 0
    %732 = vmatprep.subr.bf16.mxu0 0
    %733 = vmatpush1.bf16.xpose.msra.mxu0 0
    %734 = vmatprep.subr.bf16.mxu0 0
    %735 = vmatpush1.bf16.xpose.msra.mxu0 0
    %736 = vmatprep.subr.bf16.mxu0 0
    %737 = vmatpush1.bf16.xpose.msra.mxu0 0
    %738 = vmatprep.subr.bf16.mxu0 0
    %739 = vmatpush1.bf16.xpose.msra.mxu0 0
    %740 = vmatprep.subr.bf16.mxu0 0
    %741 = vmatpush1.bf16.xpose.msra.mxu0 0
    %742 = vmatprep.subr.bf16.mxu0 0
    %743 = vmatpush1.bf16.xpose.msra.mxu0 0
    %744 = vmatprep.subr.bf16.mxu0 0
    %745 = vmatpush1.bf16.xpose.msra.mxu0 0
    %746 = vmatprep.subr.bf16.mxu0 0
    %747 = vmatpush1.bf16.xpose.msra.mxu0 0
    %748 = vmatprep.subr.bf16.mxu0 0
    %749 = vmatpush1.bf16.xpose.msra.mxu0 0
    %750 = vmatprep.subr.bf16.mxu0 0
    %751 = vmatpush1.bf16.xpose.msra.mxu0 0
    %752 = vmatprep.subr.bf16.mxu0 0
    %753 = vmatpush1.bf16.xpose.msra.mxu0 0
    %754 = vmatprep.mubr.bf16.mxu0 0
    %755 = vmatmul.mubr.bf16.gmra.mrb[0].mxu0 %v717
    %v756 = vpop.f32.mrb[0].mxu0
    %v757 = vadd.f32 0.0, %v756
    %v758 = vpop.f32.mrb[0].mxu0
    %v759 = vpop.f32.mrb[0].mxu0
    %v760 = vpop.f32.mrb[0].mxu0
    %761 = vdwg.mxu0
    %v764 = vunpack.c.l.b16 %v44
    %v765 = vunpack.c.l.b16 %v45
    %v766 = vpack.c.b16 %v765, %v764
    %v768 = vsel %vm409, %v401, 0
    %v771 = vsel %vm409, %v766, 0
    %773 = vmatprep.subr.bf16.mxu0 0
    %774 = vmatpush1.bf16.xpose.msra.mxu0 %v771
    %775 = vmatprep.subr.bf16.mxu0 0
    %776 = vmatpush1.bf16.xpose.msra.mxu0 0
    %777 = vmatprep.subr.bf16.mxu0 0
    %778 = vmatpush1.bf16.xpose.msra.mxu0 0
    %779 = vmatprep.subr.bf16.mxu0 0
    %780 = vmatpush1.bf16.xpose.msra.mxu0 0
    %781 = vmatprep.subr.bf16.mxu0 0
    %782 = vmatpush1.bf16.xpose.msra.mxu0 0
    %783 = vmatprep.subr.bf16.mxu0 0
    %784 = vmatpush1.bf16.xpose.msra.mxu0 0
    %785 = vmatprep.subr.bf16.mxu0 0
    %786 = vmatpush1.bf16.xpose.msra.mxu0 0
    %787 = vmatprep.subr.bf16.mxu0 0
    %788 = vmatpush1.bf16.xpose.msra.mxu0 0
    %789 = vmatprep.subr.bf16.mxu0 0
    %790 = vmatpush1.bf16.xpose.msra.mxu0 0
    %791 = vmatprep.subr.bf16.mxu0 0
    %792 = vmatpush1.bf16.xpose.msra.mxu0 0
    %793 = vmatprep.subr.bf16.mxu0 0
    %794 = vmatpush1.bf16.xpose.msra.mxu0 0
    %795 = vmatprep.subr.bf16.mxu0 0
    %796 = vmatpush1.bf16.xpose.msra.mxu0 0
    %797 = vmatprep.subr.bf16.mxu0 0
    %798 = vmatpush1.bf16.xpose.msra.mxu0 0
    %799 = vmatprep.subr.bf16.mxu0 0
    %800 = vmatpush1.bf16.xpose.msra.mxu0 0
    %801 = vmatprep.subr.bf16.mxu0 0
    %802 = vmatpush1.bf16.xpose.msra.mxu0 0
    %803 = vmatprep.subr.bf16.mxu0 0
    %804 = vmatpush1.bf16.xpose.msra.mxu0 0
    %805 = vmatprep.mubr.bf16.mxu0 0
    %806 = vmatmul.mubr.bf16.gmra.mrb[0].mxu0 %v768
    %v807 = vpop.f32.mrb[0].mxu0
    %v808 = vadd.f32 0.0, %v807
    %v809 = vpop.f32.mrb[0].mxu0
    %v810 = vpop.f32.mrb[0].mxu0
    %v811 = vpop.f32.mrb[0].mxu0
    %812 = vdwg.mxu0
    %v815 = vunpack.c.l.b16 %v46
    %v816 = vunpack.c.l.b16 %v47
    %v817 = vpack.c.b16 %v816, %v815
    %v819 = vsel %vm409, %v326, 0
    %v822 = vsel %vm409, %v817, 0
    %824 = vmatprep.subr.bf16.mxu0 0
    %825 = vmatpush1.bf16.xpose.msra.mxu0 %v822
    %826 = vmatprep.subr.bf16.mxu0 0
    %827 = vmatpush1.bf16.xpose.msra.mxu0 0
    %828 = vmatprep.subr.bf16.mxu0 0
    %829 = vmatpush1.bf16.xpose.msra.mxu0 0
    %830 = vmatprep.subr.bf16.mxu0 0
    %831 = vmatpush1.bf16.xpose.msra.mxu0 0
    %832 = vmatprep.subr.bf16.mxu0 0
    %833 = vmatpush1.bf16.xpose.msra.mxu0 0
    %834 = vmatprep.subr.bf16.mxu0 0
    %835 = vmatpush1.bf16.xpose.msra.mxu0 0
    %836 = vmatprep.subr.bf16.mxu0 0
    %837 = vmatpush1.bf16.xpose.msra.mxu0 0
    %838 = vmatprep.subr.bf16.mxu0 0
    %839 = vmatpush1.bf16.xpose.msra.mxu0 0
    %840 = vmatprep.subr.bf16.mxu0 0
    %841 = vmatpush1.bf16.xpose.msra.mxu0 0
    %842 = vmatprep.subr.bf16.mxu0 0
    %843 = vmatpush1.bf16.xpose.msra.mxu0 0
    %844 = vmatprep.subr.bf16.mxu0 0
    %845 = vmatpush1.bf16.xpose.msra.mxu0 0
    %846 = vmatprep.subr.bf16.mxu0 0
    %847 = vmatpush1.bf16.xpose.msra.mxu0 0
    %848 = vmatprep.subr.bf16.mxu0 0
    %849 = vmatpush1.bf16.xpose.msra.mxu0 0
    %850 = vmatprep.subr.bf16.mxu0 0
    %851 = vmatpush1.bf16.xpose.msra.mxu0 0
    %852 = vmatprep.subr.bf16.mxu0 0
    %853 = vmatpush1.bf16.xpose.msra.mxu0 0
    %854 = vmatprep.subr.bf16.mxu0 0
    %855 = vmatpush1.bf16.xpose.msra.mxu0 0
    %856 = vmatprep.mubr.bf16.mxu0 0
    %857 = vmatmul.mubr.bf16.gmra.mrb[0].mxu0 %v819
    %v858 = vpop.f32.mrb[0].mxu0
    %v859 = vadd.f32 0.0, %v858
    %v860 = vpop.f32.mrb[0].mxu0
    %v861 = vpop.f32.mrb[0].mxu0
    %v862 = vpop.f32.mrb[0].mxu0
    %863 = vdwg.mxu0
    %v866 = vunpack.c.l.b16 %v48
    %v867 = vunpack.c.l.b16 %v49
    %v868 = vpack.c.b16 %v867, %v866
    %v870 = vsel %vm409, %v392, 0
    %v873 = vsel %vm409, %v868, 0
    %875 = vmatprep.subr.bf16.mxu0 0
    %876 = vmatpush1.bf16.xpose.msra.mxu0 %v873
    %877 = vmatprep.subr.bf16.mxu0 0
    %878 = vmatpush1.bf16.xpose.msra.mxu0 0
    %879 = vmatprep.subr.bf16.mxu0 0
    %880 = vmatpush1.bf16.xpose.msra.mxu0 0
    %881 = vmatprep.subr.bf16.mxu0 0
    %882 = vmatpush1.bf16.xpose.msra.mxu0 0
    %883 = vmatprep.subr.bf16.mxu0 0
    %884 = vmatpush1.bf16.xpose.msra.mxu0 0
    %885 = vmatprep.subr.bf16.mxu0 0
    %886 = vmatpush1.bf16.xpose.msra.mxu0 0
    %887 = vmatprep.subr.bf16.mxu0 0
    %888 = vmatpush1.bf16.xpose.msra.mxu0 0
    %889 = vmatprep.subr.bf16.mxu0 0
    %890 = vmatpush1.bf16.xpose.msra.mxu0 0
    %891 = vmatprep.subr.bf16.mxu0 0
    %892 = vmatpush1.bf16.xpose.msra.mxu0 0
    %893 = vmatprep.subr.bf16.mxu0 0
    %894 = vmatpush1.bf16.xpose.msra.mxu0 0
    %895 = vmatprep.subr.bf16.mxu0 0
    %896 = vmatpush1.bf16.xpose.msra.mxu0 0
    %897 = vmatprep.subr.bf16.mxu0 0
    %898 = vmatpush1.bf16.xpose.msra.mxu0 0
    %899 = vmatprep.subr.bf16.mxu0 0
    %900 = vmatpush1.bf16.xpose.msra.mxu0 0
    %901 = vmatprep.subr.bf16.mxu0 0
    %902 = vmatpush1.bf16.xpose.msra.mxu0 0
    %903 = vmatprep.subr.bf16.mxu0 0
    %904 = vmatpush1.bf16.xpose.msra.mxu0 0
    %905 = vmatprep.subr.bf16.mxu0 0
    %906 = vmatpush1.bf16.xpose.msra.mxu0 0
    %907 = vmatprep.mubr.bf16.mxu0 0
    %908 = vmatmul.mubr.bf16.gmra.mrb[0].mxu0 %v870
    %v909 = vpop.f32.mrb[0].mxu0
    %v910 = vadd.f32 0.0, %v909
    %v911 = vpop.f32.mrb[0].mxu0
    %v912 = vpop.f32.mrb[0].mxu0
    %v913 = vpop.f32.mrb[0].mxu0
    %914 = vdwg.mxu0
    %v917 = vunpack.c.l.b16 %v50
    %v918 = vunpack.c.l.b16 %v51
    %v919 = vpack.c.b16 %v918, %v917
    %v921 = vsel %vm409, %v336, 0
    %v924 = vsel %vm409, %v919, 0
    %926 = vmatprep.subr.bf16.mxu0 0
    %927 = vmatpush1.bf16.xpose.msra.mxu0 %v924
    %928 = vmatprep.subr.bf16.mxu0 0
    %929 = vmatpush1.bf16.xpose.msra.mxu0 0
    %930 = vmatprep.subr.bf16.mxu0 0
    %931 = vmatpush1.bf16.xpose.msra.mxu0 0
    %932 = vmatprep.subr.bf16.mxu0 0
    %933 = vmatpush1.bf16.xpose.msra.mxu0 0
    %934 = vmatprep.subr.bf16.mxu0 0
    %935 = vmatpush1.bf16.xpose.msra.mxu0 0
    %936 = vmatprep.subr.bf16.mxu0 0
    %937 = vmatpush1.bf16.xpose.msra.mxu0 0
    %938 = vmatprep.subr.bf16.mxu0 0
    %939 = vmatpush1.bf16.xpose.msra.mxu0 0
    %940 = vmatprep.subr.bf16.mxu0 0
    %941 = vmatpush1.bf16.xpose.msra.mxu0 0
    %942 = vmatprep.subr.bf16.mxu0 0
    %943 = vmatpush1.bf16.xpose.msra.mxu0 0
    %944 = vmatprep.subr.bf16.mxu0 0
    %945 = vmatpush1.bf16.xpose.msra.mxu0 0
    %946 = vmatprep.subr.bf16.mxu0 0
    %947 = vmatpush1.bf16.xpose.msra.mxu0 0
    %948 = vmatprep.subr.bf16.mxu0 0
    %949 = vmatpush1.bf16.xpose.msra.mxu0 0
    %950 = vmatprep.subr.bf16.mxu0 0
    %951 = vmatpush1.bf16.xpose.msra.mxu0 0
    %952 = vmatprep.subr.bf16.mxu0 0
    %953 = vmatpush1.bf16.xpose.msra.mxu0 0
    %954 = vmatprep.subr.bf16.mxu0 0
    %955 = vmatpush1.bf16.xpose.msra.mxu0 0
    %956 = vmatprep.subr.bf16.mxu0 0
    %957 = vmatpush1.bf16.xpose.msra.mxu0 0
    %958 = vmatprep.mubr.bf16.mxu0 0
    %959 = vmatmul.mubr.bf16.gmra.mrb[0].mxu0 %v921
    %v960 = vpop.f32.mrb[0].mxu0
    %v961 = vadd.f32 0.0, %v960
    %v962 = vpop.f32.mrb[0].mxu0
    %v963 = vpop.f32.mrb[0].mxu0
    %v964 = vpop.f32.mrb[0].mxu0
    %965 = vdwg.mxu0
    %v968 = vunpack.c.l.b16 %v52
    %v969 = vunpack.c.l.b16 %v53
    %v970 = vpack.c.b16 %v969, %v968
    %v972 = vsel %vm409, %v402, 0
    %v975 = vsel %vm409, %v970, 0
    %977 = vmatprep.subr.bf16.mxu0 0
    %978 = vmatpush1.bf16.xpose.msra.mxu0 %v975
    %979 = vmatprep.subr.bf16.mxu0 0
    %980 = vmatpush1.bf16.xpose.msra.mxu0 0
    %981 = vmatprep.subr.bf16.mxu0 0
    %982 = vmatpush1.bf16.xpose.msra.mxu0 0
    %983 = vmatprep.subr.bf16.mxu0 0
    %984 = vmatpush1.bf16.xpose.msra.mxu0 0
    %985 = vmatprep.subr.bf16.mxu0 0
    %986 = vmatpush1.bf16.xpose.msra.mxu0 0
    %987 = vmatprep.subr.bf16.mxu0 0
    %988 = vmatpush1.bf16.xpose.msra.mxu0 0
    %989 = vmatprep.subr.bf16.mxu0 0
    %990 = vmatpush1.bf16.xpose.msra.mxu0 0
    %991 = vmatprep.subr.bf16.mxu0 0
    %992 = vmatpush1.bf16.xpose.msra.mxu0 0
    %993 = vmatprep.subr.bf16.mxu0 0
    %994 = vmatpush1.bf16.xpose.msra.mxu0 0
    %995 = vmatprep.subr.bf16.mxu0 0
    %996 = vmatpush1.bf16.xpose.msra.mxu0 0
    %997 = vmatprep.subr.bf16.mxu0 0
    %998 = vmatpush1.bf16.xpose.msra.mxu0 0
    %999 = vmatprep.subr.bf16.mxu0 0
    %1000 = vmatpush1.bf16.xpose.msra.mxu0 0
    %1001 = vmatprep.subr.bf16.mxu0 0
    %1002 = vmatpush1.bf16.xpose.msra.mxu0 0
    %1003 = vmatprep.subr.bf16.mxu0 0
    %1004 = vmatpush1.bf16.xpose.msra.mxu0 0
    %1005 = vmatprep.subr.bf16.mxu0 0
    %1006 = vmatpush1.bf16.xpose.msra.mxu0 0
    %1007 = vmatprep.subr.bf16.mxu0 0
    %1008 = vmatpush1.bf16.xpose.msra.mxu0 0
    %1009 = vmatprep.mubr.bf16.mxu0 0
    %1010 = vmatmul.mubr.bf16.gmra.mrb[0].mxu0 %v972
    %v1011 = vpop.f32.mrb[0].mxu0
    %v1012 = vadd.f32 0.0, %v1011
    %v1013 = vpop.f32.mrb[0].mxu0
    %v1014 = vpop.f32.mrb[0].mxu0
    %v1015 = vpop.f32.mrb[0].mxu0
    %1016 = vdwg.mxu0
    %v1019 = vunpack.c.l.b16 %v54
    %v1020 = vunpack.c.l.b16 %v55
    %v1021 = vpack.c.b16 %v1020, %v1019
    %v1023 = vsel %vm409, %v333, 0
    %v1026 = vsel %vm409, %v1021, 0
    %1028 = vmatprep.subr.bf16.mxu0 0
    %1029 = vmatpush1.bf16.xpose.msra.mxu0 %v1026
    %1030 = vmatprep.subr.bf16.mxu0 0
    %1031 = vmatpush1.bf16.xpose.msra.mxu0 0
    %1032 = vmatprep.subr.bf16.mxu0 0
    %1033 = vmatpush1.bf16.xpose.msra.mxu0 0
    %1034 = vmatprep.subr.bf16.mxu0 0
    %1035 = vmatpush1.bf16.xpose.msra.mxu0 0
    %1036 = vmatprep.subr.bf16.mxu0 0
    %1037 = vmatpush1.bf16.xpose.msra.mxu0 0
    %1038 = vmatprep.subr.bf16.mxu0 0
    %1039 = vmatpush1.bf16.xpose.msra.mxu0 0
    %1040 = vmatprep.subr.bf16.mxu0 0
    %1041 = vmatpush1.bf16.xpose.msra.mxu0 0
    %1042 = vmatprep.subr.bf16.mxu0 0
    %1043 = vmatpush1.bf16.xpose.msra.mxu0 0
    %1044 = vmatprep.subr.bf16.mxu0 0
    %1045 = vmatpush1.bf16.xpose.msra.mxu0 0
    %1046 = vmatprep.subr.bf16.mxu0 0
    %1047 = vmatpush1.bf16.xpose.msra.mxu0 0
    %1048 = vmatprep.subr.bf16.mxu0 0
    %1049 = vmatpush1.bf16.xpose.msra.mxu0 0
    %1050 = vmatprep.subr.bf16.mxu0 0
    %1051 = vmatpush1.bf16.xpose.msra.mxu0 0
    %1052 = vmatprep.subr.bf16.mxu0 0
    %1053 = vmatpush1.bf16.xpose.msra.mxu0 0
    %1054 = vmatprep.subr.bf16.mxu0 0
    %1055 = vmatpush1.bf16.xpose.msra.mxu0 0
    %1056 = vmatprep.subr.bf16.mxu0 0
    %1057 = vmatpush1.bf16.xpose.msra.mxu0 0
    %1058 = vmatprep.subr.bf16.mxu0 0
    %1059 = vmatpush1.bf16.xpose.msra.mxu0 0
    %1060 = vmatprep.mubr.bf16.mxu0 0
    %1061 = vmatmul.mubr.bf16.gmra.mrb[0].mxu0 %v1023
    %v1062 = vpop.f32.mrb[0].mxu0
    %v1063 = vadd.f32 0.0, %v1062
    %v1064 = vpop.f32.mrb[0].mxu0
    %v1065 = vpop.f32.mrb[0].mxu0
    %v1066 = vpop.f32.mrb[0].mxu0
    %1067 = vdwg.mxu0
    %v1070 = vunpack.c.l.b16 %v56
    %v1071 = vunpack.c.l.b16 %v57
    %v1072 = vpack.c.b16 %v1071, %v1070
    %v1074 = vsel %vm409, %v399, 0
    %v1077 = vsel %vm409, %v1072, 0
    %1079 = vmatprep.subr.bf16.mxu0 0
    %1080 = vmatpush1.bf16.xpose.msra.mxu0 %v1077
    %1081 = vmatprep.subr.bf16.mxu0 0
    %1082 = vmatpush1.bf16.xpose.msra.mxu0 0
    %1083 = vmatprep.subr.bf16.mxu0 0
    %1084 = vmatpush1.bf16.xpose.msra.mxu0 0
    %1085 = vmatprep.subr.bf16.mxu0 0
    %1086 = vmatpush1.bf16.xpose.msra.mxu0 0
    %1087 = vmatprep.subr.bf16.mxu0 0
    %1088 = vmatpush1.bf16.xpose.msra.mxu0 0
    %1089 = vmatprep.subr.bf16.mxu0 0
    %1090 = vmatpush1.bf16.xpose.msra.mxu0 0
    %1091 = vmatprep.subr.bf16.mxu0 0
    %1092 = vmatpush1.bf16.xpose.msra.mxu0 0
    %1093 = vmatprep.subr.bf16.mxu0 0
    %1094 = vmatpush1.bf16.xpose.msra.mxu0 0
    %1095 = vmatprep.subr.bf16.mxu0 0
    %1096 = vmatpush1.bf16.xpose.msra.mxu0 0
    %1097 = vmatprep.subr.bf16.mxu0 0
    %1098 = vmatpush1.bf16.xpose.msra.mxu0 0
    %1099 = vmatprep.subr.bf16.mxu0 0
    %1100 = vmatpush1.bf16.xpose.msra.mxu0 0
    %1101 = vmatprep.subr.bf16.mxu0 0
    %1102 = vmatpush1.bf16.xpose.msra.mxu0 0
    %1103 = vmatprep.subr.bf16.mxu0 0
    %1104 = vmatpush1.bf16.xpose.msra.mxu0 0
    %1105 = vmatprep.subr.bf16.mxu0 0
    %1106 = vmatpush1.bf16.xpose.msra.mxu0 0
    %1107 = vmatprep.subr.bf16.mxu0 0
    %1108 = vmatpush1.bf16.xpose.msra.mxu0 0
    %1109 = vmatprep.subr.bf16.mxu0 0
    %1110 = vmatpush1.bf16.xpose.msra.mxu0 0
    %1111 = vmatprep.mubr.bf16.mxu0 0
    %1112 = vmatmul.mubr.bf16.gmra.mrb[0].mxu0 %v1074
    %v1113 = vpop.f32.mrb[0].mxu0
    %v1114 = vadd.f32 0.0, %v1113
    %v1115 = vpop.f32.mrb[0].mxu0
    %v1116 = vpop.f32.mrb[0].mxu0
    %v1117 = vpop.f32.mrb[0].mxu0
    %1118 = vdwg.mxu0
    %v1121 = vunpack.c.l.b16 %v58
    %v1122 = vunpack.c.l.b16 %v59
    %v1123 = vpack.c.b16 %v1122, %v1121
    %v1125 = vsel %vm409, %v337, 0
    %v1128 = vsel %vm409, %v1123, 0
    %1130 = vmatprep.subr.bf16.mxu0 0
    %1131 = vmatpush1.bf16.xpose.msra.mxu0 %v1128
    %1132 = vmatprep.subr.bf16.mxu0 0
    %1133 = vmatpush1.bf16.xpose.msra.mxu0 0
    %1134 = vmatprep.subr.bf16.mxu0 0
    %1135 = vmatpush1.bf16.xpose.msra.mxu0 0
    %1136 = vmatprep.subr.bf16.mxu0 0
    %1137 = vmatpush1.bf16.xpose.msra.mxu0 0
    %1138 = vmatprep.subr.bf16.mxu0 0
    %1139 = vmatpush1.bf16.xpose.msra.mxu0 0
    %1140 = vmatprep.subr.bf16.mxu0 0
    %1141 = vmatpush1.bf16.xpose.msra.mxu0 0
    %1142 = vmatprep.subr.bf16.mxu0 0
    %1143 = vmatpush1.bf16.xpose.msra.mxu0 0
    %1144 = vmatprep.subr.bf16.mxu0 0
    %1145 = vmatpush1.bf16.xpose.msra.mxu0 0
    %1146 = vmatprep.subr.bf16.mxu0 0
    %1147 = vmatpush1.bf16.xpose.msra.mxu0 0
    %1148 = vmatprep.subr.bf16.mxu0 0
    %1149 = vmatpush1.bf16.xpose.msra.mxu0 0
    %1150 = vmatprep.subr.bf16.mxu0 0
    %1151 = vmatpush1.bf16.xpose.msra.mxu0 0
    %1152 = vmatprep.subr.bf16.mxu0 0
    %1153 = vmatpush1.bf16.xpose.msra.mxu0 0
    %1154 = vmatprep.subr.bf16.mxu0 0
    %1155 = vmatpush1.bf16.xpose.msra.mxu0 0
    %1156 = vmatprep.subr.bf16.mxu0 0
    %1157 = vmatpush1.bf16.xpose.msra.mxu0 0
    %1158 = vmatprep.subr.bf16.mxu0 0
    %1159 = vmatpush1.bf16.xpose.msra.mxu0 0
    %1160 = vmatprep.subr.bf16.mxu0 0
    %1161 = vmatpush1.bf16.xpose.msra.mxu0 0
    %1162 = vmatprep.mubr.bf16.mxu0 0
    %1163 = vmatmul.mubr.bf16.gmra.mrb[0].mxu0 %v1125
    %v1164 = vpop.f32.mrb[0].mxu0
    %v1165 = vadd.f32 0.0, %v1164
    %v1166 = vpop.f32.mrb[0].mxu0
    %v1167 = vpop.f32.mrb[0].mxu0
    %v1168 = vpop.f32.mrb[0].mxu0
    %1169 = vdwg.mxu0
    %v1172 = vunpack.c.l.b16 %v60
    %v1173 = vunpack.c.l.b16 %v61
    %v1174 = vpack.c.b16 %v1173, %v1172
    %v1176 = vsel %vm409, %v403, 0
    %v1179 = vsel %vm409, %v1174, 0
    %1181 = vmatprep.subr.bf16.mxu0 0
    %1182 = vmatpush1.bf16.xpose.msra.mxu0 %v1179
    %1183 = vmatprep.subr.bf16.mxu0 0
    %1184 = vmatpush1.bf16.xpose.msra.mxu0 0
    %1185 = vmatprep.subr.bf16.mxu0 0
    %1186 = vmatpush1.bf16.xpose.msra.mxu0 0
    %1187 = vmatprep.subr.bf16.mxu0 0
    %1188 = vmatpush1.bf16.xpose.msra.mxu0 0
    %1189 = vmatprep.subr.bf16.mxu0 0
    %1190 = vmatpush1.bf16.xpose.msra.mxu0 0
    %1191 = vmatprep.subr.bf16.mxu0 0
    %1192 = vmatpush1.bf16.xpose.msra.mxu0 0
    %1193 = vmatprep.subr.bf16.mxu0 0
    %1194 = vmatpush1.bf16.xpose.msra.mxu0 0
    %1195 = vmatprep.subr.bf16.mxu0 0
    %1196 = vmatpush1.bf16.xpose.msra.mxu0 0
    %1197 = vmatprep.subr.bf16.mxu0 0
    %1198 = vmatpush1.bf16.xpose.msra.mxu0 0
    %1199 = vmatprep.subr.bf16.mxu0 0
    %1200 = vmatpush1.bf16.xpose.msra.mxu0 0
    %1201 = vmatprep.subr.bf16.mxu0 0
    %1202 = vmatpush1.bf16.xpose.msra.mxu0 0
    %1203 = vmatprep.subr.bf16.mxu0 0
    %1204 = vmatpush1.bf16.xpose.msra.mxu0 0
    %1205 = vmatprep.subr.bf16.mxu0 0
    %1206 = vmatpush1.bf16.xpose.msra.mxu0 0
    %1207 = vmatprep.subr.bf16.mxu0 0
    %1208 = vmatpush1.bf16.xpose.msra.mxu0 0
    %1209 = vmatprep.subr.bf16.mxu0 0
    %1210 = vmatpush1.bf16.xpose.msra.mxu0 0
    %1211 = vmatprep.subr.bf16.mxu0 0
    %1212 = vmatpush1.bf16.xpose.msra.mxu0 0
    %1213 = vmatprep.mubr.bf16.mxu0 0
    %1214 = vmatmul.mubr.bf16.gmra.mrb[0].mxu0 %v1176
    %v1215 = vpop.f32.mrb[0].mxu0
    %v1216 = vadd.f32 0.0, %v1215
    %v1217 = vpop.f32.mrb[0].mxu0
    %v1218 = vpop.f32.mrb[0].mxu0
    %v1219 = vpop.f32.mrb[0].mxu0
    %1220 = vdwg.mxu0
    %1222 = vrot.lane.b32.xlu0 %v164, 64
    %v1223 = vpop.permute.xlu0 %1222
    %v1240 = vrot.slane %v502, 7
    %vm1241 = vcmask 1041409
    %v1242 = vsel %vm1241, %v1240, %v451
    %v1243 = vrot.slane %v553, 6
    %vm1244 = vcmask 1042434
    %v1245 = vsel %vm1244, %v1243, %v1242
    %v1246 = vrot.slane %v604, 5
    %vm1247 = vcmask 1043459
    %v1248 = vsel %vm1247, %v1246, %v1245
    %v1249 = vrot.slane %v655, 4
    %vm1250 = vcmask 1044484
    %v1251 = vsel %vm1250, %v1249, %v1248
    %v1252 = vrot.slane %v706, 3
    %vm1253 = vcmask 1045509
    %v1254 = vsel %vm1253, %v1252, %v1251
    %v1255 = vrot.slane %v757, 2
    %vm1256 = vcmask 1046534
    %v1257 = vsel %vm1256, %v1255, %v1254
    %v1258 = vrot.slane %v808, 1
    %vm1259 = vcmask 1047559
    %v1260 = vsel %vm1259, %v1258, %v1257
    %v1261 = vrot.slane %v910, 7
    %v1262 = vsel %vm1241, %v1261, %v859
    %v1263 = vrot.slane %v961, 6
    %v1264 = vsel %vm1244, %v1263, %v1262
    %v1265 = vrot.slane %v1012, 5
    %v1266 = vsel %vm1247, %v1265, %v1264
    %v1267 = vrot.slane %v1063, 4
    %v1268 = vsel %vm1250, %v1267, %v1266
    %v1269 = vrot.slane %v1114, 3
    %v1270 = vsel %vm1253, %v1269, %v1268
    %v1271 = vrot.slane %v1165, 2
    %v1272 = vsel %vm1256, %v1271, %v1270
    %v1273 = vrot.slane %v1216, 1
    %v1274 = vsel %vm1259, %v1273, %v1272
    %vm1277 = vcmask 130048
    %v1278 = vsel %vm1277, %v164, 0
    %v1281 = vsel %vm1277, %v1223, 0
    %1283 = vmatprep.subr.bf16.mxu0 0
    %1284 = vmatpush1.bf16.xpose.msra.mxu0 %v1281
    %1285 = vmatprep.subr.bf16.mxu0 0
    %1286 = vmatpush1.bf16.xpose.msra.mxu0 0
    %1287 = vmatprep.subr.bf16.mxu0 0
    %1288 = vmatpush1.bf16.xpose.msra.mxu0 0
    %1289 = vmatprep.subr.bf16.mxu0 0
    %1290 = vmatpush1.bf16.xpose.msra.mxu0 0
    %1291 = vmatprep.subr.bf16.mxu0 0
    %1292 = vmatpush1.bf16.xpose.msra.mxu0 0
    %1293 = vmatprep.subr.bf16.mxu0 0
    %1294 = vmatpush1.bf16.xpose.msra.mxu0 0
    %1295 = vmatprep.subr.bf16.mxu0 0
    %1296 = vmatpush1.bf16.xpose.msra.mxu0 0
    %1297 = vmatprep.subr.bf16.mxu0 0
    %1298 = vmatpush1.bf16.xpose.msra.mxu0 0
    %1299 = vmatprep.subr.bf16.mxu0 0
    %1300 = vmatpush1.bf16.xpose.msra.mxu0 0
    %1301 = vmatprep.subr.bf16.mxu0 0
    %1302 = vmatpush1.bf16.xpose.msra.mxu0 0
    %1303 = vmatprep.subr.bf16.mxu0 0
    %1304 = vmatpush1.bf16.xpose.msra.mxu0 0
    %1305 = vmatprep.subr.bf16.mxu0 0
    %1306 = vmatpush1.bf16.xpose.msra.mxu0 0
    %1307 = vmatprep.subr.bf16.mxu0 0
    %1308 = vmatpush1.bf16.xpose.msra.mxu0 0
    %1309 = vmatprep.subr.bf16.mxu0 0
    %1310 = vmatpush1.bf16.xpose.msra.mxu0 0
    %1311 = vmatprep.subr.bf16.mxu0 0
    %1312 = vmatpush1.bf16.xpose.msra.mxu0 0
    %1313 = vmatprep.subr.bf16.mxu0 0
    %1314 = vmatpush1.bf16.xpose.msra.mxu0 0
    %1315 = vmatprep.mubr.bf16.mxu0 0
    %1316 = vmatmul.mubr.bf16.gmra.mrb[0].mxu0 %v1278
    %v1317 = vpop.f32.mrb[0].mxu0
    %v1318 = vadd.f32 %v1260, %v1317
    %v1319 = vpop.f32.mrb[0].mxu0
    %v1320 = vpop.f32.mrb[0].mxu0
    %v1321 = vadd.f32 %v1274, %v1320
    %v1322 = vpop.f32.mrb[0].mxu0
    %1323 = vdwg.mxu0
    %v1324 = vmul.f32 %v1318, 0.25
    %v1325 = vmul.f32 %v1321, 0.25
    %v1326 = vadd.f32 %v1324, %v62
    %v1327 = vadd.f32 %v1325, %v63
    %v1328 = vsel %vm1277, %v1326, -inf
    %1329 = vmax.xlane.f32.xlu0 %v1328
    %v1330 = vpop.xlane.xlu0 %1329
    %v1331 = vsel %vm1277, %v1327, -inf
    %1332 = vmax.xlane.f32.xlu0 %v1331
    %v1333 = vpop.xlane.xlu0 %1332
    %v1334 = vsub.f32 %v1326, %v1330
    %v1335 = vsub.f32 %v1327, %v1333
    %v1336 = vmul.f32 %v1334, 1.442695
    %v1337 = vpow.pop %v1336
    %v1338 = vmul.f32 %v1335, 1.442695
    %v1339 = vpow.pop %v1338
    %v1340 = vsel %vm1277, %v1337, 0.0
    %1341 = vadd.xlane.f32.xlu0 %v1340
    %v1342 = vpop.xlane.xlu0 %1341
    %v1343 = vsel %vm1277, %v1339, 0.0
    %1344 = vadd.xlane.f32.xlu0 %v1343
    %v1345 = vpop.xlane.xlu0 %1344
    %v1346 = vrcp.pop %v1342
    %v1347 = vrcp.pop %v1345
    %v1348 = vmul.f32 %v1337, %v1346
    %v1349 = vmul.f32 %v1339, %v1347
    %v1350 = vpack.c.bf16 %v1349, %v1348
    %v1352 = vsel %vm1277, %v1350, 0
    %1354 = vmatprep.subr.bf16.mxu0 0
    %1355 = vmatpush1.bf16.msra.mxu0 %v165
    %1356 = vmatprep.subr.bf16.mxu0 0
    %1357 = vmatpush1.bf16.msra.mxu0 0
    %1358 = vmatprep.subr.bf16.mxu0 0
    %1359 = vmatpush1.bf16.msra.mxu0 0
    %1360 = vmatprep.subr.bf16.mxu0 0
    %1361 = vmatpush1.bf16.msra.mxu0 0
    %1362 = vmatprep.subr.bf16.mxu0 0
    %1363 = vmatpush1.bf16.msra.mxu0 0
    %1364 = vmatprep.subr.bf16.mxu0 0
    %1365 = vmatpush1.bf16.msra.mxu0 0
    %1366 = vmatprep.subr.bf16.mxu0 0
    %1367 = vmatpush1.bf16.msra.mxu0 0
    %1368 = vmatprep.subr.bf16.mxu0 0
    %1369 = vmatpush1.bf16.msra.mxu0 0
    %1370 = vmatprep.subr.bf16.mxu0 0
    %1371 = vmatpush1.bf16.msra.mxu0 0
    %1372 = vmatprep.subr.bf16.mxu0 0
    %1373 = vmatpush1.bf16.msra.mxu0 0
    %1374 = vmatprep.subr.bf16.mxu0 0
    %1375 = vmatpush1.bf16.msra.mxu0 0
    %1376 = vmatprep.subr.bf16.mxu0 0
    %1377 = vmatpush1.bf16.msra.mxu0 0
    %1378 = vmatprep.subr.bf16.mxu0 0
    %1379 = vmatpush1.bf16.msra.mxu0 0
    %1380 = vmatprep.subr.bf16.mxu0 0
    %1381 = vmatpush1.bf16.msra.mxu0 0
    %1382 = vmatprep.subr.bf16.mxu0 0
    %1383 = vmatpush1.bf16.msra.mxu0 0
    %1384 = vmatprep.subr.bf16.mxu0 0
    %1385 = vmatpush1.bf16.msra.mxu0 0
    %1386 = vmatprep.mubr.bf16.mxu0 0
    %1387 = vmatmul.mubr.bf16.gmra.mrb[0].mxu0 %v1352
    %v1388 = vpop.f32.mrb[0].mxu0
    %v1389 = vadd.f32 0.0, %v1388
    %v1390 = vpop.f32.mrb[0].mxu0
    %v1391 = vpop.f32.mrb[0].mxu0
    %v1392 = vadd.f32 0.0, %v1391
    %v1393 = vpop.f32.mrb[0].mxu0
    %1394 = vdwg.mxu0
    %1395 = vrot.lane.b32.xlu0 %v164, 112
    %v1396 = vpop.permute.xlu0 %1395
    %1397 = vrot.lane.b32.xlu0 %v164, 48
    %v1398 = vpop.permute.xlu0 %1397
    %v1399 = vrot.slane %v451, 1
    %v1400 = vsel %vm1241, %v502, %v1399
    %v1401 = vrot.slane %v553, 7
    %v1402 = vsel %vm1244, %v1401, %v1400
    %v1403 = vrot.slane %v604, 6
    %v1404 = vsel %vm1247, %v1403, %v1402
    %v1405 = vrot.slane %v655, 5
    %v1406 = vsel %vm1250, %v1405, %v1404
    %v1407 = vrot.slane %v706, 4
    %v1408 = vsel %vm1253, %v1407, %v1406
    %v1409 = vrot.slane %v757, 3
    %v1410 = vsel %vm1256, %v1409, %v1408
    %v1411 = vrot.slane %v808, 2
    %v1412 = vsel %vm1259, %v1411, %v1410
    %v1413 = vrot.slane %v859, 1
    %v1414 = vsel %vm1241, %v910, %v1413
    %v1415 = vrot.slane %v961, 7
    %v1416 = vsel %vm1244, %v1415, %v1414
    %v1417 = vrot.slane %v1012, 6
    %v1418 = vsel %vm1247, %v1417, %v1416
    %v1419 = vrot.slane %v1063, 5
    %v1420 = vsel %vm1250, %v1419, %v1418
    %v1421 = vrot.slane %v1114, 4
    %v1422 = vsel %vm1253, %v1421, %v1420
    %v1423 = vrot.slane %v1165, 3
    %v1424 = vsel %vm1256, %v1423, %v1422
    %v1425 = vrot.slane %v1216, 2
    %v1426 = vsel %vm1259, %v1425, %v1424
    %v1430 = vsel %vm1277, %v1396, 0
    %v1433 = vsel %vm1277, %v1398, 0
    %1435 = vmatprep.subr.bf16.mxu0 0
    %1436 = vmatpush1.bf16.xpose.msra.mxu0 %v1433
    %1437 = vmatprep.subr.bf16.mxu0 0
    %1438 = vmatpush1.bf16.xpose.msra.mxu0 0
    %1439 = vmatprep.subr.bf16.mxu0 0
    %1440 = vmatpush1.bf16.xpose.msra.mxu0 0
    %1441 = vmatprep.subr.bf16.mxu0 0
    %1442 = vmatpush1.bf16.xpose.msra.mxu0 0
    %1443 = vmatprep.subr.bf16.mxu0 0
    %1444 = vmatpush1.bf16.xpose.msra.mxu0 0
    %1445 = vmatprep.subr.bf16.mxu0 0
    %1446 = vmatpush1.bf16.xpose.msra.mxu0 0
    %1447 = vmatprep.subr.bf16.mxu0 0
    %1448 = vmatpush1.bf16.xpose.msra.mxu0 0
    %1449 = vmatprep.subr.bf16.mxu0 0
    %1450 = vmatpush1.bf16.xpose.msra.mxu0 0
    %1451 = vmatprep.subr.bf16.mxu0 0
    %1452 = vmatpush1.bf16.xpose.msra.mxu0 0
    %1453 = vmatprep.subr.bf16.mxu0 0
    %1454 = vmatpush1.bf16.xpose.msra.mxu0 0
    %1455 = vmatprep.subr.bf16.mxu0 0
    %1456 = vmatpush1.bf16.xpose.msra.mxu0 0
    %1457 = vmatprep.subr.bf16.mxu0 0
    %1458 = vmatpush1.bf16.xpose.msra.mxu0 0
    %1459 = vmatprep.subr.bf16.mxu0 0
    %1460 = vmatpush1.bf16.xpose.msra.mxu0 0
    %1461 = vmatprep.subr.bf16.mxu0 0
    %1462 = vmatpush1.bf16.xpose.msra.mxu0 0
    %1463 = vmatprep.subr.bf16.mxu0 0
    %1464 = vmatpush1.bf16.xpose.msra.mxu0 0
    %1465 = vmatprep.subr.bf16.mxu0 0
    %1466 = vmatpush1.bf16.xpose.msra.mxu0 0
    %1467 = vmatprep.mubr.bf16.mxu0 0
    %1468 = vmatmul.mubr.bf16.gmra.mrb[0].mxu0 %v1430
    %v1469 = vpop.f32.mrb[0].mxu0
    %v1470 = vadd.f32 %v1412, %v1469
    %v1471 = vpop.f32.mrb[0].mxu0
    %v1472 = vpop.f32.mrb[0].mxu0
    %v1473 = vadd.f32 %v1426, %v1472
    %v1474 = vpop.f32.mrb[0].mxu0
    %1475 = vdwg.mxu0
    %v1476 = vmul.f32 %v1470, 0.25
    %v1477 = vmul.f32 %v1473, 0.25
    %v1478 = vadd.f32 %v1476, %v62
    %v1479 = vadd.f32 %v1477, %v63
    %v1480 = vsel %vm1277, %v1478, -inf
    %1481 = vmax.xlane.f32.xlu0 %v1480
    %v1482 = vpop.xlane.xlu0 %1481
    %v1483 = vsel %vm1277, %v1479, -inf
    %1484 = vmax.xlane.f32.xlu0 %v1483
    %v1485 = vpop.xlane.xlu0 %1484
    %v1486 = vsub.f32 %v1478, %v1482
    %v1487 = vsub.f32 %v1479, %v1485
    %v1488 = vmul.f32 %v1486, 1.442695
    %v1489 = vpow.pop %v1488
    %v1490 = vmul.f32 %v1487, 1.442695
    %v1491 = vpow.pop %v1490
    %v1492 = vsel %vm1277, %v1489, 0.0
    %1493 = vadd.xlane.f32.xlu0 %v1492
    %v1494 = vpop.xlane.xlu0 %1493
    %v1495 = vsel %vm1277, %v1491, 0.0
    %1496 = vadd.xlane.f32.xlu0 %v1495
    %v1497 = vpop.xlane.xlu0 %1496
    %v1498 = vrcp.pop %v1494
    %v1499 = vrcp.pop %v1497
    %v1500 = vmul.f32 %v1489, %v1498
    %v1501 = vmul.f32 %v1491, %v1499
    %v1502 = vpack.c.bf16 %v1501, %v1500
    %1504 = vrot.lane.b32.xlu0 %v165, 112
    %v1505 = vpop.permute.xlu0 %1504
    %v1508 = vsel %vm1277, %v1502, 0
    %1510 = vmatprep.subr.bf16.mxu0 0
    %1511 = vmatpush1.bf16.msra.mxu0 %v1505
    %1512 = vmatprep.subr.bf16.mxu0 0
    %1513 = vmatpush1.bf16.msra.mxu0 0
    %1514 = vmatprep.subr.bf16.mxu0 0
    %1515 = vmatpush1.bf16.msra.mxu0 0
    %1516 = vmatprep.subr.bf16.mxu0 0
    %1517 = vmatpush1.bf16.msra.mxu0 0
    %1518 = vmatprep.subr.bf16.mxu0 0
    %1519 = vmatpush1.bf16.msra.mxu0 0
    %1520 = vmatprep.subr.bf16.mxu0 0
    %1521 = vmatpush1.bf16.msra.mxu0 0
    %1522 = vmatprep.subr.bf16.mxu0 0
    %1523 = vmatpush1.bf16.msra.mxu0 0
    %1524 = vmatprep.subr.bf16.mxu0 0
    %1525 = vmatpush1.bf16.msra.mxu0 0
    %1526 = vmatprep.subr.bf16.mxu0 0
    %1527 = vmatpush1.bf16.msra.mxu0 0
    %1528 = vmatprep.subr.bf16.mxu0 0
    %1529 = vmatpush1.bf16.msra.mxu0 0
    %1530 = vmatprep.subr.bf16.mxu0 0
    %1531 = vmatpush1.bf16.msra.mxu0 0
    %1532 = vmatprep.subr.bf16.mxu0 0
    %1533 = vmatpush1.bf16.msra.mxu0 0
    %1534 = vmatprep.subr.bf16.mxu0 0
    %1535 = vmatpush1.bf16.msra.mxu0 0
    %1536 = vmatprep.subr.bf16.mxu0 0
    %1537 = vmatpush1.bf16.msra.mxu0 0
    %1538 = vmatprep.subr.bf16.mxu0 0
    %1539 = vmatpush1.bf16.msra.mxu0 0
    %1540 = vmatprep.subr.bf16.mxu0 0
    %1541 = vmatpush1.bf16.msra.mxu0 0
    %1542 = vmatprep.mubr.bf16.mxu0 0
    %1543 = vmatmul.mubr.bf16.gmra.mrb[0].mxu0 %v1508
    %v1544 = vpop.f32.mrb[0].mxu0
    %v1545 = vadd.f32 0.0, %v1544
    %v1546 = vpop.f32.mrb[0].mxu0
    %v1547 = vpop.f32.mrb[0].mxu0
    %v1548 = vadd.f32 0.0, %v1547
    %v1549 = vpop.f32.mrb[0].mxu0
    %1550 = vdwg.mxu0
    %1551 = vrot.lane.b32.xlu0 %v164, 96
    %v1552 = vpop.permute.xlu0 %1551
    %1553 = vrot.lane.b32.xlu0 %v164, 32
    %v1554 = vpop.permute.xlu0 %1553
    %v1555 = vrot.slane %v451, 2
    %v1556 = vrot.slane %v502, 1
    %v1557 = vsel %vm1241, %v1556, %v1555
    %v1558 = vsel %vm1244, %v553, %v1557
    %v1559 = vrot.slane %v604, 7
    %v1560 = vsel %vm1247, %v1559, %v1558
    %v1561 = vrot.slane %v655, 6
    %v1562 = vsel %vm1250, %v1561, %v1560
    %v1563 = vrot.slane %v706, 5
    %v1564 = vsel %vm1253, %v1563, %v1562
    %v1565 = vrot.slane %v757, 4
    %v1566 = vsel %vm1256, %v1565, %v1564
    %v1567 = vrot.slane %v808, 3
    %v1568 = vsel %vm1259, %v1567, %v1566
    %v1569 = vrot.slane %v859, 2
    %v1570 = vrot.slane %v910, 1
    %v1571 = vsel %vm1241, %v1570, %v1569
    %v1572 = vsel %vm1244, %v961, %v1571
    %v1573 = vrot.slane %v1012, 7
    %v1574 = vsel %vm1247, %v1573, %v1572
    %v1575 = vrot.slane %v1063, 6
    %v1576 = vsel %vm1250, %v1575, %v1574
    %v1577 = vrot.slane %v1114, 5
    %v1578 = vsel %vm1253, %v1577, %v1576
    %v1579 = vrot.slane %v1165, 4
    %v1580 = vsel %vm1256, %v1579, %v1578
    %v1581 = vrot.slane %v1216, 3
    %v1582 = vsel %vm1259, %v1581, %v1580
    %v1586 = vsel %vm1277, %v1552, 0
    %v1589 = vsel %vm1277, %v1554, 0
    %1591 = vmatprep.subr.bf16.mxu0 0
    %1592 = vmatpush1.bf16.xpose.msra.mxu0 %v1589
    %1593 = vmatprep.subr.bf16.mxu0 0
    %1594 = vmatpush1.bf16.xpose.msra.mxu0 0
    %1595 = vmatprep.subr.bf16.mxu0 0
    %1596 = vmatpush1.bf16.xpose.msra.mxu0 0
    %1597 = vmatprep.subr.bf16.mxu0 0
    %1598 = vmatpush1.bf16.xpose.msra.mxu0 0
    %1599 = vmatprep.subr.bf16.mxu0 0
    %1600 = vmatpush1.bf16.xpose.msra.mxu0 0
    %1601 = vmatprep.subr.bf16.mxu0 0
    %1602 = vmatpush1.bf16.xpose.msra.mxu0 0
    %1603 = vmatprep.subr.bf16.mxu0 0
    %1604 = vmatpush1.bf16.xpose.msra.mxu0 0
    %1605 = vmatprep.subr.bf16.mxu0 0
    %1606 = vmatpush1.bf16.xpose.msra.mxu0 0
    %1607 = vmatprep.subr.bf16.mxu0 0
    %1608 = vmatpush1.bf16.xpose.msra.mxu0 0
    %1609 = vmatprep.subr.bf16.mxu0 0
    %1610 = vmatpush1.bf16.xpose.msra.mxu0 0
    %1611 = vmatprep.subr.bf16.mxu0 0
    %1612 = vmatpush1.bf16.xpose.msra.mxu0 0
    %1613 = vmatprep.subr.bf16.mxu0 0
    %1614 = vmatpush1.bf16.xpose.msra.mxu0 0
    %1615 = vmatprep.subr.bf16.mxu0 0
    %1616 = vmatpush1.bf16.xpose.msra.mxu0 0
    %1617 = vmatprep.subr.bf16.mxu0 0
    %1618 = vmatpush1.bf16.xpose.msra.mxu0 0
    %1619 = vmatprep.subr.bf16.mxu0 0
    %1620 = vmatpush1.bf16.xpose.msra.mxu0 0
    %1621 = vmatprep.subr.bf16.mxu0 0
    %1622 = vmatpush1.bf16.xpose.msra.mxu0 0
    %1623 = vmatprep.mubr.bf16.mxu0 0
    %1624 = vmatmul.mubr.bf16.gmra.mrb[0].mxu0 %v1586
    %v1625 = vpop.f32.mrb[0].mxu0
    %v1626 = vadd.f32 %v1568, %v1625
    %v1627 = vpop.f32.mrb[0].mxu0
    %v1628 = vpop.f32.mrb[0].mxu0
    %v1629 = vadd.f32 %v1582, %v1628
    %v1630 = vpop.f32.mrb[0].mxu0
    %1631 = vdwg.mxu0
    %v1632 = vmul.f32 %v1626, 0.25
    %v1633 = vmul.f32 %v1629, 0.25
    %v1634 = vadd.f32 %v1632, %v62
    %v1635 = vadd.f32 %v1633, %v63
    %v1636 = vsel %vm1277, %v1634, -inf
    %1637 = vmax.xlane.f32.xlu0 %v1636
    %v1638 = vpop.xlane.xlu0 %1637
    %v1639 = vsel %vm1277, %v1635, -inf
    %1640 = vmax.xlane.f32.xlu0 %v1639
    %v1641 = vpop.xlane.xlu0 %1640
    %v1642 = vsub.f32 %v1634, %v1638
    %v1643 = vsub.f32 %v1635, %v1641
    %v1644 = vmul.f32 %v1642, 1.442695
    %v1645 = vpow.pop %v1644
    %v1646 = vmul.f32 %v1643, 1.442695
    %v1647 = vpow.pop %v1646
    %v1648 = vsel %vm1277, %v1645, 0.0
    %1649 = vadd.xlane.f32.xlu0 %v1648
    %v1650 = vpop.xlane.xlu0 %1649
    %v1651 = vsel %vm1277, %v1647, 0.0
    %1652 = vadd.xlane.f32.xlu0 %v1651
    %v1653 = vpop.xlane.xlu0 %1652
    %v1654 = vrcp.pop %v1650
    %v1655 = vrcp.pop %v1653
    %v1656 = vmul.f32 %v1645, %v1654
    %v1657 = vmul.f32 %v1647, %v1655
    %v1658 = vpack.c.bf16 %v1657, %v1656
    %1659 = vrot.lane.b32.xlu0 %v165, 96
    %v1660 = vpop.permute.xlu0 %1659
    %v1663 = vsel %vm1277, %v1658, 0
    %1665 = vmatprep.subr.bf16.mxu0 0
    %1666 = vmatpush1.bf16.msra.mxu0 %v1660
    %1667 = vmatprep.subr.bf16.mxu0 0
    %1668 = vmatpush1.bf16.msra.mxu0 0
    %1669 = vmatprep.subr.bf16.mxu0 0
    %1670 = vmatpush1.bf16.msra.mxu0 0
    %1671 = vmatprep.subr.bf16.mxu0 0
    %1672 = vmatpush1.bf16.msra.mxu0 0
    %1673 = vmatprep.subr.bf16.mxu0 0
    %1674 = vmatpush1.bf16.msra.mxu0 0
    %1675 = vmatprep.subr.bf16.mxu0 0
    %1676 = vmatpush1.bf16.msra.mxu0 0
    %1677 = vmatprep.subr.bf16.mxu0 0
    %1678 = vmatpush1.bf16.msra.mxu0 0
    %1679 = vmatprep.subr.bf16.mxu0 0
    %1680 = vmatpush1.bf16.msra.mxu0 0
    %1681 = vmatprep.subr.bf16.mxu0 0
    %1682 = vmatpush1.bf16.msra.mxu0 0
    %1683 = vmatprep.subr.bf16.mxu0 0
    %1684 = vmatpush1.bf16.msra.mxu0 0
    %1685 = vmatprep.subr.bf16.mxu0 0
    %1686 = vmatpush1.bf16.msra.mxu0 0
    %1687 = vmatprep.subr.bf16.mxu0 0
    %1688 = vmatpush1.bf16.msra.mxu0 0
    %1689 = vmatprep.subr.bf16.mxu0 0
    %1690 = vmatpush1.bf16.msra.mxu0 0
    %1691 = vmatprep.subr.bf16.mxu0 0
    %1692 = vmatpush1.bf16.msra.mxu0 0
    %1693 = vmatprep.subr.bf16.mxu0 0
    %1694 = vmatpush1.bf16.msra.mxu0 0
    %1695 = vmatprep.subr.bf16.mxu0 0
    %1696 = vmatpush1.bf16.msra.mxu0 0
    %1697 = vmatprep.mubr.bf16.mxu0 0
    %1698 = vmatmul.mubr.bf16.gmra.mrb[0].mxu0 %v1663
    %v1699 = vpop.f32.mrb[0].mxu0
    %v1700 = vadd.f32 0.0, %v1699
    %v1701 = vpop.f32.mrb[0].mxu0
    %v1702 = vpop.f32.mrb[0].mxu0
    %v1703 = vadd.f32 0.0, %v1702
    %v1704 = vpop.f32.mrb[0].mxu0
    %1705 = vdwg.mxu0
    %1706 = vrot.lane.b32.xlu0 %v164, 80
    %v1707 = vpop.permute.xlu0 %1706
    %1708 = vrot.lane.b32.xlu0 %v164, 16
    %v1709 = vpop.permute.xlu0 %1708
    %v1710 = vrot.slane %v451, 3
    %v1711 = vrot.slane %v502, 2
    %v1712 = vsel %vm1241, %v1711, %v1710
    %v1713 = vrot.slane %v553, 1
    %v1714 = vsel %vm1244, %v1713, %v1712
    %v1715 = vsel %vm1247, %v604, %v1714
    %v1716 = vrot.slane %v655, 7
    %v1717 = vsel %vm1250, %v1716, %v1715
    %v1718 = vrot.slane %v706, 6
    %v1719 = vsel %vm1253, %v1718, %v1717
    %v1720 = vrot.slane %v757, 5
    %v1721 = vsel %vm1256, %v1720, %v1719
    %v1722 = vrot.slane %v808, 4
    %v1723 = vsel %vm1259, %v1722, %v1721
    %v1724 = vrot.slane %v859, 3
    %v1725 = vrot.slane %v910, 2
    %v1726 = vsel %vm1241, %v1725, %v1724
    %v1727 = vrot.slane %v961, 1
    %v1728 = vsel %vm1244, %v1727, %v1726
    %v1729 = vsel %vm1247, %v1012, %v1728
    %v1730 = vrot.slane %v1063, 7
    %v1731 = vsel %vm1250, %v1730, %v1729
    %v1732 = vrot.slane %v1114, 6
    %v1733 = vsel %vm1253, %v1732, %v1731
    %v1734 = vrot.slane %v1165, 5
    %v1735 = vsel %vm1256, %v1734, %v1733
    %v1736 = vrot.slane %v1216, 4
    %v1737 = vsel %vm1259, %v1736, %v1735
    %v1741 = vsel %vm1277, %v1707, 0
    %v1744 = vsel %vm1277, %v1709, 0
    %1746 = vmatprep.subr.bf16.mxu0 0
    %1747 = vmatpush1.bf16.xpose.msra.mxu0 %v1744
    %1748 = vmatprep.subr.bf16.mxu0 0
    %1749 = vmatpush1.bf16.xpose.msra.mxu0 0
    %1750 = vmatprep.subr.bf16.mxu0 0
    %1751 = vmatpush1.bf16.xpose.msra.mxu0 0
    %1752 = vmatprep.subr.bf16.mxu0 0
    %1753 = vmatpush1.bf16.xpose.msra.mxu0 0
    %1754 = vmatprep.subr.bf16.mxu0 0
    %1755 = vmatpush1.bf16.xpose.msra.mxu0 0
    %1756 = vmatprep.subr.bf16.mxu0 0
    %1757 = vmatpush1.bf16.xpose.msra.mxu0 0
    %1758 = vmatprep.subr.bf16.mxu0 0
    %1759 = vmatpush1.bf16.xpose.msra.mxu0 0
    %1760 = vmatprep.subr.bf16.mxu0 0
    %1761 = vmatpush1.bf16.xpose.msra.mxu0 0
    %1762 = vmatprep.subr.bf16.mxu0 0
    %1763 = vmatpush1.bf16.xpose.msra.mxu0 0
    %1764 = vmatprep.subr.bf16.mxu0 0
    %1765 = vmatpush1.bf16.xpose.msra.mxu0 0
    %1766 = vmatprep.subr.bf16.mxu0 0
    %1767 = vmatpush1.bf16.xpose.msra.mxu0 0
    %1768 = vmatprep.subr.bf16.mxu0 0
    %1769 = vmatpush1.bf16.xpose.msra.mxu0 0
    %1770 = vmatprep.subr.bf16.mxu0 0
    %1771 = vmatpush1.bf16.xpose.msra.mxu0 0
    %1772 = vmatprep.subr.bf16.mxu0 0
    %1773 = vmatpush1.bf16.xpose.msra.mxu0 0
    %1774 = vmatprep.subr.bf16.mxu0 0
    %1775 = vmatpush1.bf16.xpose.msra.mxu0 0
    %1776 = vmatprep.subr.bf16.mxu0 0
    %1777 = vmatpush1.bf16.xpose.msra.mxu0 0
    %1778 = vmatprep.mubr.bf16.mxu0 0
    %1779 = vmatmul.mubr.bf16.gmra.mrb[0].mxu0 %v1741
    %v1780 = vpop.f32.mrb[0].mxu0
    %v1781 = vadd.f32 %v1723, %v1780
    %v1782 = vpop.f32.mrb[0].mxu0
    %v1783 = vpop.f32.mrb[0].mxu0
    %v1784 = vadd.f32 %v1737, %v1783
    %v1785 = vpop.f32.mrb[0].mxu0
    %1786 = vdwg.mxu0
    %v1787 = vmul.f32 %v1781, 0.25
    %v1788 = vmul.f32 %v1784, 0.25
    %v1789 = vadd.f32 %v1787, %v62
    %v1790 = vadd.f32 %v1788, %v63
    %v1791 = vsel %vm1277, %v1789, -inf
    %1792 = vmax.xlane.f32.xlu0 %v1791
    %v1793 = vpop.xlane.xlu0 %1792
    %v1794 = vsel %vm1277, %v1790, -inf
    %1795 = vmax.xlane.f32.xlu0 %v1794
    %v1796 = vpop.xlane.xlu0 %1795
    %v1797 = vsub.f32 %v1789, %v1793
    %v1798 = vsub.f32 %v1790, %v1796
    %v1799 = vmul.f32 %v1797, 1.442695
    %v1800 = vpow.pop %v1799
    %v1801 = vmul.f32 %v1798, 1.442695
    %v1802 = vpow.pop %v1801
    %v1803 = vsel %vm1277, %v1800, 0.0
    %1804 = vadd.xlane.f32.xlu0 %v1803
    %v1805 = vpop.xlane.xlu0 %1804
    %v1806 = vsel %vm1277, %v1802, 0.0
    %1807 = vadd.xlane.f32.xlu0 %v1806
    %v1808 = vpop.xlane.xlu0 %1807
    %v1809 = vrcp.pop %v1805
    %v1810 = vrcp.pop %v1808
    %v1811 = vmul.f32 %v1800, %v1809
    %v1812 = vmul.f32 %v1802, %v1810
    %v1813 = vpack.c.bf16 %v1812, %v1811
    %1814 = vrot.lane.b32.xlu0 %v165, 80
    %v1815 = vpop.permute.xlu0 %1814
    %v1818 = vsel %vm1277, %v1813, 0
    %1820 = vmatprep.subr.bf16.mxu0 0
    %1821 = vmatpush1.bf16.msra.mxu0 %v1815
    %1822 = vmatprep.subr.bf16.mxu0 0
    %1823 = vmatpush1.bf16.msra.mxu0 0
    %1824 = vmatprep.subr.bf16.mxu0 0
    %1825 = vmatpush1.bf16.msra.mxu0 0
    %1826 = vmatprep.subr.bf16.mxu0 0
    %1827 = vmatpush1.bf16.msra.mxu0 0
    %1828 = vmatprep.subr.bf16.mxu0 0
    %1829 = vmatpush1.bf16.msra.mxu0 0
    %1830 = vmatprep.subr.bf16.mxu0 0
    %1831 = vmatpush1.bf16.msra.mxu0 0
    %1832 = vmatprep.subr.bf16.mxu0 0
    %1833 = vmatpush1.bf16.msra.mxu0 0
    %1834 = vmatprep.subr.bf16.mxu0 0
    %1835 = vmatpush1.bf16.msra.mxu0 0
    %1836 = vmatprep.subr.bf16.mxu0 0
    %1837 = vmatpush1.bf16.msra.mxu0 0
    %1838 = vmatprep.subr.bf16.mxu0 0
    %1839 = vmatpush1.bf16.msra.mxu0 0
    %1840 = vmatprep.subr.bf16.mxu0 0
    %1841 = vmatpush1.bf16.msra.mxu0 0
    %1842 = vmatprep.subr.bf16.mxu0 0
    %1843 = vmatpush1.bf16.msra.mxu0 0
    %1844 = vmatprep.subr.bf16.mxu0 0
    %1845 = vmatpush1.bf16.msra.mxu0 0
    %1846 = vmatprep.subr.bf16.mxu0 0
    %1847 = vmatpush1.bf16.msra.mxu0 0
    %1848 = vmatprep.subr.bf16.mxu0 0
    %1849 = vmatpush1.bf16.msra.mxu0 0
    %1850 = vmatprep.subr.bf16.mxu0 0
    %1851 = vmatpush1.bf16.msra.mxu0 0
    %1852 = vmatprep.mubr.bf16.mxu0 0
    %1853 = vmatmul.mubr.bf16.gmra.mrb[0].mxu0 %v1818
    %v1854 = vpop.f32.mrb[0].mxu0
    %v1855 = vadd.f32 0.0, %v1854
    %v1856 = vpop.f32.mrb[0].mxu0
    %v1857 = vpop.f32.mrb[0].mxu0
    %v1858 = vadd.f32 0.0, %v1857
    %v1859 = vpop.f32.mrb[0].mxu0
    %1860 = vdwg.mxu0
    %1863 = vrot.lane.b32.xlu0 %v1545, 16
    %v1864 = vpop.permute.xlu0 %1863
    %1865 = vrot.lane.b32.xlu0 %v1548, 16
    %v1866 = vpop.permute.xlu0 %1865
    %1871 = vrot.lane.b32.xlu0 %v1700, 32
    %v1872 = vpop.permute.xlu0 %1871
    %1873 = vrot.lane.b32.xlu0 %v1703, 32
    %v1874 = vpop.permute.xlu0 %1873
    %1879 = vrot.lane.b32.xlu0 %v1855, 48
    %v1880 = vpop.permute.xlu0 %1879
    %1881 = vrot.lane.b32.xlu0 %v1858, 48
    %v1882 = vpop.permute.xlu0 %1881
    %v1885 = vsel %vm1277, %v1389, %v1864
    %v1886 = vsel %vm1277, %v1392, %v1866
    %vm1887 = vcmask 261120
    %v1888 = vsel %vm1887, %v1885, %v1872
    %v1889 = vsel %vm1887, %v1886, %v1874
    %vm1890 = vcmask 392192
    %v1891 = vsel %vm1890, %v1888, %v1880
    %v1892 = vsel %vm1890, %v1889, %v1882
    %v1895 = vcombine.high %v1348, %v1348
    %v1897 = vunpack.c.l.s4 1966171168
    %v1898 = vunpack.c.0.s8 %v1897
    %v1899 = vlaneseq
    %v1900 = vshrl.u32 %v1899, 7
    %v1901 = vsub.s32 %v1898, %v1900
    %v1902 = vrot.slane %v1348, %v1901
    %v1904 = vunpack.c.l.s4 1966171168
    %v1905 = vunpack.c.0.s8 %v1904
    %v1906 = vlaneseq
    %v1907 = vshrl.u32 %v1906, 7
    %v1908 = vsub.s32 %v1905, %v1907
    %v1909 = vrot.slane %v1895, %v1908
    %v1910 = vcombine.high %v1902, %v1902
    %v1911 = vcombine.high %v1909, %v1909
    %v1913 = vunpack.c.l.s4 1966171168
    %v1914 = vunpack.c.0.s8 %v1913
    %v1915 = vlaneseq
    %v1916 = vshrl.u32 %v1915, 7
    %v1917 = vsub.s32 %v1914, %v1916
    %v1918 = vrot.slane %v1902, %v1917
    %v1920 = vunpack.c.l.s4 1966171168
    %v1921 = vunpack.c.0.s8 %v1920
    %v1922 = vlaneseq
    %v1923 = vshrl.u32 %v1922, 7
    %v1924 = vsub.s32 %v1921, %v1923
    %v1925 = vrot.slane %v1909, %v1924
    %v1927 = vunpack.c.l.s4 1966171168
    %v1928 = vunpack.c.0.s8 %v1927
    %v1929 = vlaneseq
    %v1930 = vshrl.u32 %v1929, 7
    %v1931 = vsub.s32 %v1928, %v1930
    %v1932 = vrot.slane %v1910, %v1931
    %v1934 = vunpack.c.l.s4 1966171168
    %v1935 = vunpack.c.0.s8 %v1934
    %v1936 = vlaneseq
    %v1937 = vshrl.u32 %v1936, 7
    %v1938 = vsub.s32 %v1935, %v1937
    %v1939 = vrot.slane %v1911, %v1938
    %v1940 = vcombine.high %v1918, %v1918
    %v1941 = vcombine.high %v1925, %v1925
    %v1942 = vcombine.high %v1932, %v1932
    %v1943 = vcombine.high %v1939, %v1939
    %v1944 = vcombine.high %v1349, %v1349
    %v1946 = vunpack.c.l.s4 1966171168
    %v1947 = vunpack.c.0.s8 %v1946
    %v1948 = vlaneseq
    %v1949 = vshrl.u32 %v1948, 7
    %v1950 = vsub.s32 %v1947, %v1949
    %v1951 = vrot.slane %v1349, %v1950
    %v1953 = vunpack.c.l.s4 1966171168
    %v1954 = vunpack.c.0.s8 %v1953
    %v1955 = vlaneseq
    %v1956 = vshrl.u32 %v1955, 7
    %v1957 = vsub.s32 %v1954, %v1956
    %v1958 = vrot.slane %v1944, %v1957
    %v1959 = vcombine.high %v1951, %v1951
    %v1960 = vcombine.high %v1958, %v1958
    %v1962 = vunpack.c.l.s4 1966171168
    %v1963 = vunpack.c.0.s8 %v1962
    %v1964 = vlaneseq
    %v1965 = vshrl.u32 %v1964, 7
    %v1966 = vsub.s32 %v1963, %v1965
    %v1967 = vrot.slane %v1951, %v1966
    %v1969 = vunpack.c.l.s4 1966171168
    %v1970 = vunpack.c.0.s8 %v1969
    %v1971 = vlaneseq
    %v1972 = vshrl.u32 %v1971, 7
    %v1973 = vsub.s32 %v1970, %v1972
    %v1974 = vrot.slane %v1958, %v1973
    %v1976 = vunpack.c.l.s4 1966171168
    %v1977 = vunpack.c.0.s8 %v1976
    %v1978 = vlaneseq
    %v1979 = vshrl.u32 %v1978, 7
    %v1980 = vsub.s32 %v1977, %v1979
    %v1981 = vrot.slane %v1959, %v1980
    %v1983 = vunpack.c.l.s4 1966171168
    %v1984 = vunpack.c.0.s8 %v1983
    %v1985 = vlaneseq
    %v1986 = vshrl.u32 %v1985, 7
    %v1987 = vsub.s32 %v1984, %v1986
    %v1988 = vrot.slane %v1960, %v1987
    %v1989 = vcombine.high %v1967, %v1967
    %v1990 = vcombine.high %v1974, %v1974
    %v1991 = vcombine.high %v1981, %v1981
    %v1992 = vcombine.high %v1988, %v1988
    %v2011 = vcombine.high %v1500, %v1500
    %v2013 = vunpack.c.l.s4 1966171168
    %v2014 = vunpack.c.0.s8 %v2013
    %v2015 = vlaneseq
    %v2016 = vshrl.u32 %v2015, 7
    %v2017 = vsub.s32 %v2014, %v2016
    %v2018 = vrot.slane %v1500, %v2017
    %v2020 = vunpack.c.l.s4 1966171168
    %v2021 = vunpack.c.0.s8 %v2020
    %v2022 = vlaneseq
    %v2023 = vshrl.u32 %v2022, 7
    %v2024 = vsub.s32 %v2021, %v2023
    %v2025 = vrot.slane %v2011, %v2024
    %v2026 = vcombine.high %v2018, %v2018
    %v2027 = vcombine.high %v2025, %v2025
    %v2029 = vunpack.c.l.s4 1966171168
    %v2030 = vunpack.c.0.s8 %v2029
    %v2031 = vlaneseq
    %v2032 = vshrl.u32 %v2031, 7
    %v2033 = vsub.s32 %v2030, %v2032
    %v2034 = vrot.slane %v2018, %v2033
    %v2036 = vunpack.c.l.s4 1966171168
    %v2037 = vunpack.c.0.s8 %v2036
    %v2038 = vlaneseq
    %v2039 = vshrl.u32 %v2038, 7
    %v2040 = vsub.s32 %v2037, %v2039
    %v2041 = vrot.slane %v2025, %v2040
    %v2043 = vunpack.c.l.s4 1966171168
    %v2044 = vunpack.c.0.s8 %v2043
    %v2045 = vlaneseq
    %v2046 = vshrl.u32 %v2045, 7
    %v2047 = vsub.s32 %v2044, %v2046
    %v2048 = vrot.slane %v2026, %v2047
    %v2050 = vunpack.c.l.s4 1966171168
    %v2051 = vunpack.c.0.s8 %v2050
    %v2052 = vlaneseq
    %v2053 = vshrl.u32 %v2052, 7
    %v2054 = vsub.s32 %v2051, %v2053
    %v2055 = vrot.slane %v2027, %v2054
    %v2056 = vcombine.high %v2034, %v2034
    %v2057 = vcombine.high %v2041, %v2041
    %v2058 = vcombine.high %v2048, %v2048
    %v2059 = vcombine.high %v2055, %v2055
    %v2060 = vcombine.high %v1501, %v1501
    %v2062 = vunpack.c.l.s4 1966171168
    %v2063 = vunpack.c.0.s8 %v2062
    %v2064 = vlaneseq
    %v2065 = vshrl.u32 %v2064, 7
    %v2066 = vsub.s32 %v2063, %v2065
    %v2067 = vrot.slane %v1501, %v2066
    %v2069 = vunpack.c.l.s4 1966171168
    %v2070 = vunpack.c.0.s8 %v2069
    %v2071 = vlaneseq
    %v2072 = vshrl.u32 %v2071, 7
    %v2073 = vsub.s32 %v2070, %v2072
    %v2074 = vrot.slane %v2060, %v2073
    %v2075 = vcombine.high %v2067, %v2067
    %v2076 = vcombine.high %v2074, %v2074
    %v2078 = vunpack.c.l.s4 1966171168
    %v2079 = vunpack.c.0.s8 %v2078
    %v2080 = vlaneseq
    %v2081 = vshrl.u32 %v2080, 7
    %v2082 = vsub.s32 %v2079, %v2081
    %v2083 = vrot.slane %v2067, %v2082
    %v2085 = vunpack.c.l.s4 1966171168
    %v2086 = vunpack.c.0.s8 %v2085
    %v2087 = vlaneseq
    %v2088 = vshrl.u32 %v2087, 7
    %v2089 = vsub.s32 %v2086, %v2088
    %v2090 = vrot.slane %v2074, %v2089
    %v2092 = vunpack.c.l.s4 1966171168
    %v2093 = vunpack.c.0.s8 %v2092
    %v2094 = vlaneseq
    %v2095 = vshrl.u32 %v2094, 7
    %v2096 = vsub.s32 %v2093, %v2095
    %v2097 = vrot.slane %v2075, %v2096
    %v2099 = vunpack.c.l.s4 1966171168
    %v2100 = vunpack.c.0.s8 %v2099
    %v2101 = vlaneseq
    %v2102 = vshrl.u32 %v2101, 7
    %v2103 = vsub.s32 %v2100, %v2102
    %v2104 = vrot.slane %v2076, %v2103
    %v2105 = vcombine.high %v2083, %v2083
    %v2106 = vcombine.high %v2090, %v2090
    %v2107 = vcombine.high %v2097, %v2097
    %v2108 = vcombine.high %v2104, %v2104
    %v2111 = vcombine.high %v1656, %v1656
    %v2113 = vunpack.c.l.s4 1966171168
    %v2114 = vunpack.c.0.s8 %v2113
    %v2115 = vlaneseq
    %v2116 = vshrl.u32 %v2115, 7
    %v2117 = vsub.s32 %v2114, %v2116
    %v2118 = vrot.slane %v1656, %v2117
    %v2120 = vunpack.c.l.s4 1966171168
    %v2121 = vunpack.c.0.s8 %v2120
    %v2122 = vlaneseq
    %v2123 = vshrl.u32 %v2122, 7
    %v2124 = vsub.s32 %v2121, %v2123
    %v2125 = vrot.slane %v2111, %v2124
    %v2126 = vcombine.high %v2118, %v2118
    %v2127 = vcombine.high %v2125, %v2125
    %v2129 = vunpack.c.l.s4 1966171168
    %v2130 = vunpack.c.0.s8 %v2129
    %v2131 = vlaneseq
    %v2132 = vshrl.u32 %v2131, 7
    %v2133 = vsub.s32 %v2130, %v2132
    %v2134 = vrot.slane %v2118, %v2133
    %v2136 = vunpack.c.l.s4 1966171168
    %v2137 = vunpack.c.0.s8 %v2136
    %v2138 = vlaneseq
    %v2139 = vshrl.u32 %v2138, 7
    %v2140 = vsub.s32 %v2137, %v2139
    %v2141 = vrot.slane %v2125, %v2140
    %v2143 = vunpack.c.l.s4 1966171168
    %v2144 = vunpack.c.0.s8 %v2143
    %v2145 = vlaneseq
    %v2146 = vshrl.u32 %v2145, 7
    %v2147 = vsub.s32 %v2144, %v2146
    %v2148 = vrot.slane %v2126, %v2147
    %v2150 = vunpack.c.l.s4 1966171168
    %v2151 = vunpack.c.0.s8 %v2150
    %v2152 = vlaneseq
    %v2153 = vshrl.u32 %v2152, 7
    %v2154 = vsub.s32 %v2151, %v2153
    %v2155 = vrot.slane %v2127, %v2154
    %v2156 = vcombine.high %v2134, %v2134
    %v2157 = vcombine.high %v2141, %v2141
    %v2158 = vcombine.high %v2148, %v2148
    %v2159 = vcombine.high %v2155, %v2155
    %v2160 = vcombine.high %v1657, %v1657
    %v2162 = vunpack.c.l.s4 1966171168
    %v2163 = vunpack.c.0.s8 %v2162
    %v2164 = vlaneseq
    %v2165 = vshrl.u32 %v2164, 7
    %v2166 = vsub.s32 %v2163, %v2165
    %v2167 = vrot.slane %v1657, %v2166
    %v2169 = vunpack.c.l.s4 1966171168
    %v2170 = vunpack.c.0.s8 %v2169
    %v2171 = vlaneseq
    %v2172 = vshrl.u32 %v2171, 7
    %v2173 = vsub.s32 %v2170, %v2172
    %v2174 = vrot.slane %v2160, %v2173
    %v2175 = vcombine.high %v2167, %v2167
    %v2176 = vcombine.high %v2174, %v2174
    %v2178 = vunpack.c.l.s4 1966171168
    %v2179 = vunpack.c.0.s8 %v2178
    %v2180 = vlaneseq
    %v2181 = vshrl.u32 %v2180, 7
    %v2182 = vsub.s32 %v2179, %v2181
    %v2183 = vrot.slane %v2167, %v2182
    %v2185 = vunpack.c.l.s4 1966171168
    %v2186 = vunpack.c.0.s8 %v2185
    %v2187 = vlaneseq
    %v2188 = vshrl.u32 %v2187, 7
    %v2189 = vsub.s32 %v2186, %v2188
    %v2190 = vrot.slane %v2174, %v2189
    %v2192 = vunpack.c.l.s4 1966171168
    %v2193 = vunpack.c.0.s8 %v2192
    %v2194 = vlaneseq
    %v2195 = vshrl.u32 %v2194, 7
    %v2196 = vsub.s32 %v2193, %v2195
    %v2197 = vrot.slane %v2175, %v2196
    %v2199 = vunpack.c.l.s4 1966171168
    %v2200 = vunpack.c.0.s8 %v2199
    %v2201 = vlaneseq
    %v2202 = vshrl.u32 %v2201, 7
    %v2203 = vsub.s32 %v2200, %v2202
    %v2204 = vrot.slane %v2176, %v2203
    %v2205 = vcombine.high %v2183, %v2183
    %v2206 = vcombine.high %v2190, %v2190
    %v2207 = vcombine.high %v2197, %v2197
    %v2208 = vcombine.high %v2204, %v2204
    %v2211 = vcombine.high %v1811, %v1811
    %v2213 = vunpack.c.l.s4 1966171168
    %v2214 = vunpack.c.0.s8 %v2213
    %v2215 = vlaneseq
    %v2216 = vshrl.u32 %v2215, 7
    %v2217 = vsub.s32 %v2214, %v2216
    %v2218 = vrot.slane %v1811, %v2217
    %v2220 = vunpack.c.l.s4 1966171168
    %v2221 = vunpack.c.0.s8 %v2220
    %v2222 = vlaneseq
    %v2223 = vshrl.u32 %v2222, 7
    %v2224 = vsub.s32 %v2221, %v2223
    %v2225 = vrot.slane %v2211, %v2224
    %v2226 = vcombine.high %v2218, %v2218
    %v2227 = vcombine.high %v2225, %v2225
    %v2229 = vunpack.c.l.s4 1966171168
    %v2230 = vunpack.c.0.s8 %v2229
    %v2231 = vlaneseq
    %v2232 = vshrl.u32 %v2231, 7
    %v2233 = vsub.s32 %v2230, %v2232
    %v2234 = vrot.slane %v2218, %v2233
    %v2236 = vunpack.c.l.s4 1966171168
    %v2237 = vunpack.c.0.s8 %v2236
    %v2238 = vlaneseq
    %v2239 = vshrl.u32 %v2238, 7
    %v2240 = vsub.s32 %v2237, %v2239
    %v2241 = vrot.slane %v2225, %v2240
    %v2243 = vunpack.c.l.s4 1966171168
    %v2244 = vunpack.c.0.s8 %v2243
    %v2245 = vlaneseq
    %v2246 = vshrl.u32 %v2245, 7
    %v2247 = vsub.s32 %v2244, %v2246
    %v2248 = vrot.slane %v2226, %v2247
    %v2250 = vunpack.c.l.s4 1966171168
    %v2251 = vunpack.c.0.s8 %v2250
    %v2252 = vlaneseq
    %v2253 = vshrl.u32 %v2252, 7
    %v2254 = vsub.s32 %v2251, %v2253
    %v2255 = vrot.slane %v2227, %v2254
    %v2256 = vcombine.high %v2234, %v2234
    %v2257 = vcombine.high %v2241, %v2241
    %v2258 = vcombine.high %v2248, %v2248
    %v2259 = vcombine.high %v2255, %v2255
    %v2260 = vcombine.high %v1812, %v1812
    %v2262 = vunpack.c.l.s4 1966171168
    %v2263 = vunpack.c.0.s8 %v2262
    %v2264 = vlaneseq
    %v2265 = vshrl.u32 %v2264, 7
    %v2266 = vsub.s32 %v2263, %v2265
    %v2267 = vrot.slane %v1812, %v2266
    %v2269 = vunpack.c.l.s4 1966171168
    %v2270 = vunpack.c.0.s8 %v2269
    %v2271 = vlaneseq
    %v2272 = vshrl.u32 %v2271, 7
    %v2273 = vsub.s32 %v2270, %v2272
    %v2274 = vrot.slane %v2260, %v2273
    %v2275 = vcombine.high %v2267, %v2267
    %v2276 = vcombine.high %v2274, %v2274
    %v2278 = vunpack.c.l.s4 1966171168
    %v2279 = vunpack.c.0.s8 %v2278
    %v2280 = vlaneseq
    %v2281 = vshrl.u32 %v2280, 7
    %v2282 = vsub.s32 %v2279, %v2281
    %v2283 = vrot.slane %v2267, %v2282
    %v2285 = vunpack.c.l.s4 1966171168
    %v2286 = vunpack.c.0.s8 %v2285
    %v2287 = vlaneseq
    %v2288 = vshrl.u32 %v2287, 7
    %v2289 = vsub.s32 %v2286, %v2288
    %v2290 = vrot.slane %v2274, %v2289
    %v2292 = vunpack.c.l.s4 1966171168
    %v2293 = vunpack.c.0.s8 %v2292
    %v2294 = vlaneseq
    %v2295 = vshrl.u32 %v2294, 7
    %v2296 = vsub.s32 %v2293, %v2295
    %v2297 = vrot.slane %v2275, %v2296
    %v2299 = vunpack.c.l.s4 1966171168
    %v2300 = vunpack.c.0.s8 %v2299
    %v2301 = vlaneseq
    %v2302 = vshrl.u32 %v2301, 7
    %v2303 = vsub.s32 %v2300, %v2302
    %v2304 = vrot.slane %v2276, %v2303
    %v2305 = vcombine.high %v2283, %v2283
    %v2306 = vcombine.high %v2290, %v2290
    %v2307 = vcombine.high %v2297, %v2297
    %v2308 = vcombine.high %v2304, %v2304
    %v2309 = vlaneseq
    %v2310 = vshrl.u32 %v2309, 7
    %v2311 = vsub.s32 0, %v2310
    %v2312 = vrot.slane %v2034, %v2311
    %v2313 = vlaneseq
    %v2314 = vshrl.u32 %v2313, 7
    %v2315 = vsub.s32 0, %v2314
    %v2316 = vrot.slane %v2048, %v2315
    %v2317 = vlaneseq
    %v2318 = vshrl.u32 %v2317, 7
    %v2319 = vsub.s32 0, %v2318
    %v2320 = vrot.slane %v2056, %v2319
    %v2321 = vlaneseq
    %v2322 = vshrl.u32 %v2321, 7
    %v2323 = vsub.s32 0, %v2322
    %v2324 = vrot.slane %v2058, %v2323
    %v2325 = vlaneseq
    %v2326 = vshrl.u32 %v2325, 7
    %v2327 = vsub.s32 0, %v2326
    %v2328 = vrot.slane %v2041, %v2327
    %v2329 = vlaneseq
    %v2330 = vshrl.u32 %v2329, 7
    %v2331 = vsub.s32 0, %v2330
    %v2332 = vrot.slane %v2055, %v2331
    %v2333 = vlaneseq
    %v2334 = vshrl.u32 %v2333, 7
    %v2335 = vsub.s32 0, %v2334
    %v2336 = vrot.slane %v2057, %v2335
    %v2337 = vlaneseq
    %v2338 = vshrl.u32 %v2337, 7
    %v2339 = vsub.s32 0, %v2338
    %v2340 = vrot.slane %v2059, %v2339
    %v2341 = vlaneseq
    %v2342 = vshrl.u32 %v2341, 7
    %v2343 = vsub.s32 0, %v2342
    %v2344 = vrot.slane %v2083, %v2343
    %v2345 = vlaneseq
    %v2346 = vshrl.u32 %v2345, 7
    %v2347 = vsub.s32 0, %v2346
    %v2348 = vrot.slane %v2097, %v2347
    %v2349 = vlaneseq
    %v2350 = vshrl.u32 %v2349, 7
    %v2351 = vsub.s32 0, %v2350
    %v2352 = vrot.slane %v2105, %v2351
    %v2353 = vlaneseq
    %v2354 = vshrl.u32 %v2353, 7
    %v2355 = vsub.s32 0, %v2354
    %v2356 = vrot.slane %v2107, %v2355
    %v2357 = vlaneseq
    %v2358 = vshrl.u32 %v2357, 7
    %v2359 = vsub.s32 0, %v2358
    %v2360 = vrot.slane %v2090, %v2359
    %v2361 = vlaneseq
    %v2362 = vshrl.u32 %v2361, 7
    %v2363 = vsub.s32 0, %v2362
    %v2364 = vrot.slane %v2104, %v2363
    %v2365 = vlaneseq
    %v2366 = vshrl.u32 %v2365, 7
    %v2367 = vsub.s32 0, %v2366
    %v2368 = vrot.slane %v2106, %v2367
    %v2369 = vlaneseq
    %v2370 = vshrl.u32 %v2369, 7
    %v2371 = vsub.s32 0, %v2370
    %v2372 = vrot.slane %v2108, %v2371
    %v2389 = vlaneseq
    %v2390 = vshrl.u32 %v2389, 7
    %v2391 = vsub.s32 0, %v2390
    %v2392 = vrot.slane %v2134, %v2391
    %v2393 = vlaneseq
    %v2394 = vshrl.u32 %v2393, 7
    %v2395 = vsub.s32 0, %v2394
    %v2396 = vrot.slane %v2148, %v2395
    %v2397 = vlaneseq
    %v2398 = vshrl.u32 %v2397, 7
    %v2399 = vsub.s32 0, %v2398
    %v2400 = vrot.slane %v2156, %v2399
    %v2401 = vlaneseq
    %v2402 = vshrl.u32 %v2401, 7
    %v2403 = vsub.s32 0, %v2402
    %v2404 = vrot.slane %v2158, %v2403
    %v2405 = vlaneseq
    %v2406 = vshrl.u32 %v2405, 7
    %v2407 = vsub.s32 0, %v2406
    %v2408 = vrot.slane %v2141, %v2407
    %v2409 = vlaneseq
    %v2410 = vshrl.u32 %v2409, 7
    %v2411 = vsub.s32 0, %v2410
    %v2412 = vrot.slane %v2155, %v2411
    %v2413 = vlaneseq
    %v2414 = vshrl.u32 %v2413, 7
    %v2415 = vsub.s32 0, %v2414
    %v2416 = vrot.slane %v2157, %v2415
    %v2417 = vlaneseq
    %v2418 = vshrl.u32 %v2417, 7
    %v2419 = vsub.s32 0, %v2418
    %v2420 = vrot.slane %v2159, %v2419
    %v2421 = vlaneseq
    %v2422 = vshrl.u32 %v2421, 7
    %v2423 = vsub.s32 0, %v2422
    %v2424 = vrot.slane %v2183, %v2423
    %v2425 = vlaneseq
    %v2426 = vshrl.u32 %v2425, 7
    %v2427 = vsub.s32 0, %v2426
    %v2428 = vrot.slane %v2197, %v2427
    %v2429 = vlaneseq
    %v2430 = vshrl.u32 %v2429, 7
    %v2431 = vsub.s32 0, %v2430
    %v2432 = vrot.slane %v2205, %v2431
    %v2433 = vlaneseq
    %v2434 = vshrl.u32 %v2433, 7
    %v2435 = vsub.s32 0, %v2434
    %v2436 = vrot.slane %v2207, %v2435
    %v2437 = vlaneseq
    %v2438 = vshrl.u32 %v2437, 7
    %v2439 = vsub.s32 0, %v2438
    %v2440 = vrot.slane %v2190, %v2439
    %v2441 = vlaneseq
    %v2442 = vshrl.u32 %v2441, 7
    %v2443 = vsub.s32 0, %v2442
    %v2444 = vrot.slane %v2204, %v2443
    %v2445 = vlaneseq
    %v2446 = vshrl.u32 %v2445, 7
    %v2447 = vsub.s32 0, %v2446
    %v2448 = vrot.slane %v2206, %v2447
    %v2449 = vlaneseq
    %v2450 = vshrl.u32 %v2449, 7
    %v2451 = vsub.s32 0, %v2450
    %v2452 = vrot.slane %v2208, %v2451
    %v2469 = vlaneseq
    %v2470 = vshrl.u32 %v2469, 7
    %v2471 = vsub.s32 0, %v2470
    %v2472 = vrot.slane %v2234, %v2471
    %v2473 = vlaneseq
    %v2474 = vshrl.u32 %v2473, 7
    %v2475 = vsub.s32 0, %v2474
    %v2476 = vrot.slane %v2248, %v2475
    %v2477 = vlaneseq
    %v2478 = vshrl.u32 %v2477, 7
    %v2479 = vsub.s32 0, %v2478
    %v2480 = vrot.slane %v2256, %v2479
    %v2481 = vlaneseq
    %v2482 = vshrl.u32 %v2481, 7
    %v2483 = vsub.s32 0, %v2482
    %v2484 = vrot.slane %v2258, %v2483
    %v2485 = vlaneseq
    %v2486 = vshrl.u32 %v2485, 7
    %v2487 = vsub.s32 0, %v2486
    %v2488 = vrot.slane %v2241, %v2487
    %v2489 = vlaneseq
    %v2490 = vshrl.u32 %v2489, 7
    %v2491 = vsub.s32 0, %v2490
    %v2492 = vrot.slane %v2255, %v2491
    %v2493 = vlaneseq
    %v2494 = vshrl.u32 %v2493, 7
    %v2495 = vsub.s32 0, %v2494
    %v2496 = vrot.slane %v2257, %v2495
    %v2497 = vlaneseq
    %v2498 = vshrl.u32 %v2497, 7
    %v2499 = vsub.s32 0, %v2498
    %v2500 = vrot.slane %v2259, %v2499
    %v2501 = vlaneseq
    %v2502 = vshrl.u32 %v2501, 7
    %v2503 = vsub.s32 0, %v2502
    %v2504 = vrot.slane %v2283, %v2503
    %v2505 = vlaneseq
    %v2506 = vshrl.u32 %v2505, 7
    %v2507 = vsub.s32 0, %v2506
    %v2508 = vrot.slane %v2297, %v2507
    %v2509 = vlaneseq
    %v2510 = vshrl.u32 %v2509, 7
    %v2511 = vsub.s32 0, %v2510
    %v2512 = vrot.slane %v2305, %v2511
    %v2513 = vlaneseq
    %v2514 = vshrl.u32 %v2513, 7
    %v2515 = vsub.s32 0, %v2514
    %v2516 = vrot.slane %v2307, %v2515
    %v2517 = vlaneseq
    %v2518 = vshrl.u32 %v2517, 7
    %v2519 = vsub.s32 0, %v2518
    %v2520 = vrot.slane %v2290, %v2519
    %v2521 = vlaneseq
    %v2522 = vshrl.u32 %v2521, 7
    %v2523 = vsub.s32 0, %v2522
    %v2524 = vrot.slane %v2304, %v2523
    %v2525 = vlaneseq
    %v2526 = vshrl.u32 %v2525, 7
    %v2527 = vsub.s32 0, %v2526
    %v2528 = vrot.slane %v2306, %v2527
    %v2529 = vlaneseq
    %v2530 = vshrl.u32 %v2529, 7
    %v2531 = vsub.s32 0, %v2530
    %v2532 = vrot.slane %v2308, %v2531
    %vm2549 = vcmask 1040384
    %v2550 = vsel %vm2549, %v1918, %v2312
    %v2551 = vsel %vm2549, %v1932, %v2316
    %v2552 = vsel %vm2549, %v1940, %v2320
    %v2553 = vsel %vm2549, %v1942, %v2324
    %v2554 = vsel %vm2549, %v1925, %v2328
    %v2555 = vsel %vm2549, %v1939, %v2332
    %v2556 = vsel %vm2549, %v1941, %v2336
    %v2557 = vsel %vm2549, %v1943, %v2340
    %v2558 = vsel %vm2549, %v1967, %v2344
    %v2559 = vsel %vm2549, %v1981, %v2348
    %v2560 = vsel %vm2549, %v1989, %v2352
    %v2561 = vsel %vm2549, %v1991, %v2356
    %v2562 = vsel %vm2549, %v1974, %v2360
    %v2563 = vsel %vm2549, %v1988, %v2364
    %v2564 = vsel %vm2549, %v1990, %v2368
    %v2565 = vsel %vm2549, %v1992, %v2372
    %vm2566 = vcmask 1041408
    %v2567 = vsel %vm2566, %v2550, %v2392
    %v2568 = vsel %vm2566, %v2551, %v2396
    %v2569 = vsel %vm2566, %v2552, %v2400
    %v2570 = vsel %vm2566, %v2553, %v2404
    %v2571 = vsel %vm2566, %v2554, %v2408
    %v2572 = vsel %vm2566, %v2555, %v2412
    %v2573 = vsel %vm2566, %v2556, %v2416
    %v2574 = vsel %vm2566, %v2557, %v2420
    %v2575 = vsel %vm2566, %v2558, %v2424
    %v2576 = vsel %vm2566, %v2559, %v2428
    %v2577 = vsel %vm2566, %v2560, %v2432
    %v2578 = vsel %vm2566, %v2561, %v2436
    %v2579 = vsel %vm2566, %v2562, %v2440
    %v2580 = vsel %vm2566, %v2563, %v2444
    %v2581 = vsel %vm2566, %v2564, %v2448
    %v2582 = vsel %vm2566, %v2565, %v2452
    %vm2583 = vcmask 1042432
    %v2584 = vsel %vm2583, %v2567, %v2472
    %v2585 = vsel %vm2583, %v2568, %v2476
    %v2586 = vsel %vm2583, %v2569, %v2480
    %v2587 = vsel %vm2583, %v2570, %v2484
    %v2588 = vsel %vm2583, %v2571, %v2488
    %v2589 = vsel %vm2583, %v2572, %v2492
    %v2590 = vsel %vm2583, %v2573, %v2496
    %v2591 = vsel %vm2583, %v2574, %v2500
    %v2592 = vsel %vm2583, %v2575, %v2504
    %v2593 = vsel %vm2583, %v2576, %v2508
    %v2594 = vsel %vm2583, %v2577, %v2512
    %v2595 = vsel %vm2583, %v2578, %v2516
    %v2596 = vsel %vm2583, %v2579, %v2520
    %v2597 = vsel %vm2583, %v2580, %v2524
    %v2598 = vsel %vm2583, %v2581, %v2528
    %v2599 = vsel %vm2583, %v2582, %v2532
    %v2600 = vpack.c.bf16 %v2584, %v2584
    %v2601 = vpack.c.bf16 %v2585, %v2585
    %v2602 = vpack.c.bf16 %v2586, %v2586
    %v2603 = vpack.c.bf16 %v2587, %v2587
    %v2604 = vpack.c.bf16 %v2588, %v2588
    %v2605 = vpack.c.bf16 %v2589, %v2589
    %v2606 = vpack.c.bf16 %v2590, %v2590
    %v2607 = vpack.c.bf16 %v2591, %v2591
    %v2608 = vpack.c.bf16 %v2592, %v2592
    %v2609 = vpack.c.bf16 %v2593, %v2593
    %v2610 = vpack.c.bf16 %v2594, %v2594
    %v2611 = vpack.c.bf16 %v2595, %v2595
    %v2612 = vpack.c.bf16 %v2596, %v2596
    %v2613 = vpack.c.bf16 %v2597, %v2597
    %v2614 = vpack.c.bf16 %v2598, %v2598
    %v2615 = vpack.c.bf16 %v2599, %v2599
    %v2618 = vsel %vm1277, %v2600, 0
    %2620 = vmatprep.subr.bf16.mxu0 0
    %2621 = vmatpush1.bf16.msra.mxu0 %v408
    %2622 = vmatprep.subr.bf16.mxu0 0
    %2623 = vmatpush1.bf16.msra.mxu0 0
    %2624 = vmatprep.subr.bf16.mxu0 0
    %2625 = vmatpush1.bf16.msra.mxu0 0
    %2626 = vmatprep.subr.bf16.mxu0 0
    %2627 = vmatpush1.bf16.msra.mxu0 0
    %2628 = vmatprep.subr.bf16.mxu0 0
    %2629 = vmatpush1.bf16.msra.mxu0 0
    %2630 = vmatprep.subr.bf16.mxu0 0
    %2631 = vmatpush1.bf16.msra.mxu0 0
    %2632 = vmatprep.subr.bf16.mxu0 0
    %2633 = vmatpush1.bf16.msra.mxu0 0
    %2634 = vmatprep.subr.bf16.mxu0 0
    %2635 = vmatpush1.bf16.msra.mxu0 0
    %2636 = vmatprep.subr.bf16.mxu0 0
    %2637 = vmatpush1.bf16.msra.mxu0 0
    %2638 = vmatprep.subr.bf16.mxu0 0
    %2639 = vmatpush1.bf16.msra.mxu0 0
    %2640 = vmatprep.subr.bf16.mxu0 0
    %2641 = vmatpush1.bf16.msra.mxu0 0
    %2642 = vmatprep.subr.bf16.mxu0 0
    %2643 = vmatpush1.bf16.msra.mxu0 0
    %2644 = vmatprep.subr.bf16.mxu0 0
    %2645 = vmatpush1.bf16.msra.mxu0 0
    %2646 = vmatprep.subr.bf16.mxu0 0
    %2647 = vmatpush1.bf16.msra.mxu0 0
    %2648 = vmatprep.subr.bf16.mxu0 0
    %2649 = vmatpush1.bf16.msra.mxu0 0
    %2650 = vmatprep.subr.bf16.mxu0 0
    %2651 = vmatpush1.bf16.msra.mxu0 0
    %2652 = vmatprep.mubr.bf16.mxu0 0
    %2653 = vmatmul.mubr.bf16.gmra.mrb[0].mxu0 %v2618
    %v2654 = vpop.f32.mrb[0].mxu0
    %v2655 = vadd.f32 0.0, %v2654
    %v2656 = vpop.f32.mrb[0].mxu0
    %v2657 = vpop.f32.mrb[0].mxu0
    %v2658 = vpop.f32.mrb[0].mxu0
    %2659 = vdwg.mxu0
    %v2662 = vsel %vm1277, %v2601, 0
    %2664 = vmatprep.subr.bf16.mxu0 0
    %2665 = vmatpush1.bf16.msra.mxu0 %v460
    %2666 = vmatprep.subr.bf16.mxu0 0
    %2667 = vmatpush1.bf16.msra.mxu0 0
    %2668 = vmatprep.subr.bf16.mxu0 0
    %2669 = vmatpush1.bf16.msra.mxu0 0
    %2670 = vmatprep.subr.bf16.mxu0 0
    %2671 = vmatpush1.bf16.msra.mxu0 0
    %2672 = vmatprep.subr.bf16.mxu0 0
    %2673 = vmatpush1.bf16.msra.mxu0 0
    %2674 = vmatprep.subr.bf16.mxu0 0
    %2675 = vmatpush1.bf16.msra.mxu0 0
    %2676 = vmatprep.subr.bf16.mxu0 0
    %2677 = vmatpush1.bf16.msra.mxu0 0
    %2678 = vmatprep.subr.bf16.mxu0 0
    %2679 = vmatpush1.bf16.msra.mxu0 0
    %2680 = vmatprep.subr.bf16.mxu0 0
    %2681 = vmatpush1.bf16.msra.mxu0 0
    %2682 = vmatprep.subr.bf16.mxu0 0
    %2683 = vmatpush1.bf16.msra.mxu0 0
    %2684 = vmatprep.subr.bf16.mxu0 0
    %2685 = vmatpush1.bf16.msra.mxu0 0
    %2686 = vmatprep.subr.bf16.mxu0 0
    %2687 = vmatpush1.bf16.msra.mxu0 0
    %2688 = vmatprep.subr.bf16.mxu0 0
    %2689 = vmatpush1.bf16.msra.mxu0 0
    %2690 = vmatprep.subr.bf16.mxu0 0
    %2691 = vmatpush1.bf16.msra.mxu0 0
    %2692 = vmatprep.subr.bf16.mxu0 0
    %2693 = vmatpush1.bf16.msra.mxu0 0
    %2694 = vmatprep.subr.bf16.mxu0 0
    %2695 = vmatpush1.bf16.msra.mxu0 0
    %2696 = vmatprep.mubr.bf16.mxu0 0
    %2697 = vmatmul.mubr.bf16.gmra.mrb[0].mxu0 %v2662
    %v2698 = vpop.f32.mrb[0].mxu0
    %v2699 = vadd.f32 0.0, %v2698
    %v2700 = vpop.f32.mrb[0].mxu0
    %v2701 = vpop.f32.mrb[0].mxu0
    %v2702 = vpop.f32.mrb[0].mxu0
    %2703 = vdwg.mxu0
    %v2706 = vsel %vm1277, %v2602, 0
    %2708 = vmatprep.subr.bf16.mxu0 0
    %2709 = vmatpush1.bf16.msra.mxu0 %v511
    %2710 = vmatprep.subr.bf16.mxu0 0
    %2711 = vmatpush1.bf16.msra.mxu0 0
    %2712 = vmatprep.subr.bf16.mxu0 0
    %2713 = vmatpush1.bf16.msra.mxu0 0
    %2714 = vmatprep.subr.bf16.mxu0 0
    %2715 = vmatpush1.bf16.msra.mxu0 0
    %2716 = vmatprep.subr.bf16.mxu0 0
    %2717 = vmatpush1.bf16.msra.mxu0 0
    %2718 = vmatprep.subr.bf16.mxu0 0
    %2719 = vmatpush1.bf16.msra.mxu0 0
    %2720 = vmatprep.subr.bf16.mxu0 0
    %2721 = vmatpush1.bf16.msra.mxu0 0
    %2722 = vmatprep.subr.bf16.mxu0 0
    %2723 = vmatpush1.bf16.msra.mxu0 0
    %2724 = vmatprep.subr.bf16.mxu0 0
    %2725 = vmatpush1.bf16.msra.mxu0 0
    %2726 = vmatprep.subr.bf16.mxu0 0
    %2727 = vmatpush1.bf16.msra.mxu0 0
    %2728 = vmatprep.subr.bf16.mxu0 0
    %2729 = vmatpush1.bf16.msra.mxu0 0
    %2730 = vmatprep.subr.bf16.mxu0 0
    %2731 = vmatpush1.bf16.msra.mxu0 0
    %2732 = vmatprep.subr.bf16.mxu0 0
    %2733 = vmatpush1.bf16.msra.mxu0 0
    %2734 = vmatprep.subr.bf16.mxu0 0
    %2735 = vmatpush1.bf16.msra.mxu0 0
    %2736 = vmatprep.subr.bf16.mxu0 0
    %2737 = vmatpush1.bf16.msra.mxu0 0
    %2738 = vmatprep.subr.bf16.mxu0 0
    %2739 = vmatpush1.bf16.msra.mxu0 0
    %2740 = vmatprep.mubr.bf16.mxu0 0
    %2741 = vmatmul.mubr.bf16.gmra.mrb[0].mxu0 %v2706
    %v2742 = vpop.f32.mrb[0].mxu0
    %v2743 = vadd.f32 0.0, %v2742
    %v2744 = vpop.f32.mrb[0].mxu0
    %v2745 = vpop.f32.mrb[0].mxu0
    %v2746 = vpop.f32.mrb[0].mxu0
    %2747 = vdwg.mxu0
    %v2750 = vsel %vm1277, %v2603, 0
    %2752 = vmatprep.subr.bf16.mxu0 0
    %2753 = vmatpush1.bf16.msra.mxu0 %v562
    %2754 = vmatprep.subr.bf16.mxu0 0
    %2755 = vmatpush1.bf16.msra.mxu0 0
    %2756 = vmatprep.subr.bf16.mxu0 0
    %2757 = vmatpush1.bf16.msra.mxu0 0
    %2758 = vmatprep.subr.bf16.mxu0 0
    %2759 = vmatpush1.bf16.msra.mxu0 0
    %2760 = vmatprep.subr.bf16.mxu0 0
    %2761 = vmatpush1.bf16.msra.mxu0 0
    %2762 = vmatprep.subr.bf16.mxu0 0
    %2763 = vmatpush1.bf16.msra.mxu0 0
    %2764 = vmatprep.subr.bf16.mxu0 0
    %2765 = vmatpush1.bf16.msra.mxu0 0
    %2766 = vmatprep.subr.bf16.mxu0 0
    %2767 = vmatpush1.bf16.msra.mxu0 0
    %2768 = vmatprep.subr.bf16.mxu0 0
    %2769 = vmatpush1.bf16.msra.mxu0 0
    %2770 = vmatprep.subr.bf16.mxu0 0
    %2771 = vmatpush1.bf16.msra.mxu0 0
    %2772 = vmatprep.subr.bf16.mxu0 0
    %2773 = vmatpush1.bf16.msra.mxu0 0
    %2774 = vmatprep.subr.bf16.mxu0 0
    %2775 = vmatpush1.bf16.msra.mxu0 0
    %2776 = vmatprep.subr.bf16.mxu0 0
    %2777 = vmatpush1.bf16.msra.mxu0 0
    %2778 = vmatprep.subr.bf16.mxu0 0
    %2779 = vmatpush1.bf16.msra.mxu0 0
    %2780 = vmatprep.subr.bf16.mxu0 0
    %2781 = vmatpush1.bf16.msra.mxu0 0
    %2782 = vmatprep.subr.bf16.mxu0 0
    %2783 = vmatpush1.bf16.msra.mxu0 0
    %2784 = vmatprep.mubr.bf16.mxu0 0
    %2785 = vmatmul.mubr.bf16.gmra.mrb[0].mxu0 %v2750
    %v2786 = vpop.f32.mrb[0].mxu0
    %v2787 = vadd.f32 0.0, %v2786
    %v2788 = vpop.f32.mrb[0].mxu0
    %v2789 = vpop.f32.mrb[0].mxu0
    %v2790 = vpop.f32.mrb[0].mxu0
    %2791 = vdwg.mxu0
    %v2794 = vsel %vm1277, %v2604, 0
    %2796 = vmatprep.subr.bf16.mxu0 0
    %2797 = vmatpush1.bf16.msra.mxu0 %v613
    %2798 = vmatprep.subr.bf16.mxu0 0
    %2799 = vmatpush1.bf16.msra.mxu0 0
    %2800 = vmatprep.subr.bf16.mxu0 0
    %2801 = vmatpush1.bf16.msra.mxu0 0
    %2802 = vmatprep.subr.bf16.mxu0 0
    %2803 = vmatpush1.bf16.msra.mxu0 0
    %2804 = vmatprep.subr.bf16.mxu0 0
    %2805 = vmatpush1.bf16.msra.mxu0 0
    %2806 = vmatprep.subr.bf16.mxu0 0
    %2807 = vmatpush1.bf16.msra.mxu0 0
    %2808 = vmatprep.subr.bf16.mxu0 0
    %2809 = vmatpush1.bf16.msra.mxu0 0
    %2810 = vmatprep.subr.bf16.mxu0 0
    %2811 = vmatpush1.bf16.msra.mxu0 0
    %2812 = vmatprep.subr.bf16.mxu0 0
    %2813 = vmatpush1.bf16.msra.mxu0 0
    %2814 = vmatprep.subr.bf16.mxu0 0
    %2815 = vmatpush1.bf16.msra.mxu0 0
    %2816 = vmatprep.subr.bf16.mxu0 0
    %2817 = vmatpush1.bf16.msra.mxu0 0
    %2818 = vmatprep.subr.bf16.mxu0 0
    %2819 = vmatpush1.bf16.msra.mxu0 0
    %2820 = vmatprep.subr.bf16.mxu0 0
    %2821 = vmatpush1.bf16.msra.mxu0 0
    %2822 = vmatprep.subr.bf16.mxu0 0
    %2823 = vmatpush1.bf16.msra.mxu0 0
    %2824 = vmatprep.subr.bf16.mxu0 0
    %2825 = vmatpush1.bf16.msra.mxu0 0
    %2826 = vmatprep.subr.bf16.mxu0 0
    %2827 = vmatpush1.bf16.msra.mxu0 0
    %2828 = vmatprep.mubr.bf16.mxu0 0
    %2829 = vmatmul.mubr.bf16.gmra.mrb[0].mxu0 %v2794
    %v2830 = vpop.f32.mrb[0].mxu0
    %v2831 = vadd.f32 0.0, %v2830
    %v2832 = vpop.f32.mrb[0].mxu0
    %v2833 = vpop.f32.mrb[0].mxu0
    %v2834 = vpop.f32.mrb[0].mxu0
    %2835 = vdwg.mxu0
    %v2838 = vsel %vm1277, %v2605, 0
    %2840 = vmatprep.subr.bf16.mxu0 0
    %2841 = vmatpush1.bf16.msra.mxu0 %v664
    %2842 = vmatprep.subr.bf16.mxu0 0
    %2843 = vmatpush1.bf16.msra.mxu0 0
    %2844 = vmatprep.subr.bf16.mxu0 0
    %2845 = vmatpush1.bf16.msra.mxu0 0
    %2846 = vmatprep.subr.bf16.mxu0 0
    %2847 = vmatpush1.bf16.msra.mxu0 0
    %2848 = vmatprep.subr.bf16.mxu0 0
    %2849 = vmatpush1.bf16.msra.mxu0 0
    %2850 = vmatprep.subr.bf16.mxu0 0
    %2851 = vmatpush1.bf16.msra.mxu0 0
    %2852 = vmatprep.subr.bf16.mxu0 0
    %2853 = vmatpush1.bf16.msra.mxu0 0
    %2854 = vmatprep.subr.bf16.mxu0 0
    %2855 = vmatpush1.bf16.msra.mxu0 0
    %2856 = vmatprep.subr.bf16.mxu0 0
    %2857 = vmatpush1.bf16.msra.mxu0 0
    %2858 = vmatprep.subr.bf16.mxu0 0
    %2859 = vmatpush1.bf16.msra.mxu0 0
    %2860 = vmatprep.subr.bf16.mxu0 0
    %2861 = vmatpush1.bf16.msra.mxu0 0
    %2862 = vmatprep.subr.bf16.mxu0 0
    %2863 = vmatpush1.bf16.msra.mxu0 0
    %2864 = vmatprep.subr.bf16.mxu0 0
    %2865 = vmatpush1.bf16.msra.mxu0 0
    %2866 = vmatprep.subr.bf16.mxu0 0
    %2867 = vmatpush1.bf16.msra.mxu0 0
    %2868 = vmatprep.subr.bf16.mxu0 0
    %2869 = vmatpush1.bf16.msra.mxu0 0
    %2870 = vmatprep.subr.bf16.mxu0 0
    %2871 = vmatpush1.bf16.msra.mxu0 0
    %2872 = vmatprep.mubr.bf16.mxu0 0
    %2873 = vmatmul.mubr.bf16.gmra.mrb[0].mxu0 %v2838
    %v2874 = vpop.f32.mrb[0].mxu0
    %v2875 = vadd.f32 0.0, %v2874
    %v2876 = vpop.f32.mrb[0].mxu0
    %v2877 = vpop.f32.mrb[0].mxu0
    %v2878 = vpop.f32.mrb[0].mxu0
    %2879 = vdwg.mxu0
    %v2882 = vsel %vm1277, %v2606, 0
    %2884 = vmatprep.subr.bf16.mxu0 0
    %2885 = vmatpush1.bf16.msra.mxu0 %v715
    %2886 = vmatprep.subr.bf16.mxu0 0
    %2887 = vmatpush1.bf16.msra.mxu0 0
    %2888 = vmatprep.subr.bf16.mxu0 0
    %2889 = vmatpush1.bf16.msra.mxu0 0
    %2890 = vmatprep.subr.bf16.mxu0 0
    %2891 = vmatpush1.bf16.msra.mxu0 0
    %2892 = vmatprep.subr.bf16.mxu0 0
    %2893 = vmatpush1.bf16.msra.mxu0 0
    %2894 = vmatprep.subr.bf16.mxu0 0
    %2895 = vmatpush1.bf16.msra.mxu0 0
    %2896 = vmatprep.subr.bf16.mxu0 0
    %2897 = vmatpush1.bf16.msra.mxu0 0
    %2898 = vmatprep.subr.bf16.mxu0 0
    %2899 = vmatpush1.bf16.msra.mxu0 0
    %2900 = vmatprep.subr.bf16.mxu0 0
    %2901 = vmatpush1.bf16.msra.mxu0 0
    %2902 = vmatprep.subr.bf16.mxu0 0
    %2903 = vmatpush1.bf16.msra.mxu0 0
    %2904 = vmatprep.subr.bf16.mxu0 0
    %2905 = vmatpush1.bf16.msra.mxu0 0
    %2906 = vmatprep.subr.bf16.mxu0 0
    %2907 = vmatpush1.bf16.msra.mxu0 0
    %2908 = vmatprep.subr.bf16.mxu0 0
    %2909 = vmatpush1.bf16.msra.mxu0 0
    %2910 = vmatprep.subr.bf16.mxu0 0
    %2911 = vmatpush1.bf16.msra.mxu0 0
    %2912 = vmatprep.subr.bf16.mxu0 0
    %2913 = vmatpush1.bf16.msra.mxu0 0
    %2914 = vmatprep.subr.bf16.mxu0 0
    %2915 = vmatpush1.bf16.msra.mxu0 0
    %2916 = vmatprep.mubr.bf16.mxu0 0
    %2917 = vmatmul.mubr.bf16.gmra.mrb[0].mxu0 %v2882
    %v2918 = vpop.f32.mrb[0].mxu0
    %v2919 = vadd.f32 0.0, %v2918
    %v2920 = vpop.f32.mrb[0].mxu0
    %v2921 = vpop.f32.mrb[0].mxu0
    %v2922 = vpop.f32.mrb[0].mxu0
    %2923 = vdwg.mxu0
    %v2926 = vsel %vm1277, %v2607, 0
    %2928 = vmatprep.subr.bf16.mxu0 0
    %2929 = vmatpush1.bf16.msra.mxu0 %v766
    %2930 = vmatprep.subr.bf16.mxu0 0
    %2931 = vmatpush1.bf16.msra.mxu0 0
    %2932 = vmatprep.subr.bf16.mxu0 0
    %2933 = vmatpush1.bf16.msra.mxu0 0
    %2934 = vmatprep.subr.bf16.mxu0 0
    %2935 = vmatpush1.bf16.msra.mxu0 0
    %2936 = vmatprep.subr.bf16.mxu0 0
    %2937 = vmatpush1.bf16.msra.mxu0 0
    %2938 = vmatprep.subr.bf16.mxu0 0
    %2939 = vmatpush1.bf16.msra.mxu0 0
    %2940 = vmatprep.subr.bf16.mxu0 0
    %2941 = vmatpush1.bf16.msra.mxu0 0
    %2942 = vmatprep.subr.bf16.mxu0 0
    %2943 = vmatpush1.bf16.msra.mxu0 0
    %2944 = vmatprep.subr.bf16.mxu0 0
    %2945 = vmatpush1.bf16.msra.mxu0 0
    %2946 = vmatprep.subr.bf16.mxu0 0
    %2947 = vmatpush1.bf16.msra.mxu0 0
    %2948 = vmatprep.subr.bf16.mxu0 0
    %2949 = vmatpush1.bf16.msra.mxu0 0
    %2950 = vmatprep.subr.bf16.mxu0 0
    %2951 = vmatpush1.bf16.msra.mxu0 0
    %2952 = vmatprep.subr.bf16.mxu0 0
    %2953 = vmatpush1.bf16.msra.mxu0 0
    %2954 = vmatprep.subr.bf16.mxu0 0
    %2955 = vmatpush1.bf16.msra.mxu0 0
    %2956 = vmatprep.subr.bf16.mxu0 0
    %2957 = vmatpush1.bf16.msra.mxu0 0
    %2958 = vmatprep.subr.bf16.mxu0 0
    %2959 = vmatpush1.bf16.msra.mxu0 0
    %2960 = vmatprep.mubr.bf16.mxu0 0
    %2961 = vmatmul.mubr.bf16.gmra.mrb[0].mxu0 %v2926
    %v2962 = vpop.f32.mrb[0].mxu0
    %v2963 = vadd.f32 0.0, %v2962
    %v2964 = vpop.f32.mrb[0].mxu0
    %v2965 = vpop.f32.mrb[0].mxu0
    %v2966 = vpop.f32.mrb[0].mxu0
    %2967 = vdwg.mxu0
    %v2970 = vsel %vm1277, %v2608, 0
    %2972 = vmatprep.subr.bf16.mxu0 0
    %2973 = vmatpush1.bf16.msra.mxu0 %v817
    %2974 = vmatprep.subr.bf16.mxu0 0
    %2975 = vmatpush1.bf16.msra.mxu0 0
    %2976 = vmatprep.subr.bf16.mxu0 0
    %2977 = vmatpush1.bf16.msra.mxu0 0
    %2978 = vmatprep.subr.bf16.mxu0 0
    %2979 = vmatpush1.bf16.msra.mxu0 0
    %2980 = vmatprep.subr.bf16.mxu0 0
    %2981 = vmatpush1.bf16.msra.mxu0 0
    %2982 = vmatprep.subr.bf16.mxu0 0
    %2983 = vmatpush1.bf16.msra.mxu0 0
    %2984 = vmatprep.subr.bf16.mxu0 0
    %2985 = vmatpush1.bf16.msra.mxu0 0
    %2986 = vmatprep.subr.bf16.mxu0 0
    %2987 = vmatpush1.bf16.msra.mxu0 0
    %2988 = vmatprep.subr.bf16.mxu0 0
    %2989 = vmatpush1.bf16.msra.mxu0 0
    %2990 = vmatprep.subr.bf16.mxu0 0
    %2991 = vmatpush1.bf16.msra.mxu0 0
    %2992 = vmatprep.subr.bf16.mxu0 0
    %2993 = vmatpush1.bf16.msra.mxu0 0
    %2994 = vmatprep.subr.bf16.mxu0 0
    %2995 = vmatpush1.bf16.msra.mxu0 0
    %2996 = vmatprep.subr.bf16.mxu0 0
    %2997 = vmatpush1.bf16.msra.mxu0 0
    %2998 = vmatprep.subr.bf16.mxu0 0
    %2999 = vmatpush1.bf16.msra.mxu0 0
    %3000 = vmatprep.subr.bf16.mxu0 0
    %3001 = vmatpush1.bf16.msra.mxu0 0
    %3002 = vmatprep.subr.bf16.mxu0 0
    %3003 = vmatpush1.bf16.msra.mxu0 0
    %3004 = vmatprep.mubr.bf16.mxu0 0
    %3005 = vmatmul.mubr.bf16.gmra.mrb[0].mxu0 %v2970
    %v3006 = vpop.f32.mrb[0].mxu0
    %v3007 = vadd.f32 0.0, %v3006
    %v3008 = vpop.f32.mrb[0].mxu0
    %v3009 = vpop.f32.mrb[0].mxu0
    %v3010 = vpop.f32.mrb[0].mxu0
    %3011 = vdwg.mxu0
    %v3014 = vsel %vm1277, %v2609, 0
    %3016 = vmatprep.subr.bf16.mxu0 0
    %3017 = vmatpush1.bf16.msra.mxu0 %v868
    %3018 = vmatprep.subr.bf16.mxu0 0
    %3019 = vmatpush1.bf16.msra.mxu0 0
    %3020 = vmatprep.subr.bf16.mxu0 0
    %3021 = vmatpush1.bf16.msra.mxu0 0
    %3022 = vmatprep.subr.bf16.mxu0 0
    %3023 = vmatpush1.bf16.msra.mxu0 0
    %3024 = vmatprep.subr.bf16.mxu0 0
    %3025 = vmatpush1.bf16.msra.mxu0 0
    %3026 = vmatprep.subr.bf16.mxu0 0
    %3027 = vmatpush1.bf16.msra.mxu0 0
    %3028 = vmatprep.subr.bf16.mxu0 0
    %3029 = vmatpush1.bf16.msra.mxu0 0
    %3030 = vmatprep.subr.bf16.mxu0 0
    %3031 = vmatpush1.bf16.msra.mxu0 0
    %3032 = vmatprep.subr.bf16.mxu0 0
    %3033 = vmatpush1.bf16.msra.mxu0 0
    %3034 = vmatprep.subr.bf16.mxu0 0
    %3035 = vmatpush1.bf16.msra.mxu0 0
    %3036 = vmatprep.subr.bf16.mxu0 0
    %3037 = vmatpush1.bf16.msra.mxu0 0
    %3038 = vmatprep.subr.bf16.mxu0 0
    %3039 = vmatpush1.bf16.msra.mxu0 0
    %3040 = vmatprep.subr.bf16.mxu0 0
    %3041 = vmatpush1.bf16.msra.mxu0 0
    %3042 = vmatprep.subr.bf16.mxu0 0
    %3043 = vmatpush1.bf16.msra.mxu0 0
    %3044 = vmatprep.subr.bf16.mxu0 0
    %3045 = vmatpush1.bf16.msra.mxu0 0
    %3046 = vmatprep.subr.bf16.mxu0 0
    %3047 = vmatpush1.bf16.msra.mxu0 0
    %3048 = vmatprep.mubr.bf16.mxu0 0
    %3049 = vmatmul.mubr.bf16.gmra.mrb[0].mxu0 %v3014
    %v3050 = vpop.f32.mrb[0].mxu0
    %v3051 = vadd.f32 0.0, %v3050
    %v3052 = vpop.f32.mrb[0].mxu0
    %v3053 = vpop.f32.mrb[0].mxu0
    %v3054 = vpop.f32.mrb[0].mxu0
    %3055 = vdwg.mxu0
    %v3058 = vsel %vm1277, %v2610, 0
    %3060 = vmatprep.subr.bf16.mxu0 0
    %3061 = vmatpush1.bf16.msra.mxu0 %v919
    %3062 = vmatprep.subr.bf16.mxu0 0
    %3063 = vmatpush1.bf16.msra.mxu0 0
    %3064 = vmatprep.subr.bf16.mxu0 0
    %3065 = vmatpush1.bf16.msra.mxu0 0
    %3066 = vmatprep.subr.bf16.mxu0 0
    %3067 = vmatpush1.bf16.msra.mxu0 0
    %3068 = vmatprep.subr.bf16.mxu0 0
    %3069 = vmatpush1.bf16.msra.mxu0 0
    %3070 = vmatprep.subr.bf16.mxu0 0
    %3071 = vmatpush1.bf16.msra.mxu0 0
    %3072 = vmatprep.subr.bf16.mxu0 0
    %3073 = vmatpush1.bf16.msra.mxu0 0
    %3074 = vmatprep.subr.bf16.mxu0 0
    %3075 = vmatpush1.bf16.msra.mxu0 0
    %3076 = vmatprep.subr.bf16.mxu0 0
    %3077 = vmatpush1.bf16.msra.mxu0 0
    %3078 = vmatprep.subr.bf16.mxu0 0
    %3079 = vmatpush1.bf16.msra.mxu0 0
    %3080 = vmatprep.subr.bf16.mxu0 0
    %3081 = vmatpush1.bf16.msra.mxu0 0
    %3082 = vmatprep.subr.bf16.mxu0 0
    %3083 = vmatpush1.bf16.msra.mxu0 0
    %3084 = vmatprep.subr.bf16.mxu0 0
    %3085 = vmatpush1.bf16.msra.mxu0 0
    %3086 = vmatprep.subr.bf16.mxu0 0
    %3087 = vmatpush1.bf16.msra.mxu0 0
    %3088 = vmatprep.subr.bf16.mxu0 0
    %3089 = vmatpush1.bf16.msra.mxu0 0
    %3090 = vmatprep.subr.bf16.mxu0 0
    %3091 = vmatpush1.bf16.msra.mxu0 0
    %3092 = vmatprep.mubr.bf16.mxu0 0
    %3093 = vmatmul.mubr.bf16.gmra.mrb[0].mxu0 %v3058
    %v3094 = vpop.f32.mrb[0].mxu0
    %v3095 = vadd.f32 0.0, %v3094
    %v3096 = vpop.f32.mrb[0].mxu0
    %v3097 = vpop.f32.mrb[0].mxu0
    %v3098 = vpop.f32.mrb[0].mxu0
    %3099 = vdwg.mxu0
    %v3102 = vsel %vm1277, %v2611, 0
    %3104 = vmatprep.subr.bf16.mxu0 0
    %3105 = vmatpush1.bf16.msra.mxu0 %v970
    %3106 = vmatprep.subr.bf16.mxu0 0
    %3107 = vmatpush1.bf16.msra.mxu0 0
    %3108 = vmatprep.subr.bf16.mxu0 0
    %3109 = vmatpush1.bf16.msra.mxu0 0
    %3110 = vmatprep.subr.bf16.mxu0 0
    %3111 = vmatpush1.bf16.msra.mxu0 0
    %3112 = vmatprep.subr.bf16.mxu0 0
    %3113 = vmatpush1.bf16.msra.mxu0 0
    %3114 = vmatprep.subr.bf16.mxu0 0
    %3115 = vmatpush1.bf16.msra.mxu0 0
    %3116 = vmatprep.subr.bf16.mxu0 0
    %3117 = vmatpush1.bf16.msra.mxu0 0
    %3118 = vmatprep.subr.bf16.mxu0 0
    %3119 = vmatpush1.bf16.msra.mxu0 0
    %3120 = vmatprep.subr.bf16.mxu0 0
    %3121 = vmatpush1.bf16.msra.mxu0 0
    %3122 = vmatprep.subr.bf16.mxu0 0
    %3123 = vmatpush1.bf16.msra.mxu0 0
    %3124 = vmatprep.subr.bf16.mxu0 0
    %3125 = vmatpush1.bf16.msra.mxu0 0
    %3126 = vmatprep.subr.bf16.mxu0 0
    %3127 = vmatpush1.bf16.msra.mxu0 0
    %3128 = vmatprep.subr.bf16.mxu0 0
    %3129 = vmatpush1.bf16.msra.mxu0 0
    %3130 = vmatprep.subr.bf16.mxu0 0
    %3131 = vmatpush1.bf16.msra.mxu0 0
    %3132 = vmatprep.subr.bf16.mxu0 0
    %3133 = vmatpush1.bf16.msra.mxu0 0
    %3134 = vmatprep.subr.bf16.mxu0 0
    %3135 = vmatpush1.bf16.msra.mxu0 0
    %3136 = vmatprep.mubr.bf16.mxu0 0
    %3137 = vmatmul.mubr.bf16.gmra.mrb[0].mxu0 %v3102
    %v3138 = vpop.f32.mrb[0].mxu0
    %v3139 = vadd.f32 0.0, %v3138
    %v3140 = vpop.f32.mrb[0].mxu0
    %v3141 = vpop.f32.mrb[0].mxu0
    %v3142 = vpop.f32.mrb[0].mxu0
    %3143 = vdwg.mxu0
    %v3146 = vsel %vm1277, %v2612, 0
    %3148 = vmatprep.subr.bf16.mxu0 0
    %3149 = vmatpush1.bf16.msra.mxu0 %v1021
    %3150 = vmatprep.subr.bf16.mxu0 0
    %3151 = vmatpush1.bf16.msra.mxu0 0
    %3152 = vmatprep.subr.bf16.mxu0 0
    %3153 = vmatpush1.bf16.msra.mxu0 0
    %3154 = vmatprep.subr.bf16.mxu0 0
    %3155 = vmatpush1.bf16.msra.mxu0 0
    %3156 = vmatprep.subr.bf16.mxu0 0
    %3157 = vmatpush1.bf16.msra.mxu0 0
    %3158 = vmatprep.subr.bf16.mxu0 0
    %3159 = vmatpush1.bf16.msra.mxu0 0
    %3160 = vmatprep.subr.bf16.mxu0 0
    %3161 = vmatpush1.bf16.msra.mxu0 0
    %3162 = vmatprep.subr.bf16.mxu0 0
    %3163 = vmatpush1.bf16.msra.mxu0 0
    %3164 = vmatprep.subr.bf16.mxu0 0
    %3165 = vmatpush1.bf16.msra.mxu0 0
    %3166 = vmatprep.subr.bf16.mxu0 0
    %3167 = vmatpush1.bf16.msra.mxu0 0
    %3168 = vmatprep.subr.bf16.mxu0 0
    %3169 = vmatpush1.bf16.msra.mxu0 0
    %3170 = vmatprep.subr.bf16.mxu0 0
    %3171 = vmatpush1.bf16.msra.mxu0 0
    %3172 = vmatprep.subr.bf16.mxu0 0
    %3173 = vmatpush1.bf16.msra.mxu0 0
    %3174 = vmatprep.subr.bf16.mxu0 0
    %3175 = vmatpush1.bf16.msra.mxu0 0
    %3176 = vmatprep.subr.bf16.mxu0 0
    %3177 = vmatpush1.bf16.msra.mxu0 0
    %3178 = vmatprep.subr.bf16.mxu0 0
    %3179 = vmatpush1.bf16.msra.mxu0 0
    %3180 = vmatprep.mubr.bf16.mxu0 0
    %3181 = vmatmul.mubr.bf16.gmra.mrb[0].mxu0 %v3146
    %v3182 = vpop.f32.mrb[0].mxu0
    %v3183 = vadd.f32 0.0, %v3182
    %v3184 = vpop.f32.mrb[0].mxu0
    %v3185 = vpop.f32.mrb[0].mxu0
    %v3186 = vpop.f32.mrb[0].mxu0
    %3187 = vdwg.mxu0
    %v3190 = vsel %vm1277, %v2613, 0
    %3192 = vmatprep.subr.bf16.mxu0 0
    %3193 = vmatpush1.bf16.msra.mxu0 %v1072
    %3194 = vmatprep.subr.bf16.mxu0 0
    %3195 = vmatpush1.bf16.msra.mxu0 0
    %3196 = vmatprep.subr.bf16.mxu0 0
    %3197 = vmatpush1.bf16.msra.mxu0 0
    %3198 = vmatprep.subr.bf16.mxu0 0
    %3199 = vmatpush1.bf16.msra.mxu0 0
    %3200 = vmatprep.subr.bf16.mxu0 0
    %3201 = vmatpush1.bf16.msra.mxu0 0
    %3202 = vmatprep.subr.bf16.mxu0 0
    %3203 = vmatpush1.bf16.msra.mxu0 0
    %3204 = vmatprep.subr.bf16.mxu0 0
    %3205 = vmatpush1.bf16.msra.mxu0 0
    %3206 = vmatprep.subr.bf16.mxu0 0
    %3207 = vmatpush1.bf16.msra.mxu0 0
    %3208 = vmatprep.subr.bf16.mxu0 0
    %3209 = vmatpush1.bf16.msra.mxu0 0
    %3210 = vmatprep.subr.bf16.mxu0 0
    %3211 = vmatpush1.bf16.msra.mxu0 0
    %3212 = vmatprep.subr.bf16.mxu0 0
    %3213 = vmatpush1.bf16.msra.mxu0 0
    %3214 = vmatprep.subr.bf16.mxu0 0
    %3215 = vmatpush1.bf16.msra.mxu0 0
    %3216 = vmatprep.subr.bf16.mxu0 0
    %3217 = vmatpush1.bf16.msra.mxu0 0
    %3218 = vmatprep.subr.bf16.mxu0 0
    %3219 = vmatpush1.bf16.msra.mxu0 0
    %3220 = vmatprep.subr.bf16.mxu0 0
    %3221 = vmatpush1.bf16.msra.mxu0 0
    %3222 = vmatprep.subr.bf16.mxu0 0
    %3223 = vmatpush1.bf16.msra.mxu0 0
    %3224 = vmatprep.mubr.bf16.mxu0 0
    %3225 = vmatmul.mubr.bf16.gmra.mrb[0].mxu0 %v3190
    %v3226 = vpop.f32.mrb[0].mxu0
    %v3227 = vadd.f32 0.0, %v3226
    %v3228 = vpop.f32.mrb[0].mxu0
    %v3229 = vpop.f32.mrb[0].mxu0
    %v3230 = vpop.f32.mrb[0].mxu0
    %3231 = vdwg.mxu0
    %v3234 = vsel %vm1277, %v2614, 0
    %3236 = vmatprep.subr.bf16.mxu0 0
    %3237 = vmatpush1.bf16.msra.mxu0 %v1123
    %3238 = vmatprep.subr.bf16.mxu0 0
    %3239 = vmatpush1.bf16.msra.mxu0 0
    %3240 = vmatprep.subr.bf16.mxu0 0
    %3241 = vmatpush1.bf16.msra.mxu0 0
    %3242 = vmatprep.subr.bf16.mxu0 0
    %3243 = vmatpush1.bf16.msra.mxu0 0
    %3244 = vmatprep.subr.bf16.mxu0 0
    %3245 = vmatpush1.bf16.msra.mxu0 0
    %3246 = vmatprep.subr.bf16.mxu0 0
    %3247 = vmatpush1.bf16.msra.mxu0 0
    %3248 = vmatprep.subr.bf16.mxu0 0
    %3249 = vmatpush1.bf16.msra.mxu0 0
    %3250 = vmatprep.subr.bf16.mxu0 0
    %3251 = vmatpush1.bf16.msra.mxu0 0
    %3252 = vmatprep.subr.bf16.mxu0 0
    %3253 = vmatpush1.bf16.msra.mxu0 0
    %3254 = vmatprep.subr.bf16.mxu0 0
    %3255 = vmatpush1.bf16.msra.mxu0 0
    %3256 = vmatprep.subr.bf16.mxu0 0
    %3257 = vmatpush1.bf16.msra.mxu0 0
    %3258 = vmatprep.subr.bf16.mxu0 0
    %3259 = vmatpush1.bf16.msra.mxu0 0
    %3260 = vmatprep.subr.bf16.mxu0 0
    %3261 = vmatpush1.bf16.msra.mxu0 0
    %3262 = vmatprep.subr.bf16.mxu0 0
    %3263 = vmatpush1.bf16.msra.mxu0 0
    %3264 = vmatprep.subr.bf16.mxu0 0
    %3265 = vmatpush1.bf16.msra.mxu0 0
    %3266 = vmatprep.subr.bf16.mxu0 0
    %3267 = vmatpush1.bf16.msra.mxu0 0
    %3268 = vmatprep.mubr.bf16.mxu0 0
    %3269 = vmatmul.mubr.bf16.gmra.mrb[0].mxu0 %v3234
    %v3270 = vpop.f32.mrb[0].mxu0
    %v3271 = vadd.f32 0.0, %v3270
    %v3272 = vpop.f32.mrb[0].mxu0
    %v3273 = vpop.f32.mrb[0].mxu0
    %v3274 = vpop.f32.mrb[0].mxu0
    %3275 = vdwg.mxu0
    %v3278 = vsel %vm1277, %v2615, 0
    %3280 = vmatprep.subr.bf16.mxu0 0
    %3281 = vmatpush1.bf16.msra.mxu0 %v1174
    %3282 = vmatprep.subr.bf16.mxu0 0
    %3283 = vmatpush1.bf16.msra.mxu0 0
    %3284 = vmatprep.subr.bf16.mxu0 0
    %3285 = vmatpush1.bf16.msra.mxu0 0
    %3286 = vmatprep.subr.bf16.mxu0 0
    %3287 = vmatpush1.bf16.msra.mxu0 0
    %3288 = vmatprep.subr.bf16.mxu0 0
    %3289 = vmatpush1.bf16.msra.mxu0 0
    %3290 = vmatprep.subr.bf16.mxu0 0
    %3291 = vmatpush1.bf16.msra.mxu0 0
    %3292 = vmatprep.subr.bf16.mxu0 0
    %3293 = vmatpush1.bf16.msra.mxu0 0
    %3294 = vmatprep.subr.bf16.mxu0 0
    %3295 = vmatpush1.bf16.msra.mxu0 0
    %3296 = vmatprep.subr.bf16.mxu0 0
    %3297 = vmatpush1.bf16.msra.mxu0 0
    %3298 = vmatprep.subr.bf16.mxu0 0
    %3299 = vmatpush1.bf16.msra.mxu0 0
    %3300 = vmatprep.subr.bf16.mxu0 0
    %3301 = vmatpush1.bf16.msra.mxu0 0
    %3302 = vmatprep.subr.bf16.mxu0 0
    %3303 = vmatpush1.bf16.msra.mxu0 0
    %3304 = vmatprep.subr.bf16.mxu0 0
    %3305 = vmatpush1.bf16.msra.mxu0 0
    %3306 = vmatprep.subr.bf16.mxu0 0
    %3307 = vmatpush1.bf16.msra.mxu0 0
    %3308 = vmatprep.subr.bf16.mxu0 0
    %3309 = vmatpush1.bf16.msra.mxu0 0
    %3310 = vmatprep.subr.bf16.mxu0 0
    %3311 = vmatpush1.bf16.msra.mxu0 0
    %3312 = vmatprep.mubr.bf16.mxu0 0
    %3313 = vmatmul.mubr.bf16.gmra.mrb[0].mxu0 %v3278
    %v3314 = vpop.f32.mrb[0].mxu0
    %v3315 = vadd.f32 0.0, %v3314
    %v3316 = vpop.f32.mrb[0].mxu0
    %v3317 = vpop.f32.mrb[0].mxu0
    %v3318 = vpop.f32.mrb[0].mxu0
    %3319 = vdwg.mxu0
    %v3320 = vcombine.low %v2655, %v2743
    %v3322 = vunpack.c.l.s4 1983009808
    %v3323 = vunpack.c.0.s8 %v3322
    %v3324 = vlaneseq
    %v3325 = vshrl.u32 %v3324, 7
    %v3326 = vsub.s32 %v3323, %v3325
    %v3327 = vrot.slane %v3320, %v3326
    %v3328 = vcombine.low %v2699, %v2787
    %v3330 = vunpack.c.l.s4 1983009808
    %v3331 = vunpack.c.0.s8 %v3330
    %v3332 = vlaneseq
    %v3333 = vshrl.u32 %v3332, 7
    %v3334 = vsub.s32 %v3331, %v3333
    %v3335 = vrot.slane %v3328, %v3334
    %v3336 = vcombine.low %v2831, %v2919
    %v3338 = vunpack.c.l.s4 1983009808
    %v3339 = vunpack.c.0.s8 %v3338
    %v3340 = vlaneseq
    %v3341 = vshrl.u32 %v3340, 7
    %v3342 = vsub.s32 %v3339, %v3341
    %v3343 = vrot.slane %v3336, %v3342
    %v3344 = vcombine.low %v2875, %v2963
    %v3346 = vunpack.c.l.s4 1983009808
    %v3347 = vunpack.c.0.s8 %v3346
    %v3348 = vlaneseq
    %v3349 = vshrl.u32 %v3348, 7
    %v3350 = vsub.s32 %v3347, %v3349
    %v3351 = vrot.slane %v3344, %v3350
    %v3352 = vcombine.low %v3327, %v3335
    %v3353 = vcombine.high %v3327, %v3335
    %v3355 = vunpack.c.l.s4 1934713408
    %v3356 = vunpack.c.0.s8 %v3355
    %v3357 = vlaneseq
    %v3358 = vshrl.u32 %v3357, 7
    %v3359 = vsub.s32 %v3356, %v3358
    %v3360 = vrot.slane %v3352, %v3359
    %v3362 = vunpack.c.l.s4 1934713408
    %v3363 = vunpack.c.0.s8 %v3362
    %v3364 = vlaneseq
    %v3365 = vshrl.u32 %v3364, 7
    %v3366 = vsub.s32 %v3363, %v3365
    %v3367 = vrot.slane %v3353, %v3366
    %v3368 = vcombine.low %v3343, %v3351
    %v3369 = vcombine.high %v3343, %v3351
    %v3371 = vunpack.c.l.s4 1934713408
    %v3372 = vunpack.c.0.s8 %v3371
    %v3373 = vlaneseq
    %v3374 = vshrl.u32 %v3373, 7
    %v3375 = vsub.s32 %v3372, %v3374
    %v3376 = vrot.slane %v3368, %v3375
    %v3378 = vunpack.c.l.s4 1934713408
    %v3379 = vunpack.c.0.s8 %v3378
    %v3380 = vlaneseq
    %v3381 = vshrl.u32 %v3380, 7
    %v3382 = vsub.s32 %v3379, %v3381
    %v3383 = vrot.slane %v3369, %v3382
    %v3384 = vcombine.low %v3360, %v3376
    %v3385 = vcombine.high %v3360, %v3376
    %v3386 = vcombine.low %v3367, %v3383
    %v3387 = vcombine.high %v3367, %v3383
    %v3388 = vcombine.low %v3007, %v3095
    %v3390 = vunpack.c.l.s4 1983009808
    %v3391 = vunpack.c.0.s8 %v3390
    %v3392 = vlaneseq
    %v3393 = vshrl.u32 %v3392, 7
    %v3394 = vsub.s32 %v3391, %v3393
    %v3395 = vrot.slane %v3388, %v3394
    %v3396 = vcombine.low %v3051, %v3139
    %v3398 = vunpack.c.l.s4 1983009808
    %v3399 = vunpack.c.0.s8 %v3398
    %v3400 = vlaneseq
    %v3401 = vshrl.u32 %v3400, 7
    %v3402 = vsub.s32 %v3399, %v3401
    %v3403 = vrot.slane %v3396, %v3402
    %v3404 = vcombine.low %v3183, %v3271
    %v3406 = vunpack.c.l.s4 1983009808
    %v3407 = vunpack.c.0.s8 %v3406
    %v3408 = vlaneseq
    %v3409 = vshrl.u32 %v3408, 7
    %v3410 = vsub.s32 %v3407, %v3409
    %v3411 = vrot.slane %v3404, %v3410
    %v3412 = vcombine.low %v3227, %v3315
    %v3414 = vunpack.c.l.s4 1983009808
    %v3415 = vunpack.c.0.s8 %v3414
    %v3416 = vlaneseq
    %v3417 = vshrl.u32 %v3416, 7
    %v3418 = vsub.s32 %v3415, %v3417
    %v3419 = vrot.slane %v3412, %v3418
    %v3420 = vcombine.low %v3395, %v3403
    %v3421 = vcombine.high %v3395, %v3403
    %v3423 = vunpack.c.l.s4 1934713408
    %v3424 = vunpack.c.0.s8 %v3423
    %v3425 = vlaneseq
    %v3426 = vshrl.u32 %v3425, 7
    %v3427 = vsub.s32 %v3424, %v3426
    %v3428 = vrot.slane %v3420, %v3427
    %v3430 = vunpack.c.l.s4 1934713408
    %v3431 = vunpack.c.0.s8 %v3430
    %v3432 = vlaneseq
    %v3433 = vshrl.u32 %v3432, 7
    %v3434 = vsub.s32 %v3431, %v3433
    %v3435 = vrot.slane %v3421, %v3434
    %v3436 = vcombine.low %v3411, %v3419
    %v3437 = vcombine.high %v3411, %v3419
    %v3439 = vunpack.c.l.s4 1934713408
    %v3440 = vunpack.c.0.s8 %v3439
    %v3441 = vlaneseq
    %v3442 = vshrl.u32 %v3441, 7
    %v3443 = vsub.s32 %v3440, %v3442
    %v3444 = vrot.slane %v3436, %v3443
    %v3446 = vunpack.c.l.s4 1934713408
    %v3447 = vunpack.c.0.s8 %v3446
    %v3448 = vlaneseq
    %v3449 = vshrl.u32 %v3448, 7
    %v3450 = vsub.s32 %v3447, %v3449
    %v3451 = vrot.slane %v3437, %v3450
    %v3452 = vcombine.low %v3428, %v3444
    %v3453 = vcombine.high %v3428, %v3444
    %v3454 = vcombine.low %v3435, %v3451
    %v3455 = vcombine.high %v3435, %v3451
    %3458 = vrot.lane.b32.xlu0 %v3385, 8
    %v3459 = vpop.permute.xlu0 %3458
    %3460 = vrot.lane.b32.xlu0 %v3453, 8
    %v3461 = vpop.permute.xlu0 %3460
    %3466 = vrot.lane.b32.xlu0 %v3386, 16
    %v3467 = vpop.permute.xlu0 %3466
    %3468 = vrot.lane.b32.xlu0 %v3454, 16
    %v3469 = vpop.permute.xlu0 %3468
    %3474 = vrot.lane.b32.xlu0 %v3387, 24
    %v3475 = vpop.permute.xlu0 %3474
    %3476 = vrot.lane.b32.xlu0 %v3455, 24
    %v3477 = vpop.permute.xlu0 %3476
    %v3480 = vsel %vm409, %v3384, %v3459
    %v3481 = vsel %vm409, %v3452, %v3461
    %v3482 = vsel %vm1277, %v3480, %v3467
    %v3483 = vsel %vm1277, %v3481, %v3469
    %vm3484 = vcmask 195584
    %v3485 = vsel %vm3484, %v3482, %v3475
    %v3486 = vsel %vm3484, %v3483, %v3477
    %v3487 = vpack.c.bf16 %v3486, %v3485
    %v3488 = vld [vmem:[%s3] sm:$0xf]
    %v3489 = vld [vmem:[%s3 + $0x4] sm:$0xf]
    %v3490 = vld [vmem:[%s3 + $0x8] sm:$0xf]
    %v3491 = vld [vmem:[%s3 + $0xc] sm:$0xf]
    %v3496 = vunpack.c.l.b16 %v3488
    %v3497 = vunpack.c.l.b16 %v3489
    %v3498 = vunpack.c.l.b16 %v3490
    %v3499 = vunpack.c.l.b16 %v3491
    %v3500 = vpack.c.b16 %v3497, %v3496
    %v3501 = vpack.c.b16 %v3499, %v3498
    %v3505 = vsel %vm1887, %v3487, 0
    %3507 = vmatprep.subr.bf16.mxu0 0
    %3508 = vmatpush1.bf16.msra.mxu0 %v3500
    %3509 = vmatprep.subr.bf16.mxu0 0
    %3510 = vmatpush1.bf16.msra.mxu0 %v3501
    %3511 = vmatprep.subr.bf16.mxu0 0
    %3512 = vmatpush1.bf16.msra.mxu0 0
    %3513 = vmatprep.subr.bf16.mxu0 0
    %3514 = vmatpush1.bf16.msra.mxu0 0
    %3515 = vmatprep.subr.bf16.mxu0 0
    %3516 = vmatpush1.bf16.msra.mxu0 0
    %3517 = vmatprep.subr.bf16.mxu0 0
    %3518 = vmatpush1.bf16.msra.mxu0 0
    %3519 = vmatprep.subr.bf16.mxu0 0
    %3520 = vmatpush1.bf16.msra.mxu0 0
    %3521 = vmatprep.subr.bf16.mxu0 0
    %3522 = vmatpush1.bf16.msra.mxu0 0
    %3523 = vmatprep.subr.bf16.mxu0 0
    %3524 = vmatpush1.bf16.msra.mxu0 0
    %3525 = vmatprep.subr.bf16.mxu0 0
    %3526 = vmatpush1.bf16.msra.mxu0 0
    %3527 = vmatprep.subr.bf16.mxu0 0
    %3528 = vmatpush1.bf16.msra.mxu0 0
    %3529 = vmatprep.subr.bf16.mxu0 0
    %3530 = vmatpush1.bf16.msra.mxu0 0
    %3531 = vmatprep.subr.bf16.mxu0 0
    %3532 = vmatpush1.bf16.msra.mxu0 0
    %3533 = vmatprep.subr.bf16.mxu0 0
    %3534 = vmatpush1.bf16.msra.mxu0 0
    %3535 = vmatprep.subr.bf16.mxu0 0
    %3536 = vmatpush1.bf16.msra.mxu0 0
    %3537 = vmatprep.subr.bf16.mxu0 0
    %3538 = vmatpush1.bf16.msra.mxu0 0
    %3539 = vmatprep.mubr.bf16.mxu0 0
    %3540 = vmatmul.mubr.bf16.gmra.mrb[0].mxu0 %v3505
    %v3541 = vpop.f32.mrb[0].mxu0
    %v3542 = vadd.f32 0.0, %v3541
    %v3543 = vpop.f32.mrb[0].mxu0
    %v3544 = vpop.f32.mrb[0].mxu0
    %v3545 = vadd.f32 0.0, %v3544
    %v3546 = vpop.f32.mrb[0].mxu0
    %3547 = vdwg.mxu0
    %v3548 = vld [vmem:[%s6] sm:$0xf]
    %v3549 = vld [vmem:[%s6 + $0x4] sm:$0xf]
    %v3550 = vld [vmem:[%s6 + $0x8] sm:$0xf]
    %v3551 = vld [vmem:[%s6 + $0xc] sm:$0xf]
    %v3552 = vld [vmem:[%s6 + $0x10] sm:$0xf]
    %v3553 = vld [vmem:[%s6 + $0x14] sm:$0xf]
    %v3554 = vld [vmem:[%s6 + $0x18] sm:$0xf]
    %v3555 = vld [vmem:[%s6 + $0x1c] sm:$0xf]
    %v3564 = vunpack.c.l.b16 %v3548
    %v3565 = vunpack.c.l.b16 %v3549
    %v3566 = vunpack.c.l.b16 %v3550
    %v3567 = vunpack.c.l.b16 %v3551
    %v3568 = vunpack.c.l.b16 %v3552
    %v3569 = vunpack.c.l.b16 %v3553
    %v3570 = vunpack.c.l.b16 %v3554
    %v3571 = vunpack.c.l.b16 %v3555
    %v3572 = vpack.c.b16 %v3565, %v3564
    %v3573 = vpack.c.b16 %v3567, %v3566
    %v3574 = vpack.c.b16 %v3569, %v3568
    %v3575 = vpack.c.b16 %v3571, %v3570
    %3580 = vmatprep.subr.bf16.mxu0 0
    %3581 = vmatpush1.bf16.msra.mxu0 %v3572
    %3582 = vmatprep.subr.bf16.mxu0 0
    %3583 = vmatpush1.bf16.msra.mxu0 %v3573
    %3584 = vmatprep.subr.bf16.mxu0 0
    %3585 = vmatpush1.bf16.msra.mxu0 %v3574
    %3586 = vmatprep.subr.bf16.mxu0 0
    %3587 = vmatpush1.bf16.msra.mxu0 %v3575
    %3588 = vmatprep.subr.bf16.mxu0 0
    %3589 = vmatpush1.bf16.msra.mxu0 0
    %3590 = vmatprep.subr.bf16.mxu0 0
    %3591 = vmatpush1.bf16.msra.mxu0 0
    %3592 = vmatprep.subr.bf16.mxu0 0
    %3593 = vmatpush1.bf16.msra.mxu0 0
    %3594 = vmatprep.subr.bf16.mxu0 0
    %3595 = vmatpush1.bf16.msra.mxu0 0
    %3596 = vmatprep.subr.bf16.mxu0 0
    %3597 = vmatpush1.bf16.msra.mxu0 0
    %3598 = vmatprep.subr.bf16.mxu0 0
    %3599 = vmatpush1.bf16.msra.mxu0 0
    %3600 = vmatprep.subr.bf16.mxu0 0
    %3601 = vmatpush1.bf16.msra.mxu0 0
    %3602 = vmatprep.subr.bf16.mxu0 0
    %3603 = vmatpush1.bf16.msra.mxu0 0
    %3604 = vmatprep.subr.bf16.mxu0 0
    %3605 = vmatpush1.bf16.msra.mxu0 0
    %3606 = vmatprep.subr.bf16.mxu0 0
    %3607 = vmatpush1.bf16.msra.mxu0 0
    %3608 = vmatprep.subr.bf16.mxu0 0
    %3609 = vmatpush1.bf16.msra.mxu0 0
    %3610 = vmatprep.subr.bf16.mxu0 0
    %3611 = vmatpush1.bf16.msra.mxu0 0
    %3612 = vmatprep.mubr.bf16.mxu0 0
    %3613 = vmatmul.mubr.bf16.gmra.mrb[0].mxu0 %v119
    %v3614 = vpop.f32.mrb[0].mxu0
    %v3615 = vadd.f32 0.0, %v3614
    %v3616 = vpop.f32.mrb[0].mxu0
    %v3617 = vpop.f32.mrb[0].mxu0
    %v3618 = vadd.f32 0.0, %v3617
    %v3619 = vpop.f32.mrb[0].mxu0
    %3620 = vdwg.mxu0
    %v3621 = vadd.f32 %v1891, %v3542
    %v3622 = vadd.f32 %v1892, %v3545
    %v3623 = vadd.f32 %v3621, %v3615
    %v3624 = vadd.f32 %v3622, %v3618
    %vm3625 = vcmp.gt.f32.partialorder %v3623, 0.0
    %vm3626 = vcmp.gt.f32.partialorder %v3624, 0.0
    %v3627 = vmin.f32 %v3623, 0.0
    %v3628 = vmin.f32 %v3624, 0.0
    %v3629 = vmul.f32 %v3627, 1.442695
    %v3630 = vpow.pop %v3629
    %v3631 = vmul.f32 %v3628, 1.442695
    %v3632 = vpow.pop %v3631
    %v3633 = vsub.f32 %v3630, 1.0
    %v3634 = vsub.f32 %v3632, 1.0
    %v3635 = vsel %vm3625, %v3623, %v3633
    %v3636 = vsel %vm3626, %v3624, %v3634
    %3637 = vst.msk [vmem:[#allocation2] sm:$0xff] %vm117, %v3635
    %3638 = vst.msk [vmem:[#allocation2 + $0x8] sm:$0xff] %vm117, %v3636
    // Predicated region
    $region30: #{gtran_rel_feat_forward.3} parent=1 // pred_check
      _
    $region31: #{gtran_rel_feat_forward.3} parent=1 // pred_check_branch
      %3640 = sbr.rel (0) target = $region33
    $region32: #{gtran_rel_feat_forward.3} parent=1 // pred_region
      %s3642 = ssub.s32 256, 256
      %3643 = vsyncadd [#allocation3], %s3642
      %s3644 = sshll.u32 [#allocation2], 4
      %s3645 = int_to_ptr.vmem [resolvable:$true] %s3644
      %3650 = dma.vmem_to_hbm [thread:$0]  %s3645, 256, %s7, [#allocation3], 128, 128, 8
    $region33: #{gtran_rel_feat_forward.3} parent=1 // pred_fallthru
      _
    // Predicated region
    $region34: #{gtran_rel_feat_forward.3} parent=1 // pred_check
      _
    $region35: #{gtran_rel_feat_forward.3} parent=1 // pred_check_branch
      %3652 = sbr.rel (0) target = $region37
    $region36: #{gtran_rel_feat_forward.3} parent=1 // pred_region
      %3653 = dma.done [#allocation3], 256
    $region37: #{gtran_rel_feat_forward.3} parent=1 // pred_fallthru
      _
    %3654 = vsyncpa [#allocation3], 1

// kernel: gtran_rel_feat_forward.2
$region0: #{gtran_rel_feat_forward.2}
  #allocation0 [shape = 'u32[]', space=smem, size = 0x4, offset = 0x4, fixed_abs, tag = 'smem constant byte address 0x4 - core index']
  #allocation1 [shape = 'u32[144,128]{1,0:T(1,128)}', space=vmem, size = 0x12000, scoped, tag = 'internal scratch']
  %s0 = inlined_call_operand.vmem [shape: bf16[16,32], index: 0, kind: input, shape index: {}]
  %s1 = inlined_call_operand.vmem [shape: bf16[32,192], index: 1, kind: input, shape index: {}]
  %s2 = inlined_call_operand.vmem [shape: bf16[64,32], index: 2, kind: input, shape index: {}]
  %s3 = inlined_call_operand.vmem [shape: bf16[32,64], index: 3, kind: input, shape index: {}]
  %s4 = inlined_call_operand.vmem [shape: bf16[16,16,8], index: 4, kind: input, shape index: {}]
  %s5 = inlined_call_operand.vmem [shape: f32[16,16], index: 5, kind: input, shape index: {}]
  %s6 = inlined_call_operand.vmem [shape: bf16[32,64], index: 6, kind: input, shape index: {}]
  %s7 = inlined_call_operand.vmem [shape: f32[16,64], index: 7, kind: output, shape index: {}]
  %s8 = sld [smem:[#allocation0]]
  $region38: #{gtran_rel_feat_forward.2} parent=0
    _
  %s10 = ssub.s32 1, %s8
  %s11 = scalar_select 0, %s10, %s8
  // Predicated region
  $region2: #{gtran_rel_feat_forward.2} parent=0 // pred_check
    _
  $region3: #{gtran_rel_feat_forward.2} parent=0 // pred_check_branch
    %13 = sbr.rel (0) target = $region5
  $region4: #{gtran_rel_feat_forward.2} parent=0 // pred_region
    _
  $region5: #{gtran_rel_feat_forward.2} parent=0 // pred_fallthru
    _
  // Predicated region
  $region6: #{gtran_rel_feat_forward.2} parent=0 // pred_check
    _
  $region7: #{gtran_rel_feat_forward.2} parent=0 // pred_check_branch
    %15 = sbr.rel (0) target = $region9
  $region8: #{gtran_rel_feat_forward.2} parent=0 // pred_region
    _
  $region9: #{gtran_rel_feat_forward.2} parent=0 // pred_fallthru
    _
  // Predicated region
  $region10: #{gtran_rel_feat_forward.2} parent=0 // pred_check
    _
  $region11: #{gtran_rel_feat_forward.2} parent=0 // pred_check_branch
    %17 = sbr.rel (0) target = $region13
  $region12: #{gtran_rel_feat_forward.2} parent=0 // pred_region
    _
  $region13: #{gtran_rel_feat_forward.2} parent=0 // pred_fallthru
    _
  // Predicated region
  $region14: #{gtran_rel_feat_forward.2} parent=0 // pred_check
    _
  $region15: #{gtran_rel_feat_forward.2} parent=0 // pred_check_branch
    %19 = sbr.rel (0) target = $region17
  $region16: #{gtran_rel_feat_forward.2} parent=0 // pred_region
    _
  $region17: #{gtran_rel_feat_forward.2} parent=0 // pred_fallthru
    _
  // Predicated region
  $region18: #{gtran_rel_feat_forward.2} parent=0 // pred_check
    _
  $region19: #{gtran_rel_feat_forward.2} parent=0 // pred_check_branch
    %21 = sbr.rel (0) target = $region21
  $region20: #{gtran_rel_feat_forward.2} parent=0 // pred_region
    _
  $region21: #{gtran_rel_feat_forward.2} parent=0 // pred_fallthru
    _
  // Predicated region
  $region22: #{gtran_rel_feat_forward.2} parent=0 // pred_check
    _
  $region23: #{gtran_rel_feat_forward.2} parent=0 // pred_check_branch
    %23 = sbr.rel (0) target = $region25
  $region24: #{gtran_rel_feat_forward.2} parent=0 // pred_region
    _
  $region25: #{gtran_rel_feat_forward.2} parent=0 // pred_fallthru
    _
  // Predicated region
  $region26: #{gtran_rel_feat_forward.2} parent=0 // pred_check
    _
  $region27: #{gtran_rel_feat_forward.2} parent=0 // pred_check_branch
    %25 = sbr.rel (0) target = $region29
  $region28: #{gtran_rel_feat_forward.2} parent=0 // pred_region
    _
  $region29: #{gtran_rel_feat_forward.2} parent=0 // pred_fallthru
    _
  %v27 = vld [vmem:[%s0] sm:$0xf]
  %v28 = vld [vmem:[%s0 + $0x4] sm:$0xf]
  %v29 = vld [vmem:[%s4] sm:$0xf]
  %v30 = vld [vmem:[%s4 + $0x4] sm:$0xf]
  %v31 = vld [vmem:[%s4 + $0x8] sm:$0xf]
  %v32 = vld [vmem:[%s4 + $0xc] sm:$0xf]
  %v33 = vld [vmem:[%s4 + $0x10] sm:$0xf]
  %v34 = vld [vmem:[%s4 + $0x14] sm:$0xf]
  %v35 = vld [vmem:[%s4 + $0x18] sm:$0xf]
  %v36 = vld [vmem:[%s4 + $0x1c] sm:$0xf]
  %v37 = vld [vmem:[%s4 + $0x20] sm:$0xf]
  %v38 = vld [vmem:[%s4 + $0x24] sm:$0xf]
  %v39 = vld [vmem:[%s4 + $0x28] sm:$0xf]
  %v40 = vld [vmem:[%s4 + $0x2c] sm:$0xf]
  %v41 = vld [vmem:[%s4 + $0x30] sm:$0xf]
  %v42 = vld [vmem:[%s4 + $0x34] sm:$0xf]
  %v43 = vld [vmem:[%s4 + $0x38] sm:$0xf]
  %v44 = vld [vmem:[%s4 + $0x3c] sm:$0xf]
  %v45 = vld [vmem:[%s4 + $0x40] sm:$0xf]
  %v46 = vld [vmem:[%s4 + $0x44] sm:$0xf]
  %v47 = vld [vmem:[%s4 + $0x48] sm:$0xf]
  %v48 = vld [vmem:[%s4 + $0x4c] sm:$0xf]
  %v49 = vld [vmem:[%s4 + $0x50] sm:$0xf]
  %v50 = vld [vmem:[%s4 + $0x54] sm:$0xf]
  %v51 = vld [vmem:[%s4 + $0x58] sm:$0xf]
  %v52 = vld [vmem:[%s4 + $0x5c] sm:$0xf]
  %v53 = vld [vmem:[%s4 + $0x60] sm:$0xf]
  %v54 = vld [vmem:[%s4 + $0x64] sm:$0xf]
  %v55 = vld [vmem:[%s4 + $0x68] sm:$0xf]
  %v56 = vld [vmem:[%s4 + $0x6c] sm:$0xf]
  %v57 = vld [vmem:[%s4 + $0x70] sm:$0xf]
  %v58 = vld [vmem:[%s4 + $0x74] sm:$0xf]
  %v59 = vld [vmem:[%s4 + $0x78] sm:$0xf]
  %v60 = vld [vmem:[%s4 + $0x7c] sm:$0xf]
  %v61 = vld [vmem:[%s5] sm:$0xff]
  %v62 = vld [vmem:[%s5 + $0x8] sm:$0xff]
  %v63 = vld [vmem:[%s1] sm:$0xff]
  %v64 = vld [vmem:[%s1 + $0x8] sm:$0xff]
  %v65 = vld [vmem:[%s1 + $0x10] sm:$0xff]
  %v66 = vld [vmem:[%s1 + $0x18] sm:$0xff]
  %v69 = vunpack.c.l.b16 %v27
  %v70 = vunpack.c.l.b16 %v28
  %v71 = vpack.c.b16 %v70, %v69
  %v76 = vunpack.c.l.b16 %v63
  %v77 = vunpack.c.h.b16 %v63
  %v78 = vunpack.c.l.b16 %v64
  %v79 = vunpack.c.h.b16 %v64
  %v80 = vunpack.c.l.b16 %v65
  %v81 = vunpack.c.h.b16 %v65
  %v82 = vunpack.c.l.b16 %v66
  %v83 = vunpack.c.h.b16 %v66
  %v84 = vpack.c.b16 %v78, %v76
  %v85 = vpack.c.b16 %v79, %v77
  %v86 = vpack.c.b16 %v82, %v80
  %v87 = vpack.c.b16 %v83, %v81
  %vm92 = vcmask 261120
  %v94 = vsel %vm92, %v71, 0
  %96 = vmatprep.subr.bf16.mxu0 %v85
  %97 = vmatpush1.bf16.msra.mxu0 %v84
  %98 = vmatprep.subr.bf16.mxu0 %v87
  %99 = vmatpush1.bf16.msra.mxu0 %v86
  %100 = vmatprep.subr.bf16.mxu0 0
  %101 = vmatpush1.bf16.msra.mxu0 0
  %102 = vmatprep.subr.bf16.mxu0 0
  %103 = vmatpush1.bf16.msra.mxu0 0
  %104 = vmatprep.subr.bf16.mxu0 0
  %105 = vmatpush1.bf16.msra.mxu0 0
  %106 = vmatprep.subr.bf16.mxu0 0
  %107 = vmatpush1.bf16.msra.mxu0 0
  %108 = vmatprep.subr.bf16.mxu0 0
  %109 = vmatpush1.bf16.msra.mxu0 0
  %110 = vmatprep.subr.bf16.mxu0 0
  %111 = vmatpush1.bf16.msra.mxu0 0
  %112 = vmatprep.subr.bf16.mxu0 0
  %113 = vmatpush1.bf16.msra.mxu0 0
  %114 = vmatprep.subr.bf16.mxu0 0
  %115 = vmatpush1.bf16.msra.mxu0 0
  %116 = vmatprep.subr.bf16.mxu0 0
  %117 = vmatpush1.bf16.msra.mxu0 0
  %118 = vmatprep.subr.bf16.mxu0 0
  %119 = vmatpush1.bf16.msra.mxu0 0
  %120 = vmatprep.subr.bf16.mxu0 0
  %121 = vmatpush1.bf16.msra.mxu0 0
  %122 = vmatprep.subr.bf16.mxu0 0
  %123 = vmatpush1.bf16.msra.mxu0 0
  %124 = vmatprep.subr.bf16.mxu0 0
  %125 = vmatpush1.bf16.msra.mxu0 0
  %126 = vmatprep.subr.bf16.mxu0 0
  %127 = vmatpush1.bf16.msra.mxu0 0
  %128 = vmatprep.mubr.bf16.mxu0 0
  %129 = vmatmul.mubr.bf16.gmra.mrb[0].mxu0 %v94
  %v130 = vpop.f32.mrb[0].mxu0
  %v131 = vadd.f32 0.0, %v130
  %v132 = vpop.f32.mrb[0].mxu0
  %v133 = vadd.f32 0.0, %v132
  %v134 = vpop.f32.mrb[0].mxu0
  %v135 = vadd.f32 0.0, %v134
  %v136 = vpop.f32.mrb[0].mxu0
  %v137 = vadd.f32 0.0, %v136
  %138 = vdwg.mxu0
  %v139 = vpack.c.bf16 %v135, %v131
  %v140 = vpack.c.bf16 %v137, %v133
  %v141 = vld [vmem:[%s2] sm:$0xf]
  %v142 = vld [vmem:[%s2 + $0x4] sm:$0xf]
  %v143 = vld [vmem:[%s2 + $0x8] sm:$0xf]
  %v144 = vld [vmem:[%s2 + $0xc] sm:$0xf]
  %v145 = vld [vmem:[%s2 + $0x10] sm:$0xf]
  %v146 = vld [vmem:[%s2 + $0x14] sm:$0xf]
  %v147 = vld [vmem:[%s2 + $0x18] sm:$0xf]
  %v148 = vld [vmem:[%s2 + $0x1c] sm:$0xf]
  %v157 = vunpack.c.l.b16 %v141
  %v158 = vunpack.c.l.b16 %v142
  %v159 = vunpack.c.l.b16 %v143
  %v160 = vunpack.c.l.b16 %v144
  %v161 = vunpack.c.l.b16 %v145
  %v162 = vunpack.c.l.b16 %v146
  %v163 = vunpack.c.l.b16 %v147
  %v164 = vunpack.c.l.b16 %v148
  %v165 = vpack.c.b16 %v158, %v157
  %v166 = vpack.c.b16 %v160, %v159
  %v167 = vpack.c.b16 %v162, %v161
  %v168 = vpack.c.b16 %v164, %v163
  %vm173 = vcmask 523264
  %v175 = vsel %vm173, %v139, 0
  %177 = vmatprep.subr.bf16.mxu0 0
  %178 = vmatpush1.bf16.msra.mxu0 %v165
  %179 = vmatprep.subr.bf16.mxu0 0
  %180 = vmatpush1.bf16.msra.mxu0 %v166
  %181 = vmatprep.subr.bf16.mxu0 0
  %182 = vmatpush1.bf16.msra.mxu0 %v167
  %183 = vmatprep.subr.bf16.mxu0 0
  %184 = vmatpush1.bf16.msra.mxu0 %v168
  %185 = vmatprep.subr.bf16.mxu0 0
  %186 = vmatpush1.bf16.msra.mxu0 0
  %187 = vmatprep.subr.bf16.mxu0 0
  %188 = vmatpush1.bf16.msra.mxu0 0
  %189 = vmatprep.subr.bf16.mxu0 0
  %190 = vmatpush1.bf16.msra.mxu0 0
  %191 = vmatprep.subr.bf16.mxu0 0
  %192 = vmatpush1.bf16.msra.mxu0 0
  %193 = vmatprep.subr.bf16.mxu0 0
  %194 = vmatpush1.bf16.msra.mxu0 0
  %195 = vmatprep.subr.bf16.mxu0 0
  %196 = vmatpush1.bf16.msra.mxu0 0
  %197 = vmatprep.subr.bf16.mxu0 0
  %198 = vmatpush1.bf16.msra.mxu0 0
  %199 = vmatprep.subr.bf16.mxu0 0
  %200 = vmatpush1.bf16.msra.mxu0 0
  %201 = vmatprep.subr.bf16.mxu0 0
  %202 = vmatpush1.bf16.msra.mxu0 0
  %203 = vmatprep.subr.bf16.mxu0 0
  %204 = vmatpush1.bf16.msra.mxu0 0
  %205 = vmatprep.subr.bf16.mxu0 0
  %206 = vmatpush1.bf16.msra.mxu0 0
  %207 = vmatprep.subr.bf16.mxu0 0
  %208 = vmatpush1.bf16.msra.mxu0 0
  %209 = vmatprep.mubr.bf16.mxu0 0
  %210 = vmatmul.mubr.bf16.gmra.mrb[0].mxu0 %v175
  %v211 = vpop.f32.mrb[0].mxu0
  %v212 = vadd.f32 0.0, %v211
  %v213 = vpop.f32.mrb[0].mxu0
  %v214 = vpop.f32.mrb[0].mxu0
  %v215 = vadd.f32 0.0, %v214
  %v216 = vpop.f32.mrb[0].mxu0
  %217 = vdwg.mxu0
  %v218 = vpack.c.bf16 %v215, %v212
  %220 = vrot.lane.b32.xlu0 %v218, 120
  %v221 = vpop.permute.xlu0 %220
  %222 = vrot.lane.b32.xlu0 %v218, 112
  %v223 = vpop.permute.xlu0 %222
  %224 = vrot.lane.b32.xlu0 %v218, 104
  %v225 = vpop.permute.xlu0 %224
  %v228 = vpack.i.b16 %v221, %v218
  %v230 = vshrl.u32 %v218, 16
  %v231 = vshrl.u32 %v221, 16
  %v232 = vpack.i.b16 %v231, %v230
  %v236 = vpack.i.b16 %v225, %v223
  %v238 = vshrl.u32 %v223, 16
  %v239 = vshrl.u32 %v225, 16
  %v240 = vpack.i.b16 %v239, %v238
  %v243 = vpack.i.b16 0, 0
  %v245 = vshrl.u32 0, 16
  %v246 = vpack.i.b16 %v245, %v245
  %v248 = vcombine.high %v228, %v243
  %v250 = vunpack.c.l.s4 1983009808
  %v251 = vunpack.c.0.s8 %v250
  %v252 = vlaneseq
  %v253 = vshrl.u32 %v252, 7
  %v254 = vsub.s32 %v251, %v253
  %v255 = vrot.slane %v228, %v254
  %v257 = vunpack.c.l.s4 1983009808
  %v258 = vunpack.c.0.s8 %v257
  %v259 = vlaneseq
  %v260 = vshrl.u32 %v259, 7
  %v261 = vsub.s32 %v258, %v260
  %v262 = vrot.slane %v248, %v261
  %v263 = vcombine.high %v236, %v243
  %v265 = vunpack.c.l.s4 1983009808
  %v266 = vunpack.c.0.s8 %v265
  %v267 = vlaneseq
  %v268 = vshrl.u32 %v267, 7
  %v269 = vsub.s32 %v266, %v268
  %v270 = vrot.slane %v236, %v269
  %v272 = vunpack.c.l.s4 1983009808
  %v273 = vunpack.c.0.s8 %v272
  %v274 = vlaneseq
  %v275 = vshrl.u32 %v274, 7
  %v276 = vsub.s32 %v273, %v275
  %v277 = vrot.slane %v263, %v276
  %v278 = vcombine.low %v255, %v270
  %v279 = vcombine.high %v255, %v270
  %v281 = vunpack.c.l.s4 1934713408
  %v282 = vunpack.c.0.s8 %v281
  %v283 = vlaneseq
  %v284 = vshrl.u32 %v283, 7
  %v285 = vsub.s32 %v282, %v284
  %v286 = vrot.slane %v278, %v285
  %v288 = vunpack.c.l.s4 1934713408
  %v289 = vunpack.c.0.s8 %v288
  %v290 = vlaneseq
  %v291 = vshrl.u32 %v290, 7
  %v292 = vsub.s32 %v289, %v291
  %v293 = vrot.slane %v279, %v292
  %v294 = vcombine.low %v262, %v277
  %v295 = vcombine.high %v262, %v277
  %v297 = vunpack.c.l.s4 1934713408
  %v298 = vunpack.c.0.s8 %v297
  %v299 = vlaneseq
  %v300 = vshrl.u32 %v299, 7
  %v301 = vsub.s32 %v298, %v300
  %v302 = vrot.slane %v294, %v301
  %v304 = vunpack.c.l.s4 1934713408
  %v305 = vunpack.c.0.s8 %v304
  %v306 = vlaneseq
  %v307 = vshrl.u32 %v306, 7
  %v308 = vsub.s32 %v305, %v307
  %v309 = vrot.slane %v295, %v308
  %v310 = vcombine.high %v286, 0
  %v311 = vcombine.high %v293, 0
  %v312 = vcombine.high %v302, 0
  %v313 = vcombine.high %v309, 0
  %v314 = vcombine.high %v232, %v246
  %v316 = vunpack.c.l.s4 1983009808
  %v317 = vunpack.c.0.s8 %v316
  %v318 = vlaneseq
  %v319 = vshrl.u32 %v318, 7
  %v320 = vsub.s32 %v317, %v319
  %v321 = vrot.slane %v232, %v320
  %v323 = vunpack.c.l.s4 1983009808
  %v324 = vunpack.c.0.s8 %v323
  %v325 = vlaneseq
  %v326 = vshrl.u32 %v325, 7
  %v327 = vsub.s32 %v324, %v326
  %v328 = vrot.slane %v314, %v327
  %v329 = vcombine.high %v240, %v246
  %v331 = vunpack.c.l.s4 1983009808
  %v332 = vunpack.c.0.s8 %v331
  %v333 = vlaneseq
  %v334 = vshrl.u32 %v333, 7
  %v335 = vsub.s32 %v332, %v334
  %v336 = vrot.slane %v240, %v335
  %v338 = vunpack.c.l.s4 1983009808
  %v339 = vunpack.c.0.s8 %v338
  %v340 = vlaneseq
  %v341 = vshrl.u32 %v340, 7
  %v342 = vsub.s32 %v339, %v341
  %v343 = vrot.slane %v329, %v342
  %v344 = vcombine.low %v321, %v336
  %v345 = vcombine.high %v321, %v336
  %v347 = vunpack.c.l.s4 1934713408
  %v348 = vunpack.c.0.s8 %v347
  %v349 = vlaneseq
  %v350 = vshrl.u32 %v349, 7
  %v351 = vsub.s32 %v348, %v350
  %v352 = vrot.slane %v344, %v351
  %v354 = vunpack.c.l.s4 1934713408
  %v355 = vunpack.c.0.s8 %v354
  %v356 = vlaneseq
  %v357 = vshrl.u32 %v356, 7
  %v358 = vsub.s32 %v355, %v357
  %v359 = vrot.slane %v345, %v358
  %v360 = vcombine.low %v328, %v343
  %v361 = vcombine.high %v328, %v343
  %v363 = vunpack.c.l.s4 1934713408
  %v364 = vunpack.c.0.s8 %v363
  %v365 = vlaneseq
  %v366 = vshrl.u32 %v365, 7
  %v367 = vsub.s32 %v364, %v366
  %v368 = vrot.slane %v360, %v367
  %v370 = vunpack.c.l.s4 1934713408
  %v371 = vunpack.c.0.s8 %v370
  %v372 = vlaneseq
  %v373 = vshrl.u32 %v372, 7
  %v374 = vsub.s32 %v371, %v373
  %v375 = vrot.slane %v361, %v374
  %v376 = vcombine.high %v352, 0
  %v377 = vcombine.high %v359, 0
  %v378 = vcombine.high %v368, 0
  %v379 = vcombine.high %v375, 0
  %v382 = vunpack.c.l.b16 %v29
  %v383 = vunpack.c.l.b16 %v30
  %v384 = vpack.c.b16 %v383, %v382
  %vm385 = vcmask 64512
  %v387 = vsel %vm385, %v286, 0
  %v390 = vsel %vm385, %v384, 0
  %392 = vmatprep.subr.bf16.mxu0 0
  %393 = vmatpush1.bf16.xpose.msra.mxu0 %v390
  %394 = vmatprep.subr.bf16.mxu0 0
  %395 = vmatpush1.bf16.xpose.msra.mxu0 0
  %396 = vmatprep.subr.bf16.mxu0 0
  %397 = vmatpush1.bf16.xpose.msra.mxu0 0
  %398 = vmatprep.subr.bf16.mxu0 0
  %399 = vmatpush1.bf16.xpose.msra.mxu0 0
  %400 = vmatprep.subr.bf16.mxu0 0
  %401 = vmatpush1.bf16.xpose.msra.mxu0 0
  %402 = vmatprep.subr.bf16.mxu0 0
  %403 = vmatpush1.bf16.xpose.msra.mxu0 0
  %404 = vmatprep.subr.bf16.mxu0 0
  %405 = vmatpush1.bf16.xpose.msra.mxu0 0
  %406 = vmatprep.subr.bf16.mxu0 0
  %407 = vmatpush1.bf16.xpose.msra.mxu0 0
  %408 = vmatprep.subr.bf16.mxu0 0
  %409 = vmatpush1.bf16.xpose.msra.mxu0 0
  %410 = vmatprep.subr.bf16.mxu0 0
  %411 = vmatpush1.bf16.xpose.msra.mxu0 0
  %412 = vmatprep.subr.bf16.mxu0 0
  %413 = vmatpush1.bf16.xpose.msra.mxu0 0
  %414 = vmatprep.subr.bf16.mxu0 0
  %415 = vmatpush1.bf16.xpose.msra.mxu0 0
  %416 = vmatprep.subr.bf16.mxu0 0
  %417 = vmatpush1.bf16.xpose.msra.mxu0 0
  %418 = vmatprep.subr.bf16.mxu0 0
  %419 = vmatpush1.bf16.xpose.msra.mxu0 0
  %420 = vmatprep.subr.bf16.mxu0 0
  %421 = vmatpush1.bf16.xpose.msra.mxu0 0
  %422 = vmatprep.subr.bf16.mxu0 0
  %423 = vmatpush1.bf16.xpose.msra.mxu0 0
  %424 = vmatprep.mubr.bf16.mxu0 0
  %425 = vmatmul.mubr.bf16.gmra.mrb[0].mxu0 %v387
  %v426 = vpop.f32.mrb[0].mxu0
  %v427 = vadd.f32 0.0, %v426
  %v428 = vpop.f32.mrb[0].mxu0
  %v429 = vpop.f32.mrb[0].mxu0
  %v430 = vpop.f32.mrb[0].mxu0
  %431 = vdwg.mxu0
  %v434 = vunpack.c.l.b16 %v31
  %v435 = vunpack.c.l.b16 %v32
  %v436 = vpack.c.b16 %v435, %v434
  %v438 = vsel %vm385, %v352, 0
  %v441 = vsel %vm385, %v436, 0
  %443 = vmatprep.subr.bf16.mxu0 0
  %444 = vmatpush1.bf16.xpose.msra.mxu0 %v441
  %445 = vmatprep.subr.bf16.mxu0 0
  %446 = vmatpush1.bf16.xpose.msra.mxu0 0
  %447 = vmatprep.subr.bf16.mxu0 0
  %448 = vmatpush1.bf16.xpose.msra.mxu0 0
  %449 = vmatprep.subr.bf16.mxu0 0
  %450 = vmatpush1.bf16.xpose.msra.mxu0 0
  %451 = vmatprep.subr.bf16.mxu0 0
  %452 = vmatpush1.bf16.xpose.msra.mxu0 0
  %453 = vmatprep.subr.bf16.mxu0 0
  %454 = vmatpush1.bf16.xpose.msra.mxu0 0
  %455 = vmatprep.subr.bf16.mxu0 0
  %456 = vmatpush1.bf16.xpose.msra.mxu0 0
  %457 = vmatprep.subr.bf16.mxu0 0
  %458 = vmatpush1.bf16.xpose.msra.mxu0 0
  %459 = vmatprep.subr.bf16.mxu0 0
  %460 = vmatpush1.bf16.xpose.msra.mxu0 0
  %461 = vmatprep.subr.bf16.mxu0 0
  %462 = vmatpush1.bf16.xpose.msra.mxu0 0
  %463 = vmatprep.subr.bf16.mxu0 0
  %464 = vmatpush1.bf16.xpose.msra.mxu0 0
  %465 = vmatprep.subr.bf16.mxu0 0
  %466 = vmatpush1.bf16.xpose.msra.mxu0 0
  %467 = vmatprep.subr.bf16.mxu0 0
  %468 = vmatpush1.bf16.xpose.msra.mxu0 0
  %469 = vmatprep.subr.bf16.mxu0 0
  %470 = vmatpush1.bf16.xpose.msra.mxu0 0
  %471 = vmatprep.subr.bf16.mxu0 0
  %472 = vmatpush1.bf16.xpose.msra.mxu0 0
  %473 = vmatprep.subr.bf16.mxu0 0
  %474 = vmatpush1.bf16.xpose.msra.mxu0 0
  %475 = vmatprep.mubr.bf16.mxu0 0
  %476 = vmatmul.mubr.bf16.gmra.mrb[0].mxu0 %v438
  %v477 = vpop.f32.mrb[0].mxu0
  %v478 = vadd.f32 0.0, %v477
  %v479 = vpop.f32.mrb[0].mxu0
  %v480 = vpop.f32.mrb[0].mxu0
  %v481 = vpop.f32.mrb[0].mxu0
  %482 = vdwg.mxu0
  %v485 = vunpack.c.l.b16 %v33
  %v486 = vunpack.c.l.b16 %v34
  %v487 = vpack.c.b16 %v486, %v485
  %v489 = vsel %vm385, %v310, 0
  %v492 = vsel %vm385, %v487, 0
  %494 = vmatprep.subr.bf16.mxu0 0
  %495 = vmatpush1.bf16.xpose.msra.mxu0 %v492
  %496 = vmatprep.subr.bf16.mxu0 0
  %497 = vmatpush1.bf16.xpose.msra.mxu0 0
  %498 = vmatprep.subr.bf16.mxu0 0
  %499 = vmatpush1.bf16.xpose.msra.mxu0 0
  %500 = vmatprep.subr.bf16.mxu0 0
  %501 = vmatpush1.bf16.xpose.msra.mxu0 0
  %502 = vmatprep.subr.bf16.mxu0 0
  %503 = vmatpush1.bf16.xpose.msra.mxu0 0
  %504 = vmatprep.subr.bf16.mxu0 0
  %505 = vmatpush1.bf16.xpose.msra.mxu0 0
  %506 = vmatprep.subr.bf16.mxu0 0
  %507 = vmatpush1.bf16.xpose.msra.mxu0 0
  %508 = vmatprep.subr.bf16.mxu0 0
  %509 = vmatpush1.bf16.xpose.msra.mxu0 0
  %510 = vmatprep.subr.bf16.mxu0 0
  %511 = vmatpush1.bf16.xpose.msra.mxu0 0
  %512 = vmatprep.subr.bf16.mxu0 0
  %513 = vmatpush1.bf16.xpose.msra.mxu0 0
  %514 = vmatprep.subr.bf16.mxu0 0
  %515 = vmatpush1.bf16.xpose.msra.mxu0 0
  %516 = vmatprep.subr.bf16.mxu0 0
  %517 = vmatpush1.bf16.xpose.msra.mxu0 0
  %518 = vmatprep.subr.bf16.mxu0 0
  %519 = vmatpush1.bf16.xpose.msra.mxu0 0
  %520 = vmatprep.subr.bf16.mxu0 0
  %521 = vmatpush1.bf16.xpose.msra.mxu0 0
  %522 = vmatprep.subr.bf16.mxu0 0
  %523 = vmatpush1.bf16.xpose.msra.mxu0 0
  %524 = vmatprep.subr.bf16.mxu0 0
  %525 = vmatpush1.bf16.xpose.msra.mxu0 0
  %526 = vmatprep.mubr.bf16.mxu0 0
  %527 = vmatmul.mubr.bf16.gmra.mrb[0].mxu0 %v489
  %v528 = vpop.f32.mrb[0].mxu0
  %v529 = vadd.f32 0.0, %v528
  %v530 = vpop.f32.mrb[0].mxu0
  %v531 = vpop.f32.mrb[0].mxu0
  %v532 = vpop.f32.mrb[0].mxu0
  %533 = vdwg.mxu0
  %v536 = vunpack.c.l.b16 %v35
  %v537 = vunpack.c.l.b16 %v36
  %v538 = vpack.c.b16 %v537, %v536
  %v540 = vsel %vm385, %v376, 0
  %v543 = vsel %vm385, %v538, 0
  %545 = vmatprep.subr.bf16.mxu0 0
  %546 = vmatpush1.bf16.xpose.msra.mxu0 %v543
  %547 = vmatprep.subr.bf16.mxu0 0
  %548 = vmatpush1.bf16.xpose.msra.mxu0 0
  %549 = vmatprep.subr.bf16.mxu0 0
  %550 = vmatpush1.bf16.xpose.msra.mxu0 0
  %551 = vmatprep.subr.bf16.mxu0 0
  %552 = vmatpush1.bf16.xpose.msra.mxu0 0
  %553 = vmatprep.subr.bf16.mxu0 0
  %554 = vmatpush1.bf16.xpose.msra.mxu0 0
  %555 = vmatprep.subr.bf16.mxu0 0
  %556 = vmatpush1.bf16.xpose.msra.mxu0 0
  %557 = vmatprep.subr.bf16.mxu0 0
  %558 = vmatpush1.bf16.xpose.msra.mxu0 0
  %559 = vmatprep.subr.bf16.mxu0 0
  %560 = vmatpush1.bf16.xpose.msra.mxu0 0
  %561 = vmatprep.subr.bf16.mxu0 0
  %562 = vmatpush1.bf16.xpose.msra.mxu0 0
  %563 = vmatprep.subr.bf16.mxu0 0
  %564 = vmatpush1.bf16.xpose.msra.mxu0 0
  %565 = vmatprep.subr.bf16.mxu0 0
  %566 = vmatpush1.bf16.xpose.msra.mxu0 0
  %567 = vmatprep.subr.bf16.mxu0 0
  %568 = vmatpush1.bf16.xpose.msra.mxu0 0
  %569 = vmatprep.subr.bf16.mxu0 0
  %570 = vmatpush1.bf16.xpose.msra.mxu0 0
  %571 = vmatprep.subr.bf16.mxu0 0
  %572 = vmatpush1.bf16.xpose.msra.mxu0 0
  %573 = vmatprep.subr.bf16.mxu0 0
  %574 = vmatpush1.bf16.xpose.msra.mxu0 0
  %575 = vmatprep.subr.bf16.mxu0 0
  %576 = vmatpush1.bf16.xpose.msra.mxu0 0
  %577 = vmatprep.mubr.bf16.mxu0 0
  %578 = vmatmul.mubr.bf16.gmra.mrb[0].mxu0 %v540
  %v579 = vpop.f32.mrb[0].mxu0
  %v580 = vadd.f32 0.0, %v579
  %v581 = vpop.f32.mrb[0].mxu0
  %v582 = vpop.f32.mrb[0].mxu0
  %v583 = vpop.f32.mrb[0].mxu0
  %584 = vdwg.mxu0
  %v587 = vunpack.c.l.b16 %v37
  %v588 = vunpack.c.l.b16 %v38
  %v589 = vpack.c.b16 %v588, %v587
  %v591 = vsel %vm385, %v293, 0
  %v594 = vsel %vm385, %v589, 0
  %596 = vmatprep.subr.bf16.mxu0 0
  %597 = vmatpush1.bf16.xpose.msra.mxu0 %v594
  %598 = vmatprep.subr.bf16.mxu0 0
  %599 = vmatpush1.bf16.xpose.msra.mxu0 0
  %600 = vmatprep.subr.bf16.mxu0 0
  %601 = vmatpush1.bf16.xpose.msra.mxu0 0
  %602 = vmatprep.subr.bf16.mxu0 0
  %603 = vmatpush1.bf16.xpose.msra.mxu0 0
  %604 = vmatprep.subr.bf16.mxu0 0
  %605 = vmatpush1.bf16.xpose.msra.mxu0 0
  %606 = vmatprep.subr.bf16.mxu0 0
  %607 = vmatpush1.bf16.xpose.msra.mxu0 0
  %608 = vmatprep.subr.bf16.mxu0 0
  %609 = vmatpush1.bf16.xpose.msra.mxu0 0
  %610 = vmatprep.subr.bf16.mxu0 0
  %611 = vmatpush1.bf16.xpose.msra.mxu0 0
  %612 = vmatprep.subr.bf16.mxu0 0
  %613 = vmatpush1.bf16.xpose.msra.mxu0 0
  %614 = vmatprep.subr.bf16.mxu0 0
  %615 = vmatpush1.bf16.xpose.msra.mxu0 0
  %616 = vmatprep.subr.bf16.mxu0 0
  %617 = vmatpush1.bf16.xpose.msra.mxu0 0
  %618 = vmatprep.subr.bf16.mxu0 0
  %619 = vmatpush1.bf16.xpose.msra.mxu0 0
  %620 = vmatprep.subr.bf16.mxu0 0
  %621 = vmatpush1.bf16.xpose.msra.mxu0 0
  %622 = vmatprep.subr.bf16.mxu0 0
  %623 = vmatpush1.bf16.xpose.msra.mxu0 0
  %624 = vmatprep.subr.bf16.mxu0 0
  %625 = vmatpush1.bf16.xpose.msra.mxu0 0
  %626 = vmatprep.subr.bf16.mxu0 0
  %627 = vmatpush1.bf16.xpose.msra.mxu0 0
  %628 = vmatprep.mubr.bf16.mxu0 0
  %629 = vmatmul.mubr.bf16.gmra.mrb[0].mxu0 %v591
  %v630 = vpop.f32.mrb[0].mxu0
  %v631 = vadd.f32 0.0, %v630
  %v632 = vpop.f32.mrb[0].mxu0
  %v633 = vpop.f32.mrb[0].mxu0
  %v634 = vpop.f32.mrb[0].mxu0
  %635 = vdwg.mxu0
  %v638 = vunpack.c.l.b16 %v39
  %v639 = vunpack.c.l.b16 %v40
  %v640 = vpack.c.b16 %v639, %v638
  %v642 = vsel %vm385, %v359, 0
  %v645 = vsel %vm385, %v640, 0
  %647 = vmatprep.subr.bf16.mxu0 0
  %648 = vmatpush1.bf16.xpose.msra.mxu0 %v645
  %649 = vmatprep.subr.bf16.mxu0 0
  %650 = vmatpush1.bf16.xpose.msra.mxu0 0
  %651 = vmatprep.subr.bf16.mxu0 0
  %652 = vmatpush1.bf16.xpose.msra.mxu0 0
  %653 = vmatprep.subr.bf16.mxu0 0
  %654 = vmatpush1.bf16.xpose.msra.mxu0 0
  %655 = vmatprep.subr.bf16.mxu0 0
  %656 = vmatpush1.bf16.xpose.msra.mxu0 0
  %657 = vmatprep.subr.bf16.mxu0 0
  %658 = vmatpush1.bf16.xpose.msra.mxu0 0
  %659 = vmatprep.subr.bf16.mxu0 0
  %660 = vmatpush1.bf16.xpose.msra.mxu0 0
  %661 = vmatprep.subr.bf16.mxu0 0
  %662 = vmatpush1.bf16.xpose.msra.mxu0 0
  %663 = vmatprep.subr.bf16.mxu0 0
  %664 = vmatpush1.bf16.xpose.msra.mxu0 0
  %665 = vmatprep.subr.bf16.mxu0 0
  %666 = vmatpush1.bf16.xpose.msra.mxu0 0
  %667 = vmatprep.subr.bf16.mxu0 0
  %668 = vmatpush1.bf16.xpose.msra.mxu0 0
  %669 = vmatprep.subr.bf16.mxu0 0
  %670 = vmatpush1.bf16.xpose.msra.mxu0 0
  %671 = vmatprep.subr.bf16.mxu0 0
  %672 = vmatpush1.bf16.xpose.msra.mxu0 0
  %673 = vmatprep.subr.bf16.mxu0 0
  %674 = vmatpush1.bf16.xpose.msra.mxu0 0
  %675 = vmatprep.subr.bf16.mxu0 0
  %676 = vmatpush1.bf16.xpose.msra.mxu0 0
  %677 = vmatprep.subr.bf16.mxu0 0
  %678 = vmatpush1.bf16.xpose.msra.mxu0 0
  %679 = vmatprep.mubr.bf16.mxu0 0
  %680 = vmatmul.mubr.bf16.gmra.mrb[0].mxu0 %v642
  %v681 = vpop.f32.mrb[0].mxu0
  %v682 = vadd.f32 0.0, %v681
  %v683 = vpop.f32.mrb[0].mxu0
  %v684 = vpop.f32.mrb[0].mxu0
  %v685 = vpop.f32.mrb[0].mxu0
  %686 = vdwg.mxu0
  %v689 = vunpack.c.l.b16 %v41
  %v690 = vunpack.c.l.b16 %v42
  %v691 = vpack.c.b16 %v690, %v689
  %v693 = vsel %vm385, %v311, 0
  %v696 = vsel %vm385, %v691, 0
  %698 = vmatprep.subr.bf16.mxu0 0
  %699 = vmatpush1.bf16.xpose.msra.mxu0 %v696
  %700 = vmatprep.subr.bf16.mxu0 0
  %701 = vmatpush1.bf16.xpose.msra.mxu0 0
  %702 = vmatprep.subr.bf16.mxu0 0
  %703 = vmatpush1.bf16.xpose.msra.mxu0 0
  %704 = vmatprep.subr.bf16.mxu0 0
  %705 = vmatpush1.bf16.xpose.msra.mxu0 0
  %706 = vmatprep.subr.bf16.mxu0 0
  %707 = vmatpush1.bf16.xpose.msra.mxu0 0
  %708 = vmatprep.subr.bf16.mxu0 0
  %709 = vmatpush1.bf16.xpose.msra.mxu0 0
  %710 = vmatprep.subr.bf16.mxu0 0
  %711 = vmatpush1.bf16.xpose.msra.mxu0 0
  %712 = vmatprep.subr.bf16.mxu0 0
  %713 = vmatpush1.bf16.xpose.msra.mxu0 0
  %714 = vmatprep.subr.bf16.mxu0 0
  %715 = vmatpush1.bf16.xpose.msra.mxu0 0
  %716 = vmatprep.subr.bf16.mxu0 0
  %717 = vmatpush1.bf16.xpose.msra.mxu0 0
  %718 = vmatprep.subr.bf16.mxu0 0
  %719 = vmatpush1.bf16.xpose.msra.mxu0 0
  %720 = vmatprep.subr.bf16.mxu0 0
  %721 = vmatpush1.bf16.xpose.msra.mxu0 0
  %722 = vmatprep.subr.bf16.mxu0 0
  %723 = vmatpush1.bf16.xpose.msra.mxu0 0
  %724 = vmatprep.subr.bf16.mxu0 0
  %725 = vmatpush1.bf16.xpose.msra.mxu0 0
  %726 = vmatprep.subr.bf16.mxu0 0
  %727 = vmatpush1.bf16.xpose.msra.mxu0 0
  %728 = vmatprep.subr.bf16.mxu0 0
  %729 = vmatpush1.bf16.xpose.msra.mxu0 0
  %730 = vmatprep.mubr.bf16.mxu0 0
  %731 = vmatmul.mubr.bf16.gmra.mrb[0].mxu0 %v693
  %v732 = vpop.f32.mrb[0].mxu0
  %v733 = vadd.f32 0.0, %v732
  %v734 = vpop.f32.mrb[0].mxu0
  %v735 = vpop.f32.mrb[0].mxu0
  %v736 = vpop.f32.mrb[0].mxu0
  %737 = vdwg.mxu0
  %v740 = vunpack.c.l.b16 %v43
  %v741 = vunpack.c.l.b16 %v44
  %v742 = vpack.c.b16 %v741, %v740
  %v744 = vsel %vm385, %v377, 0
  %v747 = vsel %vm385, %v742, 0
  %749 = vmatprep.subr.bf16.mxu0 0
  %750 = vmatpush1.bf16.xpose.msra.mxu0 %v747
  %751 = vmatprep.subr.bf16.mxu0 0
  %752 = vmatpush1.bf16.xpose.msra.mxu0 0
  %753 = vmatprep.subr.bf16.mxu0 0
  %754 = vmatpush1.bf16.xpose.msra.mxu0 0
  %755 = vmatprep.subr.bf16.mxu0 0
  %756 = vmatpush1.bf16.xpose.msra.mxu0 0
  %757 = vmatprep.subr.bf16.mxu0 0
  %758 = vmatpush1.bf16.xpose.msra.mxu0 0
  %759 = vmatprep.subr.bf16.mxu0 0
  %760 = vmatpush1.bf16.xpose.msra.mxu0 0
  %761 = vmatprep.subr.bf16.mxu0 0
  %762 = vmatpush1.bf16.xpose.msra.mxu0 0
  %763 = vmatprep.subr.bf16.mxu0 0
  %764 = vmatpush1.bf16.xpose.msra.mxu0 0
  %765 = vmatprep.subr.bf16.mxu0 0
  %766 = vmatpush1.bf16.xpose.msra.mxu0 0
  %767 = vmatprep.subr.bf16.mxu0 0
  %768 = vmatpush1.bf16.xpose.msra.mxu0 0
  %769 = vmatprep.subr.bf16.mxu0 0
  %770 = vmatpush1.bf16.xpose.msra.mxu0 0
  %771 = vmatprep.subr.bf16.mxu0 0
  %772 = vmatpush1.bf16.xpose.msra.mxu0 0
  %773 = vmatprep.subr.bf16.mxu0 0
  %774 = vmatpush1.bf16.xpose.msra.mxu0 0
  %775 = vmatprep.subr.bf16.mxu0 0
  %776 = vmatpush1.bf16.xpose.msra.mxu0 0
  %777 = vmatprep.subr.bf16.mxu0 0
  %778 = vmatpush1.bf16.xpose.msra.mxu0 0
  %779 = vmatprep.subr.bf16.mxu0 0
  %780 = vmatpush1.bf16.xpose.msra.mxu0 0
  %781 = vmatprep.mubr.bf16.mxu0 0
  %782 = vmatmul.mubr.bf16.gmra.mrb[0].mxu0 %v744
  %v783 = vpop.f32.mrb[0].mxu0
  %v784 = vadd.f32 0.0, %v783
  %v785 = vpop.f32.mrb[0].mxu0
  %v786 = vpop.f32.mrb[0].mxu0
  %v787 = vpop.f32.mrb[0].mxu0
  %788 = vdwg.mxu0
  %v791 = vunpack.c.l.b16 %v45
  %v792 = vunpack.c.l.b16 %v46
  %v793 = vpack.c.b16 %v792, %v791
  %v795 = vsel %vm385, %v302, 0
  %v798 = vsel %vm385, %v793, 0
  %800 = vmatprep.subr.bf16.mxu0 0
  %801 = vmatpush1.bf16.xpose.msra.mxu0 %v798
  %802 = vmatprep.subr.bf16.mxu0 0
  %803 = vmatpush1.bf16.xpose.msra.mxu0 0
  %804 = vmatprep.subr.bf16.mxu0 0
  %805 = vmatpush1.bf16.xpose.msra.mxu0 0
  %806 = vmatprep.subr.bf16.mxu0 0
  %807 = vmatpush1.bf16.xpose.msra.mxu0 0
  %808 = vmatprep.subr.bf16.mxu0 0
  %809 = vmatpush1.bf16.xpose.msra.mxu0 0
  %810 = vmatprep.subr.bf16.mxu0 0
  %811 = vmatpush1.bf16.xpose.msra.mxu0 0
  %812 = vmatprep.subr.bf16.mxu0 0
  %813 = vmatpush1.bf16.xpose.msra.mxu0 0
  %814 = vmatprep.subr.bf16.mxu0 0
  %815 = vmatpush1.bf16.xpose.msra.mxu0 0
  %816 = vmatprep.subr.bf16.mxu0 0
  %817 = vmatpush1.bf16.xpose.msra.mxu0 0
  %818 = vmatprep.subr.bf16.mxu0 0
  %819 = vmatpush1.bf16.xpose.msra.mxu0 0
  %820 = vmatprep.subr.bf16.mxu0 0
  %821 = vmatpush1.bf16.xpose.msra.mxu0 0
  %822 = vmatprep.subr.bf16.mxu0 0
  %823 = vmatpush1.bf16.xpose.msra.mxu0 0
  %824 = vmatprep.subr.bf16.mxu0 0
  %825 = vmatpush1.bf16.xpose.msra.mxu0 0
  %826 = vmatprep.subr.bf16.mxu0 0
  %827 = vmatpush1.bf16.xpose.msra.mxu0 0
  %828 = vmatprep.subr.bf16.mxu0 0
  %829 = vmatpush1.bf16.xpose.msra.mxu0 0
  %830 = vmatprep.subr.bf16.mxu0 0
  %831 = vmatpush1.bf16.xpose.msra.mxu0 0
  %832 = vmatprep.mubr.bf16.mxu0 0
  %833 = vmatmul.mubr.bf16.gmra.mrb[0].mxu0 %v795
  %v834 = vpop.f32.mrb[0].mxu0
  %v835 = vadd.f32 0.0, %v834
  %v836 = vpop.f32.mrb[0].mxu0
  %v837 = vpop.f32.mrb[0].mxu0
  %v838 = vpop.f32.mrb[0].mxu0
  %839 = vdwg.mxu0
  %v842 = vunpack.c.l.b16 %v47
  %v843 = vunpack.c.l.b16 %v48
  %v844 = vpack.c.b16 %v843, %v842
  %v846 = vsel %vm385, %v368, 0
  %v849 = vsel %vm385, %v844, 0
  %851 = vmatprep.subr.bf16.mxu0 0
  %852 = vmatpush1.bf16.xpose.msra.mxu0 %v849
  %853 = vmatprep.subr.bf16.mxu0 0
  %854 = vmatpush1.bf16.xpose.msra.mxu0 0
  %855 = vmatprep.subr.bf16.mxu0 0
  %856 = vmatpush1.bf16.xpose.msra.mxu0 0
  %857 = vmatprep.subr.bf16.mxu0 0
  %858 = vmatpush1.bf16.xpose.msra.mxu0 0
  %859 = vmatprep.subr.bf16.mxu0 0
  %860 = vmatpush1.bf16.xpose.msra.mxu0 0
  %861 = vmatprep.subr.bf16.mxu0 0
  %862 = vmatpush1.bf16.xpose.msra.mxu0 0
  %863 = vmatprep.subr.bf16.mxu0 0
  %864 = vmatpush1.bf16.xpose.msra.mxu0 0
  %865 = vmatprep.subr.bf16.mxu0 0
  %866 = vmatpush1.bf16.xpose.msra.mxu0 0
  %867 = vmatprep.subr.bf16.mxu0 0
  %868 = vmatpush1.bf16.xpose.msra.mxu0 0
  %869 = vmatprep.subr.bf16.mxu0 0
  %870 = vmatpush1.bf16.xpose.msra.mxu0 0
  %871 = vmatprep.subr.bf16.mxu0 0
  %872 = vmatpush1.bf16.xpose.msra.mxu0 0
  %873 = vmatprep.subr.bf16.mxu0 0
  %874 = vmatpush1.bf16.xpose.msra.mxu0 0
  %875 = vmatprep.subr.bf16.mxu0 0
  %876 = vmatpush1.bf16.xpose.msra.mxu0 0
  %877 = vmatprep.subr.bf16.mxu0 0
  %878 = vmatpush1.bf16.xpose.msra.mxu0 0
  %879 = vmatprep.subr.bf16.mxu0 0
  %880 = vmatpush1.bf16.xpose.msra.mxu0 0
  %881 = vmatprep.subr.bf16.mxu0 0
  %882 = vmatpush1.bf16.xpose.msra.mxu0 0
  %883 = vmatprep.mubr.bf16.mxu0 0
  %884 = vmatmul.mubr.bf16.gmra.mrb[0].mxu0 %v846
  %v885 = vpop.f32.mrb[0].mxu0
  %v886 = vadd.f32 0.0, %v885
  %v887 = vpop.f32.mrb[0].mxu0
  %v888 = vpop.f32.mrb[0].mxu0
  %v889 = vpop.f32.mrb[0].mxu0
  %890 = vdwg.mxu0
  %v893 = vunpack.c.l.b16 %v49
  %v894 = vunpack.c.l.b16 %v50
  %v895 = vpack.c.b16 %v894, %v893
  %v897 = vsel %vm385, %v312, 0
  %v900 = vsel %vm385, %v895, 0
  %902 = vmatprep.subr.bf16.mxu0 0
  %903 = vmatpush1.bf16.xpose.msra.mxu0 %v900
  %904 = vmatprep.subr.bf16.mxu0 0
  %905 = vmatpush1.bf16.xpose.msra.mxu0 0
  %906 = vmatprep.subr.bf16.mxu0 0
  %907 = vmatpush1.bf16.xpose.msra.mxu0 0
  %908 = vmatprep.subr.bf16.mxu0 0
  %909 = vmatpush1.bf16.xpose.msra.mxu0 0
  %910 = vmatprep.subr.bf16.mxu0 0
  %911 = vmatpush1.bf16.xpose.msra.mxu0 0
  %912 = vmatprep.subr.bf16.mxu0 0
  %913 = vmatpush1.bf16.xpose.msra.mxu0 0
  %914 = vmatprep.subr.bf16.mxu0 0
  %915 = vmatpush1.bf16.xpose.msra.mxu0 0
  %916 = vmatprep.subr.bf16.mxu0 0
  %917 = vmatpush1.bf16.xpose.msra.mxu0 0
  %918 = vmatprep.subr.bf16.mxu0 0
  %919 = vmatpush1.bf16.xpose.msra.mxu0 0
  %920 = vmatprep.subr.bf16.mxu0 0
  %921 = vmatpush1.bf16.xpose.msra.mxu0 0
  %922 = vmatprep.subr.bf16.mxu0 0
  %923 = vmatpush1.bf16.xpose.msra.mxu0 0
  %924 = vmatprep.subr.bf16.mxu0 0
  %925 = vmatpush1.bf16.xpose.msra.mxu0 0
  %926 = vmatprep.subr.bf16.mxu0 0
  %927 = vmatpush1.bf16.xpose.msra.mxu0 0
  %928 = vmatprep.subr.bf16.mxu0 0
  %929 = vmatpush1.bf16.xpose.msra.mxu0 0
  %930 = vmatprep.subr.bf16.mxu0 0
  %931 = vmatpush1.bf16.xpose.msra.mxu0 0
  %932 = vmatprep.subr.bf16.mxu0 0
  %933 = vmatpush1.bf16.xpose.msra.mxu0 0
  %934 = vmatprep.mubr.bf16.mxu0 0
  %935 = vmatmul.mubr.bf16.gmra.mrb[0].mxu0 %v897
  %v936 = vpop.f32.mrb[0].mxu0
  %v937 = vadd.f32 0.0, %v936
  %v938 = vpop.f32.mrb[0].mxu0
  %v939 = vpop.f32.mrb[0].mxu0
  %v940 = vpop.f32.mrb[0].mxu0
  %941 = vdwg.mxu0
  %v944 = vunpack.c.l.b16 %v51
  %v945 = vunpack.c.l.b16 %v52
  %v946 = vpack.c.b16 %v945, %v944
  %v948 = vsel %vm385, %v378, 0
  %v951 = vsel %vm385, %v946, 0
  %953 = vmatprep.subr.bf16.mxu0 0
  %954 = vmatpush1.bf16.xpose.msra.mxu0 %v951
  %955 = vmatprep.subr.bf16.mxu0 0
  %956 = vmatpush1.bf16.xpose.msra.mxu0 0
  %957 = vmatprep.subr.bf16.mxu0 0
  %958 = vmatpush1.bf16.xpose.msra.mxu0 0
  %959 = vmatprep.subr.bf16.mxu0 0
  %960 = vmatpush1.bf16.xpose.msra.mxu0 0
  %961 = vmatprep.subr.bf16.mxu0 0
  %962 = vmatpush1.bf16.xpose.msra.mxu0 0
  %963 = vmatprep.subr.bf16.mxu0 0
  %964 = vmatpush1.bf16.xpose.msra.mxu0 0
  %965 = vmatprep.subr.bf16.mxu0 0
  %966 = vmatpush1.bf16.xpose.msra.mxu0 0
  %967 = vmatprep.subr.bf16.mxu0 0
  %968 = vmatpush1.bf16.xpose.msra.mxu0 0
  %969 = vmatprep.subr.bf16.mxu0 0
  %970 = vmatpush1.bf16.xpose.msra.mxu0 0
  %971 = vmatprep.subr.bf16.mxu0 0
  %972 = vmatpush1.bf16.xpose.msra.mxu0 0
  %973 = vmatprep.subr.bf16.mxu0 0
  %974 = vmatpush1.bf16.xpose.msra.mxu0 0
  %975 = vmatprep.subr.bf16.mxu0 0
  %976 = vmatpush1.bf16.xpose.msra.mxu0 0
  %977 = vmatprep.subr.bf16.mxu0 0
  %978 = vmatpush1.bf16.xpose.msra.mxu0 0
  %979 = vmatprep.subr.bf16.mxu0 0
  %980 = vmatpush1.bf16.xpose.msra.mxu0 0
  %981 = vmatprep.subr.bf16.mxu0 0
  %982 = vmatpush1.bf16.xpose.msra.mxu0 0
  %983 = vmatprep.subr.bf16.mxu0 0
  %984 = vmatpush1.bf16.xpose.msra.mxu0 0
  %985 = vmatprep.mubr.bf16.mxu0 0
  %986 = vmatmul.mubr.bf16.gmra.mrb[0].mxu0 %v948
  %v987 = vpop.f32.mrb[0].mxu0
  %v988 = vadd.f32 0.0, %v987
  %v989 = vpop.f32.mrb[0].mxu0
  %v990 = vpop.f32.mrb[0].mxu0
  %v991 = vpop.f32.mrb[0].mxu0
  %992 = vdwg.mxu0
  %v995 = vunpack.c.l.b16 %v53
  %v996 = vunpack.c.l.b16 %v54
  %v997 = vpack.c.b16 %v996, %v995
  %v999 = vsel %vm385, %v309, 0
  %v1002 = vsel %vm385, %v997, 0
  %1004 = vmatprep.subr.bf16.mxu0 0
  %1005 = vmatpush1.bf16.xpose.msra.mxu0 %v1002
  %1006 = vmatprep.subr.bf16.mxu0 0
  %1007 = vmatpush1.bf16.xpose.msra.mxu0 0
  %1008 = vmatprep.subr.bf16.mxu0 0
  %1009 = vmatpush1.bf16.xpose.msra.mxu0 0
  %1010 = vmatprep.subr.bf16.mxu0 0
  %1011 = vmatpush1.bf16.xpose.msra.mxu0 0
  %1012 = vmatprep.subr.bf16.mxu0 0
  %1013 = vmatpush1.bf16.xpose.msra.mxu0 0
  %1014 = vmatprep.subr.bf16.mxu0 0
  %1015 = vmatpush1.bf16.xpose.msra.mxu0 0
  %1016 = vmatprep.subr.bf16.mxu0 0
  %1017 = vmatpush1.bf16.xpose.msra.mxu0 0
  %1018 = vmatprep.subr.bf16.mxu0 0
  %1019 = vmatpush1.bf16.xpose.msra.mxu0 0
  %1020 = vmatprep.subr.bf16.mxu0 0
  %1021 = vmatpush1.bf16.xpose.msra.mxu0 0
  %1022 = vmatprep.subr.bf16.mxu0 0
  %1023 = vmatpush1.bf16.xpose.msra.mxu0 0
  %1024 = vmatprep.subr.bf16.mxu0 0
  %1025 = vmatpush1.bf16.xpose.msra.mxu0 0
  %1026 = vmatprep.subr.bf16.mxu0 0
  %1027 = vmatpush1.bf16.xpose.msra.mxu0 0
  %1028 = vmatprep.subr.bf16.mxu0 0
  %1029 = vmatpush1.bf16.xpose.msra.mxu0 0
  %1030 = vmatprep.subr.bf16.mxu0 0
  %1031 = vmatpush1.bf16.xpose.msra.mxu0 0
  %1032 = vmatprep.subr.bf16.mxu0 0
  %1033 = vmatpush1.bf16.xpose.msra.mxu0 0
  %1034 = vmatprep.subr.bf16.mxu0 0
  %1035 = vmatpush1.bf16.xpose.msra.mxu0 0
  %1036 = vmatprep.mubr.bf16.mxu0 0
  %1037 = vmatmul.mubr.bf16.gmra.mrb[0].mxu0 %v999
  %v1038 = vpop.f32.mrb[0].mxu0
  %v1039 = vadd.f32 0.0, %v1038
  %v1040 = vpop.f32.mrb[0].mxu0
  %v1041 = vpop.f32.mrb[0].mxu0
  %v1042 = vpop.f32.mrb[0].mxu0
  %1043 = vdwg.mxu0
  %v1046 = vunpack.c.l.b16 %v55
  %v1047 = vunpack.c.l.b16 %v56
  %v1048 = vpack.c.b16 %v1047, %v1046
  %v1050 = vsel %vm385, %v375, 0
  %v1053 = vsel %vm385, %v1048, 0
  %1055 = vmatprep.subr.bf16.mxu0 0
  %1056 = vmatpush1.bf16.xpose.msra.mxu0 %v1053
  %1057 = vmatprep.subr.bf16.mxu0 0
  %1058 = vmatpush1.bf16.xpose.msra.mxu0 0
  %1059 = vmatprep.subr.bf16.mxu0 0
  %1060 = vmatpush1.bf16.xpose.msra.mxu0 0
  %1061 = vmatprep.subr.bf16.mxu0 0
  %1062 = vmatpush1.bf16.xpose.msra.mxu0 0
  %1063 = vmatprep.subr.bf16.mxu0 0
  %1064 = vmatpush1.bf16.xpose.msra.mxu0 0
  %1065 = vmatprep.subr.bf16.mxu0 0
  %1066 = vmatpush1.bf16.xpose.msra.mxu0 0
  %1067 = vmatprep.subr.bf16.mxu0 0
  %1068 = vmatpush1.bf16.xpose.msra.mxu0 0
  %1069 = vmatprep.subr.bf16.mxu0 0
  %1070 = vmatpush1.bf16.xpose.msra.mxu0 0
  %1071 = vmatprep.subr.bf16.mxu0 0
  %1072 = vmatpush1.bf16.xpose.msra.mxu0 0
  %1073 = vmatprep.subr.bf16.mxu0 0
  %1074 = vmatpush1.bf16.xpose.msra.mxu0 0
  %1075 = vmatprep.subr.bf16.mxu0 0
  %1076 = vmatpush1.bf16.xpose.msra.mxu0 0
  %1077 = vmatprep.subr.bf16.mxu0 0
  %1078 = vmatpush1.bf16.xpose.msra.mxu0 0
  %1079 = vmatprep.subr.bf16.mxu0 0
  %1080 = vmatpush1.bf16.xpose.msra.mxu0 0
  %1081 = vmatprep.subr.bf16.mxu0 0
  %1082 = vmatpush1.bf16.xpose.msra.mxu0 0
  %1083 = vmatprep.subr.bf16.mxu0 0
  %1084 = vmatpush1.bf16.xpose.msra.mxu0 0
  %1085 = vmatprep.subr.bf16.mxu0 0
  %1086 = vmatpush1.bf16.xpose.msra.mxu0 0
  %1087 = vmatprep.mubr.bf16.mxu0 0
  %1088 = vmatmul.mubr.bf16.gmra.mrb[0].mxu0 %v1050
  %v1089 = vpop.f32.mrb[0].mxu0
  %v1090 = vadd.f32 0.0, %v1089
  %v1091 = vpop.f32.mrb[0].mxu0
  %v1092 = vpop.f32.mrb[0].mxu0
  %v1093 = vpop.f32.mrb[0].mxu0
  %1094 = vdwg.mxu0
  %v1097 = vunpack.c.l.b16 %v57
  %v1098 = vunpack.c.l.b16 %v58
  %v1099 = vpack.c.b16 %v1098, %v1097
  %v1101 = vsel %vm385, %v313, 0
  %v1104 = vsel %vm385, %v1099, 0
  %1106 = vmatprep.subr.bf16.mxu0 0
  %1107 = vmatpush1.bf16.xpose.msra.mxu0 %v1104
  %1108 = vmatprep.subr.bf16.mxu0 0
  %1109 = vmatpush1.bf16.xpose.msra.mxu0 0
  %1110 = vmatprep.subr.bf16.mxu0 0
  %1111 = vmatpush1.bf16.xpose.msra.mxu0 0
  %1112 = vmatprep.subr.bf16.mxu0 0
  %1113 = vmatpush1.bf16.xpose.msra.mxu0 0
  %1114 = vmatprep.subr.bf16.mxu0 0
  %1115 = vmatpush1.bf16.xpose.msra.mxu0 0
  %1116 = vmatprep.subr.bf16.mxu0 0
  %1117 = vmatpush1.bf16.xpose.msra.mxu0 0
  %1118 = vmatprep.subr.bf16.mxu0 0
  %1119 = vmatpush1.bf16.xpose.msra.mxu0 0
  %1120 = vmatprep.subr.bf16.mxu0 0
  %1121 = vmatpush1.bf16.xpose.msra.mxu0 0
  %1122 = vmatprep.subr.bf16.mxu0 0
  %1123 = vmatpush1.bf16.xpose.msra.mxu0 0
  %1124 = vmatprep.subr.bf16.mxu0 0
  %1125 = vmatpush1.bf16.xpose.msra.mxu0 0
  %1126 = vmatprep.subr.bf16.mxu0 0
  %1127 = vmatpush1.bf16.xpose.msra.mxu0 0
  %1128 = vmatprep.subr.bf16.mxu0 0
  %1129 = vmatpush1.bf16.xpose.msra.mxu0 0
  %1130 = vmatprep.subr.bf16.mxu0 0
  %1131 = vmatpush1.bf16.xpose.msra.mxu0 0
  %1132 = vmatprep.subr.bf16.mxu0 0
  %1133 = vmatpush1.bf16.xpose.msra.mxu0 0
  %1134 = vmatprep.subr.bf16.mxu0 0
  %1135 = vmatpush1.bf16.xpose.msra.mxu0 0
  %1136 = vmatprep.subr.bf16.mxu0 0
  %1137 = vmatpush1.bf16.xpose.msra.mxu0 0
  %1138 = vmatprep.mubr.bf16.mxu0 0
  %1139 = vmatmul.mubr.bf16.gmra.mrb[0].mxu0 %v1101
  %v1140 = vpop.f32.mrb[0].mxu0
  %v1141 = vadd.f32 0.0, %v1140
  %v1142 = vpop.f32.mrb[0].mxu0
  %v1143 = vpop.f32.mrb[0].mxu0
  %v1144 = vpop.f32.mrb[0].mxu0
  %1145 = vdwg.mxu0
  %v1148 = vunpack.c.l.b16 %v59
  %v1149 = vunpack.c.l.b16 %v60
  %v1150 = vpack.c.b16 %v1149, %v1148
  %v1152 = vsel %vm385, %v379, 0
  %v1155 = vsel %vm385, %v1150, 0
  %1157 = vmatprep.subr.bf16.mxu0 0
  %1158 = vmatpush1.bf16.xpose.msra.mxu0 %v1155
  %1159 = vmatprep.subr.bf16.mxu0 0
  %1160 = vmatpush1.bf16.xpose.msra.mxu0 0
  %1161 = vmatprep.subr.bf16.mxu0 0
  %1162 = vmatpush1.bf16.xpose.msra.mxu0 0
  %1163 = vmatprep.subr.bf16.mxu0 0
  %1164 = vmatpush1.bf16.xpose.msra.mxu0 0
  %1165 = vmatprep.subr.bf16.mxu0 0
  %1166 = vmatpush1.bf16.xpose.msra.mxu0 0
  %1167 = vmatprep.subr.bf16.mxu0 0
  %1168 = vmatpush1.bf16.xpose.msra.mxu0 0
  %1169 = vmatprep.subr.bf16.mxu0 0
  %1170 = vmatpush1.bf16.xpose.msra.mxu0 0
  %1171 = vmatprep.subr.bf16.mxu0 0
  %1172 = vmatpush1.bf16.xpose.msra.mxu0 0
  %1173 = vmatprep.subr.bf16.mxu0 0
  %1174 = vmatpush1.bf16.xpose.msra.mxu0 0
  %1175 = vmatprep.subr.bf16.mxu0 0
  %1176 = vmatpush1.bf16.xpose.msra.mxu0 0
  %1177 = vmatprep.subr.bf16.mxu0 0
  %1178 = vmatpush1.bf16.xpose.msra.mxu0 0
  %1179 = vmatprep.subr.bf16.mxu0 0
  %1180 = vmatpush1.bf16.xpose.msra.mxu0 0
  %1181 = vmatprep.subr.bf16.mxu0 0
  %1182 = vmatpush1.bf16.xpose.msra.mxu0 0
  %1183 = vmatprep.subr.bf16.mxu0 0
  %1184 = vmatpush1.bf16.xpose.msra.mxu0 0
  %1185 = vmatprep.subr.bf16.mxu0 0
  %1186 = vmatpush1.bf16.xpose.msra.mxu0 0
  %1187 = vmatprep.subr.bf16.mxu0 0
  %1188 = vmatpush1.bf16.xpose.msra.mxu0 0
  %1189 = vmatprep.mubr.bf16.mxu0 0
  %1190 = vmatmul.mubr.bf16.gmra.mrb[0].mxu0 %v1152
  %v1191 = vpop.f32.mrb[0].mxu0
  %v1192 = vadd.f32 0.0, %v1191
  %v1193 = vpop.f32.mrb[0].mxu0
  %v1194 = vpop.f32.mrb[0].mxu0
  %v1195 = vpop.f32.mrb[0].mxu0
  %1196 = vdwg.mxu0
  %1198 = vrot.lane.b32.xlu0 %v139, 64
  %v1199 = vpop.permute.xlu0 %1198
  %v1216 = vrot.slane %v478, 7
  %vm1217 = vcmask 1041409
  %v1218 = vsel %vm1217, %v1216, %v427
  %v1219 = vrot.slane %v529, 6
  %vm1220 = vcmask 1042434
  %v1221 = vsel %vm1220, %v1219, %v1218
  %v1222 = vrot.slane %v580, 5
  %vm1223 = vcmask 1043459
  %v1224 = vsel %vm1223, %v1222, %v1221
  %v1225 = vrot.slane %v631, 4
  %vm1226 = vcmask 1044484
  %v1227 = vsel %vm1226, %v1225, %v1224
  %v1228 = vrot.slane %v682, 3
  %vm1229 = vcmask 1045509
  %v1230 = vsel %vm1229, %v1228, %v1227
  %v1231 = vrot.slane %v733, 2
  %vm1232 = vcmask 1046534
  %v1233 = vsel %vm1232, %v1231, %v1230
  %v1234 = vrot.slane %v784, 1
  %vm1235 = vcmask 1047559
  %v1236 = vsel %vm1235, %v1234, %v1233
  %v1237 = vrot.slane %v886, 7
  %v1238 = vsel %vm1217, %v1237, %v835
  %v1239 = vrot.slane %v937, 6
  %v1240 = vsel %vm1220, %v1239, %v1238
  %v1241 = vrot.slane %v988, 5
  %v1242 = vsel %vm1223, %v1241, %v1240
  %v1243 = vrot.slane %v1039, 4
  %v1244 = vsel %vm1226, %v1243, %v1242
  %v1245 = vrot.slane %v1090, 3
  %v1246 = vsel %vm1229, %v1245, %v1244
  %v1247 = vrot.slane %v1141, 2
  %v1248 = vsel %vm1232, %v1247, %v1246
  %v1249 = vrot.slane %v1192, 1
  %v1250 = vsel %vm1235, %v1249, %v1248
  %vm1253 = vcmask 130048
  %v1254 = vsel %vm1253, %v139, 0
  %v1257 = vsel %vm1253, %v1199, 0
  %1259 = vmatprep.subr.bf16.mxu0 0
  %1260 = vmatpush1.bf16.xpose.msra.mxu0 %v1257
  %1261 = vmatprep.subr.bf16.mxu0 0
  %1262 = vmatpush1.bf16.xpose.msra.mxu0 0
  %1263 = vmatprep.subr.bf16.mxu0 0
  %1264 = vmatpush1.bf16.xpose.msra.mxu0 0
  %1265 = vmatprep.subr.bf16.mxu0 0
  %1266 = vmatpush1.bf16.xpose.msra.mxu0 0
  %1267 = vmatprep.subr.bf16.mxu0 0
  %1268 = vmatpush1.bf16.xpose.msra.mxu0 0
  %1269 = vmatprep.subr.bf16.mxu0 0
  %1270 = vmatpush1.bf16.xpose.msra.mxu0 0
  %1271 = vmatprep.subr.bf16.mxu0 0
  %1272 = vmatpush1.bf16.xpose.msra.mxu0 0
  %1273 = vmatprep.subr.bf16.mxu0 0
  %1274 = vmatpush1.bf16.xpose.msra.mxu0 0
  %1275 = vmatprep.subr.bf16.mxu0 0
  %1276 = vmatpush1.bf16.xpose.msra.mxu0 0
  %1277 = vmatprep.subr.bf16.mxu0 0
  %1278 = vmatpush1.bf16.xpose.msra.mxu0 0
  %1279 = vmatprep.subr.bf16.mxu0 0
  %1280 = vmatpush1.bf16.xpose.msra.mxu0 0
  %1281 = vmatprep.subr.bf16.mxu0 0
  %1282 = vmatpush1.bf16.xpose.msra.mxu0 0
  %1283 = vmatprep.subr.bf16.mxu0 0
  %1284 = vmatpush1.bf16.xpose.msra.mxu0 0
  %1285 = vmatprep.subr.bf16.mxu0 0
  %1286 = vmatpush1.bf16.xpose.msra.mxu0 0
  %1287 = vmatprep.subr.bf16.mxu0 0
  %1288 = vmatpush1.bf16.xpose.msra.mxu0 0
  %1289 = vmatprep.subr.bf16.mxu0 0
  %1290 = vmatpush1.bf16.xpose.msra.mxu0 0
  %1291 = vmatprep.mubr.bf16.mxu0 0
  %1292 = vmatmul.mubr.bf16.gmra.mrb[0].mxu0 %v1254
  %v1293 = vpop.f32.mrb[0].mxu0
  %v1294 = vadd.f32 %v1236, %v1293
  %v1295 = vpop.f32.mrb[0].mxu0
  %v1296 = vpop.f32.mrb[0].mxu0
  %v1297 = vadd.f32 %v1250, %v1296
  %v1298 = vpop.f32.mrb[0].mxu0
  %1299 = vdwg.mxu0
  %v1300 = vmul.f32 %v1294, 0.25
  %v1301 = vmul.f32 %v1297, 0.25
  %v1302 = vadd.f32 %v1300, %v61
  %v1303 = vadd.f32 %v1301, %v62
  %v1304 = vsel %vm1253, %v1302, -inf
  %1305 = vmax.xlane.f32.xlu0 %v1304
  %v1306 = vpop.xlane.xlu0 %1305
  %v1307 = vsel %vm1253, %v1303, -inf
  %1308 = vmax.xlane.f32.xlu0 %v1307
  %v1309 = vpop.xlane.xlu0 %1308
  %v1310 = vsub.f32 %v1302, %v1306
  %v1311 = vsub.f32 %v1303, %v1309
  %v1312 = vmul.f32 %v1310, 1.442695
  %v1313 = vpow.pop %v1312
  %v1314 = vmul.f32 %v1311, 1.442695
  %v1315 = vpow.pop %v1314
  %v1316 = vsel %vm1253, %v1313, 0.0
  %1317 = vadd.xlane.f32.xlu0 %v1316
  %v1318 = vpop.xlane.xlu0 %1317
  %v1319 = vsel %vm1253, %v1315, 0.0
  %1320 = vadd.xlane.f32.xlu0 %v1319
  %v1321 = vpop.xlane.xlu0 %1320
  %v1322 = vrcp.pop %v1318
  %v1323 = vrcp.pop %v1321
  %v1324 = vmul.f32 %v1313, %v1322
  %v1325 = vmul.f32 %v1315, %v1323
  %v1326 = vpack.c.bf16 %v1325, %v1324
  %v1328 = vsel %vm1253, %v1326, 0
  %1330 = vmatprep.subr.bf16.mxu0 0
  %1331 = vmatpush1.bf16.msra.mxu0 %v140
  %1332 = vmatprep.subr.bf16.mxu0 0
  %1333 = vmatpush1.bf16.msra.mxu0 0
  %1334 = vmatprep.subr.bf16.mxu0 0
  %1335 = vmatpush1.bf16.msra.mxu0 0
  %1336 = vmatprep.subr.bf16.mxu0 0
  %1337 = vmatpush1.bf16.msra.mxu0 0
  %1338 = vmatprep.subr.bf16.mxu0 0
  %1339 = vmatpush1.bf16.msra.mxu0 0
  %1340 = vmatprep.subr.bf16.mxu0 0
  %1341 = vmatpush1.bf16.msra.mxu0 0
  %1342 = vmatprep.subr.bf16.mxu0 0
  %1343 = vmatpush1.bf16.msra.mxu0 0
  %1344 = vmatprep.subr.bf16.mxu0 0
  %1345 = vmatpush1.bf16.msra.mxu0 0
  %1346 = vmatprep.subr.bf16.mxu0 0
  %1347 = vmatpush1.bf16.msra.mxu0 0
  %1348 = vmatprep.subr.bf16.mxu0 0
  %1349 = vmatpush1.bf16.msra.mxu0 0
  %1350 = vmatprep.subr.bf16.mxu0 0
  %1351 = vmatpush1.bf16.msra.mxu0 0
  %1352 = vmatprep.subr.bf16.mxu0 0
  %1353 = vmatpush1.bf16.msra.mxu0 0
  %1354 = vmatprep.subr.bf16.mxu0 0
  %1355 = vmatpush1.bf16.msra.mxu0 0
  %1356 = vmatprep.subr.bf16.mxu0 0
  %1357 = vmatpush1.bf16.msra.mxu0 0
  %1358 = vmatprep.subr.bf16.mxu0 0
  %1359 = vmatpush1.bf16.msra.mxu0 0
  %1360 = vmatprep.subr.bf16.mxu0 0
  %1361 = vmatpush1.bf16.msra.mxu0 0
  %1362 = vmatprep.mubr.bf16.mxu0 0
  %1363 = vmatmul.mubr.bf16.gmra.mrb[0].mxu0 %v1328
  %v1364 = vpop.f32.mrb[0].mxu0
  %v1365 = vadd.f32 0.0, %v1364
  %v1366 = vpop.f32.mrb[0].mxu0
  %v1367 = vpop.f32.mrb[0].mxu0
  %v1368 = vadd.f32 0.0, %v1367
  %v1369 = vpop.f32.mrb[0].mxu0
  %1370 = vdwg.mxu0
  %1371 = vrot.lane.b32.xlu0 %v139, 112
  %v1372 = vpop.permute.xlu0 %1371
  %1373 = vrot.lane.b32.xlu0 %v139, 48
  %v1374 = vpop.permute.xlu0 %1373
  %v1375 = vrot.slane %v427, 1
  %v1376 = vsel %vm1217, %v478, %v1375
  %v1377 = vrot.slane %v529, 7
  %v1378 = vsel %vm1220, %v1377, %v1376
  %v1379 = vrot.slane %v580, 6
  %v1380 = vsel %vm1223, %v1379, %v1378
  %v1381 = vrot.slane %v631, 5
  %v1382 = vsel %vm1226, %v1381, %v1380
  %v1383 = vrot.slane %v682, 4
  %v1384 = vsel %vm1229, %v1383, %v1382
  %v1385 = vrot.slane %v733, 3
  %v1386 = vsel %vm1232, %v1385, %v1384
  %v1387 = vrot.slane %v784, 2
  %v1388 = vsel %vm1235, %v1387, %v1386
  %v1389 = vrot.slane %v835, 1
  %v1390 = vsel %vm1217, %v886, %v1389
  %v1391 = vrot.slane %v937, 7
  %v1392 = vsel %vm1220, %v1391, %v1390
  %v1393 = vrot.slane %v988, 6
  %v1394 = vsel %vm1223, %v1393, %v1392
  %v1395 = vrot.slane %v1039, 5
  %v1396 = vsel %vm1226, %v1395, %v1394
  %v1397 = vrot.slane %v1090, 4
  %v1398 = vsel %vm1229, %v1397, %v1396
  %v1399 = vrot.slane %v1141, 3
  %v1400 = vsel %vm1232, %v1399, %v1398
  %v1401 = vrot.slane %v1192, 2
  %v1402 = vsel %vm1235, %v1401, %v1400
  %v1406 = vsel %vm1253, %v1372, 0
  %v1409 = vsel %vm1253, %v1374, 0
  %1411 = vmatprep.subr.bf16.mxu0 0
  %1412 = vmatpush1.bf16.xpose.msra.mxu0 %v1409
  %1413 = vmatprep.subr.bf16.mxu0 0
  %1414 = vmatpush1.bf16.xpose.msra.mxu0 0
  %1415 = vmatprep.subr.bf16.mxu0 0
  %1416 = vmatpush1.bf16.xpose.msra.mxu0 0
  %1417 = vmatprep.subr.bf16.mxu0 0
  %1418 = vmatpush1.bf16.xpose.msra.mxu0 0
  %1419 = vmatprep.subr.bf16.mxu0 0
  %1420 = vmatpush1.bf16.xpose.msra.mxu0 0
  %1421 = vmatprep.subr.bf16.mxu0 0
  %1422 = vmatpush1.bf16.xpose.msra.mxu0 0
  %1423 = vmatprep.subr.bf16.mxu0 0
  %1424 = vmatpush1.bf16.xpose.msra.mxu0 0
  %1425 = vmatprep.subr.bf16.mxu0 0
  %1426 = vmatpush1.bf16.xpose.msra.mxu0 0
  %1427 = vmatprep.subr.bf16.mxu0 0
  %1428 = vmatpush1.bf16.xpose.msra.mxu0 0
  %1429 = vmatprep.subr.bf16.mxu0 0
  %1430 = vmatpush1.bf16.xpose.msra.mxu0 0
  %1431 = vmatprep.subr.bf16.mxu0 0
  %1432 = vmatpush1.bf16.xpose.msra.mxu0 0
  %1433 = vmatprep.subr.bf16.mxu0 0
  %1434 = vmatpush1.bf16.xpose.msra.mxu0 0
  %1435 = vmatprep.subr.bf16.mxu0 0
  %1436 = vmatpush1.bf16.xpose.msra.mxu0 0
  %1437 = vmatprep.subr.bf16.mxu0 0
  %1438 = vmatpush1.bf16.xpose.msra.mxu0 0
  %1439 = vmatprep.subr.bf16.mxu0 0
  %1440 = vmatpush1.bf16.xpose.msra.mxu0 0
  %1441 = vmatprep.subr.bf16.mxu0 0
  %1442 = vmatpush1.bf16.xpose.msra.mxu0 0
  %1443 = vmatprep.mubr.bf16.mxu0 0
  %1444 = vmatmul.mubr.bf16.gmra.mrb[0].mxu0 %v1406
  %v1445 = vpop.f32.mrb[0].mxu0
  %v1446 = vadd.f32 %v1388, %v1445
  %v1447 = vpop.f32.mrb[0].mxu0
  %v1448 = vpop.f32.mrb[0].mxu0
  %v1449 = vadd.f32 %v1402, %v1448
  %v1450 = vpop.f32.mrb[0].mxu0
  %1451 = vdwg.mxu0
  %v1452 = vmul.f32 %v1446, 0.25
  %v1453 = vmul.f32 %v1449, 0.25
  %v1454 = vadd.f32 %v1452, %v61
  %v1455 = vadd.f32 %v1453, %v62
  %v1456 = vsel %vm1253, %v1454, -inf
  %1457 = vmax.xlane.f32.xlu0 %v1456
  %v1458 = vpop.xlane.xlu0 %1457
  %v1459 = vsel %vm1253, %v1455, -inf
  %1460 = vmax.xlane.f32.xlu0 %v1459
  %v1461 = vpop.xlane.xlu0 %1460
  %v1462 = vsub.f32 %v1454, %v1458
  %v1463 = vsub.f32 %v1455, %v1461
  %v1464 = vmul.f32 %v1462, 1.442695
  %v1465 = vpow.pop %v1464
  %v1466 = vmul.f32 %v1463, 1.442695
  %v1467 = vpow.pop %v1466
  %v1468 = vsel %vm1253, %v1465, 0.0
  %1469 = vadd.xlane.f32.xlu0 %v1468
  %v1470 = vpop.xlane.xlu0 %1469
  %v1471 = vsel %vm1253, %v1467, 0.0
  %1472 = vadd.xlane.f32.xlu0 %v1471
  %v1473 = vpop.xlane.xlu0 %1472
  %v1474 = vrcp.pop %v1470
  %v1475 = vrcp.pop %v1473
  %v1476 = vmul.f32 %v1465, %v1474
  %v1477 = vmul.f32 %v1467, %v1475
  %v1478 = vpack.c.bf16 %v1477, %v1476
  %1480 = vrot.lane.b32.xlu0 %v140, 112
  %v1481 = vpop.permute.xlu0 %1480
  %v1484 = vsel %vm1253, %v1478, 0
  %1486 = vmatprep.subr.bf16.mxu0 0
  %1487 = vmatpush1.bf16.msra.mxu0 %v1481
  %1488 = vmatprep.subr.bf16.mxu0 0
  %1489 = vmatpush1.bf16.msra.mxu0 0
  %1490 = vmatprep.subr.bf16.mxu0 0
  %1491 = vmatpush1.bf16.msra.mxu0 0
  %1492 = vmatprep.subr.bf16.mxu0 0
  %1493 = vmatpush1.bf16.msra.mxu0 0
  %1494 = vmatprep.subr.bf16.mxu0 0
  %1495 = vmatpush1.bf16.msra.mxu0 0
  %1496 = vmatprep.subr.bf16.mxu0 0
  %1497 = vmatpush1.bf16.msra.mxu0 0
  %1498 = vmatprep.subr.bf16.mxu0 0
  %1499 = vmatpush1.bf16.msra.mxu0 0
  %1500 = vmatprep.subr.bf16.mxu0 0
  %1501 = vmatpush1.bf16.msra.mxu0 0
  %1502 = vmatprep.subr.bf16.mxu0 0
  %1503 = vmatpush1.bf16.msra.mxu0 0
  %1504 = vmatprep.subr.bf16.mxu0 0
  %1505 = vmatpush1.bf16.msra.mxu0 0
  %1506 = vmatprep.subr.bf16.mxu0 0
  %1507 = vmatpush1.bf16.msra.mxu0 0
  %1508 = vmatprep.subr.bf16.mxu0 0
  %1509 = vmatpush1.bf16.msra.mxu0 0
  %1510 = vmatprep.subr.bf16.mxu0 0
  %1511 = vmatpush1.bf16.msra.mxu0 0
  %1512 = vmatprep.subr.bf16.mxu0 0
  %1513 = vmatpush1.bf16.msra.mxu0 0
  %1514 = vmatprep.subr.bf16.mxu0 0
  %1515 = vmatpush1.bf16.msra.mxu0 0
  %1516 = vmatprep.subr.bf16.mxu0 0
  %1517 = vmatpush1.bf16.msra.mxu0 0
  %1518 = vmatprep.mubr.bf16.mxu0 0
  %1519 = vmatmul.mubr.bf16.gmra.mrb[0].mxu0 %v1484
  %v1520 = vpop.f32.mrb[0].mxu0
  %v1521 = vadd.f32 0.0, %v1520
  %v1522 = vpop.f32.mrb[0].mxu0
  %v1523 = vpop.f32.mrb[0].mxu0
  %v1524 = vadd.f32 0.0, %v1523
  %v1525 = vpop.f32.mrb[0].mxu0
  %1526 = vdwg.mxu0
  %1527 = vrot.lane.b32.xlu0 %v139, 96
  %v1528 = vpop.permute.xlu0 %1527
  %1529 = vrot.lane.b32.xlu0 %v139, 32
  %v1530 = vpop.permute.xlu0 %1529
  %v1531 = vrot.slane %v427, 2
  %v1532 = vrot.slane %v478, 1
  %v1533 = vsel %vm1217, %v1532, %v1531
  %v1534 = vsel %vm1220, %v529, %v1533
  %v1535 = vrot.slane %v580, 7
  %v1536 = vsel %vm1223, %v1535, %v1534
  %v1537 = vrot.slane %v631, 6
  %v1538 = vsel %vm1226, %v1537, %v1536
  %v1539 = vrot.slane %v682, 5
  %v1540 = vsel %vm1229, %v1539, %v1538
  %v1541 = vrot.slane %v733, 4
  %v1542 = vsel %vm1232, %v1541, %v1540
  %v1543 = vrot.slane %v784, 3
  %v1544 = vsel %vm1235, %v1543, %v1542
  %v1545 = vrot.slane %v835, 2
  %v1546 = vrot.slane %v886, 1
  %v1547 = vsel %vm1217, %v1546, %v1545
  %v1548 = vsel %vm1220, %v937, %v1547
  %v1549 = vrot.slane %v988, 7
  %v1550 = vsel %vm1223, %v1549, %v1548
  %v1551 = vrot.slane %v1039, 6
  %v1552 = vsel %vm1226, %v1551, %v1550
  %v1553 = vrot.slane %v1090, 5
  %v1554 = vsel %vm1229, %v1553, %v1552
  %v1555 = vrot.slane %v1141, 4
  %v1556 = vsel %vm1232, %v1555, %v1554
  %v1557 = vrot.slane %v1192, 3
  %v1558 = vsel %vm1235, %v1557, %v1556
  %v1562 = vsel %vm1253, %v1528, 0
  %v1565 = vsel %vm1253, %v1530, 0
  %1567 = vmatprep.subr.bf16.mxu0 0
  %1568 = vmatpush1.bf16.xpose.msra.mxu0 %v1565
  %1569 = vmatprep.subr.bf16.mxu0 0
  %1570 = vmatpush1.bf16.xpose.msra.mxu0 0
  %1571 = vmatprep.subr.bf16.mxu0 0
  %1572 = vmatpush1.bf16.xpose.msra.mxu0 0
  %1573 = vmatprep.subr.bf16.mxu0 0
  %1574 = vmatpush1.bf16.xpose.msra.mxu0 0
  %1575 = vmatprep.subr.bf16.mxu0 0
  %1576 = vmatpush1.bf16.xpose.msra.mxu0 0
  %1577 = vmatprep.subr.bf16.mxu0 0
  %1578 = vmatpush1.bf16.xpose.msra.mxu0 0
  %1579 = vmatprep.subr.bf16.mxu0 0
  %1580 = vmatpush1.bf16.xpose.msra.mxu0 0
  %1581 = vmatprep.subr.bf16.mxu0 0
  %1582 = vmatpush1.bf16.xpose.msra.mxu0 0
  %1583 = vmatprep.subr.bf16.mxu0 0
  %1584 = vmatpush1.bf16.xpose.msra.mxu0 0
  %1585 = vmatprep.subr.bf16.mxu0 0
  %1586 = vmatpush1.bf16.xpose.msra.mxu0 0
  %1587 = vmatprep.subr.bf16.mxu0 0
  %1588 = vmatpush1.bf16.xpose.msra.mxu0 0
  %1589 = vmatprep.subr.bf16.mxu0 0
  %1590 = vmatpush1.bf16.xpose.msra.mxu0 0
  %1591 = vmatprep.subr.bf16.mxu0 0
  %1592 = vmatpush1.bf16.xpose.msra.mxu0 0
  %1593 = vmatprep.subr.bf16.mxu0 0
  %1594 = vmatpush1.bf16.xpose.msra.mxu0 0
  %1595 = vmatprep.subr.bf16.mxu0 0
  %1596 = vmatpush1.bf16.xpose.msra.mxu0 0
  %1597 = vmatprep.subr.bf16.mxu0 0
  %1598 = vmatpush1.bf16.xpose.msra.mxu0 0
  %1599 = vmatprep.mubr.bf16.mxu0 0
  %1600 = vmatmul.mubr.bf16.gmra.mrb[0].mxu0 %v1562
  %v1601 = vpop.f32.mrb[0].mxu0
  %v1602 = vadd.f32 %v1544, %v1601
  %v1603 = vpop.f32.mrb[0].mxu0
  %v1604 = vpop.f32.mrb[0].mxu0
  %v1605 = vadd.f32 %v1558, %v1604
  %v1606 = vpop.f32.mrb[0].mxu0
  %1607 = vdwg.mxu0
  %v1608 = vmul.f32 %v1602, 0.25
  %v1609 = vmul.f32 %v1605, 0.25
  %v1610 = vadd.f32 %v1608, %v61
  %v1611 = vadd.f32 %v1609, %v62
  %v1612 = vsel %vm1253, %v1610, -inf
  %1613 = vmax.xlane.f32.xlu0 %v1612
  %v1614 = vpop.xlane.xlu0 %1613
  %v1615 = vsel %vm1253, %v1611, -inf
  %1616 = vmax.xlane.f32.xlu0 %v1615
  %v1617 = vpop.xlane.xlu0 %1616
  %v1618 = vsub.f32 %v1610, %v1614
  %v1619 = vsub.f32 %v1611, %v1617
  %v1620 = vmul.f32 %v1618, 1.442695
  %v1621 = vpow.pop %v1620
  %v1622 = vmul.f32 %v1619, 1.442695
  %v1623 = vpow.pop %v1622
  %v1624 = vsel %vm1253, %v1621, 0.0
  %1625 = vadd.xlane.f32.xlu0 %v1624
  %v1626 = vpop.xlane.xlu0 %1625
  %v1627 = vsel %vm1253, %v1623, 0.0
  %1628 = vadd.xlane.f32.xlu0 %v1627
  %v1629 = vpop.xlane.xlu0 %1628
  %v1630 = vrcp.pop %v1626
  %v1631 = vrcp.pop %v1629
  %v1632 = vmul.f32 %v1621, %v1630
  %v1633 = vmul.f32 %v1623, %v1631
  %v1634 = vpack.c.bf16 %v1633, %v1632
  %1635 = vrot.lane.b32.xlu0 %v140, 96
  %v1636 = vpop.permute.xlu0 %1635
  %v1639 = vsel %vm1253, %v1634, 0
  %1641 = vmatprep.subr.bf16.mxu0 0
  %1642 = vmatpush1.bf16.msra.mxu0 %v1636
  %1643 = vmatprep.subr.bf16.mxu0 0
  %1644 = vmatpush1.bf16.msra.mxu0 0
  %1645 = vmatprep.subr.bf16.mxu0 0
  %1646 = vmatpush1.bf16.msra.mxu0 0
  %1647 = vmatprep.subr.bf16.mxu0 0
  %1648 = vmatpush1.bf16.msra.mxu0 0
  %1649 = vmatprep.subr.bf16.mxu0 0
  %1650 = vmatpush1.bf16.msra.mxu0 0
  %1651 = vmatprep.subr.bf16.mxu0 0
  %1652 = vmatpush1.bf16.msra.mxu0 0
  %1653 = vmatprep.subr.bf16.mxu0 0
  %1654 = vmatpush1.bf16.msra.mxu0 0
  %1655 = vmatprep.subr.bf16.mxu0 0
  %1656 = vmatpush1.bf16.msra.mxu0 0
  %1657 = vmatprep.subr.bf16.mxu0 0
  %1658 = vmatpush1.bf16.msra.mxu0 0
  %1659 = vmatprep.subr.bf16.mxu0 0
  %1660 = vmatpush1.bf16.msra.mxu0 0
  %1661 = vmatprep.subr.bf16.mxu0 0
  %1662 = vmatpush1.bf16.msra.mxu0 0
  %1663 = vmatprep.subr.bf16.mxu0 0
  %1664 = vmatpush1.bf16.msra.mxu0 0
  %1665 = vmatprep.subr.bf16.mxu0 0
  %1666 = vmatpush1.bf16.msra.mxu0 0
  %1667 = vmatprep.subr.bf16.mxu0 0
  %1668 = vmatpush1.bf16.msra.mxu0 0
  %1669 = vmatprep.subr.bf16.mxu0 0
  %1670 = vmatpush1.bf16.msra.mxu0 0
  %1671 = vmatprep.subr.bf16.mxu0 0
  %1672 = vmatpush1.bf16.msra.mxu0 0
  %1673 = vmatprep.mubr.bf16.mxu0 0
  %1674 = vmatmul.mubr.bf16.gmra.mrb[0].mxu0 %v1639
  %v1675 = vpop.f32.mrb[0].mxu0
  %v1676 = vadd.f32 0.0, %v1675
  %v1677 = vpop.f32.mrb[0].mxu0
  %v1678 = vpop.f32.mrb[0].mxu0
  %v1679 = vadd.f32 0.0, %v1678
  %v1680 = vpop.f32.mrb[0].mxu0
  %1681 = vdwg.mxu0
  %1682 = vrot.lane.b32.xlu0 %v139, 80
  %v1683 = vpop.permute.xlu0 %1682
  %1684 = vrot.lane.b32.xlu0 %v139, 16
  %v1685 = vpop.permute.xlu0 %1684
  %v1686 = vrot.slane %v427, 3
  %v1687 = vrot.slane %v478, 2
  %v1688 = vsel %vm1217, %v1687, %v1686
  %v1689 = vrot.slane %v529, 1
  %v1690 = vsel %vm1220, %v1689, %v1688
  %v1691 = vsel %vm1223, %v580, %v1690
  %v1692 = vrot.slane %v631, 7
  %v1693 = vsel %vm1226, %v1692, %v1691
  %v1694 = vrot.slane %v682, 6
  %v1695 = vsel %vm1229, %v1694, %v1693
  %v1696 = vrot.slane %v733, 5
  %v1697 = vsel %vm1232, %v1696, %v1695
  %v1698 = vrot.slane %v784, 4
  %v1699 = vsel %vm1235, %v1698, %v1697
  %v1700 = vrot.slane %v835, 3
  %v1701 = vrot.slane %v886, 2
  %v1702 = vsel %vm1217, %v1701, %v1700
  %v1703 = vrot.slane %v937, 1
  %v1704 = vsel %vm1220, %v1703, %v1702
  %v1705 = vsel %vm1223, %v988, %v1704
  %v1706 = vrot.slane %v1039, 7
  %v1707 = vsel %vm1226, %v1706, %v1705
  %v1708 = vrot.slane %v1090, 6
  %v1709 = vsel %vm1229, %v1708, %v1707
  %v1710 = vrot.slane %v1141, 5
  %v1711 = vsel %vm1232, %v1710, %v1709
  %v1712 = vrot.slane %v1192, 4
  %v1713 = vsel %vm1235, %v1712, %v1711
  %v1717 = vsel %vm1253, %v1683, 0
  %v1720 = vsel %vm1253, %v1685, 0
  %1722 = vmatprep.subr.bf16.mxu0 0
  %1723 = vmatpush1.bf16.xpose.msra.mxu0 %v1720
  %1724 = vmatprep.subr.bf16.mxu0 0
  %1725 = vmatpush1.bf16.xpose.msra.mxu0 0
  %1726 = vmatprep.subr.bf16.mxu0 0
  %1727 = vmatpush1.bf16.xpose.msra.mxu0 0
  %1728 = vmatprep.subr.bf16.mxu0 0
  %1729 = vmatpush1.bf16.xpose.msra.mxu0 0
  %1730 = vmatprep.subr.bf16.mxu0 0
  %1731 = vmatpush1.bf16.xpose.msra.mxu0 0
  %1732 = vmatprep.subr.bf16.mxu0 0
  %1733 = vmatpush1.bf16.xpose.msra.mxu0 0
  %1734 = vmatprep.subr.bf16.mxu0 0
  %1735 = vmatpush1.bf16.xpose.msra.mxu0 0
  %1736 = vmatprep.subr.bf16.mxu0 0
  %1737 = vmatpush1.bf16.xpose.msra.mxu0 0
  %1738 = vmatprep.subr.bf16.mxu0 0
  %1739 = vmatpush1.bf16.xpose.msra.mxu0 0
  %1740 = vmatprep.subr.bf16.mxu0 0
  %1741 = vmatpush1.bf16.xpose.msra.mxu0 0
  %1742 = vmatprep.subr.bf16.mxu0 0
  %1743 = vmatpush1.bf16.xpose.msra.mxu0 0
  %1744 = vmatprep.subr.bf16.mxu0 0
  %1745 = vmatpush1.bf16.xpose.msra.mxu0 0
  %1746 = vmatprep.subr.bf16.mxu0 0
  %1747 = vmatpush1.bf16.xpose.msra.mxu0 0
  %1748 = vmatprep.subr.bf16.mxu0 0
  %1749 = vmatpush1.bf16.xpose.msra.mxu0 0
  %1750 = vmatprep.subr.bf16.mxu0 0
  %1751 = vmatpush1.bf16.xpose.msra.mxu0 0
  %1752 = vmatprep.subr.bf16.mxu0 0
  %1753 = vmatpush1.bf16.xpose.msra.mxu0 0
  %1754 = vmatprep.mubr.bf16.mxu0 0
  %1755 = vmatmul.mubr.bf16.gmra.mrb[0].mxu0 %v1717
  %v1756 = vpop.f32.mrb[0].mxu0
  %v1757 = vadd.f32 %v1699, %v1756
  %v1758 = vpop.f32.mrb[0].mxu0
  %v1759 = vpop.f32.mrb[0].mxu0
  %v1760 = vadd.f32 %v1713, %v1759
  %v1761 = vpop.f32.mrb[0].mxu0
  %1762 = vdwg.mxu0
  %v1763 = vmul.f32 %v1757, 0.25
  %v1764 = vmul.f32 %v1760, 0.25
  %v1765 = vadd.f32 %v1763, %v61
  %v1766 = vadd.f32 %v1764, %v62
  %v1767 = vsel %vm1253, %v1765, -inf
  %1768 = vmax.xlane.f32.xlu0 %v1767
  %v1769 = vpop.xlane.xlu0 %1768
  %v1770 = vsel %vm1253, %v1766, -inf
  %1771 = vmax.xlane.f32.xlu0 %v1770
  %v1772 = vpop.xlane.xlu0 %1771
  %v1773 = vsub.f32 %v1765, %v1769
  %v1774 = vsub.f32 %v1766, %v1772
  %v1775 = vmul.f32 %v1773, 1.442695
  %v1776 = vpow.pop %v1775
  %v1777 = vmul.f32 %v1774, 1.442695
  %v1778 = vpow.pop %v1777
  %v1779 = vsel %vm1253, %v1776, 0.0
  %1780 = vadd.xlane.f32.xlu0 %v1779
  %v1781 = vpop.xlane.xlu0 %1780
  %v1782 = vsel %vm1253, %v1778, 0.0
  %1783 = vadd.xlane.f32.xlu0 %v1782
  %v1784 = vpop.xlane.xlu0 %1783
  %v1785 = vrcp.pop %v1781
  %v1786 = vrcp.pop %v1784
  %v1787 = vmul.f32 %v1776, %v1785
  %v1788 = vmul.f32 %v1778, %v1786
  %v1789 = vpack.c.bf16 %v1788, %v1787
  %1790 = vrot.lane.b32.xlu0 %v140, 80
  %v1791 = vpop.permute.xlu0 %1790
  %v1794 = vsel %vm1253, %v1789, 0
  %1796 = vmatprep.subr.bf16.mxu0 0
  %1797 = vmatpush1.bf16.msra.mxu0 %v1791
  %1798 = vmatprep.subr.bf16.mxu0 0
  %1799 = vmatpush1.bf16.msra.mxu0 0
  %1800 = vmatprep.subr.bf16.mxu0 0
  %1801 = vmatpush1.bf16.msra.mxu0 0
  %1802 = vmatprep.subr.bf16.mxu0 0
  %1803 = vmatpush1.bf16.msra.mxu0 0
  %1804 = vmatprep.subr.bf16.mxu0 0
  %1805 = vmatpush1.bf16.msra.mxu0 0
  %1806 = vmatprep.subr.bf16.mxu0 0
  %1807 = vmatpush1.bf16.msra.mxu0 0
  %1808 = vmatprep.subr.bf16.mxu0 0
  %1809 = vmatpush1.bf16.msra.mxu0 0
  %1810 = vmatprep.subr.bf16.mxu0 0
  %1811 = vmatpush1.bf16.msra.mxu0 0
  %1812 = vmatprep.subr.bf16.mxu0 0
  %1813 = vmatpush1.bf16.msra.mxu0 0
  %1814 = vmatprep.subr.bf16.mxu0 0
  %1815 = vmatpush1.bf16.msra.mxu0 0
  %1816 = vmatprep.subr.bf16.mxu0 0
  %1817 = vmatpush1.bf16.msra.mxu0 0
  %1818 = vmatprep.subr.bf16.mxu0 0
  %1819 = vmatpush1.bf16.msra.mxu0 0
  %1820 = vmatprep.subr.bf16.mxu0 0
  %1821 = vmatpush1.bf16.msra.mxu0 0
  %1822 = vmatprep.subr.bf16.mxu0 0
  %1823 = vmatpush1.bf16.msra.mxu0 0
  %1824 = vmatprep.subr.bf16.mxu0 0
  %1825 = vmatpush1.bf16.msra.mxu0 0
  %1826 = vmatprep.subr.bf16.mxu0 0
  %1827 = vmatpush1.bf16.msra.mxu0 0
  %1828 = vmatprep.mubr.bf16.mxu0 0
  %1829 = vmatmul.mubr.bf16.gmra.mrb[0].mxu0 %v1794
  %v1830 = vpop.f32.mrb[0].mxu0
  %v1831 = vadd.f32 0.0, %v1830
  %v1832 = vpop.f32.mrb[0].mxu0
  %v1833 = vpop.f32.mrb[0].mxu0
  %v1834 = vadd.f32 0.0, %v1833
  %v1835 = vpop.f32.mrb[0].mxu0
  %1836 = vdwg.mxu0
  %1839 = vrot.lane.b32.xlu0 %v1521, 16
  %v1840 = vpop.permute.xlu0 %1839
  %1841 = vrot.lane.b32.xlu0 %v1524, 16
  %v1842 = vpop.permute.xlu0 %1841
  %1847 = vrot.lane.b32.xlu0 %v1676, 32
  %v1848 = vpop.permute.xlu0 %1847
  %1849 = vrot.lane.b32.xlu0 %v1679, 32
  %v1850 = vpop.permute.xlu0 %1849
  %1855 = vrot.lane.b32.xlu0 %v1831, 48
  %v1856 = vpop.permute.xlu0 %1855
  %1857 = vrot.lane.b32.xlu0 %v1834, 48
  %v1858 = vpop.permute.xlu0 %1857
  %v1861 = vsel %vm1253, %v1365, %v1840
  %v1862 = vsel %vm1253, %v1368, %v1842
  %v1863 = vsel %vm92, %v1861, %v1848
  %v1864 = vsel %vm92, %v1862, %v1850
  %vm1865 = vcmask 392192
  %v1866 = vsel %vm1865, %v1863, %v1856
  %v1867 = vsel %vm1865, %v1864, %v1858
  %v1870 = vcombine.high %v1324, %v1324
  %v1872 = vunpack.c.l.s4 1966171168
  %v1873 = vunpack.c.0.s8 %v1872
  %v1874 = vlaneseq
  %v1875 = vshrl.u32 %v1874, 7
  %v1876 = vsub.s32 %v1873, %v1875
  %v1877 = vrot.slane %v1324, %v1876
  %v1879 = vunpack.c.l.s4 1966171168
  %v1880 = vunpack.c.0.s8 %v1879
  %v1881 = vlaneseq
  %v1882 = vshrl.u32 %v1881, 7
  %v1883 = vsub.s32 %v1880, %v1882
  %v1884 = vrot.slane %v1870, %v1883
  %v1885 = vcombine.high %v1877, %v1877
  %v1886 = vcombine.high %v1884, %v1884
  %v1888 = vunpack.c.l.s4 1966171168
  %v1889 = vunpack.c.0.s8 %v1888
  %v1890 = vlaneseq
  %v1891 = vshrl.u32 %v1890, 7
  %v1892 = vsub.s32 %v1889, %v1891
  %v1893 = vrot.slane %v1877, %v1892
  %v1895 = vunpack.c.l.s4 1966171168
  %v1896 = vunpack.c.0.s8 %v1895
  %v1897 = vlaneseq
  %v1898 = vshrl.u32 %v1897, 7
  %v1899 = vsub.s32 %v1896, %v1898
  %v1900 = vrot.slane %v1884, %v1899
  %v1902 = vunpack.c.l.s4 1966171168
  %v1903 = vunpack.c.0.s8 %v1902
  %v1904 = vlaneseq
  %v1905 = vshrl.u32 %v1904, 7
  %v1906 = vsub.s32 %v1903, %v1905
  %v1907 = vrot.slane %v1885, %v1906
  %v1909 = vunpack.c.l.s4 1966171168
  %v1910 = vunpack.c.0.s8 %v1909
  %v1911 = vlaneseq
  %v1912 = vshrl.u32 %v1911, 7
  %v1913 = vsub.s32 %v1910, %v1912
  %v1914 = vrot.slane %v1886, %v1913
  %v1915 = vcombine.high %v1893, %v1893
  %v1916 = vcombine.high %v1900, %v1900
  %v1917 = vcombine.high %v1907, %v1907
  %v1918 = vcombine.high %v1914, %v1914
  %v1919 = vcombine.high %v1325, %v1325
  %v1921 = vunpack.c.l.s4 1966171168
  %v1922 = vunpack.c.0.s8 %v1921
  %v1923 = vlaneseq
  %v1924 = vshrl.u32 %v1923, 7
  %v1925 = vsub.s32 %v1922, %v1924
  %v1926 = vrot.slane %v1325, %v1925
  %v1928 = vunpack.c.l.s4 1966171168
  %v1929 = vunpack.c.0.s8 %v1928
  %v1930 = vlaneseq
  %v1931 = vshrl.u32 %v1930, 7
  %v1932 = vsub.s32 %v1929, %v1931
  %v1933 = vrot.slane %v1919, %v1932
  %v1934 = vcombine.high %v1926, %v1926
  %v1935 = vcombine.high %v1933, %v1933
  %v1937 = vunpack.c.l.s4 1966171168
  %v1938 = vunpack.c.0.s8 %v1937
  %v1939 = vlaneseq
  %v1940 = vshrl.u32 %v1939, 7
  %v1941 = vsub.s32 %v1938, %v1940
  %v1942 = vrot.slane %v1926, %v1941
  %v1944 = vunpack.c.l.s4 1966171168
  %v1945 = vunpack.c.0.s8 %v1944
  %v1946 = vlaneseq
  %v1947 = vshrl.u32 %v1946, 7
  %v1948 = vsub.s32 %v1945, %v1947
  %v1949 = vrot.slane %v1933, %v1948
  %v1951 = vunpack.c.l.s4 1966171168
  %v1952 = vunpack.c.0.s8 %v1951
  %v1953 = vlaneseq
  %v1954 = vshrl.u32 %v1953, 7
  %v1955 = vsub.s32 %v1952, %v1954
  %v1956 = vrot.slane %v1934, %v1955
  %v1958 = vunpack.c.l.s4 1966171168
  %v1959 = vunpack.c.0.s8 %v1958
  %v1960 = vlaneseq
  %v1961 = vshrl.u32 %v1960, 7
  %v1962 = vsub.s32 %v1959, %v1961
  %v1963 = vrot.slane %v1935, %v1962
  %v1964 = vcombine.high %v1942, %v1942
  %v1965 = vcombine.high %v1949, %v1949
  %v1966 = vcombine.high %v1956, %v1956
  %v1967 = vcombine.high %v1963, %v1963
  %v1986 = vcombine.high %v1476, %v1476
  %v1988 = vunpack.c.l.s4 1966171168
  %v1989 = vunpack.c.0.s8 %v1988
  %v1990 = vlaneseq
  %v1991 = vshrl.u32 %v1990, 7
  %v1992 = vsub.s32 %v1989, %v1991
  %v1993 = vrot.slane %v1476, %v1992
  %v1995 = vunpack.c.l.s4 1966171168
  %v1996 = vunpack.c.0.s8 %v1995
  %v1997 = vlaneseq
  %v1998 = vshrl.u32 %v1997, 7
  %v1999 = vsub.s32 %v1996, %v1998
  %v2000 = vrot.slane %v1986, %v1999
  %v2001 = vcombine.high %v1993, %v1993
  %v2002 = vcombine.high %v2000, %v2000
  %v2004 = vunpack.c.l.s4 1966171168
  %v2005 = vunpack.c.0.s8 %v2004
  %v2006 = vlaneseq
  %v2007 = vshrl.u32 %v2006, 7
  %v2008 = vsub.s32 %v2005, %v2007
  %v2009 = vrot.slane %v1993, %v2008
  %v2011 = vunpack.c.l.s4 1966171168
  %v2012 = vunpack.c.0.s8 %v2011
  %v2013 = vlaneseq
  %v2014 = vshrl.u32 %v2013, 7
  %v2015 = vsub.s32 %v2012, %v2014
  %v2016 = vrot.slane %v2000, %v2015
  %v2018 = vunpack.c.l.s4 1966171168
  %v2019 = vunpack.c.0.s8 %v2018
  %v2020 = vlaneseq
  %v2021 = vshrl.u32 %v2020, 7
  %v2022 = vsub.s32 %v2019, %v2021
  %v2023 = vrot.slane %v2001, %v2022
  %v2025 = vunpack.c.l.s4 1966171168
  %v2026 = vunpack.c.0.s8 %v2025
  %v2027 = vlaneseq
  %v2028 = vshrl.u32 %v2027, 7
  %v2029 = vsub.s32 %v2026, %v2028
  %v2030 = vrot.slane %v2002, %v2029
  %v2031 = vcombine.high %v2009, %v2009
  %v2032 = vcombine.high %v2016, %v2016
  %v2033 = vcombine.high %v2023, %v2023
  %v2034 = vcombine.high %v2030, %v2030
  %v2035 = vcombine.high %v1477, %v1477
  %v2037 = vunpack.c.l.s4 1966171168
  %v2038 = vunpack.c.0.s8 %v2037
  %v2039 = vlaneseq
  %v2040 = vshrl.u32 %v2039, 7
  %v2041 = vsub.s32 %v2038, %v2040
  %v2042 = vrot.slane %v1477, %v2041
  %v2044 = vunpack.c.l.s4 1966171168
  %v2045 = vunpack.c.0.s8 %v2044
  %v2046 = vlaneseq
  %v2047 = vshrl.u32 %v2046, 7
  %v2048 = vsub.s32 %v2045, %v2047
  %v2049 = vrot.slane %v2035, %v2048
  %v2050 = vcombine.high %v2042, %v2042
  %v2051 = vcombine.high %v2049, %v2049
  %v2053 = vunpack.c.l.s4 1966171168
  %v2054 = vunpack.c.0.s8 %v2053
  %v2055 = vlaneseq
  %v2056 = vshrl.u32 %v2055, 7
  %v2057 = vsub.s32 %v2054, %v2056
  %v2058 = vrot.slane %v2042, %v2057
  %v2060 = vunpack.c.l.s4 1966171168
  %v2061 = vunpack.c.0.s8 %v2060
  %v2062 = vlaneseq
  %v2063 = vshrl.u32 %v2062, 7
  %v2064 = vsub.s32 %v2061, %v2063
  %v2065 = vrot.slane %v2049, %v2064
  %v2067 = vunpack.c.l.s4 1966171168
  %v2068 = vunpack.c.0.s8 %v2067
  %v2069 = vlaneseq
  %v2070 = vshrl.u32 %v2069, 7
  %v2071 = vsub.s32 %v2068, %v2070
  %v2072 = vrot.slane %v2050, %v2071
  %v2074 = vunpack.c.l.s4 1966171168
  %v2075 = vunpack.c.0.s8 %v2074
  %v2076 = vlaneseq
  %v2077 = vshrl.u32 %v2076, 7
  %v2078 = vsub.s32 %v2075, %v2077
  %v2079 = vrot.slane %v2051, %v2078
  %v2080 = vcombine.high %v2058, %v2058
  %v2081 = vcombine.high %v2065, %v2065
  %v2082 = vcombine.high %v2072, %v2072
  %v2083 = vcombine.high %v2079, %v2079
  %v2086 = vcombine.high %v1632, %v1632
  %v2088 = vunpack.c.l.s4 1966171168
  %v2089 = vunpack.c.0.s8 %v2088
  %v2090 = vlaneseq
  %v2091 = vshrl.u32 %v2090, 7
  %v2092 = vsub.s32 %v2089, %v2091
  %v2093 = vrot.slane %v1632, %v2092
  %v2095 = vunpack.c.l.s4 1966171168
  %v2096 = vunpack.c.0.s8 %v2095
  %v2097 = vlaneseq
  %v2098 = vshrl.u32 %v2097, 7
  %v2099 = vsub.s32 %v2096, %v2098
  %v2100 = vrot.slane %v2086, %v2099
  %v2101 = vcombine.high %v2093, %v2093
  %v2102 = vcombine.high %v2100, %v2100
  %v2104 = vunpack.c.l.s4 1966171168
  %v2105 = vunpack.c.0.s8 %v2104
  %v2106 = vlaneseq
  %v2107 = vshrl.u32 %v2106, 7
  %v2108 = vsub.s32 %v2105, %v2107
  %v2109 = vrot.slane %v2093, %v2108
  %v2111 = vunpack.c.l.s4 1966171168
  %v2112 = vunpack.c.0.s8 %v2111
  %v2113 = vlaneseq
  %v2114 = vshrl.u32 %v2113, 7
  %v2115 = vsub.s32 %v2112, %v2114
  %v2116 = vrot.slane %v2100, %v2115
  %v2118 = vunpack.c.l.s4 1966171168
  %v2119 = vunpack.c.0.s8 %v2118
  %v2120 = vlaneseq
  %v2121 = vshrl.u32 %v2120, 7
  %v2122 = vsub.s32 %v2119, %v2121
  %v2123 = vrot.slane %v2101, %v2122
  %v2125 = vunpack.c.l.s4 1966171168
  %v2126 = vunpack.c.0.s8 %v2125
  %v2127 = vlaneseq
  %v2128 = vshrl.u32 %v2127, 7
  %v2129 = vsub.s32 %v2126, %v2128
  %v2130 = vrot.slane %v2102, %v2129
  %v2131 = vcombine.high %v2109, %v2109
  %v2132 = vcombine.high %v2116, %v2116
  %v2133 = vcombine.high %v2123, %v2123
  %v2134 = vcombine.high %v2130, %v2130
  %v2135 = vcombine.high %v1633, %v1633
  %v2137 = vunpack.c.l.s4 1966171168
  %v2138 = vunpack.c.0.s8 %v2137
  %v2139 = vlaneseq
  %v2140 = vshrl.u32 %v2139, 7
  %v2141 = vsub.s32 %v2138, %v2140
  %v2142 = vrot.slane %v1633, %v2141
  %v2144 = vunpack.c.l.s4 1966171168
  %v2145 = vunpack.c.0.s8 %v2144
  %v2146 = vlaneseq
  %v2147 = vshrl.u32 %v2146, 7
  %v2148 = vsub.s32 %v2145, %v2147
  %v2149 = vrot.slane %v2135, %v2148
  %v2150 = vcombine.high %v2142, %v2142
  %v2151 = vcombine.high %v2149, %v2149
  %v2153 = vunpack.c.l.s4 1966171168
  %v2154 = vunpack.c.0.s8 %v2153
  %v2155 = vlaneseq
  %v2156 = vshrl.u32 %v2155, 7
  %v2157 = vsub.s32 %v2154, %v2156
  %v2158 = vrot.slane %v2142, %v2157
  %v2160 = vunpack.c.l.s4 1966171168
  %v2161 = vunpack.c.0.s8 %v2160
  %v2162 = vlaneseq
  %v2163 = vshrl.u32 %v2162, 7
  %v2164 = vsub.s32 %v2161, %v2163
  %v2165 = vrot.slane %v2149, %v2164
  %v2167 = vunpack.c.l.s4 1966171168
  %v2168 = vunpack.c.0.s8 %v2167
  %v2169 = vlaneseq
  %v2170 = vshrl.u32 %v2169, 7
  %v2171 = vsub.s32 %v2168, %v2170
  %v2172 = vrot.slane %v2150, %v2171
  %v2174 = vunpack.c.l.s4 1966171168
  %v2175 = vunpack.c.0.s8 %v2174
  %v2176 = vlaneseq
  %v2177 = vshrl.u32 %v2176, 7
  %v2178 = vsub.s32 %v2175, %v2177
  %v2179 = vrot.slane %v2151, %v2178
  %v2180 = vcombine.high %v2158, %v2158
  %v2181 = vcombine.high %v2165, %v2165
  %v2182 = vcombine.high %v2172, %v2172
  %v2183 = vcombine.high %v2179, %v2179
  %v2186 = vcombine.high %v1787, %v1787
  %v2188 = vunpack.c.l.s4 1966171168
  %v2189 = vunpack.c.0.s8 %v2188
  %v2190 = vlaneseq
  %v2191 = vshrl.u32 %v2190, 7
  %v2192 = vsub.s32 %v2189, %v2191
  %v2193 = vrot.slane %v1787, %v2192
  %v2195 = vunpack.c.l.s4 1966171168
  %v2196 = vunpack.c.0.s8 %v2195
  %v2197 = vlaneseq
  %v2198 = vshrl.u32 %v2197, 7
  %v2199 = vsub.s32 %v2196, %v2198
  %v2200 = vrot.slane %v2186, %v2199
  %v2201 = vcombine.high %v2193, %v2193
  %v2202 = vcombine.high %v2200, %v2200
  %v2204 = vunpack.c.l.s4 1966171168
  %v2205 = vunpack.c.0.s8 %v2204
  %v2206 = vlaneseq
  %v2207 = vshrl.u32 %v2206, 7
  %v2208 = vsub.s32 %v2205, %v2207
  %v2209 = vrot.slane %v2193, %v2208
  %v2211 = vunpack.c.l.s4 1966171168
  %v2212 = vunpack.c.0.s8 %v2211
  %v2213 = vlaneseq
  %v2214 = vshrl.u32 %v2213, 7
  %v2215 = vsub.s32 %v2212, %v2214
  %v2216 = vrot.slane %v2200, %v2215
  %v2218 = vunpack.c.l.s4 1966171168
  %v2219 = vunpack.c.0.s8 %v2218
  %v2220 = vlaneseq
  %v2221 = vshrl.u32 %v2220, 7
  %v2222 = vsub.s32 %v2219, %v2221
  %v2223 = vrot.slane %v2201, %v2222
  %v2225 = vunpack.c.l.s4 1966171168
  %v2226 = vunpack.c.0.s8 %v2225
  %v2227 = vlaneseq
  %v2228 = vshrl.u32 %v2227, 7
  %v2229 = vsub.s32 %v2226, %v2228
  %v2230 = vrot.slane %v2202, %v2229
  %v2231 = vcombine.high %v2209, %v2209
  %v2232 = vcombine.high %v2216, %v2216
  %v2233 = vcombine.high %v2223, %v2223
  %v2234 = vcombine.high %v2230, %v2230
  %v2235 = vcombine.high %v1788, %v1788
  %v2237 = vunpack.c.l.s4 1966171168
  %v2238 = vunpack.c.0.s8 %v2237
  %v2239 = vlaneseq
  %v2240 = vshrl.u32 %v2239, 7
  %v2241 = vsub.s32 %v2238, %v2240
  %v2242 = vrot.slane %v1788, %v2241
  %v2244 = vunpack.c.l.s4 1966171168
  %v2245 = vunpack.c.0.s8 %v2244
  %v2246 = vlaneseq
  %v2247 = vshrl.u32 %v2246, 7
  %v2248 = vsub.s32 %v2245, %v2247
  %v2249 = vrot.slane %v2235, %v2248
  %v2250 = vcombine.high %v2242, %v2242
  %v2251 = vcombine.high %v2249, %v2249
  %v2253 = vunpack.c.l.s4 1966171168
  %v2254 = vunpack.c.0.s8 %v2253
  %v2255 = vlaneseq
  %v2256 = vshrl.u32 %v2255, 7
  %v2257 = vsub.s32 %v2254, %v2256
  %v2258 = vrot.slane %v2242, %v2257
  %v2260 = vunpack.c.l.s4 1966171168
  %v2261 = vunpack.c.0.s8 %v2260
  %v2262 = vlaneseq
  %v2263 = vshrl.u32 %v2262, 7
  %v2264 = vsub.s32 %v2261, %v2263
  %v2265 = vrot.slane %v2249, %v2264
  %v2267 = vunpack.c.l.s4 1966171168
  %v2268 = vunpack.c.0.s8 %v2267
  %v2269 = vlaneseq
  %v2270 = vshrl.u32 %v2269, 7
  %v2271 = vsub.s32 %v2268, %v2270
  %v2272 = vrot.slane %v2250, %v2271
  %v2274 = vunpack.c.l.s4 1966171168
  %v2275 = vunpack.c.0.s8 %v2274
  %v2276 = vlaneseq
  %v2277 = vshrl.u32 %v2276, 7
  %v2278 = vsub.s32 %v2275, %v2277
  %v2279 = vrot.slane %v2251, %v2278
  %v2280 = vcombine.high %v2258, %v2258
  %v2281 = vcombine.high %v2265, %v2265
  %v2282 = vcombine.high %v2272, %v2272
  %v2283 = vcombine.high %v2279, %v2279
  %v2284 = vlaneseq
  %v2285 = vshrl.u32 %v2284, 7
  %v2286 = vsub.s32 0, %v2285
  %v2287 = vrot.slane %v2009, %v2286
  %v2288 = vlaneseq
  %v2289 = vshrl.u32 %v2288, 7
  %v2290 = vsub.s32 0, %v2289
  %v2291 = vrot.slane %v2023, %v2290
  %v2292 = vlaneseq
  %v2293 = vshrl.u32 %v2292, 7
  %v2294 = vsub.s32 0, %v2293
  %v2295 = vrot.slane %v2031, %v2294
  %v2296 = vlaneseq
  %v2297 = vshrl.u32 %v2296, 7
  %v2298 = vsub.s32 0, %v2297
  %v2299 = vrot.slane %v2033, %v2298
  %v2300 = vlaneseq
  %v2301 = vshrl.u32 %v2300, 7
  %v2302 = vsub.s32 0, %v2301
  %v2303 = vrot.slane %v2016, %v2302
  %v2304 = vlaneseq
  %v2305 = vshrl.u32 %v2304, 7
  %v2306 = vsub.s32 0, %v2305
  %v2307 = vrot.slane %v2030, %v2306
  %v2308 = vlaneseq
  %v2309 = vshrl.u32 %v2308, 7
  %v2310 = vsub.s32 0, %v2309
  %v2311 = vrot.slane %v2032, %v2310
  %v2312 = vlaneseq
  %v2313 = vshrl.u32 %v2312, 7
  %v2314 = vsub.s32 0, %v2313
  %v2315 = vrot.slane %v2034, %v2314
  %v2316 = vlaneseq
  %v2317 = vshrl.u32 %v2316, 7
  %v2318 = vsub.s32 0, %v2317
  %v2319 = vrot.slane %v2058, %v2318
  %v2320 = vlaneseq
  %v2321 = vshrl.u32 %v2320, 7
  %v2322 = vsub.s32 0, %v2321
  %v2323 = vrot.slane %v2072, %v2322
  %v2324 = vlaneseq
  %v2325 = vshrl.u32 %v2324, 7
  %v2326 = vsub.s32 0, %v2325
  %v2327 = vrot.slane %v2080, %v2326
  %v2328 = vlaneseq
  %v2329 = vshrl.u32 %v2328, 7
  %v2330 = vsub.s32 0, %v2329
  %v2331 = vrot.slane %v2082, %v2330
  %v2332 = vlaneseq
  %v2333 = vshrl.u32 %v2332, 7
  %v2334 = vsub.s32 0, %v2333
  %v2335 = vrot.slane %v2065, %v2334
  %v2336 = vlaneseq
  %v2337 = vshrl.u32 %v2336, 7
  %v2338 = vsub.s32 0, %v2337
  %v2339 = vrot.slane %v2079, %v2338
  %v2340 = vlaneseq
  %v2341 = vshrl.u32 %v2340, 7
  %v2342 = vsub.s32 0, %v2341
  %v2343 = vrot.slane %v2081, %v2342
  %v2344 = vlaneseq
  %v2345 = vshrl.u32 %v2344, 7
  %v2346 = vsub.s32 0, %v2345
  %v2347 = vrot.slane %v2083, %v2346
  %v2364 = vlaneseq
  %v2365 = vshrl.u32 %v2364, 7
  %v2366 = vsub.s32 0, %v2365
  %v2367 = vrot.slane %v2109, %v2366
  %v2368 = vlaneseq
  %v2369 = vshrl.u32 %v2368, 7
  %v2370 = vsub.s32 0, %v2369
  %v2371 = vrot.slane %v2123, %v2370
  %v2372 = vlaneseq
  %v2373 = vshrl.u32 %v2372, 7
  %v2374 = vsub.s32 0, %v2373
  %v2375 = vrot.slane %v2131, %v2374
  %v2376 = vlaneseq
  %v2377 = vshrl.u32 %v2376, 7
  %v2378 = vsub.s32 0, %v2377
  %v2379 = vrot.slane %v2133, %v2378
  %v2380 = vlaneseq
  %v2381 = vshrl.u32 %v2380, 7
  %v2382 = vsub.s32 0, %v2381
  %v2383 = vrot.slane %v2116, %v2382
  %v2384 = vlaneseq
  %v2385 = vshrl.u32 %v2384, 7
  %v2386 = vsub.s32 0, %v2385
  %v2387 = vrot.slane %v2130, %v2386
  %v2388 = vlaneseq
  %v2389 = vshrl.u32 %v2388, 7
  %v2390 = vsub.s32 0, %v2389
  %v2391 = vrot.slane %v2132, %v2390
  %v2392 = vlaneseq
  %v2393 = vshrl.u32 %v2392, 7
  %v2394 = vsub.s32 0, %v2393
  %v2395 = vrot.slane %v2134, %v2394
  %v2396 = vlaneseq
  %v2397 = vshrl.u32 %v2396, 7
  %v2398 = vsub.s32 0, %v2397
  %v2399 = vrot.slane %v2158, %v2398
  %v2400 = vlaneseq
  %v2401 = vshrl.u32 %v2400, 7
  %v2402 = vsub.s32 0, %v2401
  %v2403 = vrot.slane %v2172, %v2402
  %v2404 = vlaneseq
  %v2405 = vshrl.u32 %v2404, 7
  %v2406 = vsub.s32 0, %v2405
  %v2407 = vrot.slane %v2180, %v2406
  %v2408 = vlaneseq
  %v2409 = vshrl.u32 %v2408, 7
  %v2410 = vsub.s32 0, %v2409
  %v2411 = vrot.slane %v2182, %v2410
  %v2412 = vlaneseq
  %v2413 = vshrl.u32 %v2412, 7
  %v2414 = vsub.s32 0, %v2413
  %v2415 = vrot.slane %v2165, %v2414
  %v2416 = vlaneseq
  %v2417 = vshrl.u32 %v2416, 7
  %v2418 = vsub.s32 0, %v2417
  %v2419 = vrot.slane %v2179, %v2418
  %v2420 = vlaneseq
  %v2421 = vshrl.u32 %v2420, 7
  %v2422 = vsub.s32 0, %v2421
  %v2423 = vrot.slane %v2181, %v2422
  %v2424 = vlaneseq
  %v2425 = vshrl.u32 %v2424, 7
  %v2426 = vsub.s32 0, %v2425
  %v2427 = vrot.slane %v2183, %v2426
  %v2444 = vlaneseq
  %v2445 = vshrl.u32 %v2444, 7
  %v2446 = vsub.s32 0, %v2445
  %v2447 = vrot.slane %v2209, %v2446
  %v2448 = vlaneseq
  %v2449 = vshrl.u32 %v2448, 7
  %v2450 = vsub.s32 0, %v2449
  %v2451 = vrot.slane %v2223, %v2450
  %v2452 = vlaneseq
  %v2453 = vshrl.u32 %v2452, 7
  %v2454 = vsub.s32 0, %v2453
  %v2455 = vrot.slane %v2231, %v2454
  %v2456 = vlaneseq
  %v2457 = vshrl.u32 %v2456, 7
  %v2458 = vsub.s32 0, %v2457
  %v2459 = vrot.slane %v2233, %v2458
  %v2460 = vlaneseq
  %v2461 = vshrl.u32 %v2460, 7
  %v2462 = vsub.s32 0, %v2461
  %v2463 = vrot.slane %v2216, %v2462
  %v2464 = vlaneseq
  %v2465 = vshrl.u32 %v2464, 7
  %v2466 = vsub.s32 0, %v2465
  %v2467 = vrot.slane %v2230, %v2466
  %v2468 = vlaneseq
  %v2469 = vshrl.u32 %v2468, 7
  %v2470 = vsub.s32 0, %v2469
  %v2471 = vrot.slane %v2232, %v2470
  %v2472 = vlaneseq
  %v2473 = vshrl.u32 %v2472, 7
  %v2474 = vsub.s32 0, %v2473
  %v2475 = vrot.slane %v2234, %v2474
  %v2476 = vlaneseq
  %v2477 = vshrl.u32 %v2476, 7
  %v2478 = vsub.s32 0, %v2477
  %v2479 = vrot.slane %v2258, %v2478
  %v2480 = vlaneseq
  %v2481 = vshrl.u32 %v2480, 7
  %v2482 = vsub.s32 0, %v2481
  %v2483 = vrot.slane %v2272, %v2482
  %v2484 = vlaneseq
  %v2485 = vshrl.u32 %v2484, 7
  %v2486 = vsub.s32 0, %v2485
  %v2487 = vrot.slane %v2280, %v2486
  %v2488 = vlaneseq
  %v2489 = vshrl.u32 %v2488, 7
  %v2490 = vsub.s32 0, %v2489
  %v2491 = vrot.slane %v2282, %v2490
  %v2492 = vlaneseq
  %v2493 = vshrl.u32 %v2492, 7
  %v2494 = vsub.s32 0, %v2493
  %v2495 = vrot.slane %v2265, %v2494
  %v2496 = vlaneseq
  %v2497 = vshrl.u32 %v2496, 7
  %v2498 = vsub.s32 0, %v2497
  %v2499 = vrot.slane %v2279, %v2498
  %v2500 = vlaneseq
  %v2501 = vshrl.u32 %v2500, 7
  %v2502 = vsub.s32 0, %v2501
  %v2503 = vrot.slane %v2281, %v2502
  %v2504 = vlaneseq
  %v2505 = vshrl.u32 %v2504, 7
  %v2506 = vsub.s32 0, %v2505
  %v2507 = vrot.slane %v2283, %v2506
  %vm2524 = vcmask 1040384
  %v2525 = vsel %vm2524, %v1893, %v2287
  %v2526 = vsel %vm2524, %v1907, %v2291
  %v2527 = vsel %vm2524, %v1915, %v2295
  %v2528 = vsel %vm2524, %v1917, %v2299
  %v2529 = vsel %vm2524, %v1900, %v2303
  %v2530 = vsel %vm2524, %v1914, %v2307
  %v2531 = vsel %vm2524, %v1916, %v2311
  %v2532 = vsel %vm2524, %v1918, %v2315
  %v2533 = vsel %vm2524, %v1942, %v2319
  %v2534 = vsel %vm2524, %v1956, %v2323
  %v2535 = vsel %vm2524, %v1964, %v2327
  %v2536 = vsel %vm2524, %v1966, %v2331
  %v2537 = vsel %vm2524, %v1949, %v2335
  %v2538 = vsel %vm2524, %v1963, %v2339
  %v2539 = vsel %vm2524, %v1965, %v2343
  %v2540 = vsel %vm2524, %v1967, %v2347
  %vm2541 = vcmask 1041408
  %v2542 = vsel %vm2541, %v2525, %v2367
  %v2543 = vsel %vm2541, %v2526, %v2371
  %v2544 = vsel %vm2541, %v2527, %v2375
  %v2545 = vsel %vm2541, %v2528, %v2379
  %v2546 = vsel %vm2541, %v2529, %v2383
  %v2547 = vsel %vm2541, %v2530, %v2387
  %v2548 = vsel %vm2541, %v2531, %v2391
  %v2549 = vsel %vm2541, %v2532, %v2395
  %v2550 = vsel %vm2541, %v2533, %v2399
  %v2551 = vsel %vm2541, %v2534, %v2403
  %v2552 = vsel %vm2541, %v2535, %v2407
  %v2553 = vsel %vm2541, %v2536, %v2411
  %v2554 = vsel %vm2541, %v2537, %v2415
  %v2555 = vsel %vm2541, %v2538, %v2419
  %v2556 = vsel %vm2541, %v2539, %v2423
  %v2557 = vsel %vm2541, %v2540, %v2427
  %vm2558 = vcmask 1042432
  %v2559 = vsel %vm2558, %v2542, %v2447
  %v2560 = vsel %vm2558, %v2543, %v2451
  %v2561 = vsel %vm2558, %v2544, %v2455
  %v2562 = vsel %vm2558, %v2545, %v2459
  %v2563 = vsel %vm2558, %v2546, %v2463
  %v2564 = vsel %vm2558, %v2547, %v2467
  %v2565 = vsel %vm2558, %v2548, %v2471
  %v2566 = vsel %vm2558, %v2549, %v2475
  %v2567 = vsel %vm2558, %v2550, %v2479
  %v2568 = vsel %vm2558, %v2551, %v2483
  %v2569 = vsel %vm2558, %v2552, %v2487
  %v2570 = vsel %vm2558, %v2553, %v2491
  %v2571 = vsel %vm2558, %v2554, %v2495
  %v2572 = vsel %vm2558, %v2555, %v2499
  %v2573 = vsel %vm2558, %v2556, %v2503
  %v2574 = vsel %vm2558, %v2557, %v2507
  %v2575 = vpack.c.bf16 %v2559, %v2559
  %v2576 = vpack.c.bf16 %v2560, %v2560
  %v2577 = vpack.c.bf16 %v2561, %v2561
  %v2578 = vpack.c.bf16 %v2562, %v2562
  %v2579 = vpack.c.bf16 %v2563, %v2563
  %v2580 = vpack.c.bf16 %v2564, %v2564
  %v2581 = vpack.c.bf16 %v2565, %v2565
  %v2582 = vpack.c.bf16 %v2566, %v2566
  %v2583 = vpack.c.bf16 %v2567, %v2567
  %v2584 = vpack.c.bf16 %v2568, %v2568
  %v2585 = vpack.c.bf16 %v2569, %v2569
  %v2586 = vpack.c.bf16 %v2570, %v2570
  %v2587 = vpack.c.bf16 %v2571, %v2571
  %v2588 = vpack.c.bf16 %v2572, %v2572
  %v2589 = vpack.c.bf16 %v2573, %v2573
  %v2590 = vpack.c.bf16 %v2574, %v2574
  %v2593 = vsel %vm1253, %v2575, 0
  %2595 = vmatprep.subr.bf16.mxu0 0
  %2596 = vmatpush1.bf16.msra.mxu0 %v384
  %2597 = vmatprep.subr.bf16.mxu0 0
  %2598 = vmatpush1.bf16.msra.mxu0 0
  %2599 = vmatprep.subr.bf16.mxu0 0
  %2600 = vmatpush1.bf16.msra.mxu0 0
  %2601 = vmatprep.subr.bf16.mxu0 0
  %2602 = vmatpush1.bf16.msra.mxu0 0
  %2603 = vmatprep.subr.bf16.mxu0 0
  %2604 = vmatpush1.bf16.msra.mxu0 0
  %2605 = vmatprep.subr.bf16.mxu0 0
  %2606 = vmatpush1.bf16.msra.mxu0 0
  %2607 = vmatprep.subr.bf16.mxu0 0
  %2608 = vmatpush1.bf16.msra.mxu0 0
  %2609 = vmatprep.subr.bf16.mxu0 0
  %2610 = vmatpush1.bf16.msra.mxu0 0
  %2611 = vmatprep.subr.bf16.mxu0 0
  %2612 = vmatpush1.bf16.msra.mxu0 0
  %2613 = vmatprep.subr.bf16.mxu0 0
  %2614 = vmatpush1.bf16.msra.mxu0 0
  %2615 = vmatprep.subr.bf16.mxu0 0
  %2616 = vmatpush1.bf16.msra.mxu0 0
  %2617 = vmatprep.subr.bf16.mxu0 0
  %2618 = vmatpush1.bf16.msra.mxu0 0
  %2619 = vmatprep.subr.bf16.mxu0 0
  %2620 = vmatpush1.bf16.msra.mxu0 0
  %2621 = vmatprep.subr.bf16.mxu0 0
  %2622 = vmatpush1.bf16.msra.mxu0 0
  %2623 = vmatprep.subr.bf16.mxu0 0
  %2624 = vmatpush1.bf16.msra.mxu0 0
  %2625 = vmatprep.subr.bf16.mxu0 0
  %2626 = vmatpush1.bf16.msra.mxu0 0
  %2627 = vmatprep.mubr.bf16.mxu0 0
  %2628 = vmatmul.mubr.bf16.gmra.mrb[0].mxu0 %v2593
  %v2629 = vpop.f32.mrb[0].mxu0
  %v2630 = vadd.f32 0.0, %v2629
  %v2631 = vpop.f32.mrb[0].mxu0
  %v2632 = vpop.f32.mrb[0].mxu0
  %v2633 = vpop.f32.mrb[0].mxu0
  %2634 = vdwg.mxu0
  %v2637 = vsel %vm1253, %v2576, 0
  %2639 = vmatprep.subr.bf16.mxu0 0
  %2640 = vmatpush1.bf16.msra.mxu0 %v436
  %2641 = vmatprep.subr.bf16.mxu0 0
  %2642 = vmatpush1.bf16.msra.mxu0 0
  %2643 = vmatprep.subr.bf16.mxu0 0
  %2644 = vmatpush1.bf16.msra.mxu0 0
  %2645 = vmatprep.subr.bf16.mxu0 0
  %2646 = vmatpush1.bf16.msra.mxu0 0
  %2647 = vmatprep.subr.bf16.mxu0 0
  %2648 = vmatpush1.bf16.msra.mxu0 0
  %2649 = vmatprep.subr.bf16.mxu0 0
  %2650 = vmatpush1.bf16.msra.mxu0 0
  %2651 = vmatprep.subr.bf16.mxu0 0
  %2652 = vmatpush1.bf16.msra.mxu0 0
  %2653 = vmatprep.subr.bf16.mxu0 0
  %2654 = vmatpush1.bf16.msra.mxu0 0
  %2655 = vmatprep.subr.bf16.mxu0 0
  %2656 = vmatpush1.bf16.msra.mxu0 0
  %2657 = vmatprep.subr.bf16.mxu0 0
  %2658 = vmatpush1.bf16.msra.mxu0 0
  %2659 = vmatprep.subr.bf16.mxu0 0
  %2660 = vmatpush1.bf16.msra.mxu0 0
  %2661 = vmatprep.subr.bf16.mxu0 0
  %2662 = vmatpush1.bf16.msra.mxu0 0
  %2663 = vmatprep.subr.bf16.mxu0 0
  %2664 = vmatpush1.bf16.msra.mxu0 0
  %2665 = vmatprep.subr.bf16.mxu0 0
  %2666 = vmatpush1.bf16.msra.mxu0 0
  %2667 = vmatprep.subr.bf16.mxu0 0
  %2668 = vmatpush1.bf16.msra.mxu0 0
  %2669 = vmatprep.subr.bf16.mxu0 0
  %2670 = vmatpush1.bf16.msra.mxu0 0
  %2671 = vmatprep.mubr.bf16.mxu0 0
  %2672 = vmatmul.mubr.bf16.gmra.mrb[0].mxu0 %v2637
  %v2673 = vpop.f32.mrb[0].mxu0
  %v2674 = vadd.f32 0.0, %v2673
  %v2675 = vpop.f32.mrb[0].mxu0
  %v2676 = vpop.f32.mrb[0].mxu0
  %v2677 = vpop.f32.mrb[0].mxu0
  %2678 = vdwg.mxu0
  %v2681 = vsel %vm1253, %v2577, 0
  %2683 = vmatprep.subr.bf16.mxu0 0
  %2684 = vmatpush1.bf16.msra.mxu0 %v487
  %2685 = vmatprep.subr.bf16.mxu0 0
  %2686 = vmatpush1.bf16.msra.mxu0 0
  %2687 = vmatprep.subr.bf16.mxu0 0
  %2688 = vmatpush1.bf16.msra.mxu0 0
  %2689 = vmatprep.subr.bf16.mxu0 0
  %2690 = vmatpush1.bf16.msra.mxu0 0
  %2691 = vmatprep.subr.bf16.mxu0 0
  %2692 = vmatpush1.bf16.msra.mxu0 0
  %2693 = vmatprep.subr.bf16.mxu0 0
  %2694 = vmatpush1.bf16.msra.mxu0 0
  %2695 = vmatprep.subr.bf16.mxu0 0
  %2696 = vmatpush1.bf16.msra.mxu0 0
  %2697 = vmatprep.subr.bf16.mxu0 0
  %2698 = vmatpush1.bf16.msra.mxu0 0
  %2699 = vmatprep.subr.bf16.mxu0 0
  %2700 = vmatpush1.bf16.msra.mxu0 0
  %2701 = vmatprep.subr.bf16.mxu0 0
  %2702 = vmatpush1.bf16.msra.mxu0 0
  %2703 = vmatprep.subr.bf16.mxu0 0
  %2704 = vmatpush1.bf16.msra.mxu0 0
  %2705 = vmatprep.subr.bf16.mxu0 0
  %2706 = vmatpush1.bf16.msra.mxu0 0
  %2707 = vmatprep.subr.bf16.mxu0 0
  %2708 = vmatpush1.bf16.msra.mxu0 0
  %2709 = vmatprep.subr.bf16.mxu0 0
  %2710 = vmatpush1.bf16.msra.mxu0 0
  %2711 = vmatprep.subr.bf16.mxu0 0
  %2712 = vmatpush1.bf16.msra.mxu0 0
  %2713 = vmatprep.subr.bf16.mxu0 0
  %2714 = vmatpush1.bf16.msra.mxu0 0
  %2715 = vmatprep.mubr.bf16.mxu0 0
  %2716 = vmatmul.mubr.bf16.gmra.mrb[0].mxu0 %v2681
  %v2717 = vpop.f32.mrb[0].mxu0
  %v2718 = vadd.f32 0.0, %v2717
  %v2719 = vpop.f32.mrb[0].mxu0
  %v2720 = vpop.f32.mrb[0].mxu0
  %v2721 = vpop.f32.mrb[0].mxu0
  %2722 = vdwg.mxu0
  %v2725 = vsel %vm1253, %v2578, 0
  %2727 = vmatprep.subr.bf16.mxu0 0
  %2728 = vmatpush1.bf16.msra.mxu0 %v538
  %2729 = vmatprep.subr.bf16.mxu0 0
  %2730 = vmatpush1.bf16.msra.mxu0 0
  %2731 = vmatprep.subr.bf16.mxu0 0
  %2732 = vmatpush1.bf16.msra.mxu0 0
  %2733 = vmatprep.subr.bf16.mxu0 0
  %2734 = vmatpush1.bf16.msra.mxu0 0
  %2735 = vmatprep.subr.bf16.mxu0 0
  %2736 = vmatpush1.bf16.msra.mxu0 0
  %2737 = vmatprep.subr.bf16.mxu0 0
  %2738 = vmatpush1.bf16.msra.mxu0 0
  %2739 = vmatprep.subr.bf16.mxu0 0
  %2740 = vmatpush1.bf16.msra.mxu0 0
  %2741 = vmatprep.subr.bf16.mxu0 0
  %2742 = vmatpush1.bf16.msra.mxu0 0
  %2743 = vmatprep.subr.bf16.mxu0 0
  %2744 = vmatpush1.bf16.msra.mxu0 0
  %2745 = vmatprep.subr.bf16.mxu0 0
  %2746 = vmatpush1.bf16.msra.mxu0 0
  %2747 = vmatprep.subr.bf16.mxu0 0
  %2748 = vmatpush1.bf16.msra.mxu0 0
  %2749 = vmatprep.subr.bf16.mxu0 0
  %2750 = vmatpush1.bf16.msra.mxu0 0
  %2751 = vmatprep.subr.bf16.mxu0 0
  %2752 = vmatpush1.bf16.msra.mxu0 0
  %2753 = vmatprep.subr.bf16.mxu0 0
  %2754 = vmatpush1.bf16.msra.mxu0 0
  %2755 = vmatprep.subr.bf16.mxu0 0
  %2756 = vmatpush1.bf16.msra.mxu0 0
  %2757 = vmatprep.subr.bf16.mxu0 0
  %2758 = vmatpush1.bf16.msra.mxu0 0
  %2759 = vmatprep.mubr.bf16.mxu0 0
  %2760 = vmatmul.mubr.bf16.gmra.mrb[0].mxu0 %v2725
  %v2761 = vpop.f32.mrb[0].mxu0
  %v2762 = vadd.f32 0.0, %v2761
  %v2763 = vpop.f32.mrb[0].mxu0
  %v2764 = vpop.f32.mrb[0].mxu0
  %v2765 = vpop.f32.mrb[0].mxu0
  %2766 = vdwg.mxu0
  %v2769 = vsel %vm1253, %v2579, 0
  %2771 = vmatprep.subr.bf16.mxu0 0
  %2772 = vmatpush1.bf16.msra.mxu0 %v589
  %2773 = vmatprep.subr.bf16.mxu0 0
  %2774 = vmatpush1.bf16.msra.mxu0 0
  %2775 = vmatprep.subr.bf16.mxu0 0
  %2776 = vmatpush1.bf16.msra.mxu0 0
  %2777 = vmatprep.subr.bf16.mxu0 0
  %2778 = vmatpush1.bf16.msra.mxu0 0
  %2779 = vmatprep.subr.bf16.mxu0 0
  %2780 = vmatpush1.bf16.msra.mxu0 0
  %2781 = vmatprep.subr.bf16.mxu0 0
  %2782 = vmatpush1.bf16.msra.mxu0 0
  %2783 = vmatprep.subr.bf16.mxu0 0
  %2784 = vmatpush1.bf16.msra.mxu0 0
  %2785 = vmatprep.subr.bf16.mxu0 0
  %2786 = vmatpush1.bf16.msra.mxu0 0
  %2787 = vmatprep.subr.bf16.mxu0 0
  %2788 = vmatpush1.bf16.msra.mxu0 0
  %2789 = vmatprep.subr.bf16.mxu0 0
  %2790 = vmatpush1.bf16.msra.mxu0 0
  %2791 = vmatprep.subr.bf16.mxu0 0
  %2792 = vmatpush1.bf16.msra.mxu0 0
  %2793 = vmatprep.subr.bf16.mxu0 0
  %2794 = vmatpush1.bf16.msra.mxu0 0
  %2795 = vmatprep.subr.bf16.mxu0 0
  %2796 = vmatpush1.bf16.msra.mxu0 0
  %2797 = vmatprep.subr.bf16.mxu0 0
  %2798 = vmatpush1.bf16.msra.mxu0 0
  %2799 = vmatprep.subr.bf16.mxu0 0
  %2800 = vmatpush1.bf16.msra.mxu0 0
  %2801 = vmatprep.subr.bf16.mxu0 0
  %2802 = vmatpush1.bf16.msra.mxu0 0
  %2803 = vmatprep.mubr.bf16.mxu0 0
  %2804 = vmatmul.mubr.bf16.gmra.mrb[0].mxu0 %v2769
  %v2805 = vpop.f32.mrb[0].mxu0
  %v2806 = vadd.f32 0.0, %v2805
  %v2807 = vpop.f32.mrb[0].mxu0
  %v2808 = vpop.f32.mrb[0].mxu0
  %v2809 = vpop.f32.mrb[0].mxu0
  %2810 = vdwg.mxu0
  %v2813 = vsel %vm1253, %v2580, 0
  %2815 = vmatprep.subr.bf16.mxu0 0
  %2816 = vmatpush1.bf16.msra.mxu0 %v640
  %2817 = vmatprep.subr.bf16.mxu0 0
  %2818 = vmatpush1.bf16.msra.mxu0 0
  %2819 = vmatprep.subr.bf16.mxu0 0
  %2820 = vmatpush1.bf16.msra.mxu0 0
  %2821 = vmatprep.subr.bf16.mxu0 0
  %2822 = vmatpush1.bf16.msra.mxu0 0
  %2823 = vmatprep.subr.bf16.mxu0 0
  %2824 = vmatpush1.bf16.msra.mxu0 0
  %2825 = vmatprep.subr.bf16.mxu0 0
  %2826 = vmatpush1.bf16.msra.mxu0 0
  %2827 = vmatprep.subr.bf16.mxu0 0
  %2828 = vmatpush1.bf16.msra.mxu0 0
  %2829 = vmatprep.subr.bf16.mxu0 0
  %2830 = vmatpush1.bf16.msra.mxu0 0
  %2831 = vmatprep.subr.bf16.mxu0 0
  %2832 = vmatpush1.bf16.msra.mxu0 0
  %2833 = vmatprep.subr.bf16.mxu0 0
  %2834 = vmatpush1.bf16.msra.mxu0 0
  %2835 = vmatprep.subr.bf16.mxu0 0
  %2836 = vmatpush1.bf16.msra.mxu0 0
  %2837 = vmatprep.subr.bf16.mxu0 0
  %2838 = vmatpush1.bf16.msra.mxu0 0
  %2839 = vmatprep.subr.bf16.mxu0 0
  %2840 = vmatpush1.bf16.msra.mxu0 0
  %2841 = vmatprep.subr.bf16.mxu0 0
  %2842 = vmatpush1.bf16.msra.mxu0 0
  %2843 = vmatprep.subr.bf16.mxu0 0
  %2844 = vmatpush1.bf16.msra.mxu0 0
  %2845 = vmatprep.subr.bf16.mxu0 0
  %2846 = vmatpush1.bf16.msra.mxu0 0
  %2847 = vmatprep.mubr.bf16.mxu0 0
  %2848 = vmatmul.mubr.bf16.gmra.mrb[0].mxu0 %v2813
  %v2849 = vpop.f32.mrb[0].mxu0
  %v2850 = vadd.f32 0.0, %v2849
  %v2851 = vpop.f32.mrb[0].mxu0
  %v2852 = vpop.f32.mrb[0].mxu0
  %v2853 = vpop.f32.mrb[0].mxu0
  %2854 = vdwg.mxu0
  %v2857 = vsel %vm1253, %v2581, 0
  %2859 = vmatprep.subr.bf16.mxu0 0
  %2860 = vmatpush1.bf16.msra.mxu0 %v691
  %2861 = vmatprep.subr.bf16.mxu0 0
  %2862 = vmatpush1.bf16.msra.mxu0 0
  %2863 = vmatprep.subr.bf16.mxu0 0
  %2864 = vmatpush1.bf16.msra.mxu0 0
  %2865 = vmatprep.subr.bf16.mxu0 0
  %2866 = vmatpush1.bf16.msra.mxu0 0
  %2867 = vmatprep.subr.bf16.mxu0 0
  %2868 = vmatpush1.bf16.msra.mxu0 0
  %2869 = vmatprep.subr.bf16.mxu0 0
  %2870 = vmatpush1.bf16.msra.mxu0 0
  %2871 = vmatprep.subr.bf16.mxu0 0
  %2872 = vmatpush1.bf16.msra.mxu0 0
  %2873 = vmatprep.subr.bf16.mxu0 0
  %2874 = vmatpush1.bf16.msra.mxu0 0
  %2875 = vmatprep.subr.bf16.mxu0 0
  %2876 = vmatpush1.bf16.msra.mxu0 0
  %2877 = vmatprep.subr.bf16.mxu0 0
  %2878 = vmatpush1.bf16.msra.mxu0 0
  %2879 = vmatprep.subr.bf16.mxu0 0
  %2880 = vmatpush1.bf16.msra.mxu0 0
  %2881 = vmatprep.subr.bf16.mxu0 0
  %2882 = vmatpush1.bf16.msra.mxu0 0
  %2883 = vmatprep.subr.bf16.mxu0 0
  %2884 = vmatpush1.bf16.msra.mxu0 0
  %2885 = vmatprep.subr.bf16.mxu0 0
  %2886 = vmatpush1.bf16.msra.mxu0 0
  %2887 = vmatprep.subr.bf16.mxu0 0
  %2888 = vmatpush1.bf16.msra.mxu0 0
  %2889 = vmatprep.subr.bf16.mxu0 0
  %2890 = vmatpush1.bf16.msra.mxu0 0
  %2891 = vmatprep.mubr.bf16.mxu0 0
  %2892 = vmatmul.mubr.bf16.gmra.mrb[0].mxu0 %v2857
  %v2893 = vpop.f32.mrb[0].mxu0
  %v2894 = vadd.f32 0.0, %v2893
  %v2895 = vpop.f32.mrb[0].mxu0
  %v2896 = vpop.f32.mrb[0].mxu0
  %v2897 = vpop.f32.mrb[0].mxu0
  %2898 = vdwg.mxu0
  %v2901 = vsel %vm1253, %v2582, 0
  %2903 = vmatprep.subr.bf16.mxu0 0
  %2904 = vmatpush1.bf16.msra.mxu0 %v742
  %2905 = vmatprep.subr.bf16.mxu0 0
  %2906 = vmatpush1.bf16.msra.mxu0 0
  %2907 = vmatprep.subr.bf16.mxu0 0
  %2908 = vmatpush1.bf16.msra.mxu0 0
  %2909 = vmatprep.subr.bf16.mxu0 0
  %2910 = vmatpush1.bf16.msra.mxu0 0
  %2911 = vmatprep.subr.bf16.mxu0 0
  %2912 = vmatpush1.bf16.msra.mxu0 0
  %2913 = vmatprep.subr.bf16.mxu0 0
  %2914 = vmatpush1.bf16.msra.mxu0 0
  %2915 = vmatprep.subr.bf16.mxu0 0
  %2916 = vmatpush1.bf16.msra.mxu0 0
  %2917 = vmatprep.subr.bf16.mxu0 0
  %2918 = vmatpush1.bf16.msra.mxu0 0
  %2919 = vmatprep.subr.bf16.mxu0 0
  %2920 = vmatpush1.bf16.msra.mxu0 0
  %2921 = vmatprep.subr.bf16.mxu0 0
  %2922 = vmatpush1.bf16.msra.mxu0 0
  %2923 = vmatprep.subr.bf16.mxu0 0
  %2924 = vmatpush1.bf16.msra.mxu0 0
  %2925 = vmatprep.subr.bf16.mxu0 0
  %2926 = vmatpush1.bf16.msra.mxu0 0
  %2927 = vmatprep.subr.bf16.mxu0 0
  %2928 = vmatpush1.bf16.msra.mxu0 0
  %2929 = vmatprep.subr.bf16.mxu0 0
  %2930 = vmatpush1.bf16.msra.mxu0 0
  %2931 = vmatprep.subr.bf16.mxu0 0
  %2932 = vmatpush1.bf16.msra.mxu0 0
  %2933 = vmatprep.subr.bf16.mxu0 0
  %2934 = vmatpush1.bf16.msra.mxu0 0
  %2935 = vmatprep.mubr.bf16.mxu0 0
  %2936 = vmatmul.mubr.bf16.gmra.mrb[0].mxu0 %v2901
  %v2937 = vpop.f32.mrb[0].mxu0
  %v2938 = vadd.f32 0.0, %v2937
  %v2939 = vpop.f32.mrb[0].mxu0
  %v2940 = vpop.f32.mrb[0].mxu0
  %v2941 = vpop.f32.mrb[0].mxu0
  %2942 = vdwg.mxu0
  %v2945 = vsel %vm1253, %v2583, 0
  %2947 = vmatprep.subr.bf16.mxu0 0
  %2948 = vmatpush1.bf16.msra.mxu0 %v793
  %2949 = vmatprep.subr.bf16.mxu0 0
  %2950 = vmatpush1.bf16.msra.mxu0 0
  %2951 = vmatprep.subr.bf16.mxu0 0
  %2952 = vmatpush1.bf16.msra.mxu0 0
  %2953 = vmatprep.subr.bf16.mxu0 0
  %2954 = vmatpush1.bf16.msra.mxu0 0
  %2955 = vmatprep.subr.bf16.mxu0 0
  %2956 = vmatpush1.bf16.msra.mxu0 0
  %2957 = vmatprep.subr.bf16.mxu0 0
  %2958 = vmatpush1.bf16.msra.mxu0 0
  %2959 = vmatprep.subr.bf16.mxu0 0
  %2960 = vmatpush1.bf16.msra.mxu0 0
  %2961 = vmatprep.subr.bf16.mxu0 0
  %2962 = vmatpush1.bf16.msra.mxu0 0
  %2963 = vmatprep.subr.bf16.mxu0 0
  %2964 = vmatpush1.bf16.msra.mxu0 0
  %2965 = vmatprep.subr.bf16.mxu0 0
  %2966 = vmatpush1.bf16.msra.mxu0 0
  %2967 = vmatprep.subr.bf16.mxu0 0
  %2968 = vmatpush1.bf16.msra.mxu0 0
  %2969 = vmatprep.subr.bf16.mxu0 0
  %2970 = vmatpush1.bf16.msra.mxu0 0
  %2971 = vmatprep.subr.bf16.mxu0 0
  %2972 = vmatpush1.bf16.msra.mxu0 0
  %2973 = vmatprep.subr.bf16.mxu0 0
  %2974 = vmatpush1.bf16.msra.mxu0 0
  %2975 = vmatprep.subr.bf16.mxu0 0
  %2976 = vmatpush1.bf16.msra.mxu0 0
  %2977 = vmatprep.subr.bf16.mxu0 0
  %2978 = vmatpush1.bf16.msra.mxu0 0
  %2979 = vmatprep.mubr.bf16.mxu0 0
  %2980 = vmatmul.mubr.bf16.gmra.mrb[0].mxu0 %v2945
  %v2981 = vpop.f32.mrb[0].mxu0
  %v2982 = vadd.f32 0.0, %v2981
  %v2983 = vpop.f32.mrb[0].mxu0
  %v2984 = vpop.f32.mrb[0].mxu0
  %v2985 = vpop.f32.mrb[0].mxu0
  %2986 = vdwg.mxu0
  %v2989 = vsel %vm1253, %v2584, 0
  %2991 = vmatprep.subr.bf16.mxu0 0
  %2992 = vmatpush1.bf16.msra.mxu0 %v844
  %2993 = vmatprep.subr.bf16.mxu0 0
  %2994 = vmatpush1.bf16.msra.mxu0 0
  %2995 = vmatprep.subr.bf16.mxu0 0
  %2996 = vmatpush1.bf16.msra.mxu0 0
  %2997 = vmatprep.subr.bf16.mxu0 0
  %2998 = vmatpush1.bf16.msra.mxu0 0
  %2999 = vmatprep.subr.bf16.mxu0 0
  %3000 = vmatpush1.bf16.msra.mxu0 0
  %3001 = vmatprep.subr.bf16.mxu0 0
  %3002 = vmatpush1.bf16.msra.mxu0 0
  %3003 = vmatprep.subr.bf16.mxu0 0
  %3004 = vmatpush1.bf16.msra.mxu0 0
  %3005 = vmatprep.subr.bf16.mxu0 0
  %3006 = vmatpush1.bf16.msra.mxu0 0
  %3007 = vmatprep.subr.bf16.mxu0 0
  %3008 = vmatpush1.bf16.msra.mxu0 0
  %3009 = vmatprep.subr.bf16.mxu0 0
  %3010 = vmatpush1.bf16.msra.mxu0 0
  %3011 = vmatprep.subr.bf16.mxu0 0
  %3012 = vmatpush1.bf16.msra.mxu0 0
  %3013 = vmatprep.subr.bf16.mxu0 0
  %3014 = vmatpush1.bf16.msra.mxu0 0
  %3015 = vmatprep.subr.bf16.mxu0 0
  %3016 = vmatpush1.bf16.msra.mxu0 0
  %3017 = vmatprep.subr.bf16.mxu0 0
  %3018 = vmatpush1.bf16.msra.mxu0 0
  %3019 = vmatprep.subr.bf16.mxu0 0
  %3020 = vmatpush1.bf16.msra.mxu0 0
  %3021 = vmatprep.subr.bf16.mxu0 0
  %3022 = vmatpush1.bf16.msra.mxu0 0
  %3023 = vmatprep.mubr.bf16.mxu0 0
  %3024 = vmatmul.mubr.bf16.gmra.mrb[0].mxu0 %v2989
  %v3025 = vpop.f32.mrb[0].mxu0
  %v3026 = vadd.f32 0.0, %v3025
  %v3027 = vpop.f32.mrb[0].mxu0
  %v3028 = vpop.f32.mrb[0].mxu0
  %v3029 = vpop.f32.mrb[0].mxu0
  %3030 = vdwg.mxu0
  %v3033 = vsel %vm1253, %v2585, 0
  %3035 = vmatprep.subr.bf16.mxu0 0
  %3036 = vmatpush1.bf16.msra.mxu0 %v895
  %3037 = vmatprep.subr.bf16.mxu0 0
  %3038 = vmatpush1.bf16.msra.mxu0 0
  %3039 = vmatprep.subr.bf16.mxu0 0
  %3040 = vmatpush1.bf16.msra.mxu0 0
  %3041 = vmatprep.subr.bf16.mxu0 0
  %3042 = vmatpush1.bf16.msra.mxu0 0
  %3043 = vmatprep.subr.bf16.mxu0 0
  %3044 = vmatpush1.bf16.msra.mxu0 0
  %3045 = vmatprep.subr.bf16.mxu0 0
  %3046 = vmatpush1.bf16.msra.mxu0 0
  %3047 = vmatprep.subr.bf16.mxu0 0
  %3048 = vmatpush1.bf16.msra.mxu0 0
  %3049 = vmatprep.subr.bf16.mxu0 0
  %3050 = vmatpush1.bf16.msra.mxu0 0
  %3051 = vmatprep.subr.bf16.mxu0 0
  %3052 = vmatpush1.bf16.msra.mxu0 0
  %3053 = vmatprep.subr.bf16.mxu0 0
  %3054 = vmatpush1.bf16.msra.mxu0 0
  %3055 = vmatprep.subr.bf16.mxu0 0
  %3056 = vmatpush1.bf16.msra.mxu0 0
  %3057 = vmatprep.subr.bf16.mxu0 0
  %3058 = vmatpush1.bf16.msra.mxu0 0
  %3059 = vmatprep.subr.bf16.mxu0 0
  %3060 = vmatpush1.bf16.msra.mxu0 0
  %3061 = vmatprep.subr.bf16.mxu0 0
  %3062 = vmatpush1.bf16.msra.mxu0 0
  %3063 = vmatprep.subr.bf16.mxu0 0
  %3064 = vmatpush1.bf16.msra.mxu0 0
  %3065 = vmatprep.subr.bf16.mxu0 0
  %3066 = vmatpush1.bf16.msra.mxu0 0
  %3067 = vmatprep.mubr.bf16.mxu0 0
  %3068 = vmatmul.mubr.bf16.gmra.mrb[0].mxu0 %v3033
  %v3069 = vpop.f32.mrb[0].mxu0
  %v3070 = vadd.f32 0.0, %v3069
  %v3071 = vpop.f32.mrb[0].mxu0
  %v3072 = vpop.f32.mrb[0].mxu0
  %v3073 = vpop.f32.mrb[0].mxu0
  %3074 = vdwg.mxu0
  %v3077 = vsel %vm1253, %v2586, 0
  %3079 = vmatprep.subr.bf16.mxu0 0
  %3080 = vmatpush1.bf16.msra.mxu0 %v946
  %3081 = vmatprep.subr.bf16.mxu0 0
  %3082 = vmatpush1.bf16.msra.mxu0 0
  %3083 = vmatprep.subr.bf16.mxu0 0
  %3084 = vmatpush1.bf16.msra.mxu0 0
  %3085 = vmatprep.subr.bf16.mxu0 0
  %3086 = vmatpush1.bf16.msra.mxu0 0
  %3087 = vmatprep.subr.bf16.mxu0 0
  %3088 = vmatpush1.bf16.msra.mxu0 0
  %3089 = vmatprep.subr.bf16.mxu0 0
  %3090 = vmatpush1.bf16.msra.mxu0 0
  %3091 = vmatprep.subr.bf16.mxu0 0
  %3092 = vmatpush1.bf16.msra.mxu0 0
  %3093 = vmatprep.subr.bf16.mxu0 0
  %3094 = vmatpush1.bf16.msra.mxu0 0
  %3095 = vmatprep.subr.bf16.mxu0 0
  %3096 = vmatpush1.bf16.msra.mxu0 0
  %3097 = vmatprep.subr.bf16.mxu0 0
  %3098 = vmatpush1.bf16.msra.mxu0 0
  %3099 = vmatprep.subr.bf16.mxu0 0
  %3100 = vmatpush1.bf16.msra.mxu0 0
  %3101 = vmatprep.subr.bf16.mxu0 0
  %3102 = vmatpush1.bf16.msra.mxu0 0
  %3103 = vmatprep.subr.bf16.mxu0 0
  %3104 = vmatpush1.bf16.msra.mxu0 0
  %3105 = vmatprep.subr.bf16.mxu0 0
  %3106 = vmatpush1.bf16.msra.mxu0 0
  %3107 = vmatprep.subr.bf16.mxu0 0
  %3108 = vmatpush1.bf16.msra.mxu0 0
  %3109 = vmatprep.subr.bf16.mxu0 0
  %3110 = vmatpush1.bf16.msra.mxu0 0
  %3111 = vmatprep.mubr.bf16.mxu0 0
  %3112 = vmatmul.mubr.bf16.gmra.mrb[0].mxu0 %v3077
  %v3113 = vpop.f32.mrb[0].mxu0
  %v3114 = vadd.f32 0.0, %v3113
  %v3115 = vpop.f32.mrb[0].mxu0
  %v3116 = vpop.f32.mrb[0].mxu0
  %v3117 = vpop.f32.mrb[0].mxu0
  %3118 = vdwg.mxu0
  %v3121 = vsel %vm1253, %v2587, 0
  %3123 = vmatprep.subr.bf16.mxu0 0
  %3124 = vmatpush1.bf16.msra.mxu0 %v997
  %3125 = vmatprep.subr.bf16.mxu0 0
  %3126 = vmatpush1.bf16.msra.mxu0 0
  %3127 = vmatprep.subr.bf16.mxu0 0
  %3128 = vmatpush1.bf16.msra.mxu0 0
  %3129 = vmatprep.subr.bf16.mxu0 0
  %3130 = vmatpush1.bf16.msra.mxu0 0
  %3131 = vmatprep.subr.bf16.mxu0 0
  %3132 = vmatpush1.bf16.msra.mxu0 0
  %3133 = vmatprep.subr.bf16.mxu0 0
  %3134 = vmatpush1.bf16.msra.mxu0 0
  %3135 = vmatprep.subr.bf16.mxu0 0
  %3136 = vmatpush1.bf16.msra.mxu0 0
  %3137 = vmatprep.subr.bf16.mxu0 0
  %3138 = vmatpush1.bf16.msra.mxu0 0
  %3139 = vmatprep.subr.bf16.mxu0 0
  %3140 = vmatpush1.bf16.msra.mxu0 0
  %3141 = vmatprep.subr.bf16.mxu0 0
  %3142 = vmatpush1.bf16.msra.mxu0 0
  %3143 = vmatprep.subr.bf16.mxu0 0
  %3144 = vmatpush1.bf16.msra.mxu0 0
  %3145 = vmatprep.subr.bf16.mxu0 0
  %3146 = vmatpush1.bf16.msra.mxu0 0
  %3147 = vmatprep.subr.bf16.mxu0 0
  %3148 = vmatpush1.bf16.msra.mxu0 0
  %3149 = vmatprep.subr.bf16.mxu0 0
  %3150 = vmatpush1.bf16.msra.mxu0 0
  %3151 = vmatprep.subr.bf16.mxu0 0
  %3152 = vmatpush1.bf16.msra.mxu0 0
  %3153 = vmatprep.subr.bf16.mxu0 0
  %3154 = vmatpush1.bf16.msra.mxu0 0
  %3155 = vmatprep.mubr.bf16.mxu0 0
  %3156 = vmatmul.mubr.bf16.gmra.mrb[0].mxu0 %v3121
  %v3157 = vpop.f32.mrb[0].mxu0
  %v3158 = vadd.f32 0.0, %v3157
  %v3159 = vpop.f32.mrb[0].mxu0
  %v3160 = vpop.f32.mrb[0].mxu0
  %v3161 = vpop.f32.mrb[0].mxu0
  %3162 = vdwg.mxu0
  %v3165 = vsel %vm1253, %v2588, 0
  %3167 = vmatprep.subr.bf16.mxu0 0
  %3168 = vmatpush1.bf16.msra.mxu0 %v1048
  %3169 = vmatprep.subr.bf16.mxu0 0
  %3170 = vmatpush1.bf16.msra.mxu0 0
  %3171 = vmatprep.subr.bf16.mxu0 0
  %3172 = vmatpush1.bf16.msra.mxu0 0
  %3173 = vmatprep.subr.bf16.mxu0 0
  %3174 = vmatpush1.bf16.msra.mxu0 0
  %3175 = vmatprep.subr.bf16.mxu0 0
  %3176 = vmatpush1.bf16.msra.mxu0 0
  %3177 = vmatprep.subr.bf16.mxu0 0
  %3178 = vmatpush1.bf16.msra.mxu0 0
  %3179 = vmatprep.subr.bf16.mxu0 0
  %3180 = vmatpush1.bf16.msra.mxu0 0
  %3181 = vmatprep.subr.bf16.mxu0 0
  %3182 = vmatpush1.bf16.msra.mxu0 0
  %3183 = vmatprep.subr.bf16.mxu0 0
  %3184 = vmatpush1.bf16.msra.mxu0 0
  %3185 = vmatprep.subr.bf16.mxu0 0
  %3186 = vmatpush1.bf16.msra.mxu0 0
  %3187 = vmatprep.subr.bf16.mxu0 0
  %3188 = vmatpush1.bf16.msra.mxu0 0
  %3189 = vmatprep.subr.bf16.mxu0 0
  %3190 = vmatpush1.bf16.msra.mxu0 0
  %3191 = vmatprep.subr.bf16.mxu0 0
  %3192 = vmatpush1.bf16.msra.mxu0 0
  %3193 = vmatprep.subr.bf16.mxu0 0
  %3194 = vmatpush1.bf16.msra.mxu0 0
  %3195 = vmatprep.subr.bf16.mxu0 0
  %3196 = vmatpush1.bf16.msra.mxu0 0
  %3197 = vmatprep.subr.bf16.mxu0 0
  %3198 = vmatpush1.bf16.msra.mxu0 0
  %3199 = vmatprep.mubr.bf16.mxu0 0
  %3200 = vmatmul.mubr.bf16.gmra.mrb[0].mxu0 %v3165
  %v3201 = vpop.f32.mrb[0].mxu0
  %v3202 = vadd.f32 0.0, %v3201
  %v3203 = vpop.f32.mrb[0].mxu0
  %v3204 = vpop.f32.mrb[0].mxu0
  %v3205 = vpop.f32.mrb[0].mxu0
  %3206 = vdwg.mxu0
  %v3209 = vsel %vm1253, %v2589, 0
  %3211 = vmatprep.subr.bf16.mxu0 0
  %3212 = vmatpush1.bf16.msra.mxu0 %v1099
  %3213 = vmatprep.subr.bf16.mxu0 0
  %3214 = vmatpush1.bf16.msra.mxu0 0
  %3215 = vmatprep.subr.bf16.mxu0 0
  %3216 = vmatpush1.bf16.msra.mxu0 0
  %3217 = vmatprep.subr.bf16.mxu0 0
  %3218 = vmatpush1.bf16.msra.mxu0 0
  %3219 = vmatprep.subr.bf16.mxu0 0
  %3220 = vmatpush1.bf16.msra.mxu0 0
  %3221 = vmatprep.subr.bf16.mxu0 0
  %3222 = vmatpush1.bf16.msra.mxu0 0
  %3223 = vmatprep.subr.bf16.mxu0 0
  %3224 = vmatpush1.bf16.msra.mxu0 0
  %3225 = vmatprep.subr.bf16.mxu0 0
  %3226 = vmatpush1.bf16.msra.mxu0 0
  %3227 = vmatprep.subr.bf16.mxu0 0
  %3228 = vmatpush1.bf16.msra.mxu0 0
  %3229 = vmatprep.subr.bf16.mxu0 0
  %3230 = vmatpush1.bf16.msra.mxu0 0
  %3231 = vmatprep.subr.bf16.mxu0 0
  %3232 = vmatpush1.bf16.msra.mxu0 0
  %3233 = vmatprep.subr.bf16.mxu0 0
  %3234 = vmatpush1.bf16.msra.mxu0 0
  %3235 = vmatprep.subr.bf16.mxu0 0
  %3236 = vmatpush1.bf16.msra.mxu0 0
  %3237 = vmatprep.subr.bf16.mxu0 0
  %3238 = vmatpush1.bf16.msra.mxu0 0
  %3239 = vmatprep.subr.bf16.mxu0 0
  %3240 = vmatpush1.bf16.msra.mxu0 0
  %3241 = vmatprep.subr.bf16.mxu0 0
  %3242 = vmatpush1.bf16.msra.mxu0 0
  %3243 = vmatprep.mubr.bf16.mxu0 0
  %3244 = vmatmul.mubr.bf16.gmra.mrb[0].mxu0 %v3209
  %v3245 = vpop.f32.mrb[0].mxu0
  %v3246 = vadd.f32 0.0, %v3245
  %v3247 = vpop.f32.mrb[0].mxu0
  %v3248 = vpop.f32.mrb[0].mxu0
  %v3249 = vpop.f32.mrb[0].mxu0
  %3250 = vdwg.mxu0
  %v3253 = vsel %vm1253, %v2590, 0
  %3255 = vmatprep.subr.bf16.mxu0 0
  %3256 = vmatpush1.bf16.msra.mxu0 %v1150
  %3257 = vmatprep.subr.bf16.mxu0 0
  %3258 = vmatpush1.bf16.msra.mxu0 0
  %3259 = vmatprep.subr.bf16.mxu0 0
  %3260 = vmatpush1.bf16.msra.mxu0 0
  %3261 = vmatprep.subr.bf16.mxu0 0
  %3262 = vmatpush1.bf16.msra.mxu0 0
  %3263 = vmatprep.subr.bf16.mxu0 0
  %3264 = vmatpush1.bf16.msra.mxu0 0
  %3265 = vmatprep.subr.bf16.mxu0 0
  %3266 = vmatpush1.bf16.msra.mxu0 0
  %3267 = vmatprep.subr.bf16.mxu0 0
  %3268 = vmatpush1.bf16.msra.mxu0 0
  %3269 = vmatprep.subr.bf16.mxu0 0
  %3270 = vmatpush1.bf16.msra.mxu0 0
  %3271 = vmatprep.subr.bf16.mxu0 0
  %3272 = vmatpush1.bf16.msra.mxu0 0
  %3273 = vmatprep.subr.bf16.mxu0 0
  %3274 = vmatpush1.bf16.msra.mxu0 0
  %3275 = vmatprep.subr.bf16.mxu0 0
  %3276 = vmatpush1.bf16.msra.mxu0 0
  %3277 = vmatprep.subr.bf16.mxu0 0
  %3278 = vmatpush1.bf16.msra.mxu0 0
  %3279 = vmatprep.subr.bf16.mxu0 0
  %3280 = vmatpush1.bf16.msra.mxu0 0
  %3281 = vmatprep.subr.bf16.mxu0 0
  %3282 = vmatpush1.bf16.msra.mxu0 0
  %3283 = vmatprep.subr.bf16.mxu0 0
  %3284 = vmatpush1.bf16.msra.mxu0 0
  %3285 = vmatprep.subr.bf16.mxu0 0
  %3286 = vmatpush1.bf16.msra.mxu0 0
  %3287 = vmatprep.mubr.bf16.mxu0 0
  %3288 = vmatmul.mubr.bf16.gmra.mrb[0].mxu0 %v3253
  %v3289 = vpop.f32.mrb[0].mxu0
  %v3290 = vadd.f32 0.0, %v3289
  %v3291 = vpop.f32.mrb[0].mxu0
  %v3292 = vpop.f32.mrb[0].mxu0
  %v3293 = vpop.f32.mrb[0].mxu0
  %3294 = vdwg.mxu0
  %v3295 = vcombine.low %v2630, %v2718
  %v3297 = vunpack.c.l.s4 1983009808
  %v3298 = vunpack.c.0.s8 %v3297
  %v3299 = vlaneseq
  %v3300 = vshrl.u32 %v3299, 7
  %v3301 = vsub.s32 %v3298, %v3300
  %v3302 = vrot.slane %v3295, %v3301
  %v3303 = vcombine.low %v2674, %v2762
  %v3305 = vunpack.c.l.s4 1983009808
  %v3306 = vunpack.c.0.s8 %v3305
  %v3307 = vlaneseq
  %v3308 = vshrl.u32 %v3307, 7
  %v3309 = vsub.s32 %v3306, %v3308
  %v3310 = vrot.slane %v3303, %v3309
  %v3311 = vcombine.low %v2806, %v2894
  %v3313 = vunpack.c.l.s4 1983009808
  %v3314 = vunpack.c.0.s8 %v3313
  %v3315 = vlaneseq
  %v3316 = vshrl.u32 %v3315, 7
  %v3317 = vsub.s32 %v3314, %v3316
  %v3318 = vrot.slane %v3311, %v3317
  %v3319 = vcombine.low %v2850, %v2938
  %v3321 = vunpack.c.l.s4 1983009808
  %v3322 = vunpack.c.0.s8 %v3321
  %v3323 = vlaneseq
  %v3324 = vshrl.u32 %v3323, 7
  %v3325 = vsub.s32 %v3322, %v3324
  %v3326 = vrot.slane %v3319, %v3325
  %v3327 = vcombine.low %v3302, %v3310
  %v3328 = vcombine.high %v3302, %v3310
  %v3330 = vunpack.c.l.s4 1934713408
  %v3331 = vunpack.c.0.s8 %v3330
  %v3332 = vlaneseq
  %v3333 = vshrl.u32 %v3332, 7
  %v3334 = vsub.s32 %v3331, %v3333
  %v3335 = vrot.slane %v3327, %v3334
  %v3337 = vunpack.c.l.s4 1934713408
  %v3338 = vunpack.c.0.s8 %v3337
  %v3339 = vlaneseq
  %v3340 = vshrl.u32 %v3339, 7
  %v3341 = vsub.s32 %v3338, %v3340
  %v3342 = vrot.slane %v3328, %v3341
  %v3343 = vcombine.low %v3318, %v3326
  %v3344 = vcombine.high %v3318, %v3326
  %v3346 = vunpack.c.l.s4 1934713408
  %v3347 = vunpack.c.0.s8 %v3346
  %v3348 = vlaneseq
  %v3349 = vshrl.u32 %v3348, 7
  %v3350 = vsub.s32 %v3347, %v3349
  %v3351 = vrot.slane %v3343, %v3350
  %v3353 = vunpack.c.l.s4 1934713408
  %v3354 = vunpack.c.0.s8 %v3353
  %v3355 = vlaneseq
  %v3356 = vshrl.u32 %v3355, 7
  %v3357 = vsub.s32 %v3354, %v3356
  %v3358 = vrot.slane %v3344, %v3357
  %v3359 = vcombine.low %v3335, %v3351
  %v3360 = vcombine.high %v3335, %v3351
  %v3361 = vcombine.low %v3342, %v3358
  %v3362 = vcombine.high %v3342, %v3358
  %v3363 = vcombine.low %v2982, %v3070
  %v3365 = vunpack.c.l.s4 1983009808
  %v3366 = vunpack.c.0.s8 %v3365
  %v3367 = vlaneseq
  %v3368 = vshrl.u32 %v3367, 7
  %v3369 = vsub.s32 %v3366, %v3368
  %v3370 = vrot.slane %v3363, %v3369
  %v3371 = vcombine.low %v3026, %v3114
  %v3373 = vunpack.c.l.s4 1983009808
  %v3374 = vunpack.c.0.s8 %v3373
  %v3375 = vlaneseq
  %v3376 = vshrl.u32 %v3375, 7
  %v3377 = vsub.s32 %v3374, %v3376
  %v3378 = vrot.slane %v3371, %v3377
  %v3379 = vcombine.low %v3158, %v3246
  %v3381 = vunpack.c.l.s4 1983009808
  %v3382 = vunpack.c.0.s8 %v3381
  %v3383 = vlaneseq
  %v3384 = vshrl.u32 %v3383, 7
  %v3385 = vsub.s32 %v3382, %v3384
  %v3386 = vrot.slane %v3379, %v3385
  %v3387 = vcombine.low %v3202, %v3290
  %v3389 = vunpack.c.l.s4 1983009808
  %v3390 = vunpack.c.0.s8 %v3389
  %v3391 = vlaneseq
  %v3392 = vshrl.u32 %v3391, 7
  %v3393 = vsub.s32 %v3390, %v3392
  %v3394 = vrot.slane %v3387, %v3393
  %v3395 = vcombine.low %v3370, %v3378
  %v3396 = vcombine.high %v3370, %v3378
  %v3398 = vunpack.c.l.s4 1934713408
  %v3399 = vunpack.c.0.s8 %v3398
  %v3400 = vlaneseq
  %v3401 = vshrl.u32 %v3400, 7
  %v3402 = vsub.s32 %v3399, %v3401
  %v3403 = vrot.slane %v3395, %v3402
  %v3405 = vunpack.c.l.s4 1934713408
  %v3406 = vunpack.c.0.s8 %v3405
  %v3407 = vlaneseq
  %v3408 = vshrl.u32 %v3407, 7
  %v3409 = vsub.s32 %v3406, %v3408
  %v3410 = vrot.slane %v3396, %v3409
  %v3411 = vcombine.low %v3386, %v3394
  %v3412 = vcombine.high %v3386, %v3394
  %v3414 = vunpack.c.l.s4 1934713408
  %v3415 = vunpack.c.0.s8 %v3414
  %v3416 = vlaneseq
  %v3417 = vshrl.u32 %v3416, 7
  %v3418 = vsub.s32 %v3415, %v3417
  %v3419 = vrot.slane %v3411, %v3418
  %v3421 = vunpack.c.l.s4 1934713408
  %v3422 = vunpack.c.0.s8 %v3421
  %v3423 = vlaneseq
  %v3424 = vshrl.u32 %v3423, 7
  %v3425 = vsub.s32 %v3422, %v3424
  %v3426 = vrot.slane %v3412, %v3425
  %v3427 = vcombine.low %v3403, %v3419
  %v3428 = vcombine.high %v3403, %v3419
  %v3429 = vcombine.low %v3410, %v3426
  %v3430 = vcombine.high %v3410, %v3426
  %3433 = vrot.lane.b32.xlu0 %v3360, 8
  %v3434 = vpop.permute.xlu0 %3433
  %3435 = vrot.lane.b32.xlu0 %v3428, 8
  %v3436 = vpop.permute.xlu0 %3435
  %3441 = vrot.lane.b32.xlu0 %v3361, 16
  %v3442 = vpop.permute.xlu0 %3441
  %3443 = vrot.lane.b32.xlu0 %v3429, 16
  %v3444 = vpop.permute.xlu0 %3443
  %3449 = vrot.lane.b32.xlu0 %v3362, 24
  %v3450 = vpop.permute.xlu0 %3449
  %3451 = vrot.lane.b32.xlu0 %v3430, 24
  %v3452 = vpop.permute.xlu0 %3451
  %v3455 = vsel %vm385, %v3359, %v3434
  %v3456 = vsel %vm385, %v3427, %v3436
  %v3457 = vsel %vm1253, %v3455, %v3442
  %v3458 = vsel %vm1253, %v3456, %v3444
  %vm3459 = vcmask 195584
  %v3460 = vsel %vm3459, %v3457, %v3450
  %v3461 = vsel %vm3459, %v3458, %v3452
  %v3462 = vpack.c.bf16 %v3461, %v3460
  %v3463 = vld [vmem:[%s3] sm:$0xf]
  %v3464 = vld [vmem:[%s3 + $0x4] sm:$0xf]
  %v3465 = vld [vmem:[%s3 + $0x8] sm:$0xf]
  %v3466 = vld [vmem:[%s3 + $0xc] sm:$0xf]
  %v3471 = vunpack.c.l.b16 %v3463
  %v3472 = vunpack.c.l.b16 %v3464
  %v3473 = vunpack.c.l.b16 %v3465
  %v3474 = vunpack.c.l.b16 %v3466
  %v3475 = vpack.c.b16 %v3472, %v3471
  %v3476 = vpack.c.b16 %v3474, %v3473
  %v3480 = vsel %vm92, %v3462, 0
  %3482 = vmatprep.subr.bf16.mxu0 0
  %3483 = vmatpush1.bf16.msra.mxu0 %v3475
  %3484 = vmatprep.subr.bf16.mxu0 0
  %3485 = vmatpush1.bf16.msra.mxu0 %v3476
  %3486 = vmatprep.subr.bf16.mxu0 0
  %3487 = vmatpush1.bf16.msra.mxu0 0
  %3488 = vmatprep.subr.bf16.mxu0 0
  %3489 = vmatpush1.bf16.msra.mxu0 0
  %3490 = vmatprep.subr.bf16.mxu0 0
  %3491 = vmatpush1.bf16.msra.mxu0 0
  %3492 = vmatprep.subr.bf16.mxu0 0
  %3493 = vmatpush1.bf16.msra.mxu0 0
  %3494 = vmatprep.subr.bf16.mxu0 0
  %3495 = vmatpush1.bf16.msra.mxu0 0
  %3496 = vmatprep.subr.bf16.mxu0 0
  %3497 = vmatpush1.bf16.msra.mxu0 0
  %3498 = vmatprep.subr.bf16.mxu0 0
  %3499 = vmatpush1.bf16.msra.mxu0 0
  %3500 = vmatprep.subr.bf16.mxu0 0
  %3501 = vmatpush1.bf16.msra.mxu0 0
  %3502 = vmatprep.subr.bf16.mxu0 0
  %3503 = vmatpush1.bf16.msra.mxu0 0
  %3504 = vmatprep.subr.bf16.mxu0 0
  %3505 = vmatpush1.bf16.msra.mxu0 0
  %3506 = vmatprep.subr.bf16.mxu0 0
  %3507 = vmatpush1.bf16.msra.mxu0 0
  %3508 = vmatprep.subr.bf16.mxu0 0
  %3509 = vmatpush1.bf16.msra.mxu0 0
  %3510 = vmatprep.subr.bf16.mxu0 0
  %3511 = vmatpush1.bf16.msra.mxu0 0
  %3512 = vmatprep.subr.bf16.mxu0 0
  %3513 = vmatpush1.bf16.msra.mxu0 0
  %3514 = vmatprep.mubr.bf16.mxu0 0
  %3515 = vmatmul.mubr.bf16.gmra.mrb[0].mxu0 %v3480
  %v3516 = vpop.f32.mrb[0].mxu0
  %v3517 = vadd.f32 0.0, %v3516
  %v3518 = vpop.f32.mrb[0].mxu0
  %v3519 = vpop.f32.mrb[0].mxu0
  %v3520 = vadd.f32 0.0, %v3519
  %v3521 = vpop.f32.mrb[0].mxu0
  %3522 = vdwg.mxu0
  %v3523 = vld [vmem:[%s6] sm:$0xf]
  %v3524 = vld [vmem:[%s6 + $0x4] sm:$0xf]
  %v3525 = vld [vmem:[%s6 + $0x8] sm:$0xf]
  %v3526 = vld [vmem:[%s6 + $0xc] sm:$0xf]
  %v3531 = vunpack.c.l.b16 %v3523
  %v3532 = vunpack.c.l.b16 %v3524
  %v3533 = vunpack.c.l.b16 %v3525
  %v3534 = vunpack.c.l.b16 %v3526
  %v3535 = vpack.c.b16 %v3532, %v3531
  %v3536 = vpack.c.b16 %v3534, %v3533
  %3539 = vmatprep.subr.bf16.mxu0 0
  %3540 = vmatpush1.bf16.msra.mxu0 %v3535
  %3541 = vmatprep.subr.bf16.mxu0 0
  %3542 = vmatpush1.bf16.msra.mxu0 %v3536
  %3543 = vmatprep.subr.bf16.mxu0 0
  %3544 = vmatpush1.bf16.msra.mxu0 0
  %3545 = vmatprep.subr.bf16.mxu0 0
  %3546 = vmatpush1.bf16.msra.mxu0 0
  %3547 = vmatprep.subr.bf16.mxu0 0
  %3548 = vmatpush1.bf16.msra.mxu0 0
  %3549 = vmatprep.subr.bf16.mxu0 0
  %3550 = vmatpush1.bf16.msra.mxu0 0
  %3551 = vmatprep.subr.bf16.mxu0 0
  %3552 = vmatpush1.bf16.msra.mxu0 0
  %3553 = vmatprep.subr.bf16.mxu0 0
  %3554 = vmatpush1.bf16.msra.mxu0 0
  %3555 = vmatprep.subr.bf16.mxu0 0
  %3556 = vmatpush1.bf16.msra.mxu0 0
  %3557 = vmatprep.subr.bf16.mxu0 0
  %3558 = vmatpush1.bf16.msra.mxu0 0
  %3559 = vmatprep.subr.bf16.mxu0 0
  %3560 = vmatpush1.bf16.msra.mxu0 0
  %3561 = vmatprep.subr.bf16.mxu0 0
  %3562 = vmatpush1.bf16.msra.mxu0 0
  %3563 = vmatprep.subr.bf16.mxu0 0
  %3564 = vmatpush1.bf16.msra.mxu0 0
  %3565 = vmatprep.subr.bf16.mxu0 0
  %3566 = vmatpush1.bf16.msra.mxu0 0
  %3567 = vmatprep.subr.bf16.mxu0 0
  %3568 = vmatpush1.bf16.msra.mxu0 0
  %3569 = vmatprep.subr.bf16.mxu0 0
  %3570 = vmatpush1.bf16.msra.mxu0 0
  %3571 = vmatprep.mubr.bf16.mxu0 0
  %3572 = vmatmul.mubr.bf16.gmra.mrb[0].mxu0 %v94
  %v3573 = vpop.f32.mrb[0].mxu0
  %v3574 = vadd.f32 0.0, %v3573
  %v3575 = vpop.f32.mrb[0].mxu0
  %v3576 = vpop.f32.mrb[0].mxu0
  %v3577 = vadd.f32 0.0, %v3576
  %v3578 = vpop.f32.mrb[0].mxu0
  %3579 = vdwg.mxu0
  %v3580 = vadd.f32 %v1866, %v3517
  %v3581 = vadd.f32 %v1867, %v3520
  %v3582 = vadd.f32 %v3580, %v3574
  %v3583 = vadd.f32 %v3581, %v3577
  %vm3584 = vcmp.gt.f32.partialorder %v3582, 0.0
  %vm3585 = vcmp.gt.f32.partialorder %v3583, 0.0
  %v3586 = vmin.f32 %v3582, 0.0
  %v3587 = vmin.f32 %v3583, 0.0
  %v3588 = vmul.f32 %v3586, 1.442695
  %v3589 = vpow.pop %v3588
  %v3590 = vmul.f32 %v3587, 1.442695
  %v3591 = vpow.pop %v3590
  %v3592 = vsub.f32 %v3589, 1.0
  %v3593 = vsub.f32 %v3591, 1.0
  %v3594 = vsel %vm3584, %v3582, %v3592
  %v3595 = vsel %vm3585, %v3583, %v3593
  %3596 = vst.msk [vmem:[%s7] sm:$0xff] %vm173, %v3594
  %3597 = vst.msk [vmem:[%s7 + $0x8] sm:$0xff] %vm173, %v3595
  // Predicated region
  $region30: #{gtran_rel_feat_forward.2} parent=0 // pred_check
    _
  $region31: #{gtran_rel_feat_forward.2} parent=0 // pred_check_branch
    %3599 = sbr.rel (0) target = $region33
  $region32: #{gtran_rel_feat_forward.2} parent=0 // pred_region
    _
  $region33: #{gtran_rel_feat_forward.2} parent=0 // pred_fallthru
    _
  // Predicated region
  $region34: #{gtran_rel_feat_forward.2} parent=0 // pred_check
    _
  $region35: #{gtran_rel_feat_forward.2} parent=0 // pred_check_branch
    %3601 = sbr.rel (0) target = $region37
  $region36: #{gtran_rel_feat_forward.2} parent=0 // pred_region
    _
  $region37: #{gtran_rel_feat_forward.2} parent=0 // pred_fallthru
    _

</llo_original>
